<compile_context>
chip_gen: v7x
topology: tpu7x:2x2x1
jax: 0.10.0
libtpu: 0.0.40
codegen_flags: <defaults>
</compile_context>

<pallas_src>
import jax
import jax.numpy as jnp
from jax import lax
from jax.experimental import pallas as pl
from jax.experimental.pallas import tpu as pltpu

DIM = 8        # matrix dimension of the demo inputs
NSWEEPS = 6    # cyclic-Jacobi sweeps (quadratic convergence; ample for D=8 f32)


def eig_kernel(x_ref, ev_ref, w_ref):
    """One block of TB symmetric matrices per grid step, batched on lanes.

    x_ref : (D, D, TB)  symmetric input matrices (matrix row index on sublanes)
    ev_ref: (D, TB)     eigenvalues
    w_ref : (D, D, TB)  W = U^T  (row i of W = i-th eigenvector)
    """
    d = x_ref.shape[0]
    tb = x_ref.shape[2]
    f32 = jnp.float32

    # Sublane-index iota, built in-kernel (nothing captured by the closure).
    sub = lax.broadcasted_iota(jnp.int32, (d, tb), 0)

    x = x_ref[...].astype(f32)
    rows0 = tuple(x[i] for i in range(d))                        # A, (D,TB) per row
    wrows0 = tuple((sub == i).astype(f32) for i in range(d))     # W = I

    def one_sweep(_, carry):
        rows, wrows = carry
        rows = list(rows)
        wrows = list(wrows)
        for p in range(d - 1):
            mp = sub == p                                        # hoisted per p
            for q in range(p + 1, d):
                mq = sub == q
                rp, rq = rows[p], rows[q]
                app = rp[p:p + 1]                                # (1, TB)
                aqq = rq[q:q + 1]
                apq = rp[q:q + 1]

                # Relative skip threshold: avoids 0/0 and keeps tau^2 finite.
                nz = jnp.abs(apq) > (1e-12 * (jnp.abs(app) + jnp.abs(aqq)) + 1e-30)
                safe_apq = jnp.where(nz, apq, f32(1.0))
                # Angle math on (1,TB).  Approximate reciprocals only perturb
                # the rotation angle; the similarity transform stays exact.
                tau = (aqq - app) * (0.5 * pl.reciprocal(safe_apq, approx=True))
                tau2p1 = tau * tau + 1.0
                r = lax.rsqrt(tau2p1)
                sgn = jnp.where(tau >= 0.0, f32(1.0), f32(-1.0))
                t = sgn * pl.reciprocal(jnp.abs(tau) + tau2p1 * r, approx=True)
                t = jnp.where(nz, t, f32(0.0))
                c = lax.rsqrt(t * t + 1.0)       # accurate rsqrt keeps U orthonormal
                s = t * c
                cb = jnp.broadcast_to(c, (d, tb))   # hoisted, reused many times
                sb = jnp.broadcast_to(s, (d, tb))

                # Rows p, q of B = J^T A (pure VPU, lane-batched).
                bp = cb * rp - sb * rq
                bq = sb * rp + cb * rq
                # Elements p, q of rows p, q of A' = B J.
                bpp = bp[p:p + 1]
                bpq = bp[q:q + 1]
                bqp = bq[p:p + 1]
                bqq = bq[q:q + 1]
                new_rp = jnp.where(mp, c * bpp - s * bpq,
                                   jnp.where(mq, s * bpp + c * bpq, bp))
                new_rq = jnp.where(mp, c * bqp - s * bqq,
                                   jnp.where(mq, s * bqp + c * bqq, bq))

                # Other rows: only elements p and q change; by symmetry of A'
                # the new values are bp[i], bq[i] -> two small selects per row.
                for i in range(d):
                    if i != p and i != q:
                        rows[i] = jnp.where(mp, bp[i:i + 1],
                                            jnp.where(mq, bq[i:i + 1], rows[i]))
                rows[p] = new_rp
                rows[q] = new_rq

                # Eigenvector accumulation on W = U^T:  W <- J^T W.
                # Touches only rows p, q; direct assignment, zero masking.
                wp, wq = wrows[p], wrows[q]
                wrows[p] = cb * wp - sb * wq
                wrows[q] = sb * wp + cb * wq
        return tuple(rows), tuple(wrows)

    rows, wrows = lax.fori_loop(0, NSWEEPS, one_sweep, (rows0, wrows0))

    # Epilogue: one lane-dense eigenvalue store + unmasked full-row W stores.
    ev = jnp.concatenate([rows[i][i:i + 1] for i in range(d)], axis=0)   # (D, TB)
    ev_ref[...] = ev.astype(ev_ref.dtype)
    for i in range(d):
        w_ref[i, :, :] = wrows[i].astype(w_ref.dtype)


@jax.jit
def eig_layer(x):
    """Pallas equivalent of EigLayer.forward: returns (S, U) for batched x."""
    B, D, D2 = x.shape
    assert D == D2, "EigLayer expects square matrices"

    # Lane-tile selection: small batches use 128 lanes (don't waste lanes on
    # identity padding, also yields nb >= 2 sooner so v7x's two TensorCores
    # both get work); larger batches use 256 lanes per grid step.
    tb = 128 if B <= 256 else 256
    nb = (B + tb - 1) // tb
    Bp = nb * tb

    if Bp != B:   # pad the batch with identity matrices (trivial eigenproblems)
        pad = jnp.broadcast_to(jnp.eye(D, dtype=x.dtype)[None], (Bp - B, D, D))
        xp = jnp.concatenate([x, pad], axis=0)
    else:
        xp = x

    # Put the batch on the lane axis: (Bp, D, D) -> (nb, D, D, tb).
    xt = xp.reshape(nb, tb, D, D).transpose(0, 2, 3, 1)

    ev_t, w_t = pl.pallas_call(
        eig_kernel,
        out_shape=(
            jax.ShapeDtypeStruct((nb, D, tb), x.dtype),        # eigenvalues
            jax.ShapeDtypeStruct((nb, D, D, tb), x.dtype),     # W = U^T
        ),
        grid_spec=pltpu.PrefetchScalarGridSpec(
            num_scalar_prefetch=0,
            grid=(nb,),
            in_specs=[
                pl.BlockSpec((pl.Squeezed(), D, D, tb), lambda b: (b, 0, 0, 0)),
            ],
            out_specs=(
                pl.BlockSpec((pl.Squeezed(), D, tb), lambda b: (b, 0, 0)),
                pl.BlockSpec((pl.Squeezed(), D, D, tb), lambda b: (b, 0, 0, 0)),
            ),
        ),
        compiler_params=pltpu.CompilerParams(
            dimension_semantics=("parallel",)),
    )(xt)

    # Back to the (B, D, D) layout the module's consumers expect (plain XLA).
    # Eigenpairs are unsorted, matching torch.eig.
    evals = ev_t.transpose(0, 2, 1).reshape(Bp, D)[:B]          # (B, D)
    Wt = w_t.transpose(0, 3, 1, 2).reshape(Bp, D, D)[:B]        # (B, D, D) = U^T
    U = jnp.swapaxes(Wt, -1, -2)                                # eigenvectors as columns
    S = evals[:, :, None] * jnp.eye(D, dtype=x.dtype)           # diag(eigenvalues)
    return S, U


if __name__ == "__main__":
    key = jax.random.PRNGKey(0)
    B, D = 2, DIM
    m = jax.random.normal(key, (B, D, D), dtype=jnp.float32)
    # Symmetric positive-definite batch (the intended input domain of EigLayer).
    x = jnp.einsum("bij,bkj->bik", m, m) + 0.1 * jnp.eye(D, dtype=jnp.float32)[None]

    S, U = eig_layer(x)
    jax.block_until_ready((S, U))

    # Validate: U S U^T == x and U orthogonal (ordering/sign-free checks).
    recon = jnp.einsum("bij,bjk,blk->bil", U, S, U)
    rel_err = jnp.max(jnp.abs(recon - x)) / jnp.max(jnp.abs(x))
    ortho_err = jnp.max(jnp.abs(jnp.einsum("bji,bjk->bik", U, U)
                                - jnp.eye(D, dtype=jnp.float32)[None]))
    assert rel_err < 1e-3, f"reconstruction error too large: {rel_err}"
    assert ortho_err < 1e-3, f"orthogonality error too large: {ortho_err}"

    print("KERNEL_OK")
</pallas_src>

<mosaic_0001>
module attributes {stable_mosaic.version = 11 : i64} {
  func.func @eig_kernel(%arg0: i32, %arg1: memref<1x8x8x128xf32, #tpu.memory_space<vmem>>, %arg2: memref<1x8x128xf32, #tpu.memory_space<vmem>>, %arg3: memref<1x8x8x128xf32, #tpu.memory_space<vmem>>) attributes {dimension_semantics = [#tpu.dimension_semantics<parallel>], iteration_bounds = array<i64: 1>, scalar_prefetch = 0 : i64, scratch_operands = 0 : i64, tpu.core_type = #tpu.core_type<tc>, window_params = [{transform_indices = @transform_0, window_bounds = array<i64: 1, 8, 8, 128>}, {transform_indices = @transform_1, window_bounds = array<i64: 1, 8, 128>}, {transform_indices = @transform_2, window_bounds = array<i64: 1, 8, 8, 128>}]} {
    %0 = tpu.iota {dimensions = array<i32: 0>} : vector<8x128xi32>
    %c0 = arith.constant 0 : index
    %c0_0 = arith.constant 0 : index
    %c0_1 = arith.constant 0 : index
    %c0_2 = arith.constant 0 : index
    %1 = vector.load %arg1[%c0, %c0_0, %c0_1, %c0_2] : memref<1x8x8x128xf32, #tpu.memory_space<vmem>>, vector<1x8x8x128xf32>
    %2 = vector.shape_cast %1 : vector<1x8x8x128xf32> to vector<8x8x128xf32>
    %3 = vector.extract_strided_slice %2 {offsets = [0, 0, 0], sizes = [1, 8, 128], strides = [1, 1, 1]} : vector<8x8x128xf32> to vector<1x8x128xf32>
    %4 = vector.shape_cast %3 : vector<1x8x128xf32> to vector<8x128xf32>
    %5 = vector.extract_strided_slice %2 {offsets = [1, 0, 0], sizes = [1, 8, 128], strides = [1, 1, 1]} : vector<8x8x128xf32> to vector<1x8x128xf32>
    %6 = vector.shape_cast %5 : vector<1x8x128xf32> to vector<8x128xf32>
    %7 = vector.extract_strided_slice %2 {offsets = [2, 0, 0], sizes = [1, 8, 128], strides = [1, 1, 1]} : vector<8x8x128xf32> to vector<1x8x128xf32>
    %8 = vector.shape_cast %7 : vector<1x8x128xf32> to vector<8x128xf32>
    %9 = vector.extract_strided_slice %2 {offsets = [3, 0, 0], sizes = [1, 8, 128], strides = [1, 1, 1]} : vector<8x8x128xf32> to vector<1x8x128xf32>
    %10 = vector.shape_cast %9 : vector<1x8x128xf32> to vector<8x128xf32>
    %11 = vector.extract_strided_slice %2 {offsets = [4, 0, 0], sizes = [1, 8, 128], strides = [1, 1, 1]} : vector<8x8x128xf32> to vector<1x8x128xf32>
    %12 = vector.shape_cast %11 : vector<1x8x128xf32> to vector<8x128xf32>
    %13 = vector.extract_strided_slice %2 {offsets = [5, 0, 0], sizes = [1, 8, 128], strides = [1, 1, 1]} : vector<8x8x128xf32> to vector<1x8x128xf32>
    %14 = vector.shape_cast %13 : vector<1x8x128xf32> to vector<8x128xf32>
    %15 = vector.extract_strided_slice %2 {offsets = [6, 0, 0], sizes = [1, 8, 128], strides = [1, 1, 1]} : vector<8x8x128xf32> to vector<1x8x128xf32>
    %16 = vector.shape_cast %15 : vector<1x8x128xf32> to vector<8x128xf32>
    %17 = vector.extract_strided_slice %2 {offsets = [7, 0, 0], sizes = [1, 8, 128], strides = [1, 1, 1]} : vector<8x8x128xf32> to vector<1x8x128xf32>
    %18 = vector.shape_cast %17 : vector<1x8x128xf32> to vector<8x128xf32>
    %c0_i32 = arith.constant 0 : i32
    %19 = vector.broadcast %c0_i32 : i32 to vector<8x128xi32>
    %20 = arith.cmpi eq, %0, %19 : vector<8x128xi32>
    %21 = arith.extui %20 : vector<8x128xi1> to vector<8x128xi32>
    %22 = arith.sitofp %21 : vector<8x128xi32> to vector<8x128xf32>
    %c1_i32 = arith.constant 1 : i32
    %23 = vector.broadcast %c1_i32 : i32 to vector<8x128xi32>
    %24 = arith.cmpi eq, %0, %23 : vector<8x128xi32>
    %25 = arith.extui %24 : vector<8x128xi1> to vector<8x128xi32>
    %26 = arith.sitofp %25 : vector<8x128xi32> to vector<8x128xf32>
    %c2_i32 = arith.constant 2 : i32
    %27 = vector.broadcast %c2_i32 : i32 to vector<8x128xi32>
    %28 = arith.cmpi eq, %0, %27 : vector<8x128xi32>
    %29 = arith.extui %28 : vector<8x128xi1> to vector<8x128xi32>
    %30 = arith.sitofp %29 : vector<8x128xi32> to vector<8x128xf32>
    %c3_i32 = arith.constant 3 : i32
    %31 = vector.broadcast %c3_i32 : i32 to vector<8x128xi32>
    %32 = arith.cmpi eq, %0, %31 : vector<8x128xi32>
    %33 = arith.extui %32 : vector<8x128xi1> to vector<8x128xi32>
    %34 = arith.sitofp %33 : vector<8x128xi32> to vector<8x128xf32>
    %c4_i32 = arith.constant 4 : i32
    %35 = vector.broadcast %c4_i32 : i32 to vector<8x128xi32>
    %36 = arith.cmpi eq, %0, %35 : vector<8x128xi32>
    %37 = arith.extui %36 : vector<8x128xi1> to vector<8x128xi32>
    %38 = arith.sitofp %37 : vector<8x128xi32> to vector<8x128xf32>
    %c5_i32 = arith.constant 5 : i32
    %39 = vector.broadcast %c5_i32 : i32 to vector<8x128xi32>
    %40 = arith.cmpi eq, %0, %39 : vector<8x128xi32>
    %41 = arith.extui %40 : vector<8x128xi1> to vector<8x128xi32>
    %42 = arith.sitofp %41 : vector<8x128xi32> to vector<8x128xf32>
    %c6_i32 = arith.constant 6 : i32
    %43 = vector.broadcast %c6_i32 : i32 to vector<8x128xi32>
    %44 = arith.cmpi eq, %0, %43 : vector<8x128xi32>
    %45 = arith.extui %44 : vector<8x128xi1> to vector<8x128xi32>
    %46 = arith.sitofp %45 : vector<8x128xi32> to vector<8x128xf32>
    %c7_i32 = arith.constant 7 : i32
    %47 = vector.broadcast %c7_i32 : i32 to vector<8x128xi32>
    %48 = arith.cmpi eq, %0, %47 : vector<8x128xi32>
    %49 = arith.extui %48 : vector<8x128xi1> to vector<8x128xi32>
    %50 = arith.sitofp %49 : vector<8x128xi32> to vector<8x128xf32>
    %c0_i32_3 = arith.constant 0 : i32
    %c6_i32_4 = arith.constant 6 : i32
    %51 = arith.addi %c0_i32_3, %c6_i32_4 : i32
    %c1_i32_5 = arith.constant 1 : i32
    %52:16 = scf.for %arg4 = %c0_i32_3 to %51 step %c1_i32_5 iter_args(%arg5 = %4, %arg6 = %6, %arg7 = %8, %arg8 = %10, %arg9 = %12, %arg10 = %14, %arg11 = %16, %arg12 = %18, %arg13 = %22, %arg14 = %26, %arg15 = %30, %arg16 = %34, %arg17 = %38, %arg18 = %42, %arg19 = %46, %arg20 = %50) -> (vector<8x128xf32>, vector<8x128xf32>, vector<8x128xf32>, vector<8x128xf32>, vector<8x128xf32>, vector<8x128xf32>, vector<8x128xf32>, vector<8x128xf32>, vector<8x128xf32>, vector<8x128xf32>, vector<8x128xf32>, vector<8x128xf32>, vector<8x128xf32>, vector<8x128xf32>, vector<8x128xf32>, vector<8x128xf32>)  : i32 {
      %c0_i32_34 = arith.constant 0 : i32
      %89 = vector.broadcast %c0_i32_34 : i32 to vector<8x128xi32>
      %90 = arith.cmpi eq, %0, %89 : vector<8x128xi32>
      %c1_i32_35 = arith.constant 1 : i32
      %91 = vector.broadcast %c1_i32_35 : i32 to vector<8x128xi32>
      %92 = arith.cmpi eq, %0, %91 : vector<8x128xi32>
      %93 = vector.extract_strided_slice %arg5 {offsets = [0, 0], sizes = [1, 128], strides = [1, 1]} : vector<8x128xf32> to vector<1x128xf32>
      %94 = vector.extract_strided_slice %arg6 {offsets = [1, 0], sizes = [1, 128], strides = [1, 1]} : vector<8x128xf32> to vector<1x128xf32>
      %95 = vector.extract_strided_slice %arg5 {offsets = [1, 0], sizes = [1, 128], strides = [1, 1]} : vector<8x128xf32> to vector<1x128xf32>
      %96 = math.absf %95 : vector<1x128xf32>
      %97 = math.absf %93 : vector<1x128xf32>
      %98 = math.absf %94 : vector<1x128xf32>
      %99 = arith.addf %97, %98 : vector<1x128xf32>
      %cst = arith.constant 9.99999996E-13 : f32
      %100 = vector.broadcast %cst : f32 to vector<1x128xf32>
      %101 = arith.mulf %100, %99 : vector<1x128xf32>
      %cst_36 = arith.constant 1.000000e-30 : f32
      %102 = vector.broadcast %cst_36 : f32 to vector<1x128xf32>
      %103 = arith.addf %101, %102 : vector<1x128xf32>
      %104 = arith.cmpf ogt, %96, %103 : vector<1x128xf32>
      %cst_37 = arith.constant 1.000000e+00 : f32
      %105 = vector.broadcast %cst_37 : f32 to vector<1x128xf32>
      %106 = arith.select %104, %95, %105 : vector<1x128xi1>, vector<1x128xf32>
      %107 = arith.subf %94, %93 : vector<1x128xf32>
      %108 = tpu.reciprocal %106 {approx = true} : vector<1x128xf32> -> vector<1x128xf32>
      %cst_38 = arith.constant 5.000000e-01 : f32
      %109 = vector.broadcast %cst_38 : f32 to vector<1x128xf32>
      %110 = arith.mulf %109, %108 : vector<1x128xf32>
      %111 = arith.mulf %107, %110 : vector<1x128xf32>
      %112 = arith.mulf %111, %111 : vector<1x128xf32>
      %cst_39 = arith.constant 1.000000e+00 : f32
      %113 = vector.broadcast %cst_39 : f32 to vector<1x128xf32>
      %114 = arith.addf %112, %113 : vector<1x128xf32>
      %115 = math.rsqrt %114 : vector<1x128xf32>
      %cst_40 = arith.constant 0.000000e+00 : f32
      %116 = vector.broadcast %cst_40 : f32 to vector<1x128xf32>
      %117 = arith.cmpf oge, %111, %116 : vector<1x128xf32>
      %cst_41 = arith.constant 1.000000e+00 : f32
      %cst_42 = arith.constant -1.000000e+00 : f32
      %118 = vector.broadcast %cst_41 : f32 to vector<1x128xf32>
      %119 = vector.broadcast %cst_42 : f32 to vector<1x128xf32>
      %120 = arith.select %117, %118, %119 : vector<1x128xi1>, vector<1x128xf32>
      %121 = math.absf %111 : vector<1x128xf32>
      %122 = arith.mulf %114, %115 : vector<1x128xf32>
      %123 = arith.addf %121, %122 : vector<1x128xf32>
      %124 = tpu.reciprocal %123 {approx = true} : vector<1x128xf32> -> vector<1x128xf32>
      %125 = arith.mulf %120, %124 : vector<1x128xf32>
      %cst_43 = arith.constant 0.000000e+00 : f32
      %126 = vector.broadcast %cst_43 : f32 to vector<1x128xf32>
      %127 = arith.select %104, %125, %126 : vector<1x128xi1>, vector<1x128xf32>
      %128 = arith.mulf %127, %127 : vector<1x128xf32>
      %cst_44 = arith.constant 1.000000e+00 : f32
      %129 = vector.broadcast %cst_44 : f32 to vector<1x128xf32>
      %130 = arith.addf %128, %129 : vector<1x128xf32>
      %131 = math.rsqrt %130 : vector<1x128xf32>
      %132 = arith.mulf %127, %131 : vector<1x128xf32>
      %133 = vector.shape_cast %131 : vector<1x128xf32> to vector<1x128xf32>
      %134 = vector.broadcast %133 : vector<1x128xf32> to vector<8x128xf32>
      %135 = vector.shape_cast %132 : vector<1x128xf32> to vector<1x128xf32>
      %136 = vector.broadcast %135 : vector<1x128xf32> to vector<8x128xf32>
      %137 = arith.mulf %134, %arg5 : vector<8x128xf32>
      %138 = arith.mulf %136, %arg6 : vector<8x128xf32>
      %139 = arith.subf %137, %138 : vector<8x128xf32>
      %140 = arith.mulf %136, %arg5 : vector<8x128xf32>
      %141 = arith.mulf %134, %arg6 : vector<8x128xf32>
      %142 = arith.addf %140, %141 : vector<8x128xf32>
      %143 = vector.extract_strided_slice %139 {offsets = [0, 0], sizes = [1, 128], strides = [1, 1]} : vector<8x128xf32> to vector<1x128xf32>
      %144 = vector.extract_strided_slice %139 {offsets = [1, 0], sizes = [1, 128], strides = [1, 1]} : vector<8x128xf32> to vector<1x128xf32>
      %145 = vector.extract_strided_slice %142 {offsets = [0, 0], sizes = [1, 128], strides = [1, 1]} : vector<8x128xf32> to vector<1x128xf32>
      %146 = vector.extract_strided_slice %142 {offsets = [1, 0], sizes = [1, 128], strides = [1, 1]} : vector<8x128xf32> to vector<1x128xf32>
      %147 = arith.mulf %131, %143 : vector<1x128xf32>
      %148 = arith.mulf %132, %144 : vector<1x128xf32>
      %149 = arith.subf %147, %148 : vector<1x128xf32>
      %150 = arith.mulf %132, %143 : vector<1x128xf32>
      %151 = arith.mulf %131, %144 : vector<1x128xf32>
      %152 = arith.addf %150, %151 : vector<1x128xf32>
      %153 = vector.shape_cast %152 : vector<1x128xf32> to vector<1x128xf32>
      %154 = vector.broadcast %153 : vector<1x128xf32> to vector<8x128xf32>
      %155 = arith.select %92, %154, %139 : vector<8x128xi1>, vector<8x128xf32>
      %156 = vector.shape_cast %149 : vector<1x128xf32> to vector<1x128xf32>
      %157 = vector.broadcast %156 : vector<1x128xf32> to vector<8x128xf32>
      %158 = arith.select %90, %157, %155 : vector<8x128xi1>, vector<8x128xf32>
      %159 = arith.mulf %131, %145 : vector<1x128xf32>
      %160 = arith.mulf %132, %146 : vector<1x128xf32>
      %161 = arith.subf %159, %160 : vector<1x128xf32>
      %162 = arith.mulf %132, %145 : vector<1x128xf32>
      %163 = arith.mulf %131, %146 : vector<1x128xf32>
      %164 = arith.addf %162, %163 : vector<1x128xf32>
      %165 = vector.shape_cast %164 : vector<1x128xf32> to vector<1x128xf32>
      %166 = vector.broadcast %165 : vector<1x128xf32> to vector<8x128xf32>
      %167 = arith.select %92, %166, %142 : vector<8x128xi1>, vector<8x128xf32>
      %168 = vector.shape_cast %161 : vector<1x128xf32> to vector<1x128xf32>
      %169 = vector.broadcast %168 : vector<1x128xf32> to vector<8x128xf32>
      %170 = arith.select %90, %169, %167 : vector<8x128xi1>, vector<8x128xf32>
      %171 = vector.extract_strided_slice %139 {offsets = [2, 0], sizes = [1, 128], strides = [1, 1]} : vector<8x128xf32> to vector<1x128xf32>
      %172 = vector.extract_strided_slice %142 {offsets = [2, 0], sizes = [1, 128], strides = [1, 1]} : vector<8x128xf32> to vector<1x128xf32>
      %173 = vector.shape_cast %172 : vector<1x128xf32> to vector<1x128xf32>
      %174 = vector.broadcast %173 : vector<1x128xf32> to vector<8x128xf32>
      %175 = arith.select %92, %174, %arg7 : vector<8x128xi1>, vector<8x128xf32>
      %176 = vector.shape_cast %171 : vector<1x128xf32> to vector<1x128xf32>
      %177 = vector.broadcast %176 : vector<1x128xf32> to vector<8x128xf32>
      %178 = arith.select %90, %177, %175 : vector<8x128xi1>, vector<8x128xf32>
      %179 = vector.extract_strided_slice %139 {offsets = [3, 0], sizes = [1, 128], strides = [1, 1]} : vector<8x128xf32> to vector<1x128xf32>
      %180 = vector.extract_strided_slice %142 {offsets = [3, 0], sizes = [1, 128], strides = [1, 1]} : vector<8x128xf32> to vector<1x128xf32>
      %181 = vector.shape_cast %180 : vector<1x128xf32> to vector<1x128xf32>
      %182 = vector.broadcast %181 : vector<1x128xf32> to vector<8x128xf32>
      %183 = arith.select %92, %182, %arg8 : vector<8x128xi1>, vector<8x128xf32>
      %184 = vector.shape_cast %179 : vector<1x128xf32> to vector<1x128xf32>
      %185 = vector.broadcast %184 : vector<1x128xf32> to vector<8x128xf32>
      %186 = arith.select %90, %185, %183 : vector<8x128xi1>, vector<8x128xf32>
      %187 = vector.extract_strided_slice %139 {offsets = [4, 0], sizes = [1, 128], strides = [1, 1]} : vector<8x128xf32> to vector<1x128xf32>
      %188 = vector.extract_strided_slice %142 {offsets = [4, 0], sizes = [1, 128], strides = [1, 1]} : vector<8x128xf32> to vector<1x128xf32>
      %189 = vector.shape_cast %188 : vector<1x128xf32> to vector<1x128xf32>
      %190 = vector.broadcast %189 : vector<1x128xf32> to vector<8x128xf32>
      %191 = arith.select %92, %190, %arg9 : vector<8x128xi1>, vector<8x128xf32>
      %192 = vector.shape_cast %187 : vector<1x128xf32> to vector<1x128xf32>
      %193 = vector.broadcast %192 : vector<1x128xf32> to vector<8x128xf32>
      %194 = arith.select %90, %193, %191 : vector<8x128xi1>, vector<8x128xf32>
      %195 = vector.extract_strided_slice %139 {offsets = [5, 0], sizes = [1, 128], strides = [1, 1]} : vector<8x128xf32> to vector<1x128xf32>
      %196 = vector.extract_strided_slice %142 {offsets = [5, 0], sizes = [1, 128], strides = [1, 1]} : vector<8x128xf32> to vector<1x128xf32>
      %197 = vector.shape_cast %196 : vector<1x128xf32> to vector<1x128xf32>
      %198 = vector.broadcast %197 : vector<1x128xf32> to vector<8x128xf32>
      %199 = arith.select %92, %198, %arg10 : vector<8x128xi1>, vector<8x128xf32>
      %200 = vector.shape_cast %195 : vector<1x128xf32> to vector<1x128xf32>
      %201 = vector.broadcast %200 : vector<1x128xf32> to vector<8x128xf32>
      %202 = arith.select %90, %201, %199 : vector<8x128xi1>, vector<8x128xf32>
      %203 = vector.extract_strided_slice %139 {offsets = [6, 0], sizes = [1, 128], strides = [1, 1]} : vector<8x128xf32> to vector<1x128xf32>
      %204 = vector.extract_strided_slice %142 {offsets = [6, 0], sizes = [1, 128], strides = [1, 1]} : vector<8x128xf32> to vector<1x128xf32>
      %205 = vector.shape_cast %204 : vector<1x128xf32> to vector<1x128xf32>
      %206 = vector.broadcast %205 : vector<1x128xf32> to vector<8x128xf32>
      %207 = arith.select %92, %206, %arg11 : vector<8x128xi1>, vector<8x128xf32>
      %208 = vector.shape_cast %203 : vector<1x128xf32> to vector<1x128xf32>
      %209 = vector.broadcast %208 : vector<1x128xf32> to vector<8x128xf32>
      %210 = arith.select %90, %209, %207 : vector<8x128xi1>, vector<8x128xf32>
      %211 = vector.extract_strided_slice %139 {offsets = [7, 0], sizes = [1, 128], strides = [1, 1]} : vector<8x128xf32> to vector<1x128xf32>
      %212 = vector.extract_strided_slice %142 {offsets = [7, 0], sizes = [1, 128], strides = [1, 1]} : vector<8x128xf32> to vector<1x128xf32>
      %213 = vector.shape_cast %212 : vector<1x128xf32> to vector<1x128xf32>
      %214 = vector.broadcast %213 : vector<1x128xf32> to vector<8x128xf32>
      %215 = arith.select %92, %214, %arg12 : vector<8x128xi1>, vector<8x128xf32>
      %216 = vector.shape_cast %211 : vector<1x128xf32> to vector<1x128xf32>
      %217 = vector.broadcast %216 : vector<1x128xf32> to vector<8x128xf32>
      %218 = arith.select %90, %217, %215 : vector<8x128xi1>, vector<8x128xf32>
      %219 = arith.mulf %134, %arg13 : vector<8x128xf32>
      %220 = arith.mulf %136, %arg14 : vector<8x128xf32>
      %221 = arith.subf %219, %220 : vector<8x128xf32>
      %222 = arith.mulf %136, %arg13 : vector<8x128xf32>
      %223 = arith.mulf %134, %arg14 : vector<8x128xf32>
      %224 = arith.addf %222, %223 : vector<8x128xf32>
      %c2_i32_45 = arith.constant 2 : i32
      %225 = vector.broadcast %c2_i32_45 : i32 to vector<8x128xi32>
      %226 = arith.cmpi eq, %0, %225 : vector<8x128xi32>
      %227 = vector.extract_strided_slice %158 {offsets = [0, 0], sizes = [1, 128], strides = [1, 1]} : vector<8x128xf32> to vector<1x128xf32>
      %228 = vector.extract_strided_slice %178 {offsets = [2, 0], sizes = [1, 128], strides = [1, 1]} : vector<8x128xf32> to vector<1x128xf32>
      %229 = vector.extract_strided_slice %158 {offsets = [2, 0], sizes = [1, 128], strides = [1, 1]} : vector<8x128xf32> to vector<1x128xf32>
      %230 = math.absf %229 : vector<1x128xf32>
      %231 = math.absf %227 : vector<1x128xf32>
      %232 = math.absf %228 : vector<1x128xf32>
      %233 = arith.addf %231, %232 : vector<1x128xf32>
      %cst_46 = arith.constant 9.99999996E-13 : f32
      %234 = vector.broadcast %cst_46 : f32 to vector<1x128xf32>
      %235 = arith.mulf %234, %233 : vector<1x128xf32>
      %cst_47 = arith.constant 1.000000e-30 : f32
      %236 = vector.broadcast %cst_47 : f32 to vector<1x128xf32>
      %237 = arith.addf %235, %236 : vector<1x128xf32>
      %238 = arith.cmpf ogt, %230, %237 : vector<1x128xf32>
      %cst_48 = arith.constant 1.000000e+00 : f32
      %239 = vector.broadcast %cst_48 : f32 to vector<1x128xf32>
      %240 = arith.select %238, %229, %239 : vector<1x128xi1>, vector<1x128xf32>
      %241 = arith.subf %228, %227 : vector<1x128xf32>
      %242 = tpu.reciprocal %240 {approx = true} : vector<1x128xf32> -> vector<1x128xf32>
      %cst_49 = arith.constant 5.000000e-01 : f32
      %243 = vector.broadcast %cst_49 : f32 to vector<1x128xf32>
      %244 = arith.mulf %243, %242 : vector<1x128xf32>
      %245 = arith.mulf %241, %244 : vector<1x128xf32>
      %246 = arith.mulf %245, %245 : vector<1x128xf32>
      %cst_50 = arith.constant 1.000000e+00 : f32
      %247 = vector.broadcast %cst_50 : f32 to vector<1x128xf32>
      %248 = arith.addf %246, %247 : vector<1x128xf32>
      %249 = math.rsqrt %248 : vector<1x128xf32>
      %cst_51 = arith.constant 0.000000e+00 : f32
      %250 = vector.broadcast %cst_51 : f32 to vector<1x128xf32>
      %251 = arith.cmpf oge, %245, %250 : vector<1x128xf32>
      %cst_52 = arith.constant 1.000000e+00 : f32
      %cst_53 = arith.constant -1.000000e+00 : f32
      %252 = vector.broadcast %cst_52 : f32 to vector<1x128xf32>
      %253 = vector.broadcast %cst_53 : f32 to vector<1x128xf32>
      %254 = arith.select %251, %252, %253 : vector<1x128xi1>, vector<1x128xf32>
      %255 = math.absf %245 : vector<1x128xf32>
      %256 = arith.mulf %248, %249 : vector<1x128xf32>
      %257 = arith.addf %255, %256 : vector<1x128xf32>
      %258 = tpu.reciprocal %257 {approx = true} : vector<1x128xf32> -> vector<1x128xf32>
      %259 = arith.mulf %254, %258 : vector<1x128xf32>
      %cst_54 = arith.constant 0.000000e+00 : f32
      %260 = vector.broadcast %cst_54 : f32 to vector<1x128xf32>
      %261 = arith.select %238, %259, %260 : vector<1x128xi1>, vector<1x128xf32>
      %262 = arith.mulf %261, %261 : vector<1x128xf32>
      %cst_55 = arith.constant 1.000000e+00 : f32
      %263 = vector.broadcast %cst_55 : f32 to vector<1x128xf32>
      %264 = arith.addf %262, %263 : vector<1x128xf32>
      %265 = math.rsqrt %264 : vector<1x128xf32>
      %266 = arith.mulf %261, %265 : vector<1x128xf32>
      %267 = vector.shape_cast %265 : vector<1x128xf32> to vector<1x128xf32>
      %268 = vector.broadcast %267 : vector<1x128xf32> to vector<8x128xf32>
      %269 = vector.shape_cast %266 : vector<1x128xf32> to vector<1x128xf32>
      %270 = vector.broadcast %269 : vector<1x128xf32> to vector<8x128xf32>
      %271 = arith.mulf %268, %158 : vector<8x128xf32>
      %272 = arith.mulf %270, %178 : vector<8x128xf32>
      %273 = arith.subf %271, %272 : vector<8x128xf32>
      %274 = arith.mulf %270, %158 : vector<8x128xf32>
      %275 = arith.mulf %268, %178 : vector<8x128xf32>
      %276 = arith.addf %274, %275 : vector<8x128xf32>
      %277 = vector.extract_strided_slice %273 {offsets = [0, 0], sizes = [1, 128], strides = [1, 1]} : vector<8x128xf32> to vector<1x128xf32>
      %278 = vector.extract_strided_slice %273 {offsets = [2, 0], sizes = [1, 128], strides = [1, 1]} : vector<8x128xf32> to vector<1x128xf32>
      %279 = vector.extract_strided_slice %276 {offsets = [0, 0], sizes = [1, 128], strides = [1, 1]} : vector<8x128xf32> to vector<1x128xf32>
      %280 = vector.extract_strided_slice %276 {offsets = [2, 0], sizes = [1, 128], strides = [1, 1]} : vector<8x128xf32> to vector<1x128xf32>
      %281 = arith.mulf %265, %277 : vector<1x128xf32>
      %282 = arith.mulf %266, %278 : vector<1x128xf32>
      %283 = arith.subf %281, %282 : vector<1x128xf32>
      %284 = arith.mulf %266, %277 : vector<1x128xf32>
      %285 = arith.mulf %265, %278 : vector<1x128xf32>
      %286 = arith.addf %284, %285 : vector<1x128xf32>
      %287 = vector.shape_cast %286 : vector<1x128xf32> to vector<1x128xf32>
      %288 = vector.broadcast %287 : vector<1x128xf32> to vector<8x128xf32>
      %289 = arith.select %226, %288, %273 : vector<8x128xi1>, vector<8x128xf32>
      %290 = vector.shape_cast %283 : vector<1x128xf32> to vector<1x128xf32>
      %291 = vector.broadcast %290 : vector<1x128xf32> to vector<8x128xf32>
      %292 = arith.select %90, %291, %289 : vector<8x128xi1>, vector<8x128xf32>
      %293 = arith.mulf %265, %279 : vector<1x128xf32>
      %294 = arith.mulf %266, %280 : vector<1x128xf32>
      %295 = arith.subf %293, %294 : vector<1x128xf32>
      %296 = arith.mulf %266, %279 : vector<1x128xf32>
      %297 = arith.mulf %265, %280 : vector<1x128xf32>
      %298 = arith.addf %296, %297 : vector<1x128xf32>
      %299 = vector.shape_cast %298 : vector<1x128xf32> to vector<1x128xf32>
      %300 = vector.broadcast %299 : vector<1x128xf32> to vector<8x128xf32>
      %301 = arith.select %226, %300, %276 : vector<8x128xi1>, vector<8x128xf32>
      %302 = vector.shape_cast %295 : vector<1x128xf32> to vector<1x128xf32>
      %303 = vector.broadcast %302 : vector<1x128xf32> to vector<8x128xf32>
      %304 = arith.select %90, %303, %301 : vector<8x128xi1>, vector<8x128xf32>
      %305 = vector.extract_strided_slice %273 {offsets = [1, 0], sizes = [1, 128], strides = [1, 1]} : vector<8x128xf32> to vector<1x128xf32>
      %306 = vector.extract_strided_slice %276 {offsets = [1, 0], sizes = [1, 128], strides = [1, 1]} : vector<8x128xf32> to vector<1x128xf32>
      %307 = vector.shape_cast %306 : vector<1x128xf32> to vector<1x128xf32>
      %308 = vector.broadcast %307 : vector<1x128xf32> to vector<8x128xf32>
      %309 = arith.select %226, %308, %170 : vector<8x128xi1>, vector<8x128xf32>
      %310 = vector.shape_cast %305 : vector<1x128xf32> to vector<1x128xf32>
      %311 = vector.broadcast %310 : vector<1x128xf32> to vector<8x128xf32>
      %312 = arith.select %90, %311, %309 : vector<8x128xi1>, vector<8x128xf32>
      %313 = vector.extract_strided_slice %273 {offsets = [3, 0], sizes = [1, 128], strides = [1, 1]} : vector<8x128xf32> to vector<1x128xf32>
      %314 = vector.extract_strided_slice %276 {offsets = [3, 0], sizes = [1, 128], strides = [1, 1]} : vector<8x128xf32> to vector<1x128xf32>
      %315 = vector.shape_cast %314 : vector<1x128xf32> to vector<1x128xf32>
      %316 = vector.broadcast %315 : vector<1x128xf32> to vector<8x128xf32>
      %317 = arith.select %226, %316, %186 : vector<8x128xi1>, vector<8x128xf32>
      %318 = vector.shape_cast %313 : vector<1x128xf32> to vector<1x128xf32>
      %319 = vector.broadcast %318 : vector<1x128xf32> to vector<8x128xf32>
      %320 = arith.select %90, %319, %317 : vector<8x128xi1>, vector<8x128xf32>
      %321 = vector.extract_strided_slice %273 {offsets = [4, 0], sizes = [1, 128], strides = [1, 1]} : vector<8x128xf32> to vector<1x128xf32>
      %322 = vector.extract_strided_slice %276 {offsets = [4, 0], sizes = [1, 128], strides = [1, 1]} : vector<8x128xf32> to vector<1x128xf32>
      %323 = vector.shape_cast %322 : vector<1x128xf32> to vector<1x128xf32>
      %324 = vector.broadcast %323 : vector<1x128xf32> to vector<8x128xf32>
      %325 = arith.select %226, %324, %194 : vector<8x128xi1>, vector<8x128xf32>
      %326 = vector.shape_cast %321 : vector<1x128xf32> to vector<1x128xf32>
      %327 = vector.broadcast %326 : vector<1x128xf32> to vector<8x128xf32>
      %328 = arith.select %90, %327, %325 : vector<8x128xi1>, vector<8x128xf32>
      %329 = vector.extract_strided_slice %273 {offsets = [5, 0], sizes = [1, 128], strides = [1, 1]} : vector<8x128xf32> to vector<1x128xf32>
      %330 = vector.extract_strided_slice %276 {offsets = [5, 0], sizes = [1, 128], strides = [1, 1]} : vector<8x128xf32> to vector<1x128xf32>
      %331 = vector.shape_cast %330 : vector<1x128xf32> to vector<1x128xf32>
      %332 = vector.broadcast %331 : vector<1x128xf32> to vector<8x128xf32>
      %333 = arith.select %226, %332, %202 : vector<8x128xi1>, vector<8x128xf32>
      %334 = vector.shape_cast %329 : vector<1x128xf32> to vector<1x128xf32>
      %335 = vector.broadcast %334 : vector<1x128xf32> to vector<8x128xf32>
      %336 = arith.select %90, %335, %333 : vector<8x128xi1>, vector<8x128xf32>
      %337 = vector.extract_strided_slice %273 {offsets = [6, 0], sizes = [1, 128], strides = [1, 1]} : vector<8x128xf32> to vector<1x128xf32>
      %338 = vector.extract_strided_slice %276 {offsets = [6, 0], sizes = [1, 128], strides = [1, 1]} : vector<8x128xf32> to vector<1x128xf32>
      %339 = vector.shape_cast %338 : vector<1x128xf32> to vector<1x128xf32>
      %340 = vector.broadcast %339 : vector<1x128xf32> to vector<8x128xf32>
      %341 = arith.select %226, %340, %210 : vector<8x128xi1>, vector<8x128xf32>
      %342 = vector.shape_cast %337 : vector<1x128xf32> to vector<1x128xf32>
      %343 = vector.broadcast %342 : vector<1x128xf32> to vector<8x128xf32>
      %344 = arith.select %90, %343, %341 : vector<8x128xi1>, vector<8x128xf32>
      %345 = vector.extract_strided_slice %273 {offsets = [7, 0], sizes = [1, 128], strides = [1, 1]} : vector<8x128xf32> to vector<1x128xf32>
      %346 = vector.extract_strided_slice %276 {offsets = [7, 0], sizes = [1, 128], strides = [1, 1]} : vector<8x128xf32> to vector<1x128xf32>
      %347 = vector.shape_cast %346 : vector<1x128xf32> to vector<1x128xf32>
      %348 = vector.broadcast %347 : vector<1x128xf32> to vector<8x128xf32>
      %349 = arith.select %226, %348, %218 : vector<8x128xi1>, vector<8x128xf32>
      %350 = vector.shape_cast %345 : vector<1x128xf32> to vector<1x128xf32>
      %351 = vector.broadcast %350 : vector<1x128xf32> to vector<8x128xf32>
      %352 = arith.select %90, %351, %349 : vector<8x128xi1>, vector<8x128xf32>
      %353 = arith.mulf %268, %221 : vector<8x128xf32>
      %354 = arith.mulf %270, %arg15 : vector<8x128xf32>
      %355 = arith.subf %353, %354 : vector<8x128xf32>
      %356 = arith.mulf %270, %221 : vector<8x128xf32>
      %357 = arith.mulf %268, %arg15 : vector<8x128xf32>
      %358 = arith.addf %356, %357 : vector<8x128xf32>
      %c3_i32_56 = arith.constant 3 : i32
      %359 = vector.broadcast %c3_i32_56 : i32 to vector<8x128xi32>
      %360 = arith.cmpi eq, %0, %359 : vector<8x128xi32>
      %361 = vector.extract_strided_slice %292 {offsets = [0, 0], sizes = [1, 128], strides = [1, 1]} : vector<8x128xf32> to vector<1x128xf32>
      %362 = vector.extract_strided_slice %320 {offsets = [3, 0], sizes = [1, 128], strides = [1, 1]} : vector<8x128xf32> to vector<1x128xf32>
      %363 = vector.extract_strided_slice %292 {offsets = [3, 0], sizes = [1, 128], strides = [1, 1]} : vector<8x128xf32> to vector<1x128xf32>
      %364 = math.absf %363 : vector<1x128xf32>
      %365 = math.absf %361 : vector<1x128xf32>
      %366 = math.absf %362 : vector<1x128xf32>
      %367 = arith.addf %365, %366 : vector<1x128xf32>
      %cst_57 = arith.constant 9.99999996E-13 : f32
      %368 = vector.broadcast %cst_57 : f32 to vector<1x128xf32>
      %369 = arith.mulf %368, %367 : vector<1x128xf32>
      %cst_58 = arith.constant 1.000000e-30 : f32
      %370 = vector.broadcast %cst_58 : f32 to vector<1x128xf32>
      %371 = arith.addf %369, %370 : vector<1x128xf32>
      %372 = arith.cmpf ogt, %364, %371 : vector<1x128xf32>
      %cst_59 = arith.constant 1.000000e+00 : f32
      %373 = vector.broadcast %cst_59 : f32 to vector<1x128xf32>
      %374 = arith.select %372, %363, %373 : vector<1x128xi1>, vector<1x128xf32>
      %375 = arith.subf %362, %361 : vector<1x128xf32>
      %376 = tpu.reciprocal %374 {approx = true} : vector<1x128xf32> -> vector<1x128xf32>
      %cst_60 = arith.constant 5.000000e-01 : f32
      %377 = vector.broadcast %cst_60 : f32 to vector<1x128xf32>
      %378 = arith.mulf %377, %376 : vector<1x128xf32>
      %379 = arith.mulf %375, %378 : vector<1x128xf32>
      %380 = arith.mulf %379, %379 : vector<1x128xf32>
      %cst_61 = arith.constant 1.000000e+00 : f32
      %381 = vector.broadcast %cst_61 : f32 to vector<1x128xf32>
      %382 = arith.addf %380, %381 : vector<1x128xf32>
      %383 = math.rsqrt %382 : vector<1x128xf32>
      %cst_62 = arith.constant 0.000000e+00 : f32
      %384 = vector.broadcast %cst_62 : f32 to vector<1x128xf32>
      %385 = arith.cmpf oge, %379, %384 : vector<1x128xf32>
      %cst_63 = arith.constant 1.000000e+00 : f32
      %cst_64 = arith.constant -1.000000e+00 : f32
      %386 = vector.broadcast %cst_63 : f32 to vector<1x128xf32>
      %387 = vector.broadcast %cst_64 : f32 to vector<1x128xf32>
      %388 = arith.select %385, %386, %387 : vector<1x128xi1>, vector<1x128xf32>
      %389 = math.absf %379 : vector<1x128xf32>
      %390 = arith.mulf %382, %383 : vector<1x128xf32>
      %391 = arith.addf %389, %390 : vector<1x128xf32>
      %392 = tpu.reciprocal %391 {approx = true} : vector<1x128xf32> -> vector<1x128xf32>
      %393 = arith.mulf %388, %392 : vector<1x128xf32>
      %cst_65 = arith.constant 0.000000e+00 : f32
      %394 = vector.broadcast %cst_65 : f32 to vector<1x128xf32>
      %395 = arith.select %372, %393, %394 : vector<1x128xi1>, vector<1x128xf32>
      %396 = arith.mulf %395, %395 : vector<1x128xf32>
      %cst_66 = arith.constant 1.000000e+00 : f32
      %397 = vector.broadcast %cst_66 : f32 to vector<1x128xf32>
      %398 = arith.addf %396, %397 : vector<1x128xf32>
      %399 = math.rsqrt %398 : vector<1x128xf32>
      %400 = arith.mulf %395, %399 : vector<1x128xf32>
      %401 = vector.shape_cast %399 : vector<1x128xf32> to vector<1x128xf32>
      %402 = vector.broadcast %401 : vector<1x128xf32> to vector<8x128xf32>
      %403 = vector.shape_cast %400 : vector<1x128xf32> to vector<1x128xf32>
      %404 = vector.broadcast %403 : vector<1x128xf32> to vector<8x128xf32>
      %405 = arith.mulf %402, %292 : vector<8x128xf32>
      %406 = arith.mulf %404, %320 : vector<8x128xf32>
      %407 = arith.subf %405, %406 : vector<8x128xf32>
      %408 = arith.mulf %404, %292 : vector<8x128xf32>
      %409 = arith.mulf %402, %320 : vector<8x128xf32>
      %410 = arith.addf %408, %409 : vector<8x128xf32>
      %411 = vector.extract_strided_slice %407 {offsets = [0, 0], sizes = [1, 128], strides = [1, 1]} : vector<8x128xf32> to vector<1x128xf32>
      %412 = vector.extract_strided_slice %407 {offsets = [3, 0], sizes = [1, 128], strides = [1, 1]} : vector<8x128xf32> to vector<1x128xf32>
      %413 = vector.extract_strided_slice %410 {offsets = [0, 0], sizes = [1, 128], strides = [1, 1]} : vector<8x128xf32> to vector<1x128xf32>
      %414 = vector.extract_strided_slice %410 {offsets = [3, 0], sizes = [1, 128], strides = [1, 1]} : vector<8x128xf32> to vector<1x128xf32>
      %415 = arith.mulf %399, %411 : vector<1x128xf32>
      %416 = arith.mulf %400, %412 : vector<1x128xf32>
      %417 = arith.subf %415, %416 : vector<1x128xf32>
      %418 = arith.mulf %400, %411 : vector<1x128xf32>
      %419 = arith.mulf %399, %412 : vector<1x128xf32>
      %420 = arith.addf %418, %419 : vector<1x128xf32>
      %421 = vector.shape_cast %420 : vector<1x128xf32> to vector<1x128xf32>
      %422 = vector.broadcast %421 : vector<1x128xf32> to vector<8x128xf32>
      %423 = arith.select %360, %422, %407 : vector<8x128xi1>, vector<8x128xf32>
      %424 = vector.shape_cast %417 : vector<1x128xf32> to vector<1x128xf32>
      %425 = vector.broadcast %424 : vector<1x128xf32> to vector<8x128xf32>
      %426 = arith.select %90, %425, %423 : vector<8x128xi1>, vector<8x128xf32>
      %427 = arith.mulf %399, %413 : vector<1x128xf32>
      %428 = arith.mulf %400, %414 : vector<1x128xf32>
      %429 = arith.subf %427, %428 : vector<1x128xf32>
      %430 = arith.mulf %400, %413 : vector<1x128xf32>
      %431 = arith.mulf %399, %414 : vector<1x128xf32>
      %432 = arith.addf %430, %431 : vector<1x128xf32>
      %433 = vector.shape_cast %432 : vector<1x128xf32> to vector<1x128xf32>
      %434 = vector.broadcast %433 : vector<1x128xf32> to vector<8x128xf32>
      %435 = arith.select %360, %434, %410 : vector<8x128xi1>, vector<8x128xf32>
      %436 = vector.shape_cast %429 : vector<1x128xf32> to vector<1x128xf32>
      %437 = vector.broadcast %436 : vector<1x128xf32> to vector<8x128xf32>
      %438 = arith.select %90, %437, %435 : vector<8x128xi1>, vector<8x128xf32>
      %439 = vector.extract_strided_slice %407 {offsets = [1, 0], sizes = [1, 128], strides = [1, 1]} : vector<8x128xf32> to vector<1x128xf32>
      %440 = vector.extract_strided_slice %410 {offsets = [1, 0], sizes = [1, 128], strides = [1, 1]} : vector<8x128xf32> to vector<1x128xf32>
      %441 = vector.shape_cast %440 : vector<1x128xf32> to vector<1x128xf32>
      %442 = vector.broadcast %441 : vector<1x128xf32> to vector<8x128xf32>
      %443 = arith.select %360, %442, %312 : vector<8x128xi1>, vector<8x128xf32>
      %444 = vector.shape_cast %439 : vector<1x128xf32> to vector<1x128xf32>
      %445 = vector.broadcast %444 : vector<1x128xf32> to vector<8x128xf32>
      %446 = arith.select %90, %445, %443 : vector<8x128xi1>, vector<8x128xf32>
      %447 = vector.extract_strided_slice %407 {offsets = [2, 0], sizes = [1, 128], strides = [1, 1]} : vector<8x128xf32> to vector<1x128xf32>
      %448 = vector.extract_strided_slice %410 {offsets = [2, 0], sizes = [1, 128], strides = [1, 1]} : vector<8x128xf32> to vector<1x128xf32>
      %449 = vector.shape_cast %448 : vector<1x128xf32> to vector<1x128xf32>
      %450 = vector.broadcast %449 : vector<1x128xf32> to vector<8x128xf32>
      %451 = arith.select %360, %450, %304 : vector<8x128xi1>, vector<8x128xf32>
      %452 = vector.shape_cast %447 : vector<1x128xf32> to vector<1x128xf32>
      %453 = vector.broadcast %452 : vector<1x128xf32> to vector<8x128xf32>
      %454 = arith.select %90, %453, %451 : vector<8x128xi1>, vector<8x128xf32>
      %455 = vector.extract_strided_slice %407 {offsets = [4, 0], sizes = [1, 128], strides = [1, 1]} : vector<8x128xf32> to vector<1x128xf32>
      %456 = vector.extract_strided_slice %410 {offsets = [4, 0], sizes = [1, 128], strides = [1, 1]} : vector<8x128xf32> to vector<1x128xf32>
      %457 = vector.shape_cast %456 : vector<1x128xf32> to vector<1x128xf32>
      %458 = vector.broadcast %457 : vector<1x128xf32> to vector<8x128xf32>
      %459 = arith.select %360, %458, %328 : vector<8x128xi1>, vector<8x128xf32>
      %460 = vector.shape_cast %455 : vector<1x128xf32> to vector<1x128xf32>
      %461 = vector.broadcast %460 : vector<1x128xf32> to vector<8x128xf32>
      %462 = arith.select %90, %461, %459 : vector<8x128xi1>, vector<8x128xf32>
      %463 = vector.extract_strided_slice %407 {offsets = [5, 0], sizes = [1, 128], strides = [1, 1]} : vector<8x128xf32> to vector<1x128xf32>
      %464 = vector.extract_strided_slice %410 {offsets = [5, 0], sizes = [1, 128], strides = [1, 1]} : vector<8x128xf32> to vector<1x128xf32>
      %465 = vector.shape_cast %464 : vector<1x128xf32> to vector<1x128xf32>
      %466 = vector.broadcast %465 : vector<1x128xf32> to vector<8x128xf32>
      %467 = arith.select %360, %466, %336 : vector<8x128xi1>, vector<8x128xf32>
      %468 = vector.shape_cast %463 : vector<1x128xf32> to vector<1x128xf32>
      %469 = vector.broadcast %468 : vector<1x128xf32> to vector<8x128xf32>
      %470 = arith.select %90, %469, %467 : vector<8x128xi1>, vector<8x128xf32>
      %471 = vector.extract_strided_slice %407 {offsets = [6, 0], sizes = [1, 128], strides = [1, 1]} : vector<8x128xf32> to vector<1x128xf32>
      %472 = vector.extract_strided_slice %410 {offsets = [6, 0], sizes = [1, 128], strides = [1, 1]} : vector<8x128xf32> to vector<1x128xf32>
      %473 = vector.shape_cast %472 : vector<1x128xf32> to vector<1x128xf32>
      %474 = vector.broadcast %473 : vector<1x128xf32> to vector<8x128xf32>
      %475 = arith.select %360, %474, %344 : vector<8x128xi1>, vector<8x128xf32>
      %476 = vector.shape_cast %471 : vector<1x128xf32> to vector<1x128xf32>
      %477 = vector.broadcast %476 : vector<1x128xf32> to vector<8x128xf32>
      %478 = arith.select %90, %477, %475 : vector<8x128xi1>, vector<8x128xf32>
      %479 = vector.extract_strided_slice %407 {offsets = [7, 0], sizes = [1, 128], strides = [1, 1]} : vector<8x128xf32> to vector<1x128xf32>
      %480 = vector.extract_strided_slice %410 {offsets = [7, 0], sizes = [1, 128], strides = [1, 1]} : vector<8x128xf32> to vector<1x128xf32>
      %481 = vector.shape_cast %480 : vector<1x128xf32> to vector<1x128xf32>
      %482 = vector.broadcast %481 : vector<1x128xf32> to vector<8x128xf32>
      %483 = arith.select %360, %482, %352 : vector<8x128xi1>, vector<8x128xf32>
      %484 = vector.shape_cast %479 : vector<1x128xf32> to vector<1x128xf32>
      %485 = vector.broadcast %484 : vector<1x128xf32> to vector<8x128xf32>
      %486 = arith.select %90, %485, %483 : vector<8x128xi1>, vector<8x128xf32>
      %487 = arith.mulf %402, %355 : vector<8x128xf32>
      %488 = arith.mulf %404, %arg16 : vector<8x128xf32>
      %489 = arith.subf %487, %488 : vector<8x128xf32>
      %490 = arith.mulf %404, %355 : vector<8x128xf32>
      %491 = arith.mulf %402, %arg16 : vector<8x128xf32>
      %492 = arith.addf %490, %491 : vector<8x128xf32>
      %c4_i32_67 = arith.constant 4 : i32
      %493 = vector.broadcast %c4_i32_67 : i32 to vector<8x128xi32>
      %494 = arith.cmpi eq, %0, %493 : vector<8x128xi32>
      %495 = vector.extract_strided_slice %426 {offsets = [0, 0], sizes = [1, 128], strides = [1, 1]} : vector<8x128xf32> to vector<1x128xf32>
      %496 = vector.extract_strided_slice %462 {offsets = [4, 0], sizes = [1, 128], strides = [1, 1]} : vector<8x128xf32> to vector<1x128xf32>
      %497 = vector.extract_strided_slice %426 {offsets = [4, 0], sizes = [1, 128], strides = [1, 1]} : vector<8x128xf32> to vector<1x128xf32>
      %498 = math.absf %497 : vector<1x128xf32>
      %499 = math.absf %495 : vector<1x128xf32>
      %500 = math.absf %496 : vector<1x128xf32>
      %501 = arith.addf %499, %500 : vector<1x128xf32>
      %cst_68 = arith.constant 9.99999996E-13 : f32
      %502 = vector.broadcast %cst_68 : f32 to vector<1x128xf32>
      %503 = arith.mulf %502, %501 : vector<1x128xf32>
      %cst_69 = arith.constant 1.000000e-30 : f32
      %504 = vector.broadcast %cst_69 : f32 to vector<1x128xf32>
      %505 = arith.addf %503, %504 : vector<1x128xf32>
      %506 = arith.cmpf ogt, %498, %505 : vector<1x128xf32>
      %cst_70 = arith.constant 1.000000e+00 : f32
      %507 = vector.broadcast %cst_70 : f32 to vector<1x128xf32>
      %508 = arith.select %506, %497, %507 : vector<1x128xi1>, vector<1x128xf32>
      %509 = arith.subf %496, %495 : vector<1x128xf32>
      %510 = tpu.reciprocal %508 {approx = true} : vector<1x128xf32> -> vector<1x128xf32>
      %cst_71 = arith.constant 5.000000e-01 : f32
      %511 = vector.broadcast %cst_71 : f32 to vector<1x128xf32>
      %512 = arith.mulf %511, %510 : vector<1x128xf32>
      %513 = arith.mulf %509, %512 : vector<1x128xf32>
      %514 = arith.mulf %513, %513 : vector<1x128xf32>
      %cst_72 = arith.constant 1.000000e+00 : f32
      %515 = vector.broadcast %cst_72 : f32 to vector<1x128xf32>
      %516 = arith.addf %514, %515 : vector<1x128xf32>
      %517 = math.rsqrt %516 : vector<1x128xf32>
      %cst_73 = arith.constant 0.000000e+00 : f32
      %518 = vector.broadcast %cst_73 : f32 to vector<1x128xf32>
      %519 = arith.cmpf oge, %513, %518 : vector<1x128xf32>
      %cst_74 = arith.constant 1.000000e+00 : f32
      %cst_75 = arith.constant -1.000000e+00 : f32
      %520 = vector.broadcast %cst_74 : f32 to vector<1x128xf32>
      %521 = vector.broadcast %cst_75 : f32 to vector<1x128xf32>
      %522 = arith.select %519, %520, %521 : vector<1x128xi1>, vector<1x128xf32>
      %523 = math.absf %513 : vector<1x128xf32>
      %524 = arith.mulf %516, %517 : vector<1x128xf32>
      %525 = arith.addf %523, %524 : vector<1x128xf32>
      %526 = tpu.reciprocal %525 {approx = true} : vector<1x128xf32> -> vector<1x128xf32>
      %527 = arith.mulf %522, %526 : vector<1x128xf32>
      %cst_76 = arith.constant 0.000000e+00 : f32
      %528 = vector.broadcast %cst_76 : f32 to vector<1x128xf32>
      %529 = arith.select %506, %527, %528 : vector<1x128xi1>, vector<1x128xf32>
      %530 = arith.mulf %529, %529 : vector<1x128xf32>
      %cst_77 = arith.constant 1.000000e+00 : f32
      %531 = vector.broadcast %cst_77 : f32 to vector<1x128xf32>
      %532 = arith.addf %530, %531 : vector<1x128xf32>
      %533 = math.rsqrt %532 : vector<1x128xf32>
      %534 = arith.mulf %529, %533 : vector<1x128xf32>
      %535 = vector.shape_cast %533 : vector<1x128xf32> to vector<1x128xf32>
      %536 = vector.broadcast %535 : vector<1x128xf32> to vector<8x128xf32>
      %537 = vector.shape_cast %534 : vector<1x128xf32> to vector<1x128xf32>
      %538 = vector.broadcast %537 : vector<1x128xf32> to vector<8x128xf32>
      %539 = arith.mulf %536, %426 : vector<8x128xf32>
      %540 = arith.mulf %538, %462 : vector<8x128xf32>
      %541 = arith.subf %539, %540 : vector<8x128xf32>
      %542 = arith.mulf %538, %426 : vector<8x128xf32>
      %543 = arith.mulf %536, %462 : vector<8x128xf32>
      %544 = arith.addf %542, %543 : vector<8x128xf32>
      %545 = vector.extract_strided_slice %541 {offsets = [0, 0], sizes = [1, 128], strides = [1, 1]} : vector<8x128xf32> to vector<1x128xf32>
      %546 = vector.extract_strided_slice %541 {offsets = [4, 0], sizes = [1, 128], strides = [1, 1]} : vector<8x128xf32> to vector<1x128xf32>
      %547 = vector.extract_strided_slice %544 {offsets = [0, 0], sizes = [1, 128], strides = [1, 1]} : vector<8x128xf32> to vector<1x128xf32>
      %548 = vector.extract_strided_slice %544 {offsets = [4, 0], sizes = [1, 128], strides = [1, 1]} : vector<8x128xf32> to vector<1x128xf32>
      %549 = arith.mulf %533, %545 : vector<1x128xf32>
      %550 = arith.mulf %534, %546 : vector<1x128xf32>
      %551 = arith.subf %549, %550 : vector<1x128xf32>
      %552 = arith.mulf %534, %545 : vector<1x128xf32>
      %553 = arith.mulf %533, %546 : vector<1x128xf32>
      %554 = arith.addf %552, %553 : vector<1x128xf32>
      %555 = vector.shape_cast %554 : vector<1x128xf32> to vector<1x128xf32>
      %556 = vector.broadcast %555 : vector<1x128xf32> to vector<8x128xf32>
      %557 = arith.select %494, %556, %541 : vector<8x128xi1>, vector<8x128xf32>
      %558 = vector.shape_cast %551 : vector<1x128xf32> to vector<1x128xf32>
      %559 = vector.broadcast %558 : vector<1x128xf32> to vector<8x128xf32>
      %560 = arith.select %90, %559, %557 : vector<8x128xi1>, vector<8x128xf32>
      %561 = arith.mulf %533, %547 : vector<1x128xf32>
      %562 = arith.mulf %534, %548 : vector<1x128xf32>
      %563 = arith.subf %561, %562 : vector<1x128xf32>
      %564 = arith.mulf %534, %547 : vector<1x128xf32>
      %565 = arith.mulf %533, %548 : vector<1x128xf32>
      %566 = arith.addf %564, %565 : vector<1x128xf32>
      %567 = vector.shape_cast %566 : vector<1x128xf32> to vector<1x128xf32>
      %568 = vector.broadcast %567 : vector<1x128xf32> to vector<8x128xf32>
      %569 = arith.select %494, %568, %544 : vector<8x128xi1>, vector<8x128xf32>
      %570 = vector.shape_cast %563 : vector<1x128xf32> to vector<1x128xf32>
      %571 = vector.broadcast %570 : vector<1x128xf32> to vector<8x128xf32>
      %572 = arith.select %90, %571, %569 : vector<8x128xi1>, vector<8x128xf32>
      %573 = vector.extract_strided_slice %541 {offsets = [1, 0], sizes = [1, 128], strides = [1, 1]} : vector<8x128xf32> to vector<1x128xf32>
      %574 = vector.extract_strided_slice %544 {offsets = [1, 0], sizes = [1, 128], strides = [1, 1]} : vector<8x128xf32> to vector<1x128xf32>
      %575 = vector.shape_cast %574 : vector<1x128xf32> to vector<1x128xf32>
      %576 = vector.broadcast %575 : vector<1x128xf32> to vector<8x128xf32>
      %577 = arith.select %494, %576, %446 : vector<8x128xi1>, vector<8x128xf32>
      %578 = vector.shape_cast %573 : vector<1x128xf32> to vector<1x128xf32>
      %579 = vector.broadcast %578 : vector<1x128xf32> to vector<8x128xf32>
      %580 = arith.select %90, %579, %577 : vector<8x128xi1>, vector<8x128xf32>
      %581 = vector.extract_strided_slice %541 {offsets = [2, 0], sizes = [1, 128], strides = [1, 1]} : vector<8x128xf32> to vector<1x128xf32>
      %582 = vector.extract_strided_slice %544 {offsets = [2, 0], sizes = [1, 128], strides = [1, 1]} : vector<8x128xf32> to vector<1x128xf32>
      %583 = vector.shape_cast %582 : vector<1x128xf32> to vector<1x128xf32>
      %584 = vector.broadcast %583 : vector<1x128xf32> to vector<8x128xf32>
      %585 = arith.select %494, %584, %454 : vector<8x128xi1>, vector<8x128xf32>
      %586 = vector.shape_cast %581 : vector<1x128xf32> to vector<1x128xf32>
      %587 = vector.broadcast %586 : vector<1x128xf32> to vector<8x128xf32>
      %588 = arith.select %90, %587, %585 : vector<8x128xi1>, vector<8x128xf32>
      %589 = vector.extract_strided_slice %541 {offsets = [3, 0], sizes = [1, 128], strides = [1, 1]} : vector<8x128xf32> to vector<1x128xf32>
      %590 = vector.extract_strided_slice %544 {offsets = [3, 0], sizes = [1, 128], strides = [1, 1]} : vector<8x128xf32> to vector<1x128xf32>
      %591 = vector.shape_cast %590 : vector<1x128xf32> to vector<1x128xf32>
      %592 = vector.broadcast %591 : vector<1x128xf32> to vector<8x128xf32>
      %593 = arith.select %494, %592, %438 : vector<8x128xi1>, vector<8x128xf32>
      %594 = vector.shape_cast %589 : vector<1x128xf32> to vector<1x128xf32>
      %595 = vector.broadcast %594 : vector<1x128xf32> to vector<8x128xf32>
      %596 = arith.select %90, %595, %593 : vector<8x128xi1>, vector<8x128xf32>
      %597 = vector.extract_strided_slice %541 {offsets = [5, 0], sizes = [1, 128], strides = [1, 1]} : vector<8x128xf32> to vector<1x128xf32>
      %598 = vector.extract_strided_slice %544 {offsets = [5, 0], sizes = [1, 128], strides = [1, 1]} : vector<8x128xf32> to vector<1x128xf32>
      %599 = vector.shape_cast %598 : vector<1x128xf32> to vector<1x128xf32>
      %600 = vector.broadcast %599 : vector<1x128xf32> to vector<8x128xf32>
      %601 = arith.select %494, %600, %470 : vector<8x128xi1>, vector<8x128xf32>
      %602 = vector.shape_cast %597 : vector<1x128xf32> to vector<1x128xf32>
      %603 = vector.broadcast %602 : vector<1x128xf32> to vector<8x128xf32>
      %604 = arith.select %90, %603, %601 : vector<8x128xi1>, vector<8x128xf32>
      %605 = vector.extract_strided_slice %541 {offsets = [6, 0], sizes = [1, 128], strides = [1, 1]} : vector<8x128xf32> to vector<1x128xf32>
      %606 = vector.extract_strided_slice %544 {offsets = [6, 0], sizes = [1, 128], strides = [1, 1]} : vector<8x128xf32> to vector<1x128xf32>
      %607 = vector.shape_cast %606 : vector<1x128xf32> to vector<1x128xf32>
      %608 = vector.broadcast %607 : vector<1x128xf32> to vector<8x128xf32>
      %609 = arith.select %494, %608, %478 : vector<8x128xi1>, vector<8x128xf32>
      %610 = vector.shape_cast %605 : vector<1x128xf32> to vector<1x128xf32>
      %611 = vector.broadcast %610 : vector<1x128xf32> to vector<8x128xf32>
      %612 = arith.select %90, %611, %609 : vector<8x128xi1>, vector<8x128xf32>
      %613 = vector.extract_strided_slice %541 {offsets = [7, 0], sizes = [1, 128], strides = [1, 1]} : vector<8x128xf32> to vector<1x128xf32>
      %614 = vector.extract_strided_slice %544 {offsets = [7, 0], sizes = [1, 128], strides = [1, 1]} : vector<8x128xf32> to vector<1x128xf32>
      %615 = vector.shape_cast %614 : vector<1x128xf32> to vector<1x128xf32>
      %616 = vector.broadcast %615 : vector<1x128xf32> to vector<8x128xf32>
      %617 = arith.select %494, %616, %486 : vector<8x128xi1>, vector<8x128xf32>
      %618 = vector.shape_cast %613 : vector<1x128xf32> to vector<1x128xf32>
      %619 = vector.broadcast %618 : vector<1x128xf32> to vector<8x128xf32>
      %620 = arith.select %90, %619, %617 : vector<8x128xi1>, vector<8x128xf32>
      %621 = arith.mulf %536, %489 : vector<8x128xf32>
      %622 = arith.mulf %538, %arg17 : vector<8x128xf32>
      %623 = arith.subf %621, %622 : vector<8x128xf32>
      %624 = arith.mulf %538, %489 : vector<8x128xf32>
      %625 = arith.mulf %536, %arg17 : vector<8x128xf32>
      %626 = arith.addf %624, %625 : vector<8x128xf32>
      %c5_i32_78 = arith.constant 5 : i32
      %627 = vector.broadcast %c5_i32_78 : i32 to vector<8x128xi32>
      %628 = arith.cmpi eq, %0, %627 : vector<8x128xi32>
      %629 = vector.extract_strided_slice %560 {offsets = [0, 0], sizes = [1, 128], strides = [1, 1]} : vector<8x128xf32> to vector<1x128xf32>
      %630 = vector.extract_strided_slice %604 {offsets = [5, 0], sizes = [1, 128], strides = [1, 1]} : vector<8x128xf32> to vector<1x128xf32>
      %631 = vector.extract_strided_slice %560 {offsets = [5, 0], sizes = [1, 128], strides = [1, 1]} : vector<8x128xf32> to vector<1x128xf32>
      %632 = math.absf %631 : vector<1x128xf32>
      %633 = math.absf %629 : vector<1x128xf32>
      %634 = math.absf %630 : vector<1x128xf32>
      %635 = arith.addf %633, %634 : vector<1x128xf32>
      %cst_79 = arith.constant 9.99999996E-13 : f32
      %636 = vector.broadcast %cst_79 : f32 to vector<1x128xf32>
      %637 = arith.mulf %636, %635 : vector<1x128xf32>
      %cst_80 = arith.constant 1.000000e-30 : f32
      %638 = vector.broadcast %cst_80 : f32 to vector<1x128xf32>
      %639 = arith.addf %637, %638 : vector<1x128xf32>
      %640 = arith.cmpf ogt, %632, %639 : vector<1x128xf32>
      %cst_81 = arith.constant 1.000000e+00 : f32
      %641 = vector.broadcast %cst_81 : f32 to vector<1x128xf32>
      %642 = arith.select %640, %631, %641 : vector<1x128xi1>, vector<1x128xf32>
      %643 = arith.subf %630, %629 : vector<1x128xf32>
      %644 = tpu.reciprocal %642 {approx = true} : vector<1x128xf32> -> vector<1x128xf32>
      %cst_82 = arith.constant 5.000000e-01 : f32
      %645 = vector.broadcast %cst_82 : f32 to vector<1x128xf32>
      %646 = arith.mulf %645, %644 : vector<1x128xf32>
      %647 = arith.mulf %643, %646 : vector<1x128xf32>
      %648 = arith.mulf %647, %647 : vector<1x128xf32>
      %cst_83 = arith.constant 1.000000e+00 : f32
      %649 = vector.broadcast %cst_83 : f32 to vector<1x128xf32>
      %650 = arith.addf %648, %649 : vector<1x128xf32>
      %651 = math.rsqrt %650 : vector<1x128xf32>
      %cst_84 = arith.constant 0.000000e+00 : f32
      %652 = vector.broadcast %cst_84 : f32 to vector<1x128xf32>
      %653 = arith.cmpf oge, %647, %652 : vector<1x128xf32>
      %cst_85 = arith.constant 1.000000e+00 : f32
      %cst_86 = arith.constant -1.000000e+00 : f32
      %654 = vector.broadcast %cst_85 : f32 to vector<1x128xf32>
      %655 = vector.broadcast %cst_86 : f32 to vector<1x128xf32>
      %656 = arith.select %653, %654, %655 : vector<1x128xi1>, vector<1x128xf32>
      %657 = math.absf %647 : vector<1x128xf32>
      %658 = arith.mulf %650, %651 : vector<1x128xf32>
      %659 = arith.addf %657, %658 : vector<1x128xf32>
      %660 = tpu.reciprocal %659 {approx = true} : vector<1x128xf32> -> vector<1x128xf32>
      %661 = arith.mulf %656, %660 : vector<1x128xf32>
      %cst_87 = arith.constant 0.000000e+00 : f32
      %662 = vector.broadcast %cst_87 : f32 to vector<1x128xf32>
      %663 = arith.select %640, %661, %662 : vector<1x128xi1>, vector<1x128xf32>
      %664 = arith.mulf %663, %663 : vector<1x128xf32>
      %cst_88 = arith.constant 1.000000e+00 : f32
      %665 = vector.broadcast %cst_88 : f32 to vector<1x128xf32>
      %666 = arith.addf %664, %665 : vector<1x128xf32>
      %667 = math.rsqrt %666 : vector<1x128xf32>
      %668 = arith.mulf %663, %667 : vector<1x128xf32>
      %669 = vector.shape_cast %667 : vector<1x128xf32> to vector<1x128xf32>
      %670 = vector.broadcast %669 : vector<1x128xf32> to vector<8x128xf32>
      %671 = vector.shape_cast %668 : vector<1x128xf32> to vector<1x128xf32>
      %672 = vector.broadcast %671 : vector<1x128xf32> to vector<8x128xf32>
      %673 = arith.mulf %670, %560 : vector<8x128xf32>
      %674 = arith.mulf %672, %604 : vector<8x128xf32>
      %675 = arith.subf %673, %674 : vector<8x128xf32>
      %676 = arith.mulf %672, %560 : vector<8x128xf32>
      %677 = arith.mulf %670, %604 : vector<8x128xf32>
      %678 = arith.addf %676, %677 : vector<8x128xf32>
      %679 = vector.extract_strided_slice %675 {offsets = [0, 0], sizes = [1, 128], strides = [1, 1]} : vector<8x128xf32> to vector<1x128xf32>
      %680 = vector.extract_strided_slice %675 {offsets = [5, 0], sizes = [1, 128], strides = [1, 1]} : vector<8x128xf32> to vector<1x128xf32>
      %681 = vector.extract_strided_slice %678 {offsets = [0, 0], sizes = [1, 128], strides = [1, 1]} : vector<8x128xf32> to vector<1x128xf32>
      %682 = vector.extract_strided_slice %678 {offsets = [5, 0], sizes = [1, 128], strides = [1, 1]} : vector<8x128xf32> to vector<1x128xf32>
      %683 = arith.mulf %667, %679 : vector<1x128xf32>
      %684 = arith.mulf %668, %680 : vector<1x128xf32>
      %685 = arith.subf %683, %684 : vector<1x128xf32>
      %686 = arith.mulf %668, %679 : vector<1x128xf32>
      %687 = arith.mulf %667, %680 : vector<1x128xf32>
      %688 = arith.addf %686, %687 : vector<1x128xf32>
      %689 = vector.shape_cast %688 : vector<1x128xf32> to vector<1x128xf32>
      %690 = vector.broadcast %689 : vector<1x128xf32> to vector<8x128xf32>
      %691 = arith.select %628, %690, %675 : vector<8x128xi1>, vector<8x128xf32>
      %692 = vector.shape_cast %685 : vector<1x128xf32> to vector<1x128xf32>
      %693 = vector.broadcast %692 : vector<1x128xf32> to vector<8x128xf32>
      %694 = arith.select %90, %693, %691 : vector<8x128xi1>, vector<8x128xf32>
      %695 = arith.mulf %667, %681 : vector<1x128xf32>
      %696 = arith.mulf %668, %682 : vector<1x128xf32>
      %697 = arith.subf %695, %696 : vector<1x128xf32>
      %698 = arith.mulf %668, %681 : vector<1x128xf32>
      %699 = arith.mulf %667, %682 : vector<1x128xf32>
      %700 = arith.addf %698, %699 : vector<1x128xf32>
      %701 = vector.shape_cast %700 : vector<1x128xf32> to vector<1x128xf32>
      %702 = vector.broadcast %701 : vector<1x128xf32> to vector<8x128xf32>
      %703 = arith.select %628, %702, %678 : vector<8x128xi1>, vector<8x128xf32>
      %704 = vector.shape_cast %697 : vector<1x128xf32> to vector<1x128xf32>
      %705 = vector.broadcast %704 : vector<1x128xf32> to vector<8x128xf32>
      %706 = arith.select %90, %705, %703 : vector<8x128xi1>, vector<8x128xf32>
      %707 = vector.extract_strided_slice %675 {offsets = [1, 0], sizes = [1, 128], strides = [1, 1]} : vector<8x128xf32> to vector<1x128xf32>
      %708 = vector.extract_strided_slice %678 {offsets = [1, 0], sizes = [1, 128], strides = [1, 1]} : vector<8x128xf32> to vector<1x128xf32>
      %709 = vector.shape_cast %708 : vector<1x128xf32> to vector<1x128xf32>
      %710 = vector.broadcast %709 : vector<1x128xf32> to vector<8x128xf32>
      %711 = arith.select %628, %710, %580 : vector<8x128xi1>, vector<8x128xf32>
      %712 = vector.shape_cast %707 : vector<1x128xf32> to vector<1x128xf32>
      %713 = vector.broadcast %712 : vector<1x128xf32> to vector<8x128xf32>
      %714 = arith.select %90, %713, %711 : vector<8x128xi1>, vector<8x128xf32>
      %715 = vector.extract_strided_slice %675 {offsets = [2, 0], sizes = [1, 128], strides = [1, 1]} : vector<8x128xf32> to vector<1x128xf32>
      %716 = vector.extract_strided_slice %678 {offsets = [2, 0], sizes = [1, 128], strides = [1, 1]} : vector<8x128xf32> to vector<1x128xf32>
      %717 = vector.shape_cast %716 : vector<1x128xf32> to vector<1x128xf32>
      %718 = vector.broadcast %717 : vector<1x128xf32> to vector<8x128xf32>
      %719 = arith.select %628, %718, %588 : vector<8x128xi1>, vector<8x128xf32>
      %720 = vector.shape_cast %715 : vector<1x128xf32> to vector<1x128xf32>
      %721 = vector.broadcast %720 : vector<1x128xf32> to vector<8x128xf32>
      %722 = arith.select %90, %721, %719 : vector<8x128xi1>, vector<8x128xf32>
      %723 = vector.extract_strided_slice %675 {offsets = [3, 0], sizes = [1, 128], strides = [1, 1]} : vector<8x128xf32> to vector<1x128xf32>
      %724 = vector.extract_strided_slice %678 {offsets = [3, 0], sizes = [1, 128], strides = [1, 1]} : vector<8x128xf32> to vector<1x128xf32>
      %725 = vector.shape_cast %724 : vector<1x128xf32> to vector<1x128xf32>
      %726 = vector.broadcast %725 : vector<1x128xf32> to vector<8x128xf32>
      %727 = arith.select %628, %726, %596 : vector<8x128xi1>, vector<8x128xf32>
      %728 = vector.shape_cast %723 : vector<1x128xf32> to vector<1x128xf32>
      %729 = vector.broadcast %728 : vector<1x128xf32> to vector<8x128xf32>
      %730 = arith.select %90, %729, %727 : vector<8x128xi1>, vector<8x128xf32>
      %731 = vector.extract_strided_slice %675 {offsets = [4, 0], sizes = [1, 128], strides = [1, 1]} : vector<8x128xf32> to vector<1x128xf32>
      %732 = vector.extract_strided_slice %678 {offsets = [4, 0], sizes = [1, 128], strides = [1, 1]} : vector<8x128xf32> to vector<1x128xf32>
      %733 = vector.shape_cast %732 : vector<1x128xf32> to vector<1x128xf32>
      %734 = vector.broadcast %733 : vector<1x128xf32> to vector<8x128xf32>
      %735 = arith.select %628, %734, %572 : vector<8x128xi1>, vector<8x128xf32>
      %736 = vector.shape_cast %731 : vector<1x128xf32> to vector<1x128xf32>
      %737 = vector.broadcast %736 : vector<1x128xf32> to vector<8x128xf32>
      %738 = arith.select %90, %737, %735 : vector<8x128xi1>, vector<8x128xf32>
      %739 = vector.extract_strided_slice %675 {offsets = [6, 0], sizes = [1, 128], strides = [1, 1]} : vector<8x128xf32> to vector<1x128xf32>
      %740 = vector.extract_strided_slice %678 {offsets = [6, 0], sizes = [1, 128], strides = [1, 1]} : vector<8x128xf32> to vector<1x128xf32>
      %741 = vector.shape_cast %740 : vector<1x128xf32> to vector<1x128xf32>
      %742 = vector.broadcast %741 : vector<1x128xf32> to vector<8x128xf32>
      %743 = arith.select %628, %742, %612 : vector<8x128xi1>, vector<8x128xf32>
      %744 = vector.shape_cast %739 : vector<1x128xf32> to vector<1x128xf32>
      %745 = vector.broadcast %744 : vector<1x128xf32> to vector<8x128xf32>
      %746 = arith.select %90, %745, %743 : vector<8x128xi1>, vector<8x128xf32>
      %747 = vector.extract_strided_slice %675 {offsets = [7, 0], sizes = [1, 128], strides = [1, 1]} : vector<8x128xf32> to vector<1x128xf32>
      %748 = vector.extract_strided_slice %678 {offsets = [7, 0], sizes = [1, 128], strides = [1, 1]} : vector<8x128xf32> to vector<1x128xf32>
      %749 = vector.shape_cast %748 : vector<1x128xf32> to vector<1x128xf32>
      %750 = vector.broadcast %749 : vector<1x128xf32> to vector<8x128xf32>
      %751 = arith.select %628, %750, %620 : vector<8x128xi1>, vector<8x128xf32>
      %752 = vector.shape_cast %747 : vector<1x128xf32> to vector<1x128xf32>
      %753 = vector.broadcast %752 : vector<1x128xf32> to vector<8x128xf32>
      %754 = arith.select %90, %753, %751 : vector<8x128xi1>, vector<8x128xf32>
      %755 = arith.mulf %670, %623 : vector<8x128xf32>
      %756 = arith.mulf %672, %arg18 : vector<8x128xf32>
      %757 = arith.subf %755, %756 : vector<8x128xf32>
      %758 = arith.mulf %672, %623 : vector<8x128xf32>
      %759 = arith.mulf %670, %arg18 : vector<8x128xf32>
      %760 = arith.addf %758, %759 : vector<8x128xf32>
      %c6_i32_89 = arith.constant 6 : i32
      %761 = vector.broadcast %c6_i32_89 : i32 to vector<8x128xi32>
      %762 = arith.cmpi eq, %0, %761 : vector<8x128xi32>
      %763 = vector.extract_strided_slice %694 {offsets = [0, 0], sizes = [1, 128], strides = [1, 1]} : vector<8x128xf32> to vector<1x128xf32>
      %764 = vector.extract_strided_slice %746 {offsets = [6, 0], sizes = [1, 128], strides = [1, 1]} : vector<8x128xf32> to vector<1x128xf32>
      %765 = vector.extract_strided_slice %694 {offsets = [6, 0], sizes = [1, 128], strides = [1, 1]} : vector<8x128xf32> to vector<1x128xf32>
      %766 = math.absf %765 : vector<1x128xf32>
      %767 = math.absf %763 : vector<1x128xf32>
      %768 = math.absf %764 : vector<1x128xf32>
      %769 = arith.addf %767, %768 : vector<1x128xf32>
      %cst_90 = arith.constant 9.99999996E-13 : f32
      %770 = vector.broadcast %cst_90 : f32 to vector<1x128xf32>
      %771 = arith.mulf %770, %769 : vector<1x128xf32>
      %cst_91 = arith.constant 1.000000e-30 : f32
      %772 = vector.broadcast %cst_91 : f32 to vector<1x128xf32>
      %773 = arith.addf %771, %772 : vector<1x128xf32>
      %774 = arith.cmpf ogt, %766, %773 : vector<1x128xf32>
      %cst_92 = arith.constant 1.000000e+00 : f32
      %775 = vector.broadcast %cst_92 : f32 to vector<1x128xf32>
      %776 = arith.select %774, %765, %775 : vector<1x128xi1>, vector<1x128xf32>
      %777 = arith.subf %764, %763 : vector<1x128xf32>
      %778 = tpu.reciprocal %776 {approx = true} : vector<1x128xf32> -> vector<1x128xf32>
      %cst_93 = arith.constant 5.000000e-01 : f32
      %779 = vector.broadcast %cst_93 : f32 to vector<1x128xf32>
      %780 = arith.mulf %779, %778 : vector<1x128xf32>
      %781 = arith.mulf %777, %780 : vector<1x128xf32>
      %782 = arith.mulf %781, %781 : vector<1x128xf32>
      %cst_94 = arith.constant 1.000000e+00 : f32
      %783 = vector.broadcast %cst_94 : f32 to vector<1x128xf32>
      %784 = arith.addf %782, %783 : vector<1x128xf32>
      %785 = math.rsqrt %784 : vector<1x128xf32>
      %cst_95 = arith.constant 0.000000e+00 : f32
      %786 = vector.broadcast %cst_95 : f32 to vector<1x128xf32>
      %787 = arith.cmpf oge, %781, %786 : vector<1x128xf32>
      %cst_96 = arith.constant 1.000000e+00 : f32
      %cst_97 = arith.constant -1.000000e+00 : f32
      %788 = vector.broadcast %cst_96 : f32 to vector<1x128xf32>
      %789 = vector.broadcast %cst_97 : f32 to vector<1x128xf32>
      %790 = arith.select %787, %788, %789 : vector<1x128xi1>, vector<1x128xf32>
      %791 = math.absf %781 : vector<1x128xf32>
      %792 = arith.mulf %784, %785 : vector<1x128xf32>
      %793 = arith.addf %791, %792 : vector<1x128xf32>
      %794 = tpu.reciprocal %793 {approx = true} : vector<1x128xf32> -> vector<1x128xf32>
      %795 = arith.mulf %790, %794 : vector<1x128xf32>
      %cst_98 = arith.constant 0.000000e+00 : f32
      %796 = vector.broadcast %cst_98 : f32 to vector<1x128xf32>
      %797 = arith.select %774, %795, %796 : vector<1x128xi1>, vector<1x128xf32>
      %798 = arith.mulf %797, %797 : vector<1x128xf32>
      %cst_99 = arith.constant 1.000000e+00 : f32
      %799 = vector.broadcast %cst_99 : f32 to vector<1x128xf32>
      %800 = arith.addf %798, %799 : vector<1x128xf32>
      %801 = math.rsqrt %800 : vector<1x128xf32>
      %802 = arith.mulf %797, %801 : vector<1x128xf32>
      %803 = vector.shape_cast %801 : vector<1x128xf32> to vector<1x128xf32>
      %804 = vector.broadcast %803 : vector<1x128xf32> to vector<8x128xf32>
      %805 = vector.shape_cast %802 : vector<1x128xf32> to vector<1x128xf32>
      %806 = vector.broadcast %805 : vector<1x128xf32> to vector<8x128xf32>
      %807 = arith.mulf %804, %694 : vector<8x128xf32>
      %808 = arith.mulf %806, %746 : vector<8x128xf32>
      %809 = arith.subf %807, %808 : vector<8x128xf32>
      %810 = arith.mulf %806, %694 : vector<8x128xf32>
      %811 = arith.mulf %804, %746 : vector<8x128xf32>
      %812 = arith.addf %810, %811 : vector<8x128xf32>
      %813 = vector.extract_strided_slice %809 {offsets = [0, 0], sizes = [1, 128], strides = [1, 1]} : vector<8x128xf32> to vector<1x128xf32>
      %814 = vector.extract_strided_slice %809 {offsets = [6, 0], sizes = [1, 128], strides = [1, 1]} : vector<8x128xf32> to vector<1x128xf32>
      %815 = vector.extract_strided_slice %812 {offsets = [0, 0], sizes = [1, 128], strides = [1, 1]} : vector<8x128xf32> to vector<1x128xf32>
      %816 = vector.extract_strided_slice %812 {offsets = [6, 0], sizes = [1, 128], strides = [1, 1]} : vector<8x128xf32> to vector<1x128xf32>
      %817 = arith.mulf %801, %813 : vector<1x128xf32>
      %818 = arith.mulf %802, %814 : vector<1x128xf32>
      %819 = arith.subf %817, %818 : vector<1x128xf32>
      %820 = arith.mulf %802, %813 : vector<1x128xf32>
      %821 = arith.mulf %801, %814 : vector<1x128xf32>
      %822 = arith.addf %820, %821 : vector<1x128xf32>
      %823 = vector.shape_cast %822 : vector<1x128xf32> to vector<1x128xf32>
      %824 = vector.broadcast %823 : vector<1x128xf32> to vector<8x128xf32>
      %825 = arith.select %762, %824, %809 : vector<8x128xi1>, vector<8x128xf32>
      %826 = vector.shape_cast %819 : vector<1x128xf32> to vector<1x128xf32>
      %827 = vector.broadcast %826 : vector<1x128xf32> to vector<8x128xf32>
      %828 = arith.select %90, %827, %825 : vector<8x128xi1>, vector<8x128xf32>
      %829 = arith.mulf %801, %815 : vector<1x128xf32>
      %830 = arith.mulf %802, %816 : vector<1x128xf32>
      %831 = arith.subf %829, %830 : vector<1x128xf32>
      %832 = arith.mulf %802, %815 : vector<1x128xf32>
      %833 = arith.mulf %801, %816 : vector<1x128xf32>
      %834 = arith.addf %832, %833 : vector<1x128xf32>
      %835 = vector.shape_cast %834 : vector<1x128xf32> to vector<1x128xf32>
      %836 = vector.broadcast %835 : vector<1x128xf32> to vector<8x128xf32>
      %837 = arith.select %762, %836, %812 : vector<8x128xi1>, vector<8x128xf32>
      %838 = vector.shape_cast %831 : vector<1x128xf32> to vector<1x128xf32>
      %839 = vector.broadcast %838 : vector<1x128xf32> to vector<8x128xf32>
      %840 = arith.select %90, %839, %837 : vector<8x128xi1>, vector<8x128xf32>
      %841 = vector.extract_strided_slice %809 {offsets = [1, 0], sizes = [1, 128], strides = [1, 1]} : vector<8x128xf32> to vector<1x128xf32>
      %842 = vector.extract_strided_slice %812 {offsets = [1, 0], sizes = [1, 128], strides = [1, 1]} : vector<8x128xf32> to vector<1x128xf32>
      %843 = vector.shape_cast %842 : vector<1x128xf32> to vector<1x128xf32>
      %844 = vector.broadcast %843 : vector<1x128xf32> to vector<8x128xf32>
      %845 = arith.select %762, %844, %714 : vector<8x128xi1>, vector<8x128xf32>
      %846 = vector.shape_cast %841 : vector<1x128xf32> to vector<1x128xf32>
      %847 = vector.broadcast %846 : vector<1x128xf32> to vector<8x128xf32>
      %848 = arith.select %90, %847, %845 : vector<8x128xi1>, vector<8x128xf32>
      %849 = vector.extract_strided_slice %809 {offsets = [2, 0], sizes = [1, 128], strides = [1, 1]} : vector<8x128xf32> to vector<1x128xf32>
      %850 = vector.extract_strided_slice %812 {offsets = [2, 0], sizes = [1, 128], strides = [1, 1]} : vector<8x128xf32> to vector<1x128xf32>
      %851 = vector.shape_cast %850 : vector<1x128xf32> to vector<1x128xf32>
      %852 = vector.broadcast %851 : vector<1x128xf32> to vector<8x128xf32>
      %853 = arith.select %762, %852, %722 : vector<8x128xi1>, vector<8x128xf32>
      %854 = vector.shape_cast %849 : vector<1x128xf32> to vector<1x128xf32>
      %855 = vector.broadcast %854 : vector<1x128xf32> to vector<8x128xf32>
      %856 = arith.select %90, %855, %853 : vector<8x128xi1>, vector<8x128xf32>
      %857 = vector.extract_strided_slice %809 {offsets = [3, 0], sizes = [1, 128], strides = [1, 1]} : vector<8x128xf32> to vector<1x128xf32>
      %858 = vector.extract_strided_slice %812 {offsets = [3, 0], sizes = [1, 128], strides = [1, 1]} : vector<8x128xf32> to vector<1x128xf32>
      %859 = vector.shape_cast %858 : vector<1x128xf32> to vector<1x128xf32>
      %860 = vector.broadcast %859 : vector<1x128xf32> to vector<8x128xf32>
      %861 = arith.select %762, %860, %730 : vector<8x128xi1>, vector<8x128xf32>
      %862 = vector.shape_cast %857 : vector<1x128xf32> to vector<1x128xf32>
      %863 = vector.broadcast %862 : vector<1x128xf32> to vector<8x128xf32>
      %864 = arith.select %90, %863, %861 : vector<8x128xi1>, vector<8x128xf32>
      %865 = vector.extract_strided_slice %809 {offsets = [4, 0], sizes = [1, 128], strides = [1, 1]} : vector<8x128xf32> to vector<1x128xf32>
      %866 = vector.extract_strided_slice %812 {offsets = [4, 0], sizes = [1, 128], strides = [1, 1]} : vector<8x128xf32> to vector<1x128xf32>
      %867 = vector.shape_cast %866 : vector<1x128xf32> to vector<1x128xf32>
      %868 = vector.broadcast %867 : vector<1x128xf32> to vector<8x128xf32>
      %869 = arith.select %762, %868, %738 : vector<8x128xi1>, vector<8x128xf32>
      %870 = vector.shape_cast %865 : vector<1x128xf32> to vector<1x128xf32>
      %871 = vector.broadcast %870 : vector<1x128xf32> to vector<8x128xf32>
      %872 = arith.select %90, %871, %869 : vector<8x128xi1>, vector<8x128xf32>
      %873 = vector.extract_strided_slice %809 {offsets = [5, 0], sizes = [1, 128], strides = [1, 1]} : vector<8x128xf32> to vector<1x128xf32>
      %874 = vector.extract_strided_slice %812 {offsets = [5, 0], sizes = [1, 128], strides = [1, 1]} : vector<8x128xf32> to vector<1x128xf32>
      %875 = vector.shape_cast %874 : vector<1x128xf32> to vector<1x128xf32>
      %876 = vector.broadcast %875 : vector<1x128xf32> to vector<8x128xf32>
      %877 = arith.select %762, %876, %706 : vector<8x128xi1>, vector<8x128xf32>
      %878 = vector.shape_cast %873 : vector<1x128xf32> to vector<1x128xf32>
      %879 = vector.broadcast %878 : vector<1x128xf32> to vector<8x128xf32>
      %880 = arith.select %90, %879, %877 : vector<8x128xi1>, vector<8x128xf32>
      %881 = vector.extract_strided_slice %809 {offsets = [7, 0], sizes = [1, 128], strides = [1, 1]} : vector<8x128xf32> to vector<1x128xf32>
      %882 = vector.extract_strided_slice %812 {offsets = [7, 0], sizes = [1, 128], strides = [1, 1]} : vector<8x128xf32> to vector<1x128xf32>
      %883 = vector.shape_cast %882 : vector<1x128xf32> to vector<1x128xf32>
      %884 = vector.broadcast %883 : vector<1x128xf32> to vector<8x128xf32>
      %885 = arith.select %762, %884, %754 : vector<8x128xi1>, vector<8x128xf32>
      %886 = vector.shape_cast %881 : vector<1x128xf32> to vector<1x128xf32>
      %887 = vector.broadcast %886 : vector<1x128xf32> to vector<8x128xf32>
      %888 = arith.select %90, %887, %885 : vector<8x128xi1>, vector<8x128xf32>
      %889 = arith.mulf %804, %757 : vector<8x128xf32>
      %890 = arith.mulf %806, %arg19 : vector<8x128xf32>
      %891 = arith.subf %889, %890 : vector<8x128xf32>
      %892 = arith.mulf %806, %757 : vector<8x128xf32>
      %893 = arith.mulf %804, %arg19 : vector<8x128xf32>
      %894 = arith.addf %892, %893 : vector<8x128xf32>
      %c7_i32_100 = arith.constant 7 : i32
      %895 = vector.broadcast %c7_i32_100 : i32 to vector<8x128xi32>
      %896 = arith.cmpi eq, %0, %895 : vector<8x128xi32>
      %897 = vector.extract_strided_slice %828 {offsets = [0, 0], sizes = [1, 128], strides = [1, 1]} : vector<8x128xf32> to vector<1x128xf32>
      %898 = vector.extract_strided_slice %888 {offsets = [7, 0], sizes = [1, 128], strides = [1, 1]} : vector<8x128xf32> to vector<1x128xf32>
      %899 = vector.extract_strided_slice %828 {offsets = [7, 0], sizes = [1, 128], strides = [1, 1]} : vector<8x128xf32> to vector<1x128xf32>
      %900 = math.absf %899 : vector<1x128xf32>
      %901 = math.absf %897 : vector<1x128xf32>
      %902 = math.absf %898 : vector<1x128xf32>
      %903 = arith.addf %901, %902 : vector<1x128xf32>
      %cst_101 = arith.constant 9.99999996E-13 : f32
      %904 = vector.broadcast %cst_101 : f32 to vector<1x128xf32>
      %905 = arith.mulf %904, %903 : vector<1x128xf32>
      %cst_102 = arith.constant 1.000000e-30 : f32
      %906 = vector.broadcast %cst_102 : f32 to vector<1x128xf32>
      %907 = arith.addf %905, %906 : vector<1x128xf32>
      %908 = arith.cmpf ogt, %900, %907 : vector<1x128xf32>
      %cst_103 = arith.constant 1.000000e+00 : f32
      %909 = vector.broadcast %cst_103 : f32 to vector<1x128xf32>
      %910 = arith.select %908, %899, %909 : vector<1x128xi1>, vector<1x128xf32>
      %911 = arith.subf %898, %897 : vector<1x128xf32>
      %912 = tpu.reciprocal %910 {approx = true} : vector<1x128xf32> -> vector<1x128xf32>
      %cst_104 = arith.constant 5.000000e-01 : f32
      %913 = vector.broadcast %cst_104 : f32 to vector<1x128xf32>
      %914 = arith.mulf %913, %912 : vector<1x128xf32>
      %915 = arith.mulf %911, %914 : vector<1x128xf32>
      %916 = arith.mulf %915, %915 : vector<1x128xf32>
      %cst_105 = arith.constant 1.000000e+00 : f32
      %917 = vector.broadcast %cst_105 : f32 to vector<1x128xf32>
      %918 = arith.addf %916, %917 : vector<1x128xf32>
      %919 = math.rsqrt %918 : vector<1x128xf32>
      %cst_106 = arith.constant 0.000000e+00 : f32
      %920 = vector.broadcast %cst_106 : f32 to vector<1x128xf32>
      %921 = arith.cmpf oge, %915, %920 : vector<1x128xf32>
      %cst_107 = arith.constant 1.000000e+00 : f32
      %cst_108 = arith.constant -1.000000e+00 : f32
      %922 = vector.broadcast %cst_107 : f32 to vector<1x128xf32>
      %923 = vector.broadcast %cst_108 : f32 to vector<1x128xf32>
      %924 = arith.select %921, %922, %923 : vector<1x128xi1>, vector<1x128xf32>
      %925 = math.absf %915 : vector<1x128xf32>
      %926 = arith.mulf %918, %919 : vector<1x128xf32>
      %927 = arith.addf %925, %926 : vector<1x128xf32>
      %928 = tpu.reciprocal %927 {approx = true} : vector<1x128xf32> -> vector<1x128xf32>
      %929 = arith.mulf %924, %928 : vector<1x128xf32>
      %cst_109 = arith.constant 0.000000e+00 : f32
      %930 = vector.broadcast %cst_109 : f32 to vector<1x128xf32>
      %931 = arith.select %908, %929, %930 : vector<1x128xi1>, vector<1x128xf32>
      %932 = arith.mulf %931, %931 : vector<1x128xf32>
      %cst_110 = arith.constant 1.000000e+00 : f32
      %933 = vector.broadcast %cst_110 : f32 to vector<1x128xf32>
      %934 = arith.addf %932, %933 : vector<1x128xf32>
      %935 = math.rsqrt %934 : vector<1x128xf32>
      %936 = arith.mulf %931, %935 : vector<1x128xf32>
      %937 = vector.shape_cast %935 : vector<1x128xf32> to vector<1x128xf32>
      %938 = vector.broadcast %937 : vector<1x128xf32> to vector<8x128xf32>
      %939 = vector.shape_cast %936 : vector<1x128xf32> to vector<1x128xf32>
      %940 = vector.broadcast %939 : vector<1x128xf32> to vector<8x128xf32>
      %941 = arith.mulf %938, %828 : vector<8x128xf32>
      %942 = arith.mulf %940, %888 : vector<8x128xf32>
      %943 = arith.subf %941, %942 : vector<8x128xf32>
      %944 = arith.mulf %940, %828 : vector<8x128xf32>
      %945 = arith.mulf %938, %888 : vector<8x128xf32>
      %946 = arith.addf %944, %945 : vector<8x128xf32>
      %947 = vector.extract_strided_slice %943 {offsets = [0, 0], sizes = [1, 128], strides = [1, 1]} : vector<8x128xf32> to vector<1x128xf32>
      %948 = vector.extract_strided_slice %943 {offsets = [7, 0], sizes = [1, 128], strides = [1, 1]} : vector<8x128xf32> to vector<1x128xf32>
      %949 = vector.extract_strided_slice %946 {offsets = [0, 0], sizes = [1, 128], strides = [1, 1]} : vector<8x128xf32> to vector<1x128xf32>
      %950 = vector.extract_strided_slice %946 {offsets = [7, 0], sizes = [1, 128], strides = [1, 1]} : vector<8x128xf32> to vector<1x128xf32>
      %951 = arith.mulf %935, %947 : vector<1x128xf32>
      %952 = arith.mulf %936, %948 : vector<1x128xf32>
      %953 = arith.subf %951, %952 : vector<1x128xf32>
      %954 = arith.mulf %936, %947 : vector<1x128xf32>
      %955 = arith.mulf %935, %948 : vector<1x128xf32>
      %956 = arith.addf %954, %955 : vector<1x128xf32>
      %957 = vector.shape_cast %956 : vector<1x128xf32> to vector<1x128xf32>
      %958 = vector.broadcast %957 : vector<1x128xf32> to vector<8x128xf32>
      %959 = arith.select %896, %958, %943 : vector<8x128xi1>, vector<8x128xf32>
      %960 = vector.shape_cast %953 : vector<1x128xf32> to vector<1x128xf32>
      %961 = vector.broadcast %960 : vector<1x128xf32> to vector<8x128xf32>
      %962 = arith.select %90, %961, %959 : vector<8x128xi1>, vector<8x128xf32>
      %963 = arith.mulf %935, %949 : vector<1x128xf32>
      %964 = arith.mulf %936, %950 : vector<1x128xf32>
      %965 = arith.subf %963, %964 : vector<1x128xf32>
      %966 = arith.mulf %936, %949 : vector<1x128xf32>
      %967 = arith.mulf %935, %950 : vector<1x128xf32>
      %968 = arith.addf %966, %967 : vector<1x128xf32>
      %969 = vector.shape_cast %968 : vector<1x128xf32> to vector<1x128xf32>
      %970 = vector.broadcast %969 : vector<1x128xf32> to vector<8x128xf32>
      %971 = arith.select %896, %970, %946 : vector<8x128xi1>, vector<8x128xf32>
      %972 = vector.shape_cast %965 : vector<1x128xf32> to vector<1x128xf32>
      %973 = vector.broadcast %972 : vector<1x128xf32> to vector<8x128xf32>
      %974 = arith.select %90, %973, %971 : vector<8x128xi1>, vector<8x128xf32>
      %975 = vector.extract_strided_slice %943 {offsets = [1, 0], sizes = [1, 128], strides = [1, 1]} : vector<8x128xf32> to vector<1x128xf32>
      %976 = vector.extract_strided_slice %946 {offsets = [1, 0], sizes = [1, 128], strides = [1, 1]} : vector<8x128xf32> to vector<1x128xf32>
      %977 = vector.shape_cast %976 : vector<1x128xf32> to vector<1x128xf32>
      %978 = vector.broadcast %977 : vector<1x128xf32> to vector<8x128xf32>
      %979 = arith.select %896, %978, %848 : vector<8x128xi1>, vector<8x128xf32>
      %980 = vector.shape_cast %975 : vector<1x128xf32> to vector<1x128xf32>
      %981 = vector.broadcast %980 : vector<1x128xf32> to vector<8x128xf32>
      %982 = arith.select %90, %981, %979 : vector<8x128xi1>, vector<8x128xf32>
      %983 = vector.extract_strided_slice %943 {offsets = [2, 0], sizes = [1, 128], strides = [1, 1]} : vector<8x128xf32> to vector<1x128xf32>
      %984 = vector.extract_strided_slice %946 {offsets = [2, 0], sizes = [1, 128], strides = [1, 1]} : vector<8x128xf32> to vector<1x128xf32>
      %985 = vector.shape_cast %984 : vector<1x128xf32> to vector<1x128xf32>
      %986 = vector.broadcast %985 : vector<1x128xf32> to vector<8x128xf32>
      %987 = arith.select %896, %986, %856 : vector<8x128xi1>, vector<8x128xf32>
      %988 = vector.shape_cast %983 : vector<1x128xf32> to vector<1x128xf32>
      %989 = vector.broadcast %988 : vector<1x128xf32> to vector<8x128xf32>
      %990 = arith.select %90, %989, %987 : vector<8x128xi1>, vector<8x128xf32>
      %991 = vector.extract_strided_slice %943 {offsets = [3, 0], sizes = [1, 128], strides = [1, 1]} : vector<8x128xf32> to vector<1x128xf32>
      %992 = vector.extract_strided_slice %946 {offsets = [3, 0], sizes = [1, 128], strides = [1, 1]} : vector<8x128xf32> to vector<1x128xf32>
      %993 = vector.shape_cast %992 : vector<1x128xf32> to vector<1x128xf32>
      %994 = vector.broadcast %993 : vector<1x128xf32> to vector<8x128xf32>
      %995 = arith.select %896, %994, %864 : vector<8x128xi1>, vector<8x128xf32>
      %996 = vector.shape_cast %991 : vector<1x128xf32> to vector<1x128xf32>
      %997 = vector.broadcast %996 : vector<1x128xf32> to vector<8x128xf32>
      %998 = arith.select %90, %997, %995 : vector<8x128xi1>, vector<8x128xf32>
      %999 = vector.extract_strided_slice %943 {offsets = [4, 0], sizes = [1, 128], strides = [1, 1]} : vector<8x128xf32> to vector<1x128xf32>
      %1000 = vector.extract_strided_slice %946 {offsets = [4, 0], sizes = [1, 128], strides = [1, 1]} : vector<8x128xf32> to vector<1x128xf32>
      %1001 = vector.shape_cast %1000 : vector<1x128xf32> to vector<1x128xf32>
      %1002 = vector.broadcast %1001 : vector<1x128xf32> to vector<8x128xf32>
      %1003 = arith.select %896, %1002, %872 : vector<8x128xi1>, vector<8x128xf32>
      %1004 = vector.shape_cast %999 : vector<1x128xf32> to vector<1x128xf32>
      %1005 = vector.broadcast %1004 : vector<1x128xf32> to vector<8x128xf32>
      %1006 = arith.select %90, %1005, %1003 : vector<8x128xi1>, vector<8x128xf32>
      %1007 = vector.extract_strided_slice %943 {offsets = [5, 0], sizes = [1, 128], strides = [1, 1]} : vector<8x128xf32> to vector<1x128xf32>
      %1008 = vector.extract_strided_slice %946 {offsets = [5, 0], sizes = [1, 128], strides = [1, 1]} : vector<8x128xf32> to vector<1x128xf32>
      %1009 = vector.shape_cast %1008 : vector<1x128xf32> to vector<1x128xf32>
      %1010 = vector.broadcast %1009 : vector<1x128xf32> to vector<8x128xf32>
      %1011 = arith.select %896, %1010, %880 : vector<8x128xi1>, vector<8x128xf32>
      %1012 = vector.shape_cast %1007 : vector<1x128xf32> to vector<1x128xf32>
      %1013 = vector.broadcast %1012 : vector<1x128xf32> to vector<8x128xf32>
      %1014 = arith.select %90, %1013, %1011 : vector<8x128xi1>, vector<8x128xf32>
      %1015 = vector.extract_strided_slice %943 {offsets = [6, 0], sizes = [1, 128], strides = [1, 1]} : vector<8x128xf32> to vector<1x128xf32>
      %1016 = vector.extract_strided_slice %946 {offsets = [6, 0], sizes = [1, 128], strides = [1, 1]} : vector<8x128xf32> to vector<1x128xf32>
      %1017 = vector.shape_cast %1016 : vector<1x128xf32> to vector<1x128xf32>
      %1018 = vector.broadcast %1017 : vector<1x128xf32> to vector<8x128xf32>
      %1019 = arith.select %896, %1018, %840 : vector<8x128xi1>, vector<8x128xf32>
      %1020 = vector.shape_cast %1015 : vector<1x128xf32> to vector<1x128xf32>
      %1021 = vector.broadcast %1020 : vector<1x128xf32> to vector<8x128xf32>
      %1022 = arith.select %90, %1021, %1019 : vector<8x128xi1>, vector<8x128xf32>
      %1023 = arith.mulf %938, %891 : vector<8x128xf32>
      %1024 = arith.mulf %940, %arg20 : vector<8x128xf32>
      %1025 = arith.subf %1023, %1024 : vector<8x128xf32>
      %1026 = arith.mulf %940, %891 : vector<8x128xf32>
      %1027 = arith.mulf %938, %arg20 : vector<8x128xf32>
      %1028 = arith.addf %1026, %1027 : vector<8x128xf32>
      %c1_i32_111 = arith.constant 1 : i32
      %1029 = vector.broadcast %c1_i32_111 : i32 to vector<8x128xi32>
      %1030 = arith.cmpi eq, %0, %1029 : vector<8x128xi32>
      %c2_i32_112 = arith.constant 2 : i32
      %1031 = vector.broadcast %c2_i32_112 : i32 to vector<8x128xi32>
      %1032 = arith.cmpi eq, %0, %1031 : vector<8x128xi32>
      %1033 = vector.extract_strided_slice %982 {offsets = [1, 0], sizes = [1, 128], strides = [1, 1]} : vector<8x128xf32> to vector<1x128xf32>
      %1034 = vector.extract_strided_slice %990 {offsets = [2, 0], sizes = [1, 128], strides = [1, 1]} : vector<8x128xf32> to vector<1x128xf32>
      %1035 = vector.extract_strided_slice %982 {offsets = [2, 0], sizes = [1, 128], strides = [1, 1]} : vector<8x128xf32> to vector<1x128xf32>
      %1036 = math.absf %1035 : vector<1x128xf32>
      %1037 = math.absf %1033 : vector<1x128xf32>
      %1038 = math.absf %1034 : vector<1x128xf32>
      %1039 = arith.addf %1037, %1038 : vector<1x128xf32>
      %cst_113 = arith.constant 9.99999996E-13 : f32
      %1040 = vector.broadcast %cst_113 : f32 to vector<1x128xf32>
      %1041 = arith.mulf %1040, %1039 : vector<1x128xf32>
      %cst_114 = arith.constant 1.000000e-30 : f32
      %1042 = vector.broadcast %cst_114 : f32 to vector<1x128xf32>
      %1043 = arith.addf %1041, %1042 : vector<1x128xf32>
      %1044 = arith.cmpf ogt, %1036, %1043 : vector<1x128xf32>
      %cst_115 = arith.constant 1.000000e+00 : f32
      %1045 = vector.broadcast %cst_115 : f32 to vector<1x128xf32>
      %1046 = arith.select %1044, %1035, %1045 : vector<1x128xi1>, vector<1x128xf32>
      %1047 = arith.subf %1034, %1033 : vector<1x128xf32>
      %1048 = tpu.reciprocal %1046 {approx = true} : vector<1x128xf32> -> vector<1x128xf32>
      %cst_116 = arith.constant 5.000000e-01 : f32
      %1049 = vector.broadcast %cst_116 : f32 to vector<1x128xf32>
      %1050 = arith.mulf %1049, %1048 : vector<1x128xf32>
      %1051 = arith.mulf %1047, %1050 : vector<1x128xf32>
      %1052 = arith.mulf %1051, %1051 : vector<1x128xf32>
      %cst_117 = arith.constant 1.000000e+00 : f32
      %1053 = vector.broadcast %cst_117 : f32 to vector<1x128xf32>
      %1054 = arith.addf %1052, %1053 : vector<1x128xf32>
      %1055 = math.rsqrt %1054 : vector<1x128xf32>
      %cst_118 = arith.constant 0.000000e+00 : f32
      %1056 = vector.broadcast %cst_118 : f32 to vector<1x128xf32>
      %1057 = arith.cmpf oge, %1051, %1056 : vector<1x128xf32>
      %cst_119 = arith.constant 1.000000e+00 : f32
      %cst_120 = arith.constant -1.000000e+00 : f32
      %1058 = vector.broadcast %cst_119 : f32 to vector<1x128xf32>
      %1059 = vector.broadcast %cst_120 : f32 to vector<1x128xf32>
      %1060 = arith.select %1057, %1058, %1059 : vector<1x128xi1>, vector<1x128xf32>
      %1061 = math.absf %1051 : vector<1x128xf32>
      %1062 = arith.mulf %1054, %1055 : vector<1x128xf32>
      %1063 = arith.addf %1061, %1062 : vector<1x128xf32>
      %1064 = tpu.reciprocal %1063 {approx = true} : vector<1x128xf32> -> vector<1x128xf32>
      %1065 = arith.mulf %1060, %1064 : vector<1x128xf32>
      %cst_121 = arith.constant 0.000000e+00 : f32
      %1066 = vector.broadcast %cst_121 : f32 to vector<1x128xf32>
      %1067 = arith.select %1044, %1065, %1066 : vector<1x128xi1>, vector<1x128xf32>
      %1068 = arith.mulf %1067, %1067 : vector<1x128xf32>
      %cst_122 = arith.constant 1.000000e+00 : f32
      %1069 = vector.broadcast %cst_122 : f32 to vector<1x128xf32>
      %1070 = arith.addf %1068, %1069 : vector<1x128xf32>
      %1071 = math.rsqrt %1070 : vector<1x128xf32>
      %1072 = arith.mulf %1067, %1071 : vector<1x128xf32>
      %1073 = vector.shape_cast %1071 : vector<1x128xf32> to vector<1x128xf32>
      %1074 = vector.broadcast %1073 : vector<1x128xf32> to vector<8x128xf32>
      %1075 = vector.shape_cast %1072 : vector<1x128xf32> to vector<1x128xf32>
      %1076 = vector.broadcast %1075 : vector<1x128xf32> to vector<8x128xf32>
      %1077 = arith.mulf %1074, %982 : vector<8x128xf32>
      %1078 = arith.mulf %1076, %990 : vector<8x128xf32>
      %1079 = arith.subf %1077, %1078 : vector<8x128xf32>
      %1080 = arith.mulf %1076, %982 : vector<8x128xf32>
      %1081 = arith.mulf %1074, %990 : vector<8x128xf32>
      %1082 = arith.addf %1080, %1081 : vector<8x128xf32>
      %1083 = vector.extract_strided_slice %1079 {offsets = [1, 0], sizes = [1, 128], strides = [1, 1]} : vector<8x128xf32> to vector<1x128xf32>
      %1084 = vector.extract_strided_slice %1079 {offsets = [2, 0], sizes = [1, 128], strides = [1, 1]} : vector<8x128xf32> to vector<1x128xf32>
      %1085 = vector.extract_strided_slice %1082 {offsets = [1, 0], sizes = [1, 128], strides = [1, 1]} : vector<8x128xf32> to vector<1x128xf32>
      %1086 = vector.extract_strided_slice %1082 {offsets = [2, 0], sizes = [1, 128], strides = [1, 1]} : vector<8x128xf32> to vector<1x128xf32>
      %1087 = arith.mulf %1071, %1083 : vector<1x128xf32>
      %1088 = arith.mulf %1072, %1084 : vector<1x128xf32>
      %1089 = arith.subf %1087, %1088 : vector<1x128xf32>
      %1090 = arith.mulf %1072, %1083 : vector<1x128xf32>
      %1091 = arith.mulf %1071, %1084 : vector<1x128xf32>
      %1092 = arith.addf %1090, %1091 : vector<1x128xf32>
      %1093 = vector.shape_cast %1092 : vector<1x128xf32> to vector<1x128xf32>
      %1094 = vector.broadcast %1093 : vector<1x128xf32> to vector<8x128xf32>
      %1095 = arith.select %1032, %1094, %1079 : vector<8x128xi1>, vector<8x128xf32>
      %1096 = vector.shape_cast %1089 : vector<1x128xf32> to vector<1x128xf32>
      %1097 = vector.broadcast %1096 : vector<1x128xf32> to vector<8x128xf32>
      %1098 = arith.select %1030, %1097, %1095 : vector<8x128xi1>, vector<8x128xf32>
      %1099 = arith.mulf %1071, %1085 : vector<1x128xf32>
      %1100 = arith.mulf %1072, %1086 : vector<1x128xf32>
      %1101 = arith.subf %1099, %1100 : vector<1x128xf32>
      %1102 = arith.mulf %1072, %1085 : vector<1x128xf32>
      %1103 = arith.mulf %1071, %1086 : vector<1x128xf32>
      %1104 = arith.addf %1102, %1103 : vector<1x128xf32>
      %1105 = vector.shape_cast %1104 : vector<1x128xf32> to vector<1x128xf32>
      %1106 = vector.broadcast %1105 : vector<1x128xf32> to vector<8x128xf32>
      %1107 = arith.select %1032, %1106, %1082 : vector<8x128xi1>, vector<8x128xf32>
      %1108 = vector.shape_cast %1101 : vector<1x128xf32> to vector<1x128xf32>
      %1109 = vector.broadcast %1108 : vector<1x128xf32> to vector<8x128xf32>
      %1110 = arith.select %1030, %1109, %1107 : vector<8x128xi1>, vector<8x128xf32>
      %1111 = vector.extract_strided_slice %1079 {offsets = [0, 0], sizes = [1, 128], strides = [1, 1]} : vector<8x128xf32> to vector<1x128xf32>
      %1112 = vector.extract_strided_slice %1082 {offsets = [0, 0], sizes = [1, 128], strides = [1, 1]} : vector<8x128xf32> to vector<1x128xf32>
      %1113 = vector.shape_cast %1112 : vector<1x128xf32> to vector<1x128xf32>
      %1114 = vector.broadcast %1113 : vector<1x128xf32> to vector<8x128xf32>
      %1115 = arith.select %1032, %1114, %962 : vector<8x128xi1>, vector<8x128xf32>
      %1116 = vector.shape_cast %1111 : vector<1x128xf32> to vector<1x128xf32>
      %1117 = vector.broadcast %1116 : vector<1x128xf32> to vector<8x128xf32>
      %1118 = arith.select %1030, %1117, %1115 : vector<8x128xi1>, vector<8x128xf32>
      %1119 = vector.extract_strided_slice %1079 {offsets = [3, 0], sizes = [1, 128], strides = [1, 1]} : vector<8x128xf32> to vector<1x128xf32>
      %1120 = vector.extract_strided_slice %1082 {offsets = [3, 0], sizes = [1, 128], strides = [1, 1]} : vector<8x128xf32> to vector<1x128xf32>
      %1121 = vector.shape_cast %1120 : vector<1x128xf32> to vector<1x128xf32>
      %1122 = vector.broadcast %1121 : vector<1x128xf32> to vector<8x128xf32>
      %1123 = arith.select %1032, %1122, %998 : vector<8x128xi1>, vector<8x128xf32>
      %1124 = vector.shape_cast %1119 : vector<1x128xf32> to vector<1x128xf32>
      %1125 = vector.broadcast %1124 : vector<1x128xf32> to vector<8x128xf32>
      %1126 = arith.select %1030, %1125, %1123 : vector<8x128xi1>, vector<8x128xf32>
      %1127 = vector.extract_strided_slice %1079 {offsets = [4, 0], sizes = [1, 128], strides = [1, 1]} : vector<8x128xf32> to vector<1x128xf32>
      %1128 = vector.extract_strided_slice %1082 {offsets = [4, 0], sizes = [1, 128], strides = [1, 1]} : vector<8x128xf32> to vector<1x128xf32>
      %1129 = vector.shape_cast %1128 : vector<1x128xf32> to vector<1x128xf32>
      %1130 = vector.broadcast %1129 : vector<1x128xf32> to vector<8x128xf32>
      %1131 = arith.select %1032, %1130, %1006 : vector<8x128xi1>, vector<8x128xf32>
      %1132 = vector.shape_cast %1127 : vector<1x128xf32> to vector<1x128xf32>
      %1133 = vector.broadcast %1132 : vector<1x128xf32> to vector<8x128xf32>
      %1134 = arith.select %1030, %1133, %1131 : vector<8x128xi1>, vector<8x128xf32>
      %1135 = vector.extract_strided_slice %1079 {offsets = [5, 0], sizes = [1, 128], strides = [1, 1]} : vector<8x128xf32> to vector<1x128xf32>
      %1136 = vector.extract_strided_slice %1082 {offsets = [5, 0], sizes = [1, 128], strides = [1, 1]} : vector<8x128xf32> to vector<1x128xf32>
      %1137 = vector.shape_cast %1136 : vector<1x128xf32> to vector<1x128xf32>
      %1138 = vector.broadcast %1137 : vector<1x128xf32> to vector<8x128xf32>
      %1139 = arith.select %1032, %1138, %1014 : vector<8x128xi1>, vector<8x128xf32>
      %1140 = vector.shape_cast %1135 : vector<1x128xf32> to vector<1x128xf32>
      %1141 = vector.broadcast %1140 : vector<1x128xf32> to vector<8x128xf32>
      %1142 = arith.select %1030, %1141, %1139 : vector<8x128xi1>, vector<8x128xf32>
      %1143 = vector.extract_strided_slice %1079 {offsets = [6, 0], sizes = [1, 128], strides = [1, 1]} : vector<8x128xf32> to vector<1x128xf32>
      %1144 = vector.extract_strided_slice %1082 {offsets = [6, 0], sizes = [1, 128], strides = [1, 1]} : vector<8x128xf32> to vector<1x128xf32>
      %1145 = vector.shape_cast %1144 : vector<1x128xf32> to vector<1x128xf32>
      %1146 = vector.broadcast %1145 : vector<1x128xf32> to vector<8x128xf32>
      %1147 = arith.select %1032, %1146, %1022 : vector<8x128xi1>, vector<8x128xf32>
      %1148 = vector.shape_cast %1143 : vector<1x128xf32> to vector<1x128xf32>
      %1149 = vector.broadcast %1148 : vector<1x128xf32> to vector<8x128xf32>
      %1150 = arith.select %1030, %1149, %1147 : vector<8x128xi1>, vector<8x128xf32>
      %1151 = vector.extract_strided_slice %1079 {offsets = [7, 0], sizes = [1, 128], strides = [1, 1]} : vector<8x128xf32> to vector<1x128xf32>
      %1152 = vector.extract_strided_slice %1082 {offsets = [7, 0], sizes = [1, 128], strides = [1, 1]} : vector<8x128xf32> to vector<1x128xf32>
      %1153 = vector.shape_cast %1152 : vector<1x128xf32> to vector<1x128xf32>
      %1154 = vector.broadcast %1153 : vector<1x128xf32> to vector<8x128xf32>
      %1155 = arith.select %1032, %1154, %974 : vector<8x128xi1>, vector<8x128xf32>
      %1156 = vector.shape_cast %1151 : vector<1x128xf32> to vector<1x128xf32>
      %1157 = vector.broadcast %1156 : vector<1x128xf32> to vector<8x128xf32>
      %1158 = arith.select %1030, %1157, %1155 : vector<8x128xi1>, vector<8x128xf32>
      %1159 = arith.mulf %1074, %224 : vector<8x128xf32>
      %1160 = arith.mulf %1076, %358 : vector<8x128xf32>
      %1161 = arith.subf %1159, %1160 : vector<8x128xf32>
      %1162 = arith.mulf %1076, %224 : vector<8x128xf32>
      %1163 = arith.mulf %1074, %358 : vector<8x128xf32>
      %1164 = arith.addf %1162, %1163 : vector<8x128xf32>
      %c3_i32_123 = arith.constant 3 : i32
      %1165 = vector.broadcast %c3_i32_123 : i32 to vector<8x128xi32>
      %1166 = arith.cmpi eq, %0, %1165 : vector<8x128xi32>
      %1167 = vector.extract_strided_slice %1098 {offsets = [1, 0], sizes = [1, 128], strides = [1, 1]} : vector<8x128xf32> to vector<1x128xf32>
      %1168 = vector.extract_strided_slice %1126 {offsets = [3, 0], sizes = [1, 128], strides = [1, 1]} : vector<8x128xf32> to vector<1x128xf32>
      %1169 = vector.extract_strided_slice %1098 {offsets = [3, 0], sizes = [1, 128], strides = [1, 1]} : vector<8x128xf32> to vector<1x128xf32>
      %1170 = math.absf %1169 : vector<1x128xf32>
      %1171 = math.absf %1167 : vector<1x128xf32>
      %1172 = math.absf %1168 : vector<1x128xf32>
      %1173 = arith.addf %1171, %1172 : vector<1x128xf32>
      %cst_124 = arith.constant 9.99999996E-13 : f32
      %1174 = vector.broadcast %cst_124 : f32 to vector<1x128xf32>
      %1175 = arith.mulf %1174, %1173 : vector<1x128xf32>
      %cst_125 = arith.constant 1.000000e-30 : f32
      %1176 = vector.broadcast %cst_125 : f32 to vector<1x128xf32>
      %1177 = arith.addf %1175, %1176 : vector<1x128xf32>
      %1178 = arith.cmpf ogt, %1170, %1177 : vector<1x128xf32>
      %cst_126 = arith.constant 1.000000e+00 : f32
      %1179 = vector.broadcast %cst_126 : f32 to vector<1x128xf32>
      %1180 = arith.select %1178, %1169, %1179 : vector<1x128xi1>, vector<1x128xf32>
      %1181 = arith.subf %1168, %1167 : vector<1x128xf32>
      %1182 = tpu.reciprocal %1180 {approx = true} : vector<1x128xf32> -> vector<1x128xf32>
      %cst_127 = arith.constant 5.000000e-01 : f32
      %1183 = vector.broadcast %cst_127 : f32 to vector<1x128xf32>
      %1184 = arith.mulf %1183, %1182 : vector<1x128xf32>
      %1185 = arith.mulf %1181, %1184 : vector<1x128xf32>
      %1186 = arith.mulf %1185, %1185 : vector<1x128xf32>
      %cst_128 = arith.constant 1.000000e+00 : f32
      %1187 = vector.broadcast %cst_128 : f32 to vector<1x128xf32>
      %1188 = arith.addf %1186, %1187 : vector<1x128xf32>
      %1189 = math.rsqrt %1188 : vector<1x128xf32>
      %cst_129 = arith.constant 0.000000e+00 : f32
      %1190 = vector.broadcast %cst_129 : f32 to vector<1x128xf32>
      %1191 = arith.cmpf oge, %1185, %1190 : vector<1x128xf32>
      %cst_130 = arith.constant 1.000000e+00 : f32
      %cst_131 = arith.constant -1.000000e+00 : f32
      %1192 = vector.broadcast %cst_130 : f32 to vector<1x128xf32>
      %1193 = vector.broadcast %cst_131 : f32 to vector<1x128xf32>
      %1194 = arith.select %1191, %1192, %1193 : vector<1x128xi1>, vector<1x128xf32>
      %1195 = math.absf %1185 : vector<1x128xf32>
      %1196 = arith.mulf %1188, %1189 : vector<1x128xf32>
      %1197 = arith.addf %1195, %1196 : vector<1x128xf32>
      %1198 = tpu.reciprocal %1197 {approx = true} : vector<1x128xf32> -> vector<1x128xf32>
      %1199 = arith.mulf %1194, %1198 : vector<1x128xf32>
      %cst_132 = arith.constant 0.000000e+00 : f32
      %1200 = vector.broadcast %cst_132 : f32 to vector<1x128xf32>
      %1201 = arith.select %1178, %1199, %1200 : vector<1x128xi1>, vector<1x128xf32>
      %1202 = arith.mulf %1201, %1201 : vector<1x128xf32>
      %cst_133 = arith.constant 1.000000e+00 : f32
      %1203 = vector.broadcast %cst_133 : f32 to vector<1x128xf32>
      %1204 = arith.addf %1202, %1203 : vector<1x128xf32>
      %1205 = math.rsqrt %1204 : vector<1x128xf32>
      %1206 = arith.mulf %1201, %1205 : vector<1x128xf32>
      %1207 = vector.shape_cast %1205 : vector<1x128xf32> to vector<1x128xf32>
      %1208 = vector.broadcast %1207 : vector<1x128xf32> to vector<8x128xf32>
      %1209 = vector.shape_cast %1206 : vector<1x128xf32> to vector<1x128xf32>
      %1210 = vector.broadcast %1209 : vector<1x128xf32> to vector<8x128xf32>
      %1211 = arith.mulf %1208, %1098 : vector<8x128xf32>
      %1212 = arith.mulf %1210, %1126 : vector<8x128xf32>
      %1213 = arith.subf %1211, %1212 : vector<8x128xf32>
      %1214 = arith.mulf %1210, %1098 : vector<8x128xf32>
      %1215 = arith.mulf %1208, %1126 : vector<8x128xf32>
      %1216 = arith.addf %1214, %1215 : vector<8x128xf32>
      %1217 = vector.extract_strided_slice %1213 {offsets = [1, 0], sizes = [1, 128], strides = [1, 1]} : vector<8x128xf32> to vector<1x128xf32>
      %1218 = vector.extract_strided_slice %1213 {offsets = [3, 0], sizes = [1, 128], strides = [1, 1]} : vector<8x128xf32> to vector<1x128xf32>
      %1219 = vector.extract_strided_slice %1216 {offsets = [1, 0], sizes = [1, 128], strides = [1, 1]} : vector<8x128xf32> to vector<1x128xf32>
      %1220 = vector.extract_strided_slice %1216 {offsets = [3, 0], sizes = [1, 128], strides = [1, 1]} : vector<8x128xf32> to vector<1x128xf32>
      %1221 = arith.mulf %1205, %1217 : vector<1x128xf32>
      %1222 = arith.mulf %1206, %1218 : vector<1x128xf32>
      %1223 = arith.subf %1221, %1222 : vector<1x128xf32>
      %1224 = arith.mulf %1206, %1217 : vector<1x128xf32>
      %1225 = arith.mulf %1205, %1218 : vector<1x128xf32>
      %1226 = arith.addf %1224, %1225 : vector<1x128xf32>
      %1227 = vector.shape_cast %1226 : vector<1x128xf32> to vector<1x128xf32>
      %1228 = vector.broadcast %1227 : vector<1x128xf32> to vector<8x128xf32>
      %1229 = arith.select %1166, %1228, %1213 : vector<8x128xi1>, vector<8x128xf32>
      %1230 = vector.shape_cast %1223 : vector<1x128xf32> to vector<1x128xf32>
      %1231 = vector.broadcast %1230 : vector<1x128xf32> to vector<8x128xf32>
      %1232 = arith.select %1030, %1231, %1229 : vector<8x128xi1>, vector<8x128xf32>
      %1233 = arith.mulf %1205, %1219 : vector<1x128xf32>
      %1234 = arith.mulf %1206, %1220 : vector<1x128xf32>
      %1235 = arith.subf %1233, %1234 : vector<1x128xf32>
      %1236 = arith.mulf %1206, %1219 : vector<1x128xf32>
      %1237 = arith.mulf %1205, %1220 : vector<1x128xf32>
      %1238 = arith.addf %1236, %1237 : vector<1x128xf32>
      %1239 = vector.shape_cast %1238 : vector<1x128xf32> to vector<1x128xf32>
      %1240 = vector.broadcast %1239 : vector<1x128xf32> to vector<8x128xf32>
      %1241 = arith.select %1166, %1240, %1216 : vector<8x128xi1>, vector<8x128xf32>
      %1242 = vector.shape_cast %1235 : vector<1x128xf32> to vector<1x128xf32>
      %1243 = vector.broadcast %1242 : vector<1x128xf32> to vector<8x128xf32>
      %1244 = arith.select %1030, %1243, %1241 : vector<8x128xi1>, vector<8x128xf32>
      %1245 = vector.extract_strided_slice %1213 {offsets = [0, 0], sizes = [1, 128], strides = [1, 1]} : vector<8x128xf32> to vector<1x128xf32>
      %1246 = vector.extract_strided_slice %1216 {offsets = [0, 0], sizes = [1, 128], strides = [1, 1]} : vector<8x128xf32> to vector<1x128xf32>
      %1247 = vector.shape_cast %1246 : vector<1x128xf32> to vector<1x128xf32>
      %1248 = vector.broadcast %1247 : vector<1x128xf32> to vector<8x128xf32>
      %1249 = arith.select %1166, %1248, %1118 : vector<8x128xi1>, vector<8x128xf32>
      %1250 = vector.shape_cast %1245 : vector<1x128xf32> to vector<1x128xf32>
      %1251 = vector.broadcast %1250 : vector<1x128xf32> to vector<8x128xf32>
      %1252 = arith.select %1030, %1251, %1249 : vector<8x128xi1>, vector<8x128xf32>
      %1253 = vector.extract_strided_slice %1213 {offsets = [2, 0], sizes = [1, 128], strides = [1, 1]} : vector<8x128xf32> to vector<1x128xf32>
      %1254 = vector.extract_strided_slice %1216 {offsets = [2, 0], sizes = [1, 128], strides = [1, 1]} : vector<8x128xf32> to vector<1x128xf32>
      %1255 = vector.shape_cast %1254 : vector<1x128xf32> to vector<1x128xf32>
      %1256 = vector.broadcast %1255 : vector<1x128xf32> to vector<8x128xf32>
      %1257 = arith.select %1166, %1256, %1110 : vector<8x128xi1>, vector<8x128xf32>
      %1258 = vector.shape_cast %1253 : vector<1x128xf32> to vector<1x128xf32>
      %1259 = vector.broadcast %1258 : vector<1x128xf32> to vector<8x128xf32>
      %1260 = arith.select %1030, %1259, %1257 : vector<8x128xi1>, vector<8x128xf32>
      %1261 = vector.extract_strided_slice %1213 {offsets = [4, 0], sizes = [1, 128], strides = [1, 1]} : vector<8x128xf32> to vector<1x128xf32>
      %1262 = vector.extract_strided_slice %1216 {offsets = [4, 0], sizes = [1, 128], strides = [1, 1]} : vector<8x128xf32> to vector<1x128xf32>
      %1263 = vector.shape_cast %1262 : vector<1x128xf32> to vector<1x128xf32>
      %1264 = vector.broadcast %1263 : vector<1x128xf32> to vector<8x128xf32>
      %1265 = arith.select %1166, %1264, %1134 : vector<8x128xi1>, vector<8x128xf32>
      %1266 = vector.shape_cast %1261 : vector<1x128xf32> to vector<1x128xf32>
      %1267 = vector.broadcast %1266 : vector<1x128xf32> to vector<8x128xf32>
      %1268 = arith.select %1030, %1267, %1265 : vector<8x128xi1>, vector<8x128xf32>
      %1269 = vector.extract_strided_slice %1213 {offsets = [5, 0], sizes = [1, 128], strides = [1, 1]} : vector<8x128xf32> to vector<1x128xf32>
      %1270 = vector.extract_strided_slice %1216 {offsets = [5, 0], sizes = [1, 128], strides = [1, 1]} : vector<8x128xf32> to vector<1x128xf32>
      %1271 = vector.shape_cast %1270 : vector<1x128xf32> to vector<1x128xf32>
      %1272 = vector.broadcast %1271 : vector<1x128xf32> to vector<8x128xf32>
      %1273 = arith.select %1166, %1272, %1142 : vector<8x128xi1>, vector<8x128xf32>
      %1274 = vector.shape_cast %1269 : vector<1x128xf32> to vector<1x128xf32>
      %1275 = vector.broadcast %1274 : vector<1x128xf32> to vector<8x128xf32>
      %1276 = arith.select %1030, %1275, %1273 : vector<8x128xi1>, vector<8x128xf32>
      %1277 = vector.extract_strided_slice %1213 {offsets = [6, 0], sizes = [1, 128], strides = [1, 1]} : vector<8x128xf32> to vector<1x128xf32>
      %1278 = vector.extract_strided_slice %1216 {offsets = [6, 0], sizes = [1, 128], strides = [1, 1]} : vector<8x128xf32> to vector<1x128xf32>
      %1279 = vector.shape_cast %1278 : vector<1x128xf32> to vector<1x128xf32>
      %1280 = vector.broadcast %1279 : vector<1x128xf32> to vector<8x128xf32>
      %1281 = arith.select %1166, %1280, %1150 : vector<8x128xi1>, vector<8x128xf32>
      %1282 = vector.shape_cast %1277 : vector<1x128xf32> to vector<1x128xf32>
      %1283 = vector.broadcast %1282 : vector<1x128xf32> to vector<8x128xf32>
      %1284 = arith.select %1030, %1283, %1281 : vector<8x128xi1>, vector<8x128xf32>
      %1285 = vector.extract_strided_slice %1213 {offsets = [7, 0], sizes = [1, 128], strides = [1, 1]} : vector<8x128xf32> to vector<1x128xf32>
      %1286 = vector.extract_strided_slice %1216 {offsets = [7, 0], sizes = [1, 128], strides = [1, 1]} : vector<8x128xf32> to vector<1x128xf32>
      %1287 = vector.shape_cast %1286 : vector<1x128xf32> to vector<1x128xf32>
      %1288 = vector.broadcast %1287 : vector<1x128xf32> to vector<8x128xf32>
      %1289 = arith.select %1166, %1288, %1158 : vector<8x128xi1>, vector<8x128xf32>
      %1290 = vector.shape_cast %1285 : vector<1x128xf32> to vector<1x128xf32>
      %1291 = vector.broadcast %1290 : vector<1x128xf32> to vector<8x128xf32>
      %1292 = arith.select %1030, %1291, %1289 : vector<8x128xi1>, vector<8x128xf32>
      %1293 = arith.mulf %1208, %1161 : vector<8x128xf32>
      %1294 = arith.mulf %1210, %492 : vector<8x128xf32>
      %1295 = arith.subf %1293, %1294 : vector<8x128xf32>
      %1296 = arith.mulf %1210, %1161 : vector<8x128xf32>
      %1297 = arith.mulf %1208, %492 : vector<8x128xf32>
      %1298 = arith.addf %1296, %1297 : vector<8x128xf32>
      %c4_i32_134 = arith.constant 4 : i32
      %1299 = vector.broadcast %c4_i32_134 : i32 to vector<8x128xi32>
      %1300 = arith.cmpi eq, %0, %1299 : vector<8x128xi32>
      %1301 = vector.extract_strided_slice %1232 {offsets = [1, 0], sizes = [1, 128], strides = [1, 1]} : vector<8x128xf32> to vector<1x128xf32>
      %1302 = vector.extract_strided_slice %1268 {offsets = [4, 0], sizes = [1, 128], strides = [1, 1]} : vector<8x128xf32> to vector<1x128xf32>
      %1303 = vector.extract_strided_slice %1232 {offsets = [4, 0], sizes = [1, 128], strides = [1, 1]} : vector<8x128xf32> to vector<1x128xf32>
      %1304 = math.absf %1303 : vector<1x128xf32>
      %1305 = math.absf %1301 : vector<1x128xf32>
      %1306 = math.absf %1302 : vector<1x128xf32>
      %1307 = arith.addf %1305, %1306 : vector<1x128xf32>
      %cst_135 = arith.constant 9.99999996E-13 : f32
      %1308 = vector.broadcast %cst_135 : f32 to vector<1x128xf32>
      %1309 = arith.mulf %1308, %1307 : vector<1x128xf32>
      %cst_136 = arith.constant 1.000000e-30 : f32
      %1310 = vector.broadcast %cst_136 : f32 to vector<1x128xf32>
      %1311 = arith.addf %1309, %1310 : vector<1x128xf32>
      %1312 = arith.cmpf ogt, %1304, %1311 : vector<1x128xf32>
      %cst_137 = arith.constant 1.000000e+00 : f32
      %1313 = vector.broadcast %cst_137 : f32 to vector<1x128xf32>
      %1314 = arith.select %1312, %1303, %1313 : vector<1x128xi1>, vector<1x128xf32>
      %1315 = arith.subf %1302, %1301 : vector<1x128xf32>
      %1316 = tpu.reciprocal %1314 {approx = true} : vector<1x128xf32> -> vector<1x128xf32>
      %cst_138 = arith.constant 5.000000e-01 : f32
      %1317 = vector.broadcast %cst_138 : f32 to vector<1x128xf32>
      %1318 = arith.mulf %1317, %1316 : vector<1x128xf32>
      %1319 = arith.mulf %1315, %1318 : vector<1x128xf32>
      %1320 = arith.mulf %1319, %1319 : vector<1x128xf32>
      %cst_139 = arith.constant 1.000000e+00 : f32
      %1321 = vector.broadcast %cst_139 : f32 to vector<1x128xf32>
      %1322 = arith.addf %1320, %1321 : vector<1x128xf32>
      %1323 = math.rsqrt %1322 : vector<1x128xf32>
      %cst_140 = arith.constant 0.000000e+00 : f32
      %1324 = vector.broadcast %cst_140 : f32 to vector<1x128xf32>
      %1325 = arith.cmpf oge, %1319, %1324 : vector<1x128xf32>
      %cst_141 = arith.constant 1.000000e+00 : f32
      %cst_142 = arith.constant -1.000000e+00 : f32
      %1326 = vector.broadcast %cst_141 : f32 to vector<1x128xf32>
      %1327 = vector.broadcast %cst_142 : f32 to vector<1x128xf32>
      %1328 = arith.select %1325, %1326, %1327 : vector<1x128xi1>, vector<1x128xf32>
      %1329 = math.absf %1319 : vector<1x128xf32>
      %1330 = arith.mulf %1322, %1323 : vector<1x128xf32>
      %1331 = arith.addf %1329, %1330 : vector<1x128xf32>
      %1332 = tpu.reciprocal %1331 {approx = true} : vector<1x128xf32> -> vector<1x128xf32>
      %1333 = arith.mulf %1328, %1332 : vector<1x128xf32>
      %cst_143 = arith.constant 0.000000e+00 : f32
      %1334 = vector.broadcast %cst_143 : f32 to vector<1x128xf32>
      %1335 = arith.select %1312, %1333, %1334 : vector<1x128xi1>, vector<1x128xf32>
      %1336 = arith.mulf %1335, %1335 : vector<1x128xf32>
      %cst_144 = arith.constant 1.000000e+00 : f32
      %1337 = vector.broadcast %cst_144 : f32 to vector<1x128xf32>
      %1338 = arith.addf %1336, %1337 : vector<1x128xf32>
      %1339 = math.rsqrt %1338 : vector<1x128xf32>
      %1340 = arith.mulf %1335, %1339 : vector<1x128xf32>
      %1341 = vector.shape_cast %1339 : vector<1x128xf32> to vector<1x128xf32>
      %1342 = vector.broadcast %1341 : vector<1x128xf32> to vector<8x128xf32>
      %1343 = vector.shape_cast %1340 : vector<1x128xf32> to vector<1x128xf32>
      %1344 = vector.broadcast %1343 : vector<1x128xf32> to vector<8x128xf32>
      %1345 = arith.mulf %1342, %1232 : vector<8x128xf32>
      %1346 = arith.mulf %1344, %1268 : vector<8x128xf32>
      %1347 = arith.subf %1345, %1346 : vector<8x128xf32>
      %1348 = arith.mulf %1344, %1232 : vector<8x128xf32>
      %1349 = arith.mulf %1342, %1268 : vector<8x128xf32>
      %1350 = arith.addf %1348, %1349 : vector<8x128xf32>
      %1351 = vector.extract_strided_slice %1347 {offsets = [1, 0], sizes = [1, 128], strides = [1, 1]} : vector<8x128xf32> to vector<1x128xf32>
      %1352 = vector.extract_strided_slice %1347 {offsets = [4, 0], sizes = [1, 128], strides = [1, 1]} : vector<8x128xf32> to vector<1x128xf32>
      %1353 = vector.extract_strided_slice %1350 {offsets = [1, 0], sizes = [1, 128], strides = [1, 1]} : vector<8x128xf32> to vector<1x128xf32>
      %1354 = vector.extract_strided_slice %1350 {offsets = [4, 0], sizes = [1, 128], strides = [1, 1]} : vector<8x128xf32> to vector<1x128xf32>
      %1355 = arith.mulf %1339, %1351 : vector<1x128xf32>
      %1356 = arith.mulf %1340, %1352 : vector<1x128xf32>
      %1357 = arith.subf %1355, %1356 : vector<1x128xf32>
      %1358 = arith.mulf %1340, %1351 : vector<1x128xf32>
      %1359 = arith.mulf %1339, %1352 : vector<1x128xf32>
      %1360 = arith.addf %1358, %1359 : vector<1x128xf32>
      %1361 = vector.shape_cast %1360 : vector<1x128xf32> to vector<1x128xf32>
      %1362 = vector.broadcast %1361 : vector<1x128xf32> to vector<8x128xf32>
      %1363 = arith.select %1300, %1362, %1347 : vector<8x128xi1>, vector<8x128xf32>
      %1364 = vector.shape_cast %1357 : vector<1x128xf32> to vector<1x128xf32>
      %1365 = vector.broadcast %1364 : vector<1x128xf32> to vector<8x128xf32>
      %1366 = arith.select %1030, %1365, %1363 : vector<8x128xi1>, vector<8x128xf32>
      %1367 = arith.mulf %1339, %1353 : vector<1x128xf32>
      %1368 = arith.mulf %1340, %1354 : vector<1x128xf32>
      %1369 = arith.subf %1367, %1368 : vector<1x128xf32>
      %1370 = arith.mulf %1340, %1353 : vector<1x128xf32>
      %1371 = arith.mulf %1339, %1354 : vector<1x128xf32>
      %1372 = arith.addf %1370, %1371 : vector<1x128xf32>
      %1373 = vector.shape_cast %1372 : vector<1x128xf32> to vector<1x128xf32>
      %1374 = vector.broadcast %1373 : vector<1x128xf32> to vector<8x128xf32>
      %1375 = arith.select %1300, %1374, %1350 : vector<8x128xi1>, vector<8x128xf32>
      %1376 = vector.shape_cast %1369 : vector<1x128xf32> to vector<1x128xf32>
      %1377 = vector.broadcast %1376 : vector<1x128xf32> to vector<8x128xf32>
      %1378 = arith.select %1030, %1377, %1375 : vector<8x128xi1>, vector<8x128xf32>
      %1379 = vector.extract_strided_slice %1347 {offsets = [0, 0], sizes = [1, 128], strides = [1, 1]} : vector<8x128xf32> to vector<1x128xf32>
      %1380 = vector.extract_strided_slice %1350 {offsets = [0, 0], sizes = [1, 128], strides = [1, 1]} : vector<8x128xf32> to vector<1x128xf32>
      %1381 = vector.shape_cast %1380 : vector<1x128xf32> to vector<1x128xf32>
      %1382 = vector.broadcast %1381 : vector<1x128xf32> to vector<8x128xf32>
      %1383 = arith.select %1300, %1382, %1252 : vector<8x128xi1>, vector<8x128xf32>
      %1384 = vector.shape_cast %1379 : vector<1x128xf32> to vector<1x128xf32>
      %1385 = vector.broadcast %1384 : vector<1x128xf32> to vector<8x128xf32>
      %1386 = arith.select %1030, %1385, %1383 : vector<8x128xi1>, vector<8x128xf32>
      %1387 = vector.extract_strided_slice %1347 {offsets = [2, 0], sizes = [1, 128], strides = [1, 1]} : vector<8x128xf32> to vector<1x128xf32>
      %1388 = vector.extract_strided_slice %1350 {offsets = [2, 0], sizes = [1, 128], strides = [1, 1]} : vector<8x128xf32> to vector<1x128xf32>
      %1389 = vector.shape_cast %1388 : vector<1x128xf32> to vector<1x128xf32>
      %1390 = vector.broadcast %1389 : vector<1x128xf32> to vector<8x128xf32>
      %1391 = arith.select %1300, %1390, %1260 : vector<8x128xi1>, vector<8x128xf32>
      %1392 = vector.shape_cast %1387 : vector<1x128xf32> to vector<1x128xf32>
      %1393 = vector.broadcast %1392 : vector<1x128xf32> to vector<8x128xf32>
      %1394 = arith.select %1030, %1393, %1391 : vector<8x128xi1>, vector<8x128xf32>
      %1395 = vector.extract_strided_slice %1347 {offsets = [3, 0], sizes = [1, 128], strides = [1, 1]} : vector<8x128xf32> to vector<1x128xf32>
      %1396 = vector.extract_strided_slice %1350 {offsets = [3, 0], sizes = [1, 128], strides = [1, 1]} : vector<8x128xf32> to vector<1x128xf32>
      %1397 = vector.shape_cast %1396 : vector<1x128xf32> to vector<1x128xf32>
      %1398 = vector.broadcast %1397 : vector<1x128xf32> to vector<8x128xf32>
      %1399 = arith.select %1300, %1398, %1244 : vector<8x128xi1>, vector<8x128xf32>
      %1400 = vector.shape_cast %1395 : vector<1x128xf32> to vector<1x128xf32>
      %1401 = vector.broadcast %1400 : vector<1x128xf32> to vector<8x128xf32>
      %1402 = arith.select %1030, %1401, %1399 : vector<8x128xi1>, vector<8x128xf32>
      %1403 = vector.extract_strided_slice %1347 {offsets = [5, 0], sizes = [1, 128], strides = [1, 1]} : vector<8x128xf32> to vector<1x128xf32>
      %1404 = vector.extract_strided_slice %1350 {offsets = [5, 0], sizes = [1, 128], strides = [1, 1]} : vector<8x128xf32> to vector<1x128xf32>
      %1405 = vector.shape_cast %1404 : vector<1x128xf32> to vector<1x128xf32>
      %1406 = vector.broadcast %1405 : vector<1x128xf32> to vector<8x128xf32>
      %1407 = arith.select %1300, %1406, %1276 : vector<8x128xi1>, vector<8x128xf32>
      %1408 = vector.shape_cast %1403 : vector<1x128xf32> to vector<1x128xf32>
      %1409 = vector.broadcast %1408 : vector<1x128xf32> to vector<8x128xf32>
      %1410 = arith.select %1030, %1409, %1407 : vector<8x128xi1>, vector<8x128xf32>
      %1411 = vector.extract_strided_slice %1347 {offsets = [6, 0], sizes = [1, 128], strides = [1, 1]} : vector<8x128xf32> to vector<1x128xf32>
      %1412 = vector.extract_strided_slice %1350 {offsets = [6, 0], sizes = [1, 128], strides = [1, 1]} : vector<8x128xf32> to vector<1x128xf32>
      %1413 = vector.shape_cast %1412 : vector<1x128xf32> to vector<1x128xf32>
      %1414 = vector.broadcast %1413 : vector<1x128xf32> to vector<8x128xf32>
      %1415 = arith.select %1300, %1414, %1284 : vector<8x128xi1>, vector<8x128xf32>
      %1416 = vector.shape_cast %1411 : vector<1x128xf32> to vector<1x128xf32>
      %1417 = vector.broadcast %1416 : vector<1x128xf32> to vector<8x128xf32>
      %1418 = arith.select %1030, %1417, %1415 : vector<8x128xi1>, vector<8x128xf32>
      %1419 = vector.extract_strided_slice %1347 {offsets = [7, 0], sizes = [1, 128], strides = [1, 1]} : vector<8x128xf32> to vector<1x128xf32>
      %1420 = vector.extract_strided_slice %1350 {offsets = [7, 0], sizes = [1, 128], strides = [1, 1]} : vector<8x128xf32> to vector<1x128xf32>
      %1421 = vector.shape_cast %1420 : vector<1x128xf32> to vector<1x128xf32>
      %1422 = vector.broadcast %1421 : vector<1x128xf32> to vector<8x128xf32>
      %1423 = arith.select %1300, %1422, %1292 : vector<8x128xi1>, vector<8x128xf32>
      %1424 = vector.shape_cast %1419 : vector<1x128xf32> to vector<1x128xf32>
      %1425 = vector.broadcast %1424 : vector<1x128xf32> to vector<8x128xf32>
      %1426 = arith.select %1030, %1425, %1423 : vector<8x128xi1>, vector<8x128xf32>
      %1427 = arith.mulf %1342, %1295 : vector<8x128xf32>
      %1428 = arith.mulf %1344, %626 : vector<8x128xf32>
      %1429 = arith.subf %1427, %1428 : vector<8x128xf32>
      %1430 = arith.mulf %1344, %1295 : vector<8x128xf32>
      %1431 = arith.mulf %1342, %626 : vector<8x128xf32>
      %1432 = arith.addf %1430, %1431 : vector<8x128xf32>
      %c5_i32_145 = arith.constant 5 : i32
      %1433 = vector.broadcast %c5_i32_145 : i32 to vector<8x128xi32>
      %1434 = arith.cmpi eq, %0, %1433 : vector<8x128xi32>
      %1435 = vector.extract_strided_slice %1366 {offsets = [1, 0], sizes = [1, 128], strides = [1, 1]} : vector<8x128xf32> to vector<1x128xf32>
      %1436 = vector.extract_strided_slice %1410 {offsets = [5, 0], sizes = [1, 128], strides = [1, 1]} : vector<8x128xf32> to vector<1x128xf32>
      %1437 = vector.extract_strided_slice %1366 {offsets = [5, 0], sizes = [1, 128], strides = [1, 1]} : vector<8x128xf32> to vector<1x128xf32>
      %1438 = math.absf %1437 : vector<1x128xf32>
      %1439 = math.absf %1435 : vector<1x128xf32>
      %1440 = math.absf %1436 : vector<1x128xf32>
      %1441 = arith.addf %1439, %1440 : vector<1x128xf32>
      %cst_146 = arith.constant 9.99999996E-13 : f32
      %1442 = vector.broadcast %cst_146 : f32 to vector<1x128xf32>
      %1443 = arith.mulf %1442, %1441 : vector<1x128xf32>
      %cst_147 = arith.constant 1.000000e-30 : f32
      %1444 = vector.broadcast %cst_147 : f32 to vector<1x128xf32>
      %1445 = arith.addf %1443, %1444 : vector<1x128xf32>
      %1446 = arith.cmpf ogt, %1438, %1445 : vector<1x128xf32>
      %cst_148 = arith.constant 1.000000e+00 : f32
      %1447 = vector.broadcast %cst_148 : f32 to vector<1x128xf32>
      %1448 = arith.select %1446, %1437, %1447 : vector<1x128xi1>, vector<1x128xf32>
      %1449 = arith.subf %1436, %1435 : vector<1x128xf32>
      %1450 = tpu.reciprocal %1448 {approx = true} : vector<1x128xf32> -> vector<1x128xf32>
      %cst_149 = arith.constant 5.000000e-01 : f32
      %1451 = vector.broadcast %cst_149 : f32 to vector<1x128xf32>
      %1452 = arith.mulf %1451, %1450 : vector<1x128xf32>
      %1453 = arith.mulf %1449, %1452 : vector<1x128xf32>
      %1454 = arith.mulf %1453, %1453 : vector<1x128xf32>
      %cst_150 = arith.constant 1.000000e+00 : f32
      %1455 = vector.broadcast %cst_150 : f32 to vector<1x128xf32>
      %1456 = arith.addf %1454, %1455 : vector<1x128xf32>
      %1457 = math.rsqrt %1456 : vector<1x128xf32>
      %cst_151 = arith.constant 0.000000e+00 : f32
      %1458 = vector.broadcast %cst_151 : f32 to vector<1x128xf32>
      %1459 = arith.cmpf oge, %1453, %1458 : vector<1x128xf32>
      %cst_152 = arith.constant 1.000000e+00 : f32
      %cst_153 = arith.constant -1.000000e+00 : f32
      %1460 = vector.broadcast %cst_152 : f32 to vector<1x128xf32>
      %1461 = vector.broadcast %cst_153 : f32 to vector<1x128xf32>
      %1462 = arith.select %1459, %1460, %1461 : vector<1x128xi1>, vector<1x128xf32>
      %1463 = math.absf %1453 : vector<1x128xf32>
      %1464 = arith.mulf %1456, %1457 : vector<1x128xf32>
      %1465 = arith.addf %1463, %1464 : vector<1x128xf32>
      %1466 = tpu.reciprocal %1465 {approx = true} : vector<1x128xf32> -> vector<1x128xf32>
      %1467 = arith.mulf %1462, %1466 : vector<1x128xf32>
      %cst_154 = arith.constant 0.000000e+00 : f32
      %1468 = vector.broadcast %cst_154 : f32 to vector<1x128xf32>
      %1469 = arith.select %1446, %1467, %1468 : vector<1x128xi1>, vector<1x128xf32>
      %1470 = arith.mulf %1469, %1469 : vector<1x128xf32>
      %cst_155 = arith.constant 1.000000e+00 : f32
      %1471 = vector.broadcast %cst_155 : f32 to vector<1x128xf32>
      %1472 = arith.addf %1470, %1471 : vector<1x128xf32>
      %1473 = math.rsqrt %1472 : vector<1x128xf32>
      %1474 = arith.mulf %1469, %1473 : vector<1x128xf32>
      %1475 = vector.shape_cast %1473 : vector<1x128xf32> to vector<1x128xf32>
      %1476 = vector.broadcast %1475 : vector<1x128xf32> to vector<8x128xf32>
      %1477 = vector.shape_cast %1474 : vector<1x128xf32> to vector<1x128xf32>
      %1478 = vector.broadcast %1477 : vector<1x128xf32> to vector<8x128xf32>
      %1479 = arith.mulf %1476, %1366 : vector<8x128xf32>
      %1480 = arith.mulf %1478, %1410 : vector<8x128xf32>
      %1481 = arith.subf %1479, %1480 : vector<8x128xf32>
      %1482 = arith.mulf %1478, %1366 : vector<8x128xf32>
      %1483 = arith.mulf %1476, %1410 : vector<8x128xf32>
      %1484 = arith.addf %1482, %1483 : vector<8x128xf32>
      %1485 = vector.extract_strided_slice %1481 {offsets = [1, 0], sizes = [1, 128], strides = [1, 1]} : vector<8x128xf32> to vector<1x128xf32>
      %1486 = vector.extract_strided_slice %1481 {offsets = [5, 0], sizes = [1, 128], strides = [1, 1]} : vector<8x128xf32> to vector<1x128xf32>
      %1487 = vector.extract_strided_slice %1484 {offsets = [1, 0], sizes = [1, 128], strides = [1, 1]} : vector<8x128xf32> to vector<1x128xf32>
      %1488 = vector.extract_strided_slice %1484 {offsets = [5, 0], sizes = [1, 128], strides = [1, 1]} : vector<8x128xf32> to vector<1x128xf32>
      %1489 = arith.mulf %1473, %1485 : vector<1x128xf32>
      %1490 = arith.mulf %1474, %1486 : vector<1x128xf32>
      %1491 = arith.subf %1489, %1490 : vector<1x128xf32>
      %1492 = arith.mulf %1474, %1485 : vector<1x128xf32>
      %1493 = arith.mulf %1473, %1486 : vector<1x128xf32>
      %1494 = arith.addf %1492, %1493 : vector<1x128xf32>
      %1495 = vector.shape_cast %1494 : vector<1x128xf32> to vector<1x128xf32>
      %1496 = vector.broadcast %1495 : vector<1x128xf32> to vector<8x128xf32>
      %1497 = arith.select %1434, %1496, %1481 : vector<8x128xi1>, vector<8x128xf32>
      %1498 = vector.shape_cast %1491 : vector<1x128xf32> to vector<1x128xf32>
      %1499 = vector.broadcast %1498 : vector<1x128xf32> to vector<8x128xf32>
      %1500 = arith.select %1030, %1499, %1497 : vector<8x128xi1>, vector<8x128xf32>
      %1501 = arith.mulf %1473, %1487 : vector<1x128xf32>
      %1502 = arith.mulf %1474, %1488 : vector<1x128xf32>
      %1503 = arith.subf %1501, %1502 : vector<1x128xf32>
      %1504 = arith.mulf %1474, %1487 : vector<1x128xf32>
      %1505 = arith.mulf %1473, %1488 : vector<1x128xf32>
      %1506 = arith.addf %1504, %1505 : vector<1x128xf32>
      %1507 = vector.shape_cast %1506 : vector<1x128xf32> to vector<1x128xf32>
      %1508 = vector.broadcast %1507 : vector<1x128xf32> to vector<8x128xf32>
      %1509 = arith.select %1434, %1508, %1484 : vector<8x128xi1>, vector<8x128xf32>
      %1510 = vector.shape_cast %1503 : vector<1x128xf32> to vector<1x128xf32>
      %1511 = vector.broadcast %1510 : vector<1x128xf32> to vector<8x128xf32>
      %1512 = arith.select %1030, %1511, %1509 : vector<8x128xi1>, vector<8x128xf32>
      %1513 = vector.extract_strided_slice %1481 {offsets = [0, 0], sizes = [1, 128], strides = [1, 1]} : vector<8x128xf32> to vector<1x128xf32>
      %1514 = vector.extract_strided_slice %1484 {offsets = [0, 0], sizes = [1, 128], strides = [1, 1]} : vector<8x128xf32> to vector<1x128xf32>
      %1515 = vector.shape_cast %1514 : vector<1x128xf32> to vector<1x128xf32>
      %1516 = vector.broadcast %1515 : vector<1x128xf32> to vector<8x128xf32>
      %1517 = arith.select %1434, %1516, %1386 : vector<8x128xi1>, vector<8x128xf32>
      %1518 = vector.shape_cast %1513 : vector<1x128xf32> to vector<1x128xf32>
      %1519 = vector.broadcast %1518 : vector<1x128xf32> to vector<8x128xf32>
      %1520 = arith.select %1030, %1519, %1517 : vector<8x128xi1>, vector<8x128xf32>
      %1521 = vector.extract_strided_slice %1481 {offsets = [2, 0], sizes = [1, 128], strides = [1, 1]} : vector<8x128xf32> to vector<1x128xf32>
      %1522 = vector.extract_strided_slice %1484 {offsets = [2, 0], sizes = [1, 128], strides = [1, 1]} : vector<8x128xf32> to vector<1x128xf32>
      %1523 = vector.shape_cast %1522 : vector<1x128xf32> to vector<1x128xf32>
      %1524 = vector.broadcast %1523 : vector<1x128xf32> to vector<8x128xf32>
      %1525 = arith.select %1434, %1524, %1394 : vector<8x128xi1>, vector<8x128xf32>
      %1526 = vector.shape_cast %1521 : vector<1x128xf32> to vector<1x128xf32>
      %1527 = vector.broadcast %1526 : vector<1x128xf32> to vector<8x128xf32>
      %1528 = arith.select %1030, %1527, %1525 : vector<8x128xi1>, vector<8x128xf32>
      %1529 = vector.extract_strided_slice %1481 {offsets = [3, 0], sizes = [1, 128], strides = [1, 1]} : vector<8x128xf32> to vector<1x128xf32>
      %1530 = vector.extract_strided_slice %1484 {offsets = [3, 0], sizes = [1, 128], strides = [1, 1]} : vector<8x128xf32> to vector<1x128xf32>
      %1531 = vector.shape_cast %1530 : vector<1x128xf32> to vector<1x128xf32>
      %1532 = vector.broadcast %1531 : vector<1x128xf32> to vector<8x128xf32>
      %1533 = arith.select %1434, %1532, %1402 : vector<8x128xi1>, vector<8x128xf32>
      %1534 = vector.shape_cast %1529 : vector<1x128xf32> to vector<1x128xf32>
      %1535 = vector.broadcast %1534 : vector<1x128xf32> to vector<8x128xf32>
      %1536 = arith.select %1030, %1535, %1533 : vector<8x128xi1>, vector<8x128xf32>
      %1537 = vector.extract_strided_slice %1481 {offsets = [4, 0], sizes = [1, 128], strides = [1, 1]} : vector<8x128xf32> to vector<1x128xf32>
      %1538 = vector.extract_strided_slice %1484 {offsets = [4, 0], sizes = [1, 128], strides = [1, 1]} : vector<8x128xf32> to vector<1x128xf32>
      %1539 = vector.shape_cast %1538 : vector<1x128xf32> to vector<1x128xf32>
      %1540 = vector.broadcast %1539 : vector<1x128xf32> to vector<8x128xf32>
      %1541 = arith.select %1434, %1540, %1378 : vector<8x128xi1>, vector<8x128xf32>
      %1542 = vector.shape_cast %1537 : vector<1x128xf32> to vector<1x128xf32>
      %1543 = vector.broadcast %1542 : vector<1x128xf32> to vector<8x128xf32>
      %1544 = arith.select %1030, %1543, %1541 : vector<8x128xi1>, vector<8x128xf32>
      %1545 = vector.extract_strided_slice %1481 {offsets = [6, 0], sizes = [1, 128], strides = [1, 1]} : vector<8x128xf32> to vector<1x128xf32>
      %1546 = vector.extract_strided_slice %1484 {offsets = [6, 0], sizes = [1, 128], strides = [1, 1]} : vector<8x128xf32> to vector<1x128xf32>
      %1547 = vector.shape_cast %1546 : vector<1x128xf32> to vector<1x128xf32>
      %1548 = vector.broadcast %1547 : vector<1x128xf32> to vector<8x128xf32>
      %1549 = arith.select %1434, %1548, %1418 : vector<8x128xi1>, vector<8x128xf32>
      %1550 = vector.shape_cast %1545 : vector<1x128xf32> to vector<1x128xf32>
      %1551 = vector.broadcast %1550 : vector<1x128xf32> to vector<8x128xf32>
      %1552 = arith.select %1030, %1551, %1549 : vector<8x128xi1>, vector<8x128xf32>
      %1553 = vector.extract_strided_slice %1481 {offsets = [7, 0], sizes = [1, 128], strides = [1, 1]} : vector<8x128xf32> to vector<1x128xf32>
      %1554 = vector.extract_strided_slice %1484 {offsets = [7, 0], sizes = [1, 128], strides = [1, 1]} : vector<8x128xf32> to vector<1x128xf32>
      %1555 = vector.shape_cast %1554 : vector<1x128xf32> to vector<1x128xf32>
      %1556 = vector.broadcast %1555 : vector<1x128xf32> to vector<8x128xf32>
      %1557 = arith.select %1434, %1556, %1426 : vector<8x128xi1>, vector<8x128xf32>
      %1558 = vector.shape_cast %1553 : vector<1x128xf32> to vector<1x128xf32>
      %1559 = vector.broadcast %1558 : vector<1x128xf32> to vector<8x128xf32>
      %1560 = arith.select %1030, %1559, %1557 : vector<8x128xi1>, vector<8x128xf32>
      %1561 = arith.mulf %1476, %1429 : vector<8x128xf32>
      %1562 = arith.mulf %1478, %760 : vector<8x128xf32>
      %1563 = arith.subf %1561, %1562 : vector<8x128xf32>
      %1564 = arith.mulf %1478, %1429 : vector<8x128xf32>
      %1565 = arith.mulf %1476, %760 : vector<8x128xf32>
      %1566 = arith.addf %1564, %1565 : vector<8x128xf32>
      %c6_i32_156 = arith.constant 6 : i32
      %1567 = vector.broadcast %c6_i32_156 : i32 to vector<8x128xi32>
      %1568 = arith.cmpi eq, %0, %1567 : vector<8x128xi32>
      %1569 = vector.extract_strided_slice %1500 {offsets = [1, 0], sizes = [1, 128], strides = [1, 1]} : vector<8x128xf32> to vector<1x128xf32>
      %1570 = vector.extract_strided_slice %1552 {offsets = [6, 0], sizes = [1, 128], strides = [1, 1]} : vector<8x128xf32> to vector<1x128xf32>
      %1571 = vector.extract_strided_slice %1500 {offsets = [6, 0], sizes = [1, 128], strides = [1, 1]} : vector<8x128xf32> to vector<1x128xf32>
      %1572 = math.absf %1571 : vector<1x128xf32>
      %1573 = math.absf %1569 : vector<1x128xf32>
      %1574 = math.absf %1570 : vector<1x128xf32>
      %1575 = arith.addf %1573, %1574 : vector<1x128xf32>
      %cst_157 = arith.constant 9.99999996E-13 : f32
      %1576 = vector.broadcast %cst_157 : f32 to vector<1x128xf32>
      %1577 = arith.mulf %1576, %1575 : vector<1x128xf32>
      %cst_158 = arith.constant 1.000000e-30 : f32
      %1578 = vector.broadcast %cst_158 : f32 to vector<1x128xf32>
      %1579 = arith.addf %1577, %1578 : vector<1x128xf32>
      %1580 = arith.cmpf ogt, %1572, %1579 : vector<1x128xf32>
      %cst_159 = arith.constant 1.000000e+00 : f32
      %1581 = vector.broadcast %cst_159 : f32 to vector<1x128xf32>
      %1582 = arith.select %1580, %1571, %1581 : vector<1x128xi1>, vector<1x128xf32>
      %1583 = arith.subf %1570, %1569 : vector<1x128xf32>
      %1584 = tpu.reciprocal %1582 {approx = true} : vector<1x128xf32> -> vector<1x128xf32>
      %cst_160 = arith.constant 5.000000e-01 : f32
      %1585 = vector.broadcast %cst_160 : f32 to vector<1x128xf32>
      %1586 = arith.mulf %1585, %1584 : vector<1x128xf32>
      %1587 = arith.mulf %1583, %1586 : vector<1x128xf32>
      %1588 = arith.mulf %1587, %1587 : vector<1x128xf32>
      %cst_161 = arith.constant 1.000000e+00 : f32
      %1589 = vector.broadcast %cst_161 : f32 to vector<1x128xf32>
      %1590 = arith.addf %1588, %1589 : vector<1x128xf32>
      %1591 = math.rsqrt %1590 : vector<1x128xf32>
      %cst_162 = arith.constant 0.000000e+00 : f32
      %1592 = vector.broadcast %cst_162 : f32 to vector<1x128xf32>
      %1593 = arith.cmpf oge, %1587, %1592 : vector<1x128xf32>
      %cst_163 = arith.constant 1.000000e+00 : f32
      %cst_164 = arith.constant -1.000000e+00 : f32
      %1594 = vector.broadcast %cst_163 : f32 to vector<1x128xf32>
      %1595 = vector.broadcast %cst_164 : f32 to vector<1x128xf32>
      %1596 = arith.select %1593, %1594, %1595 : vector<1x128xi1>, vector<1x128xf32>
      %1597 = math.absf %1587 : vector<1x128xf32>
      %1598 = arith.mulf %1590, %1591 : vector<1x128xf32>
      %1599 = arith.addf %1597, %1598 : vector<1x128xf32>
      %1600 = tpu.reciprocal %1599 {approx = true} : vector<1x128xf32> -> vector<1x128xf32>
      %1601 = arith.mulf %1596, %1600 : vector<1x128xf32>
      %cst_165 = arith.constant 0.000000e+00 : f32
      %1602 = vector.broadcast %cst_165 : f32 to vector<1x128xf32>
      %1603 = arith.select %1580, %1601, %1602 : vector<1x128xi1>, vector<1x128xf32>
      %1604 = arith.mulf %1603, %1603 : vector<1x128xf32>
      %cst_166 = arith.constant 1.000000e+00 : f32
      %1605 = vector.broadcast %cst_166 : f32 to vector<1x128xf32>
      %1606 = arith.addf %1604, %1605 : vector<1x128xf32>
      %1607 = math.rsqrt %1606 : vector<1x128xf32>
      %1608 = arith.mulf %1603, %1607 : vector<1x128xf32>
      %1609 = vector.shape_cast %1607 : vector<1x128xf32> to vector<1x128xf32>
      %1610 = vector.broadcast %1609 : vector<1x128xf32> to vector<8x128xf32>
      %1611 = vector.shape_cast %1608 : vector<1x128xf32> to vector<1x128xf32>
      %1612 = vector.broadcast %1611 : vector<1x128xf32> to vector<8x128xf32>
      %1613 = arith.mulf %1610, %1500 : vector<8x128xf32>
      %1614 = arith.mulf %1612, %1552 : vector<8x128xf32>
      %1615 = arith.subf %1613, %1614 : vector<8x128xf32>
      %1616 = arith.mulf %1612, %1500 : vector<8x128xf32>
      %1617 = arith.mulf %1610, %1552 : vector<8x128xf32>
      %1618 = arith.addf %1616, %1617 : vector<8x128xf32>
      %1619 = vector.extract_strided_slice %1615 {offsets = [1, 0], sizes = [1, 128], strides = [1, 1]} : vector<8x128xf32> to vector<1x128xf32>
      %1620 = vector.extract_strided_slice %1615 {offsets = [6, 0], sizes = [1, 128], strides = [1, 1]} : vector<8x128xf32> to vector<1x128xf32>
      %1621 = vector.extract_strided_slice %1618 {offsets = [1, 0], sizes = [1, 128], strides = [1, 1]} : vector<8x128xf32> to vector<1x128xf32>
      %1622 = vector.extract_strided_slice %1618 {offsets = [6, 0], sizes = [1, 128], strides = [1, 1]} : vector<8x128xf32> to vector<1x128xf32>
      %1623 = arith.mulf %1607, %1619 : vector<1x128xf32>
      %1624 = arith.mulf %1608, %1620 : vector<1x128xf32>
      %1625 = arith.subf %1623, %1624 : vector<1x128xf32>
      %1626 = arith.mulf %1608, %1619 : vector<1x128xf32>
      %1627 = arith.mulf %1607, %1620 : vector<1x128xf32>
      %1628 = arith.addf %1626, %1627 : vector<1x128xf32>
      %1629 = vector.shape_cast %1628 : vector<1x128xf32> to vector<1x128xf32>
      %1630 = vector.broadcast %1629 : vector<1x128xf32> to vector<8x128xf32>
      %1631 = arith.select %1568, %1630, %1615 : vector<8x128xi1>, vector<8x128xf32>
      %1632 = vector.shape_cast %1625 : vector<1x128xf32> to vector<1x128xf32>
      %1633 = vector.broadcast %1632 : vector<1x128xf32> to vector<8x128xf32>
      %1634 = arith.select %1030, %1633, %1631 : vector<8x128xi1>, vector<8x128xf32>
      %1635 = arith.mulf %1607, %1621 : vector<1x128xf32>
      %1636 = arith.mulf %1608, %1622 : vector<1x128xf32>
      %1637 = arith.subf %1635, %1636 : vector<1x128xf32>
      %1638 = arith.mulf %1608, %1621 : vector<1x128xf32>
      %1639 = arith.mulf %1607, %1622 : vector<1x128xf32>
      %1640 = arith.addf %1638, %1639 : vector<1x128xf32>
      %1641 = vector.shape_cast %1640 : vector<1x128xf32> to vector<1x128xf32>
      %1642 = vector.broadcast %1641 : vector<1x128xf32> to vector<8x128xf32>
      %1643 = arith.select %1568, %1642, %1618 : vector<8x128xi1>, vector<8x128xf32>
      %1644 = vector.shape_cast %1637 : vector<1x128xf32> to vector<1x128xf32>
      %1645 = vector.broadcast %1644 : vector<1x128xf32> to vector<8x128xf32>
      %1646 = arith.select %1030, %1645, %1643 : vector<8x128xi1>, vector<8x128xf32>
      %1647 = vector.extract_strided_slice %1615 {offsets = [0, 0], sizes = [1, 128], strides = [1, 1]} : vector<8x128xf32> to vector<1x128xf32>
      %1648 = vector.extract_strided_slice %1618 {offsets = [0, 0], sizes = [1, 128], strides = [1, 1]} : vector<8x128xf32> to vector<1x128xf32>
      %1649 = vector.shape_cast %1648 : vector<1x128xf32> to vector<1x128xf32>
      %1650 = vector.broadcast %1649 : vector<1x128xf32> to vector<8x128xf32>
      %1651 = arith.select %1568, %1650, %1520 : vector<8x128xi1>, vector<8x128xf32>
      %1652 = vector.shape_cast %1647 : vector<1x128xf32> to vector<1x128xf32>
      %1653 = vector.broadcast %1652 : vector<1x128xf32> to vector<8x128xf32>
      %1654 = arith.select %1030, %1653, %1651 : vector<8x128xi1>, vector<8x128xf32>
      %1655 = vector.extract_strided_slice %1615 {offsets = [2, 0], sizes = [1, 128], strides = [1, 1]} : vector<8x128xf32> to vector<1x128xf32>
      %1656 = vector.extract_strided_slice %1618 {offsets = [2, 0], sizes = [1, 128], strides = [1, 1]} : vector<8x128xf32> to vector<1x128xf32>
      %1657 = vector.shape_cast %1656 : vector<1x128xf32> to vector<1x128xf32>
      %1658 = vector.broadcast %1657 : vector<1x128xf32> to vector<8x128xf32>
      %1659 = arith.select %1568, %1658, %1528 : vector<8x128xi1>, vector<8x128xf32>
      %1660 = vector.shape_cast %1655 : vector<1x128xf32> to vector<1x128xf32>
      %1661 = vector.broadcast %1660 : vector<1x128xf32> to vector<8x128xf32>
      %1662 = arith.select %1030, %1661, %1659 : vector<8x128xi1>, vector<8x128xf32>
      %1663 = vector.extract_strided_slice %1615 {offsets = [3, 0], sizes = [1, 128], strides = [1, 1]} : vector<8x128xf32> to vector<1x128xf32>
      %1664 = vector.extract_strided_slice %1618 {offsets = [3, 0], sizes = [1, 128], strides = [1, 1]} : vector<8x128xf32> to vector<1x128xf32>
      %1665 = vector.shape_cast %1664 : vector<1x128xf32> to vector<1x128xf32>
      %1666 = vector.broadcast %1665 : vector<1x128xf32> to vector<8x128xf32>
      %1667 = arith.select %1568, %1666, %1536 : vector<8x128xi1>, vector<8x128xf32>
      %1668 = vector.shape_cast %1663 : vector<1x128xf32> to vector<1x128xf32>
      %1669 = vector.broadcast %1668 : vector<1x128xf32> to vector<8x128xf32>
      %1670 = arith.select %1030, %1669, %1667 : vector<8x128xi1>, vector<8x128xf32>
      %1671 = vector.extract_strided_slice %1615 {offsets = [4, 0], sizes = [1, 128], strides = [1, 1]} : vector<8x128xf32> to vector<1x128xf32>
      %1672 = vector.extract_strided_slice %1618 {offsets = [4, 0], sizes = [1, 128], strides = [1, 1]} : vector<8x128xf32> to vector<1x128xf32>
      %1673 = vector.shape_cast %1672 : vector<1x128xf32> to vector<1x128xf32>
      %1674 = vector.broadcast %1673 : vector<1x128xf32> to vector<8x128xf32>
      %1675 = arith.select %1568, %1674, %1544 : vector<8x128xi1>, vector<8x128xf32>
      %1676 = vector.shape_cast %1671 : vector<1x128xf32> to vector<1x128xf32>
      %1677 = vector.broadcast %1676 : vector<1x128xf32> to vector<8x128xf32>
      %1678 = arith.select %1030, %1677, %1675 : vector<8x128xi1>, vector<8x128xf32>
      %1679 = vector.extract_strided_slice %1615 {offsets = [5, 0], sizes = [1, 128], strides = [1, 1]} : vector<8x128xf32> to vector<1x128xf32>
      %1680 = vector.extract_strided_slice %1618 {offsets = [5, 0], sizes = [1, 128], strides = [1, 1]} : vector<8x128xf32> to vector<1x128xf32>
      %1681 = vector.shape_cast %1680 : vector<1x128xf32> to vector<1x128xf32>
      %1682 = vector.broadcast %1681 : vector<1x128xf32> to vector<8x128xf32>
      %1683 = arith.select %1568, %1682, %1512 : vector<8x128xi1>, vector<8x128xf32>
      %1684 = vector.shape_cast %1679 : vector<1x128xf32> to vector<1x128xf32>
      %1685 = vector.broadcast %1684 : vector<1x128xf32> to vector<8x128xf32>
      %1686 = arith.select %1030, %1685, %1683 : vector<8x128xi1>, vector<8x128xf32>
      %1687 = vector.extract_strided_slice %1615 {offsets = [7, 0], sizes = [1, 128], strides = [1, 1]} : vector<8x128xf32> to vector<1x128xf32>
      %1688 = vector.extract_strided_slice %1618 {offsets = [7, 0], sizes = [1, 128], strides = [1, 1]} : vector<8x128xf32> to vector<1x128xf32>
      %1689 = vector.shape_cast %1688 : vector<1x128xf32> to vector<1x128xf32>
      %1690 = vector.broadcast %1689 : vector<1x128xf32> to vector<8x128xf32>
      %1691 = arith.select %1568, %1690, %1560 : vector<8x128xi1>, vector<8x128xf32>
      %1692 = vector.shape_cast %1687 : vector<1x128xf32> to vector<1x128xf32>
      %1693 = vector.broadcast %1692 : vector<1x128xf32> to vector<8x128xf32>
      %1694 = arith.select %1030, %1693, %1691 : vector<8x128xi1>, vector<8x128xf32>
      %1695 = arith.mulf %1610, %1563 : vector<8x128xf32>
      %1696 = arith.mulf %1612, %894 : vector<8x128xf32>
      %1697 = arith.subf %1695, %1696 : vector<8x128xf32>
      %1698 = arith.mulf %1612, %1563 : vector<8x128xf32>
      %1699 = arith.mulf %1610, %894 : vector<8x128xf32>
      %1700 = arith.addf %1698, %1699 : vector<8x128xf32>
      %c7_i32_167 = arith.constant 7 : i32
      %1701 = vector.broadcast %c7_i32_167 : i32 to vector<8x128xi32>
      %1702 = arith.cmpi eq, %0, %1701 : vector<8x128xi32>
      %1703 = vector.extract_strided_slice %1634 {offsets = [1, 0], sizes = [1, 128], strides = [1, 1]} : vector<8x128xf32> to vector<1x128xf32>
      %1704 = vector.extract_strided_slice %1694 {offsets = [7, 0], sizes = [1, 128], strides = [1, 1]} : vector<8x128xf32> to vector<1x128xf32>
      %1705 = vector.extract_strided_slice %1634 {offsets = [7, 0], sizes = [1, 128], strides = [1, 1]} : vector<8x128xf32> to vector<1x128xf32>
      %1706 = math.absf %1705 : vector<1x128xf32>
      %1707 = math.absf %1703 : vector<1x128xf32>
      %1708 = math.absf %1704 : vector<1x128xf32>
      %1709 = arith.addf %1707, %1708 : vector<1x128xf32>
      %cst_168 = arith.constant 9.99999996E-13 : f32
      %1710 = vector.broadcast %cst_168 : f32 to vector<1x128xf32>
      %1711 = arith.mulf %1710, %1709 : vector<1x128xf32>
      %cst_169 = arith.constant 1.000000e-30 : f32
      %1712 = vector.broadcast %cst_169 : f32 to vector<1x128xf32>
      %1713 = arith.addf %1711, %1712 : vector<1x128xf32>
      %1714 = arith.cmpf ogt, %1706, %1713 : vector<1x128xf32>
      %cst_170 = arith.constant 1.000000e+00 : f32
      %1715 = vector.broadcast %cst_170 : f32 to vector<1x128xf32>
      %1716 = arith.select %1714, %1705, %1715 : vector<1x128xi1>, vector<1x128xf32>
      %1717 = arith.subf %1704, %1703 : vector<1x128xf32>
      %1718 = tpu.reciprocal %1716 {approx = true} : vector<1x128xf32> -> vector<1x128xf32>
      %cst_171 = arith.constant 5.000000e-01 : f32
      %1719 = vector.broadcast %cst_171 : f32 to vector<1x128xf32>
      %1720 = arith.mulf %1719, %1718 : vector<1x128xf32>
      %1721 = arith.mulf %1717, %1720 : vector<1x128xf32>
      %1722 = arith.mulf %1721, %1721 : vector<1x128xf32>
      %cst_172 = arith.constant 1.000000e+00 : f32
      %1723 = vector.broadcast %cst_172 : f32 to vector<1x128xf32>
      %1724 = arith.addf %1722, %1723 : vector<1x128xf32>
      %1725 = math.rsqrt %1724 : vector<1x128xf32>
      %cst_173 = arith.constant 0.000000e+00 : f32
      %1726 = vector.broadcast %cst_173 : f32 to vector<1x128xf32>
      %1727 = arith.cmpf oge, %1721, %1726 : vector<1x128xf32>
      %cst_174 = arith.constant 1.000000e+00 : f32
      %cst_175 = arith.constant -1.000000e+00 : f32
      %1728 = vector.broadcast %cst_174 : f32 to vector<1x128xf32>
      %1729 = vector.broadcast %cst_175 : f32 to vector<1x128xf32>
      %1730 = arith.select %1727, %1728, %1729 : vector<1x128xi1>, vector<1x128xf32>
      %1731 = math.absf %1721 : vector<1x128xf32>
      %1732 = arith.mulf %1724, %1725 : vector<1x128xf32>
      %1733 = arith.addf %1731, %1732 : vector<1x128xf32>
      %1734 = tpu.reciprocal %1733 {approx = true} : vector<1x128xf32> -> vector<1x128xf32>
      %1735 = arith.mulf %1730, %1734 : vector<1x128xf32>
      %cst_176 = arith.constant 0.000000e+00 : f32
      %1736 = vector.broadcast %cst_176 : f32 to vector<1x128xf32>
      %1737 = arith.select %1714, %1735, %1736 : vector<1x128xi1>, vector<1x128xf32>
      %1738 = arith.mulf %1737, %1737 : vector<1x128xf32>
      %cst_177 = arith.constant 1.000000e+00 : f32
      %1739 = vector.broadcast %cst_177 : f32 to vector<1x128xf32>
      %1740 = arith.addf %1738, %1739 : vector<1x128xf32>
      %1741 = math.rsqrt %1740 : vector<1x128xf32>
      %1742 = arith.mulf %1737, %1741 : vector<1x128xf32>
      %1743 = vector.shape_cast %1741 : vector<1x128xf32> to vector<1x128xf32>
      %1744 = vector.broadcast %1743 : vector<1x128xf32> to vector<8x128xf32>
      %1745 = vector.shape_cast %1742 : vector<1x128xf32> to vector<1x128xf32>
      %1746 = vector.broadcast %1745 : vector<1x128xf32> to vector<8x128xf32>
      %1747 = arith.mulf %1744, %1634 : vector<8x128xf32>
      %1748 = arith.mulf %1746, %1694 : vector<8x128xf32>
      %1749 = arith.subf %1747, %1748 : vector<8x128xf32>
      %1750 = arith.mulf %1746, %1634 : vector<8x128xf32>
      %1751 = arith.mulf %1744, %1694 : vector<8x128xf32>
      %1752 = arith.addf %1750, %1751 : vector<8x128xf32>
      %1753 = vector.extract_strided_slice %1749 {offsets = [1, 0], sizes = [1, 128], strides = [1, 1]} : vector<8x128xf32> to vector<1x128xf32>
      %1754 = vector.extract_strided_slice %1749 {offsets = [7, 0], sizes = [1, 128], strides = [1, 1]} : vector<8x128xf32> to vector<1x128xf32>
      %1755 = vector.extract_strided_slice %1752 {offsets = [1, 0], sizes = [1, 128], strides = [1, 1]} : vector<8x128xf32> to vector<1x128xf32>
      %1756 = vector.extract_strided_slice %1752 {offsets = [7, 0], sizes = [1, 128], strides = [1, 1]} : vector<8x128xf32> to vector<1x128xf32>
      %1757 = arith.mulf %1741, %1753 : vector<1x128xf32>
      %1758 = arith.mulf %1742, %1754 : vector<1x128xf32>
      %1759 = arith.subf %1757, %1758 : vector<1x128xf32>
      %1760 = arith.mulf %1742, %1753 : vector<1x128xf32>
      %1761 = arith.mulf %1741, %1754 : vector<1x128xf32>
      %1762 = arith.addf %1760, %1761 : vector<1x128xf32>
      %1763 = vector.shape_cast %1762 : vector<1x128xf32> to vector<1x128xf32>
      %1764 = vector.broadcast %1763 : vector<1x128xf32> to vector<8x128xf32>
      %1765 = arith.select %1702, %1764, %1749 : vector<8x128xi1>, vector<8x128xf32>
      %1766 = vector.shape_cast %1759 : vector<1x128xf32> to vector<1x128xf32>
      %1767 = vector.broadcast %1766 : vector<1x128xf32> to vector<8x128xf32>
      %1768 = arith.select %1030, %1767, %1765 : vector<8x128xi1>, vector<8x128xf32>
      %1769 = arith.mulf %1741, %1755 : vector<1x128xf32>
      %1770 = arith.mulf %1742, %1756 : vector<1x128xf32>
      %1771 = arith.subf %1769, %1770 : vector<1x128xf32>
      %1772 = arith.mulf %1742, %1755 : vector<1x128xf32>
      %1773 = arith.mulf %1741, %1756 : vector<1x128xf32>
      %1774 = arith.addf %1772, %1773 : vector<1x128xf32>
      %1775 = vector.shape_cast %1774 : vector<1x128xf32> to vector<1x128xf32>
      %1776 = vector.broadcast %1775 : vector<1x128xf32> to vector<8x128xf32>
      %1777 = arith.select %1702, %1776, %1752 : vector<8x128xi1>, vector<8x128xf32>
      %1778 = vector.shape_cast %1771 : vector<1x128xf32> to vector<1x128xf32>
      %1779 = vector.broadcast %1778 : vector<1x128xf32> to vector<8x128xf32>
      %1780 = arith.select %1030, %1779, %1777 : vector<8x128xi1>, vector<8x128xf32>
      %1781 = vector.extract_strided_slice %1749 {offsets = [0, 0], sizes = [1, 128], strides = [1, 1]} : vector<8x128xf32> to vector<1x128xf32>
      %1782 = vector.extract_strided_slice %1752 {offsets = [0, 0], sizes = [1, 128], strides = [1, 1]} : vector<8x128xf32> to vector<1x128xf32>
      %1783 = vector.shape_cast %1782 : vector<1x128xf32> to vector<1x128xf32>
      %1784 = vector.broadcast %1783 : vector<1x128xf32> to vector<8x128xf32>
      %1785 = arith.select %1702, %1784, %1654 : vector<8x128xi1>, vector<8x128xf32>
      %1786 = vector.shape_cast %1781 : vector<1x128xf32> to vector<1x128xf32>
      %1787 = vector.broadcast %1786 : vector<1x128xf32> to vector<8x128xf32>
      %1788 = arith.select %1030, %1787, %1785 : vector<8x128xi1>, vector<8x128xf32>
      %1789 = vector.extract_strided_slice %1749 {offsets = [2, 0], sizes = [1, 128], strides = [1, 1]} : vector<8x128xf32> to vector<1x128xf32>
      %1790 = vector.extract_strided_slice %1752 {offsets = [2, 0], sizes = [1, 128], strides = [1, 1]} : vector<8x128xf32> to vector<1x128xf32>
      %1791 = vector.shape_cast %1790 : vector<1x128xf32> to vector<1x128xf32>
      %1792 = vector.broadcast %1791 : vector<1x128xf32> to vector<8x128xf32>
      %1793 = arith.select %1702, %1792, %1662 : vector<8x128xi1>, vector<8x128xf32>
      %1794 = vector.shape_cast %1789 : vector<1x128xf32> to vector<1x128xf32>
      %1795 = vector.broadcast %1794 : vector<1x128xf32> to vector<8x128xf32>
      %1796 = arith.select %1030, %1795, %1793 : vector<8x128xi1>, vector<8x128xf32>
      %1797 = vector.extract_strided_slice %1749 {offsets = [3, 0], sizes = [1, 128], strides = [1, 1]} : vector<8x128xf32> to vector<1x128xf32>
      %1798 = vector.extract_strided_slice %1752 {offsets = [3, 0], sizes = [1, 128], strides = [1, 1]} : vector<8x128xf32> to vector<1x128xf32>
      %1799 = vector.shape_cast %1798 : vector<1x128xf32> to vector<1x128xf32>
      %1800 = vector.broadcast %1799 : vector<1x128xf32> to vector<8x128xf32>
      %1801 = arith.select %1702, %1800, %1670 : vector<8x128xi1>, vector<8x128xf32>
      %1802 = vector.shape_cast %1797 : vector<1x128xf32> to vector<1x128xf32>
      %1803 = vector.broadcast %1802 : vector<1x128xf32> to vector<8x128xf32>
      %1804 = arith.select %1030, %1803, %1801 : vector<8x128xi1>, vector<8x128xf32>
      %1805 = vector.extract_strided_slice %1749 {offsets = [4, 0], sizes = [1, 128], strides = [1, 1]} : vector<8x128xf32> to vector<1x128xf32>
      %1806 = vector.extract_strided_slice %1752 {offsets = [4, 0], sizes = [1, 128], strides = [1, 1]} : vector<8x128xf32> to vector<1x128xf32>
      %1807 = vector.shape_cast %1806 : vector<1x128xf32> to vector<1x128xf32>
      %1808 = vector.broadcast %1807 : vector<1x128xf32> to vector<8x128xf32>
      %1809 = arith.select %1702, %1808, %1678 : vector<8x128xi1>, vector<8x128xf32>
      %1810 = vector.shape_cast %1805 : vector<1x128xf32> to vector<1x128xf32>
      %1811 = vector.broadcast %1810 : vector<1x128xf32> to vector<8x128xf32>
      %1812 = arith.select %1030, %1811, %1809 : vector<8x128xi1>, vector<8x128xf32>
      %1813 = vector.extract_strided_slice %1749 {offsets = [5, 0], sizes = [1, 128], strides = [1, 1]} : vector<8x128xf32> to vector<1x128xf32>
      %1814 = vector.extract_strided_slice %1752 {offsets = [5, 0], sizes = [1, 128], strides = [1, 1]} : vector<8x128xf32> to vector<1x128xf32>
      %1815 = vector.shape_cast %1814 : vector<1x128xf32> to vector<1x128xf32>
      %1816 = vector.broadcast %1815 : vector<1x128xf32> to vector<8x128xf32>
      %1817 = arith.select %1702, %1816, %1686 : vector<8x128xi1>, vector<8x128xf32>
      %1818 = vector.shape_cast %1813 : vector<1x128xf32> to vector<1x128xf32>
      %1819 = vector.broadcast %1818 : vector<1x128xf32> to vector<8x128xf32>
      %1820 = arith.select %1030, %1819, %1817 : vector<8x128xi1>, vector<8x128xf32>
      %1821 = vector.extract_strided_slice %1749 {offsets = [6, 0], sizes = [1, 128], strides = [1, 1]} : vector<8x128xf32> to vector<1x128xf32>
      %1822 = vector.extract_strided_slice %1752 {offsets = [6, 0], sizes = [1, 128], strides = [1, 1]} : vector<8x128xf32> to vector<1x128xf32>
      %1823 = vector.shape_cast %1822 : vector<1x128xf32> to vector<1x128xf32>
      %1824 = vector.broadcast %1823 : vector<1x128xf32> to vector<8x128xf32>
      %1825 = arith.select %1702, %1824, %1646 : vector<8x128xi1>, vector<8x128xf32>
      %1826 = vector.shape_cast %1821 : vector<1x128xf32> to vector<1x128xf32>
      %1827 = vector.broadcast %1826 : vector<1x128xf32> to vector<8x128xf32>
      %1828 = arith.select %1030, %1827, %1825 : vector<8x128xi1>, vector<8x128xf32>
      %1829 = arith.mulf %1744, %1697 : vector<8x128xf32>
      %1830 = arith.mulf %1746, %1028 : vector<8x128xf32>
      %1831 = arith.subf %1829, %1830 : vector<8x128xf32>
      %1832 = arith.mulf %1746, %1697 : vector<8x128xf32>
      %1833 = arith.mulf %1744, %1028 : vector<8x128xf32>
      %1834 = arith.addf %1832, %1833 : vector<8x128xf32>
      %c2_i32_178 = arith.constant 2 : i32
      %1835 = vector.broadcast %c2_i32_178 : i32 to vector<8x128xi32>
      %1836 = arith.cmpi eq, %0, %1835 : vector<8x128xi32>
      %c3_i32_179 = arith.constant 3 : i32
      %1837 = vector.broadcast %c3_i32_179 : i32 to vector<8x128xi32>
      %1838 = arith.cmpi eq, %0, %1837 : vector<8x128xi32>
      %1839 = vector.extract_strided_slice %1796 {offsets = [2, 0], sizes = [1, 128], strides = [1, 1]} : vector<8x128xf32> to vector<1x128xf32>
      %1840 = vector.extract_strided_slice %1804 {offsets = [3, 0], sizes = [1, 128], strides = [1, 1]} : vector<8x128xf32> to vector<1x128xf32>
      %1841 = vector.extract_strided_slice %1796 {offsets = [3, 0], sizes = [1, 128], strides = [1, 1]} : vector<8x128xf32> to vector<1x128xf32>
      %1842 = math.absf %1841 : vector<1x128xf32>
      %1843 = math.absf %1839 : vector<1x128xf32>
      %1844 = math.absf %1840 : vector<1x128xf32>
      %1845 = arith.addf %1843, %1844 : vector<1x128xf32>
      %cst_180 = arith.constant 9.99999996E-13 : f32
      %1846 = vector.broadcast %cst_180 : f32 to vector<1x128xf32>
      %1847 = arith.mulf %1846, %1845 : vector<1x128xf32>
      %cst_181 = arith.constant 1.000000e-30 : f32
      %1848 = vector.broadcast %cst_181 : f32 to vector<1x128xf32>
      %1849 = arith.addf %1847, %1848 : vector<1x128xf32>
      %1850 = arith.cmpf ogt, %1842, %1849 : vector<1x128xf32>
      %cst_182 = arith.constant 1.000000e+00 : f32
      %1851 = vector.broadcast %cst_182 : f32 to vector<1x128xf32>
      %1852 = arith.select %1850, %1841, %1851 : vector<1x128xi1>, vector<1x128xf32>
      %1853 = arith.subf %1840, %1839 : vector<1x128xf32>
      %1854 = tpu.reciprocal %1852 {approx = true} : vector<1x128xf32> -> vector<1x128xf32>
      %cst_183 = arith.constant 5.000000e-01 : f32
      %1855 = vector.broadcast %cst_183 : f32 to vector<1x128xf32>
      %1856 = arith.mulf %1855, %1854 : vector<1x128xf32>
      %1857 = arith.mulf %1853, %1856 : vector<1x128xf32>
      %1858 = arith.mulf %1857, %1857 : vector<1x128xf32>
      %cst_184 = arith.constant 1.000000e+00 : f32
      %1859 = vector.broadcast %cst_184 : f32 to vector<1x128xf32>
      %1860 = arith.addf %1858, %1859 : vector<1x128xf32>
      %1861 = math.rsqrt %1860 : vector<1x128xf32>
      %cst_185 = arith.constant 0.000000e+00 : f32
      %1862 = vector.broadcast %cst_185 : f32 to vector<1x128xf32>
      %1863 = arith.cmpf oge, %1857, %1862 : vector<1x128xf32>
      %cst_186 = arith.constant 1.000000e+00 : f32
      %cst_187 = arith.constant -1.000000e+00 : f32
      %1864 = vector.broadcast %cst_186 : f32 to vector<1x128xf32>
      %1865 = vector.broadcast %cst_187 : f32 to vector<1x128xf32>
      %1866 = arith.select %1863, %1864, %1865 : vector<1x128xi1>, vector<1x128xf32>
      %1867 = math.absf %1857 : vector<1x128xf32>
      %1868 = arith.mulf %1860, %1861 : vector<1x128xf32>
      %1869 = arith.addf %1867, %1868 : vector<1x128xf32>
      %1870 = tpu.reciprocal %1869 {approx = true} : vector<1x128xf32> -> vector<1x128xf32>
      %1871 = arith.mulf %1866, %1870 : vector<1x128xf32>
      %cst_188 = arith.constant 0.000000e+00 : f32
      %1872 = vector.broadcast %cst_188 : f32 to vector<1x128xf32>
      %1873 = arith.select %1850, %1871, %1872 : vector<1x128xi1>, vector<1x128xf32>
      %1874 = arith.mulf %1873, %1873 : vector<1x128xf32>
      %cst_189 = arith.constant 1.000000e+00 : f32
      %1875 = vector.broadcast %cst_189 : f32 to vector<1x128xf32>
      %1876 = arith.addf %1874, %1875 : vector<1x128xf32>
      %1877 = math.rsqrt %1876 : vector<1x128xf32>
      %1878 = arith.mulf %1873, %1877 : vector<1x128xf32>
      %1879 = vector.shape_cast %1877 : vector<1x128xf32> to vector<1x128xf32>
      %1880 = vector.broadcast %1879 : vector<1x128xf32> to vector<8x128xf32>
      %1881 = vector.shape_cast %1878 : vector<1x128xf32> to vector<1x128xf32>
      %1882 = vector.broadcast %1881 : vector<1x128xf32> to vector<8x128xf32>
      %1883 = arith.mulf %1880, %1796 : vector<8x128xf32>
      %1884 = arith.mulf %1882, %1804 : vector<8x128xf32>
      %1885 = arith.subf %1883, %1884 : vector<8x128xf32>
      %1886 = arith.mulf %1882, %1796 : vector<8x128xf32>
      %1887 = arith.mulf %1880, %1804 : vector<8x128xf32>
      %1888 = arith.addf %1886, %1887 : vector<8x128xf32>
      %1889 = vector.extract_strided_slice %1885 {offsets = [2, 0], sizes = [1, 128], strides = [1, 1]} : vector<8x128xf32> to vector<1x128xf32>
      %1890 = vector.extract_strided_slice %1885 {offsets = [3, 0], sizes = [1, 128], strides = [1, 1]} : vector<8x128xf32> to vector<1x128xf32>
      %1891 = vector.extract_strided_slice %1888 {offsets = [2, 0], sizes = [1, 128], strides = [1, 1]} : vector<8x128xf32> to vector<1x128xf32>
      %1892 = vector.extract_strided_slice %1888 {offsets = [3, 0], sizes = [1, 128], strides = [1, 1]} : vector<8x128xf32> to vector<1x128xf32>
      %1893 = arith.mulf %1877, %1889 : vector<1x128xf32>
      %1894 = arith.mulf %1878, %1890 : vector<1x128xf32>
      %1895 = arith.subf %1893, %1894 : vector<1x128xf32>
      %1896 = arith.mulf %1878, %1889 : vector<1x128xf32>
      %1897 = arith.mulf %1877, %1890 : vector<1x128xf32>
      %1898 = arith.addf %1896, %1897 : vector<1x128xf32>
      %1899 = vector.shape_cast %1898 : vector<1x128xf32> to vector<1x128xf32>
      %1900 = vector.broadcast %1899 : vector<1x128xf32> to vector<8x128xf32>
      %1901 = arith.select %1838, %1900, %1885 : vector<8x128xi1>, vector<8x128xf32>
      %1902 = vector.shape_cast %1895 : vector<1x128xf32> to vector<1x128xf32>
      %1903 = vector.broadcast %1902 : vector<1x128xf32> to vector<8x128xf32>
      %1904 = arith.select %1836, %1903, %1901 : vector<8x128xi1>, vector<8x128xf32>
      %1905 = arith.mulf %1877, %1891 : vector<1x128xf32>
      %1906 = arith.mulf %1878, %1892 : vector<1x128xf32>
      %1907 = arith.subf %1905, %1906 : vector<1x128xf32>
      %1908 = arith.mulf %1878, %1891 : vector<1x128xf32>
      %1909 = arith.mulf %1877, %1892 : vector<1x128xf32>
      %1910 = arith.addf %1908, %1909 : vector<1x128xf32>
      %1911 = vector.shape_cast %1910 : vector<1x128xf32> to vector<1x128xf32>
      %1912 = vector.broadcast %1911 : vector<1x128xf32> to vector<8x128xf32>
      %1913 = arith.select %1838, %1912, %1888 : vector<8x128xi1>, vector<8x128xf32>
      %1914 = vector.shape_cast %1907 : vector<1x128xf32> to vector<1x128xf32>
      %1915 = vector.broadcast %1914 : vector<1x128xf32> to vector<8x128xf32>
      %1916 = arith.select %1836, %1915, %1913 : vector<8x128xi1>, vector<8x128xf32>
      %1917 = vector.extract_strided_slice %1885 {offsets = [0, 0], sizes = [1, 128], strides = [1, 1]} : vector<8x128xf32> to vector<1x128xf32>
      %1918 = vector.extract_strided_slice %1888 {offsets = [0, 0], sizes = [1, 128], strides = [1, 1]} : vector<8x128xf32> to vector<1x128xf32>
      %1919 = vector.shape_cast %1918 : vector<1x128xf32> to vector<1x128xf32>
      %1920 = vector.broadcast %1919 : vector<1x128xf32> to vector<8x128xf32>
      %1921 = arith.select %1838, %1920, %1788 : vector<8x128xi1>, vector<8x128xf32>
      %1922 = vector.shape_cast %1917 : vector<1x128xf32> to vector<1x128xf32>
      %1923 = vector.broadcast %1922 : vector<1x128xf32> to vector<8x128xf32>
      %1924 = arith.select %1836, %1923, %1921 : vector<8x128xi1>, vector<8x128xf32>
      %1925 = vector.extract_strided_slice %1885 {offsets = [1, 0], sizes = [1, 128], strides = [1, 1]} : vector<8x128xf32> to vector<1x128xf32>
      %1926 = vector.extract_strided_slice %1888 {offsets = [1, 0], sizes = [1, 128], strides = [1, 1]} : vector<8x128xf32> to vector<1x128xf32>
      %1927 = vector.shape_cast %1926 : vector<1x128xf32> to vector<1x128xf32>
      %1928 = vector.broadcast %1927 : vector<1x128xf32> to vector<8x128xf32>
      %1929 = arith.select %1838, %1928, %1768 : vector<8x128xi1>, vector<8x128xf32>
      %1930 = vector.shape_cast %1925 : vector<1x128xf32> to vector<1x128xf32>
      %1931 = vector.broadcast %1930 : vector<1x128xf32> to vector<8x128xf32>
      %1932 = arith.select %1836, %1931, %1929 : vector<8x128xi1>, vector<8x128xf32>
      %1933 = vector.extract_strided_slice %1885 {offsets = [4, 0], sizes = [1, 128], strides = [1, 1]} : vector<8x128xf32> to vector<1x128xf32>
      %1934 = vector.extract_strided_slice %1888 {offsets = [4, 0], sizes = [1, 128], strides = [1, 1]} : vector<8x128xf32> to vector<1x128xf32>
      %1935 = vector.shape_cast %1934 : vector<1x128xf32> to vector<1x128xf32>
      %1936 = vector.broadcast %1935 : vector<1x128xf32> to vector<8x128xf32>
      %1937 = arith.select %1838, %1936, %1812 : vector<8x128xi1>, vector<8x128xf32>
      %1938 = vector.shape_cast %1933 : vector<1x128xf32> to vector<1x128xf32>
      %1939 = vector.broadcast %1938 : vector<1x128xf32> to vector<8x128xf32>
      %1940 = arith.select %1836, %1939, %1937 : vector<8x128xi1>, vector<8x128xf32>
      %1941 = vector.extract_strided_slice %1885 {offsets = [5, 0], sizes = [1, 128], strides = [1, 1]} : vector<8x128xf32> to vector<1x128xf32>
      %1942 = vector.extract_strided_slice %1888 {offsets = [5, 0], sizes = [1, 128], strides = [1, 1]} : vector<8x128xf32> to vector<1x128xf32>
      %1943 = vector.shape_cast %1942 : vector<1x128xf32> to vector<1x128xf32>
      %1944 = vector.broadcast %1943 : vector<1x128xf32> to vector<8x128xf32>
      %1945 = arith.select %1838, %1944, %1820 : vector<8x128xi1>, vector<8x128xf32>
      %1946 = vector.shape_cast %1941 : vector<1x128xf32> to vector<1x128xf32>
      %1947 = vector.broadcast %1946 : vector<1x128xf32> to vector<8x128xf32>
      %1948 = arith.select %1836, %1947, %1945 : vector<8x128xi1>, vector<8x128xf32>
      %1949 = vector.extract_strided_slice %1885 {offsets = [6, 0], sizes = [1, 128], strides = [1, 1]} : vector<8x128xf32> to vector<1x128xf32>
      %1950 = vector.extract_strided_slice %1888 {offsets = [6, 0], sizes = [1, 128], strides = [1, 1]} : vector<8x128xf32> to vector<1x128xf32>
      %1951 = vector.shape_cast %1950 : vector<1x128xf32> to vector<1x128xf32>
      %1952 = vector.broadcast %1951 : vector<1x128xf32> to vector<8x128xf32>
      %1953 = arith.select %1838, %1952, %1828 : vector<8x128xi1>, vector<8x128xf32>
      %1954 = vector.shape_cast %1949 : vector<1x128xf32> to vector<1x128xf32>
      %1955 = vector.broadcast %1954 : vector<1x128xf32> to vector<8x128xf32>
      %1956 = arith.select %1836, %1955, %1953 : vector<8x128xi1>, vector<8x128xf32>
      %1957 = vector.extract_strided_slice %1885 {offsets = [7, 0], sizes = [1, 128], strides = [1, 1]} : vector<8x128xf32> to vector<1x128xf32>
      %1958 = vector.extract_strided_slice %1888 {offsets = [7, 0], sizes = [1, 128], strides = [1, 1]} : vector<8x128xf32> to vector<1x128xf32>
      %1959 = vector.shape_cast %1958 : vector<1x128xf32> to vector<1x128xf32>
      %1960 = vector.broadcast %1959 : vector<1x128xf32> to vector<8x128xf32>
      %1961 = arith.select %1838, %1960, %1780 : vector<8x128xi1>, vector<8x128xf32>
      %1962 = vector.shape_cast %1957 : vector<1x128xf32> to vector<1x128xf32>
      %1963 = vector.broadcast %1962 : vector<1x128xf32> to vector<8x128xf32>
      %1964 = arith.select %1836, %1963, %1961 : vector<8x128xi1>, vector<8x128xf32>
      %1965 = arith.mulf %1880, %1164 : vector<8x128xf32>
      %1966 = arith.mulf %1882, %1298 : vector<8x128xf32>
      %1967 = arith.subf %1965, %1966 : vector<8x128xf32>
      %1968 = arith.mulf %1882, %1164 : vector<8x128xf32>
      %1969 = arith.mulf %1880, %1298 : vector<8x128xf32>
      %1970 = arith.addf %1968, %1969 : vector<8x128xf32>
      %c4_i32_190 = arith.constant 4 : i32
      %1971 = vector.broadcast %c4_i32_190 : i32 to vector<8x128xi32>
      %1972 = arith.cmpi eq, %0, %1971 : vector<8x128xi32>
      %1973 = vector.extract_strided_slice %1904 {offsets = [2, 0], sizes = [1, 128], strides = [1, 1]} : vector<8x128xf32> to vector<1x128xf32>
      %1974 = vector.extract_strided_slice %1940 {offsets = [4, 0], sizes = [1, 128], strides = [1, 1]} : vector<8x128xf32> to vector<1x128xf32>
      %1975 = vector.extract_strided_slice %1904 {offsets = [4, 0], sizes = [1, 128], strides = [1, 1]} : vector<8x128xf32> to vector<1x128xf32>
      %1976 = math.absf %1975 : vector<1x128xf32>
      %1977 = math.absf %1973 : vector<1x128xf32>
      %1978 = math.absf %1974 : vector<1x128xf32>
      %1979 = arith.addf %1977, %1978 : vector<1x128xf32>
      %cst_191 = arith.constant 9.99999996E-13 : f32
      %1980 = vector.broadcast %cst_191 : f32 to vector<1x128xf32>
      %1981 = arith.mulf %1980, %1979 : vector<1x128xf32>
      %cst_192 = arith.constant 1.000000e-30 : f32
      %1982 = vector.broadcast %cst_192 : f32 to vector<1x128xf32>
      %1983 = arith.addf %1981, %1982 : vector<1x128xf32>
      %1984 = arith.cmpf ogt, %1976, %1983 : vector<1x128xf32>
      %cst_193 = arith.constant 1.000000e+00 : f32
      %1985 = vector.broadcast %cst_193 : f32 to vector<1x128xf32>
      %1986 = arith.select %1984, %1975, %1985 : vector<1x128xi1>, vector<1x128xf32>
      %1987 = arith.subf %1974, %1973 : vector<1x128xf32>
      %1988 = tpu.reciprocal %1986 {approx = true} : vector<1x128xf32> -> vector<1x128xf32>
      %cst_194 = arith.constant 5.000000e-01 : f32
      %1989 = vector.broadcast %cst_194 : f32 to vector<1x128xf32>
      %1990 = arith.mulf %1989, %1988 : vector<1x128xf32>
      %1991 = arith.mulf %1987, %1990 : vector<1x128xf32>
      %1992 = arith.mulf %1991, %1991 : vector<1x128xf32>
      %cst_195 = arith.constant 1.000000e+00 : f32
      %1993 = vector.broadcast %cst_195 : f32 to vector<1x128xf32>
      %1994 = arith.addf %1992, %1993 : vector<1x128xf32>
      %1995 = math.rsqrt %1994 : vector<1x128xf32>
      %cst_196 = arith.constant 0.000000e+00 : f32
      %1996 = vector.broadcast %cst_196 : f32 to vector<1x128xf32>
      %1997 = arith.cmpf oge, %1991, %1996 : vector<1x128xf32>
      %cst_197 = arith.constant 1.000000e+00 : f32
      %cst_198 = arith.constant -1.000000e+00 : f32
      %1998 = vector.broadcast %cst_197 : f32 to vector<1x128xf32>
      %1999 = vector.broadcast %cst_198 : f32 to vector<1x128xf32>
      %2000 = arith.select %1997, %1998, %1999 : vector<1x128xi1>, vector<1x128xf32>
      %2001 = math.absf %1991 : vector<1x128xf32>
      %2002 = arith.mulf %1994, %1995 : vector<1x128xf32>
      %2003 = arith.addf %2001, %2002 : vector<1x128xf32>
      %2004 = tpu.reciprocal %2003 {approx = true} : vector<1x128xf32> -> vector<1x128xf32>
      %2005 = arith.mulf %2000, %2004 : vector<1x128xf32>
      %cst_199 = arith.constant 0.000000e+00 : f32
      %2006 = vector.broadcast %cst_199 : f32 to vector<1x128xf32>
      %2007 = arith.select %1984, %2005, %2006 : vector<1x128xi1>, vector<1x128xf32>
      %2008 = arith.mulf %2007, %2007 : vector<1x128xf32>
      %cst_200 = arith.constant 1.000000e+00 : f32
      %2009 = vector.broadcast %cst_200 : f32 to vector<1x128xf32>
      %2010 = arith.addf %2008, %2009 : vector<1x128xf32>
      %2011 = math.rsqrt %2010 : vector<1x128xf32>
      %2012 = arith.mulf %2007, %2011 : vector<1x128xf32>
      %2013 = vector.shape_cast %2011 : vector<1x128xf32> to vector<1x128xf32>
      %2014 = vector.broadcast %2013 : vector<1x128xf32> to vector<8x128xf32>
      %2015 = vector.shape_cast %2012 : vector<1x128xf32> to vector<1x128xf32>
      %2016 = vector.broadcast %2015 : vector<1x128xf32> to vector<8x128xf32>
      %2017 = arith.mulf %2014, %1904 : vector<8x128xf32>
      %2018 = arith.mulf %2016, %1940 : vector<8x128xf32>
      %2019 = arith.subf %2017, %2018 : vector<8x128xf32>
      %2020 = arith.mulf %2016, %1904 : vector<8x128xf32>
      %2021 = arith.mulf %2014, %1940 : vector<8x128xf32>
      %2022 = arith.addf %2020, %2021 : vector<8x128xf32>
      %2023 = vector.extract_strided_slice %2019 {offsets = [2, 0], sizes = [1, 128], strides = [1, 1]} : vector<8x128xf32> to vector<1x128xf32>
      %2024 = vector.extract_strided_slice %2019 {offsets = [4, 0], sizes = [1, 128], strides = [1, 1]} : vector<8x128xf32> to vector<1x128xf32>
      %2025 = vector.extract_strided_slice %2022 {offsets = [2, 0], sizes = [1, 128], strides = [1, 1]} : vector<8x128xf32> to vector<1x128xf32>
      %2026 = vector.extract_strided_slice %2022 {offsets = [4, 0], sizes = [1, 128], strides = [1, 1]} : vector<8x128xf32> to vector<1x128xf32>
      %2027 = arith.mulf %2011, %2023 : vector<1x128xf32>
      %2028 = arith.mulf %2012, %2024 : vector<1x128xf32>
      %2029 = arith.subf %2027, %2028 : vector<1x128xf32>
      %2030 = arith.mulf %2012, %2023 : vector<1x128xf32>
      %2031 = arith.mulf %2011, %2024 : vector<1x128xf32>
      %2032 = arith.addf %2030, %2031 : vector<1x128xf32>
      %2033 = vector.shape_cast %2032 : vector<1x128xf32> to vector<1x128xf32>
      %2034 = vector.broadcast %2033 : vector<1x128xf32> to vector<8x128xf32>
      %2035 = arith.select %1972, %2034, %2019 : vector<8x128xi1>, vector<8x128xf32>
      %2036 = vector.shape_cast %2029 : vector<1x128xf32> to vector<1x128xf32>
      %2037 = vector.broadcast %2036 : vector<1x128xf32> to vector<8x128xf32>
      %2038 = arith.select %1836, %2037, %2035 : vector<8x128xi1>, vector<8x128xf32>
      %2039 = arith.mulf %2011, %2025 : vector<1x128xf32>
      %2040 = arith.mulf %2012, %2026 : vector<1x128xf32>
      %2041 = arith.subf %2039, %2040 : vector<1x128xf32>
      %2042 = arith.mulf %2012, %2025 : vector<1x128xf32>
      %2043 = arith.mulf %2011, %2026 : vector<1x128xf32>
      %2044 = arith.addf %2042, %2043 : vector<1x128xf32>
      %2045 = vector.shape_cast %2044 : vector<1x128xf32> to vector<1x128xf32>
      %2046 = vector.broadcast %2045 : vector<1x128xf32> to vector<8x128xf32>
      %2047 = arith.select %1972, %2046, %2022 : vector<8x128xi1>, vector<8x128xf32>
      %2048 = vector.shape_cast %2041 : vector<1x128xf32> to vector<1x128xf32>
      %2049 = vector.broadcast %2048 : vector<1x128xf32> to vector<8x128xf32>
      %2050 = arith.select %1836, %2049, %2047 : vector<8x128xi1>, vector<8x128xf32>
      %2051 = vector.extract_strided_slice %2019 {offsets = [0, 0], sizes = [1, 128], strides = [1, 1]} : vector<8x128xf32> to vector<1x128xf32>
      %2052 = vector.extract_strided_slice %2022 {offsets = [0, 0], sizes = [1, 128], strides = [1, 1]} : vector<8x128xf32> to vector<1x128xf32>
      %2053 = vector.shape_cast %2052 : vector<1x128xf32> to vector<1x128xf32>
      %2054 = vector.broadcast %2053 : vector<1x128xf32> to vector<8x128xf32>
      %2055 = arith.select %1972, %2054, %1924 : vector<8x128xi1>, vector<8x128xf32>
      %2056 = vector.shape_cast %2051 : vector<1x128xf32> to vector<1x128xf32>
      %2057 = vector.broadcast %2056 : vector<1x128xf32> to vector<8x128xf32>
      %2058 = arith.select %1836, %2057, %2055 : vector<8x128xi1>, vector<8x128xf32>
      %2059 = vector.extract_strided_slice %2019 {offsets = [1, 0], sizes = [1, 128], strides = [1, 1]} : vector<8x128xf32> to vector<1x128xf32>
      %2060 = vector.extract_strided_slice %2022 {offsets = [1, 0], sizes = [1, 128], strides = [1, 1]} : vector<8x128xf32> to vector<1x128xf32>
      %2061 = vector.shape_cast %2060 : vector<1x128xf32> to vector<1x128xf32>
      %2062 = vector.broadcast %2061 : vector<1x128xf32> to vector<8x128xf32>
      %2063 = arith.select %1972, %2062, %1932 : vector<8x128xi1>, vector<8x128xf32>
      %2064 = vector.shape_cast %2059 : vector<1x128xf32> to vector<1x128xf32>
      %2065 = vector.broadcast %2064 : vector<1x128xf32> to vector<8x128xf32>
      %2066 = arith.select %1836, %2065, %2063 : vector<8x128xi1>, vector<8x128xf32>
      %2067 = vector.extract_strided_slice %2019 {offsets = [3, 0], sizes = [1, 128], strides = [1, 1]} : vector<8x128xf32> to vector<1x128xf32>
      %2068 = vector.extract_strided_slice %2022 {offsets = [3, 0], sizes = [1, 128], strides = [1, 1]} : vector<8x128xf32> to vector<1x128xf32>
      %2069 = vector.shape_cast %2068 : vector<1x128xf32> to vector<1x128xf32>
      %2070 = vector.broadcast %2069 : vector<1x128xf32> to vector<8x128xf32>
      %2071 = arith.select %1972, %2070, %1916 : vector<8x128xi1>, vector<8x128xf32>
      %2072 = vector.shape_cast %2067 : vector<1x128xf32> to vector<1x128xf32>
      %2073 = vector.broadcast %2072 : vector<1x128xf32> to vector<8x128xf32>
      %2074 = arith.select %1836, %2073, %2071 : vector<8x128xi1>, vector<8x128xf32>
      %2075 = vector.extract_strided_slice %2019 {offsets = [5, 0], sizes = [1, 128], strides = [1, 1]} : vector<8x128xf32> to vector<1x128xf32>
      %2076 = vector.extract_strided_slice %2022 {offsets = [5, 0], sizes = [1, 128], strides = [1, 1]} : vector<8x128xf32> to vector<1x128xf32>
      %2077 = vector.shape_cast %2076 : vector<1x128xf32> to vector<1x128xf32>
      %2078 = vector.broadcast %2077 : vector<1x128xf32> to vector<8x128xf32>
      %2079 = arith.select %1972, %2078, %1948 : vector<8x128xi1>, vector<8x128xf32>
      %2080 = vector.shape_cast %2075 : vector<1x128xf32> to vector<1x128xf32>
      %2081 = vector.broadcast %2080 : vector<1x128xf32> to vector<8x128xf32>
      %2082 = arith.select %1836, %2081, %2079 : vector<8x128xi1>, vector<8x128xf32>
      %2083 = vector.extract_strided_slice %2019 {offsets = [6, 0], sizes = [1, 128], strides = [1, 1]} : vector<8x128xf32> to vector<1x128xf32>
      %2084 = vector.extract_strided_slice %2022 {offsets = [6, 0], sizes = [1, 128], strides = [1, 1]} : vector<8x128xf32> to vector<1x128xf32>
      %2085 = vector.shape_cast %2084 : vector<1x128xf32> to vector<1x128xf32>
      %2086 = vector.broadcast %2085 : vector<1x128xf32> to vector<8x128xf32>
      %2087 = arith.select %1972, %2086, %1956 : vector<8x128xi1>, vector<8x128xf32>
      %2088 = vector.shape_cast %2083 : vector<1x128xf32> to vector<1x128xf32>
      %2089 = vector.broadcast %2088 : vector<1x128xf32> to vector<8x128xf32>
      %2090 = arith.select %1836, %2089, %2087 : vector<8x128xi1>, vector<8x128xf32>
      %2091 = vector.extract_strided_slice %2019 {offsets = [7, 0], sizes = [1, 128], strides = [1, 1]} : vector<8x128xf32> to vector<1x128xf32>
      %2092 = vector.extract_strided_slice %2022 {offsets = [7, 0], sizes = [1, 128], strides = [1, 1]} : vector<8x128xf32> to vector<1x128xf32>
      %2093 = vector.shape_cast %2092 : vector<1x128xf32> to vector<1x128xf32>
      %2094 = vector.broadcast %2093 : vector<1x128xf32> to vector<8x128xf32>
      %2095 = arith.select %1972, %2094, %1964 : vector<8x128xi1>, vector<8x128xf32>
      %2096 = vector.shape_cast %2091 : vector<1x128xf32> to vector<1x128xf32>
      %2097 = vector.broadcast %2096 : vector<1x128xf32> to vector<8x128xf32>
      %2098 = arith.select %1836, %2097, %2095 : vector<8x128xi1>, vector<8x128xf32>
      %2099 = arith.mulf %2014, %1967 : vector<8x128xf32>
      %2100 = arith.mulf %2016, %1432 : vector<8x128xf32>
      %2101 = arith.subf %2099, %2100 : vector<8x128xf32>
      %2102 = arith.mulf %2016, %1967 : vector<8x128xf32>
      %2103 = arith.mulf %2014, %1432 : vector<8x128xf32>
      %2104 = arith.addf %2102, %2103 : vector<8x128xf32>
      %c5_i32_201 = arith.constant 5 : i32
      %2105 = vector.broadcast %c5_i32_201 : i32 to vector<8x128xi32>
      %2106 = arith.cmpi eq, %0, %2105 : vector<8x128xi32>
      %2107 = vector.extract_strided_slice %2038 {offsets = [2, 0], sizes = [1, 128], strides = [1, 1]} : vector<8x128xf32> to vector<1x128xf32>
      %2108 = vector.extract_strided_slice %2082 {offsets = [5, 0], sizes = [1, 128], strides = [1, 1]} : vector<8x128xf32> to vector<1x128xf32>
      %2109 = vector.extract_strided_slice %2038 {offsets = [5, 0], sizes = [1, 128], strides = [1, 1]} : vector<8x128xf32> to vector<1x128xf32>
      %2110 = math.absf %2109 : vector<1x128xf32>
      %2111 = math.absf %2107 : vector<1x128xf32>
      %2112 = math.absf %2108 : vector<1x128xf32>
      %2113 = arith.addf %2111, %2112 : vector<1x128xf32>
      %cst_202 = arith.constant 9.99999996E-13 : f32
      %2114 = vector.broadcast %cst_202 : f32 to vector<1x128xf32>
      %2115 = arith.mulf %2114, %2113 : vector<1x128xf32>
      %cst_203 = arith.constant 1.000000e-30 : f32
      %2116 = vector.broadcast %cst_203 : f32 to vector<1x128xf32>
      %2117 = arith.addf %2115, %2116 : vector<1x128xf32>
      %2118 = arith.cmpf ogt, %2110, %2117 : vector<1x128xf32>
      %cst_204 = arith.constant 1.000000e+00 : f32
      %2119 = vector.broadcast %cst_204 : f32 to vector<1x128xf32>
      %2120 = arith.select %2118, %2109, %2119 : vector<1x128xi1>, vector<1x128xf32>
      %2121 = arith.subf %2108, %2107 : vector<1x128xf32>
      %2122 = tpu.reciprocal %2120 {approx = true} : vector<1x128xf32> -> vector<1x128xf32>
      %cst_205 = arith.constant 5.000000e-01 : f32
      %2123 = vector.broadcast %cst_205 : f32 to vector<1x128xf32>
      %2124 = arith.mulf %2123, %2122 : vector<1x128xf32>
      %2125 = arith.mulf %2121, %2124 : vector<1x128xf32>
      %2126 = arith.mulf %2125, %2125 : vector<1x128xf32>
      %cst_206 = arith.constant 1.000000e+00 : f32
      %2127 = vector.broadcast %cst_206 : f32 to vector<1x128xf32>
      %2128 = arith.addf %2126, %2127 : vector<1x128xf32>
      %2129 = math.rsqrt %2128 : vector<1x128xf32>
      %cst_207 = arith.constant 0.000000e+00 : f32
      %2130 = vector.broadcast %cst_207 : f32 to vector<1x128xf32>
      %2131 = arith.cmpf oge, %2125, %2130 : vector<1x128xf32>
      %cst_208 = arith.constant 1.000000e+00 : f32
      %cst_209 = arith.constant -1.000000e+00 : f32
      %2132 = vector.broadcast %cst_208 : f32 to vector<1x128xf32>
      %2133 = vector.broadcast %cst_209 : f32 to vector<1x128xf32>
      %2134 = arith.select %2131, %2132, %2133 : vector<1x128xi1>, vector<1x128xf32>
      %2135 = math.absf %2125 : vector<1x128xf32>
      %2136 = arith.mulf %2128, %2129 : vector<1x128xf32>
      %2137 = arith.addf %2135, %2136 : vector<1x128xf32>
      %2138 = tpu.reciprocal %2137 {approx = true} : vector<1x128xf32> -> vector<1x128xf32>
      %2139 = arith.mulf %2134, %2138 : vector<1x128xf32>
      %cst_210 = arith.constant 0.000000e+00 : f32
      %2140 = vector.broadcast %cst_210 : f32 to vector<1x128xf32>
      %2141 = arith.select %2118, %2139, %2140 : vector<1x128xi1>, vector<1x128xf32>
      %2142 = arith.mulf %2141, %2141 : vector<1x128xf32>
      %cst_211 = arith.constant 1.000000e+00 : f32
      %2143 = vector.broadcast %cst_211 : f32 to vector<1x128xf32>
      %2144 = arith.addf %2142, %2143 : vector<1x128xf32>
      %2145 = math.rsqrt %2144 : vector<1x128xf32>
      %2146 = arith.mulf %2141, %2145 : vector<1x128xf32>
      %2147 = vector.shape_cast %2145 : vector<1x128xf32> to vector<1x128xf32>
      %2148 = vector.broadcast %2147 : vector<1x128xf32> to vector<8x128xf32>
      %2149 = vector.shape_cast %2146 : vector<1x128xf32> to vector<1x128xf32>
      %2150 = vector.broadcast %2149 : vector<1x128xf32> to vector<8x128xf32>
      %2151 = arith.mulf %2148, %2038 : vector<8x128xf32>
      %2152 = arith.mulf %2150, %2082 : vector<8x128xf32>
      %2153 = arith.subf %2151, %2152 : vector<8x128xf32>
      %2154 = arith.mulf %2150, %2038 : vector<8x128xf32>
      %2155 = arith.mulf %2148, %2082 : vector<8x128xf32>
      %2156 = arith.addf %2154, %2155 : vector<8x128xf32>
      %2157 = vector.extract_strided_slice %2153 {offsets = [2, 0], sizes = [1, 128], strides = [1, 1]} : vector<8x128xf32> to vector<1x128xf32>
      %2158 = vector.extract_strided_slice %2153 {offsets = [5, 0], sizes = [1, 128], strides = [1, 1]} : vector<8x128xf32> to vector<1x128xf32>
      %2159 = vector.extract_strided_slice %2156 {offsets = [2, 0], sizes = [1, 128], strides = [1, 1]} : vector<8x128xf32> to vector<1x128xf32>
      %2160 = vector.extract_strided_slice %2156 {offsets = [5, 0], sizes = [1, 128], strides = [1, 1]} : vector<8x128xf32> to vector<1x128xf32>
      %2161 = arith.mulf %2145, %2157 : vector<1x128xf32>
      %2162 = arith.mulf %2146, %2158 : vector<1x128xf32>
      %2163 = arith.subf %2161, %2162 : vector<1x128xf32>
      %2164 = arith.mulf %2146, %2157 : vector<1x128xf32>
      %2165 = arith.mulf %2145, %2158 : vector<1x128xf32>
      %2166 = arith.addf %2164, %2165 : vector<1x128xf32>
      %2167 = vector.shape_cast %2166 : vector<1x128xf32> to vector<1x128xf32>
      %2168 = vector.broadcast %2167 : vector<1x128xf32> to vector<8x128xf32>
      %2169 = arith.select %2106, %2168, %2153 : vector<8x128xi1>, vector<8x128xf32>
      %2170 = vector.shape_cast %2163 : vector<1x128xf32> to vector<1x128xf32>
      %2171 = vector.broadcast %2170 : vector<1x128xf32> to vector<8x128xf32>
      %2172 = arith.select %1836, %2171, %2169 : vector<8x128xi1>, vector<8x128xf32>
      %2173 = arith.mulf %2145, %2159 : vector<1x128xf32>
      %2174 = arith.mulf %2146, %2160 : vector<1x128xf32>
      %2175 = arith.subf %2173, %2174 : vector<1x128xf32>
      %2176 = arith.mulf %2146, %2159 : vector<1x128xf32>
      %2177 = arith.mulf %2145, %2160 : vector<1x128xf32>
      %2178 = arith.addf %2176, %2177 : vector<1x128xf32>
      %2179 = vector.shape_cast %2178 : vector<1x128xf32> to vector<1x128xf32>
      %2180 = vector.broadcast %2179 : vector<1x128xf32> to vector<8x128xf32>
      %2181 = arith.select %2106, %2180, %2156 : vector<8x128xi1>, vector<8x128xf32>
      %2182 = vector.shape_cast %2175 : vector<1x128xf32> to vector<1x128xf32>
      %2183 = vector.broadcast %2182 : vector<1x128xf32> to vector<8x128xf32>
      %2184 = arith.select %1836, %2183, %2181 : vector<8x128xi1>, vector<8x128xf32>
      %2185 = vector.extract_strided_slice %2153 {offsets = [0, 0], sizes = [1, 128], strides = [1, 1]} : vector<8x128xf32> to vector<1x128xf32>
      %2186 = vector.extract_strided_slice %2156 {offsets = [0, 0], sizes = [1, 128], strides = [1, 1]} : vector<8x128xf32> to vector<1x128xf32>
      %2187 = vector.shape_cast %2186 : vector<1x128xf32> to vector<1x128xf32>
      %2188 = vector.broadcast %2187 : vector<1x128xf32> to vector<8x128xf32>
      %2189 = arith.select %2106, %2188, %2058 : vector<8x128xi1>, vector<8x128xf32>
      %2190 = vector.shape_cast %2185 : vector<1x128xf32> to vector<1x128xf32>
      %2191 = vector.broadcast %2190 : vector<1x128xf32> to vector<8x128xf32>
      %2192 = arith.select %1836, %2191, %2189 : vector<8x128xi1>, vector<8x128xf32>
      %2193 = vector.extract_strided_slice %2153 {offsets = [1, 0], sizes = [1, 128], strides = [1, 1]} : vector<8x128xf32> to vector<1x128xf32>
      %2194 = vector.extract_strided_slice %2156 {offsets = [1, 0], sizes = [1, 128], strides = [1, 1]} : vector<8x128xf32> to vector<1x128xf32>
      %2195 = vector.shape_cast %2194 : vector<1x128xf32> to vector<1x128xf32>
      %2196 = vector.broadcast %2195 : vector<1x128xf32> to vector<8x128xf32>
      %2197 = arith.select %2106, %2196, %2066 : vector<8x128xi1>, vector<8x128xf32>
      %2198 = vector.shape_cast %2193 : vector<1x128xf32> to vector<1x128xf32>
      %2199 = vector.broadcast %2198 : vector<1x128xf32> to vector<8x128xf32>
      %2200 = arith.select %1836, %2199, %2197 : vector<8x128xi1>, vector<8x128xf32>
      %2201 = vector.extract_strided_slice %2153 {offsets = [3, 0], sizes = [1, 128], strides = [1, 1]} : vector<8x128xf32> to vector<1x128xf32>
      %2202 = vector.extract_strided_slice %2156 {offsets = [3, 0], sizes = [1, 128], strides = [1, 1]} : vector<8x128xf32> to vector<1x128xf32>
      %2203 = vector.shape_cast %2202 : vector<1x128xf32> to vector<1x128xf32>
      %2204 = vector.broadcast %2203 : vector<1x128xf32> to vector<8x128xf32>
      %2205 = arith.select %2106, %2204, %2074 : vector<8x128xi1>, vector<8x128xf32>
      %2206 = vector.shape_cast %2201 : vector<1x128xf32> to vector<1x128xf32>
      %2207 = vector.broadcast %2206 : vector<1x128xf32> to vector<8x128xf32>
      %2208 = arith.select %1836, %2207, %2205 : vector<8x128xi1>, vector<8x128xf32>
      %2209 = vector.extract_strided_slice %2153 {offsets = [4, 0], sizes = [1, 128], strides = [1, 1]} : vector<8x128xf32> to vector<1x128xf32>
      %2210 = vector.extract_strided_slice %2156 {offsets = [4, 0], sizes = [1, 128], strides = [1, 1]} : vector<8x128xf32> to vector<1x128xf32>
      %2211 = vector.shape_cast %2210 : vector<1x128xf32> to vector<1x128xf32>
      %2212 = vector.broadcast %2211 : vector<1x128xf32> to vector<8x128xf32>
      %2213 = arith.select %2106, %2212, %2050 : vector<8x128xi1>, vector<8x128xf32>
      %2214 = vector.shape_cast %2209 : vector<1x128xf32> to vector<1x128xf32>
      %2215 = vector.broadcast %2214 : vector<1x128xf32> to vector<8x128xf32>
      %2216 = arith.select %1836, %2215, %2213 : vector<8x128xi1>, vector<8x128xf32>
      %2217 = vector.extract_strided_slice %2153 {offsets = [6, 0], sizes = [1, 128], strides = [1, 1]} : vector<8x128xf32> to vector<1x128xf32>
      %2218 = vector.extract_strided_slice %2156 {offsets = [6, 0], sizes = [1, 128], strides = [1, 1]} : vector<8x128xf32> to vector<1x128xf32>
      %2219 = vector.shape_cast %2218 : vector<1x128xf32> to vector<1x128xf32>
      %2220 = vector.broadcast %2219 : vector<1x128xf32> to vector<8x128xf32>
      %2221 = arith.select %2106, %2220, %2090 : vector<8x128xi1>, vector<8x128xf32>
      %2222 = vector.shape_cast %2217 : vector<1x128xf32> to vector<1x128xf32>
      %2223 = vector.broadcast %2222 : vector<1x128xf32> to vector<8x128xf32>
      %2224 = arith.select %1836, %2223, %2221 : vector<8x128xi1>, vector<8x128xf32>
      %2225 = vector.extract_strided_slice %2153 {offsets = [7, 0], sizes = [1, 128], strides = [1, 1]} : vector<8x128xf32> to vector<1x128xf32>
      %2226 = vector.extract_strided_slice %2156 {offsets = [7, 0], sizes = [1, 128], strides = [1, 1]} : vector<8x128xf32> to vector<1x128xf32>
      %2227 = vector.shape_cast %2226 : vector<1x128xf32> to vector<1x128xf32>
      %2228 = vector.broadcast %2227 : vector<1x128xf32> to vector<8x128xf32>
      %2229 = arith.select %2106, %2228, %2098 : vector<8x128xi1>, vector<8x128xf32>
      %2230 = vector.shape_cast %2225 : vector<1x128xf32> to vector<1x128xf32>
      %2231 = vector.broadcast %2230 : vector<1x128xf32> to vector<8x128xf32>
      %2232 = arith.select %1836, %2231, %2229 : vector<8x128xi1>, vector<8x128xf32>
      %2233 = arith.mulf %2148, %2101 : vector<8x128xf32>
      %2234 = arith.mulf %2150, %1566 : vector<8x128xf32>
      %2235 = arith.subf %2233, %2234 : vector<8x128xf32>
      %2236 = arith.mulf %2150, %2101 : vector<8x128xf32>
      %2237 = arith.mulf %2148, %1566 : vector<8x128xf32>
      %2238 = arith.addf %2236, %2237 : vector<8x128xf32>
      %c6_i32_212 = arith.constant 6 : i32
      %2239 = vector.broadcast %c6_i32_212 : i32 to vector<8x128xi32>
      %2240 = arith.cmpi eq, %0, %2239 : vector<8x128xi32>
      %2241 = vector.extract_strided_slice %2172 {offsets = [2, 0], sizes = [1, 128], strides = [1, 1]} : vector<8x128xf32> to vector<1x128xf32>
      %2242 = vector.extract_strided_slice %2224 {offsets = [6, 0], sizes = [1, 128], strides = [1, 1]} : vector<8x128xf32> to vector<1x128xf32>
      %2243 = vector.extract_strided_slice %2172 {offsets = [6, 0], sizes = [1, 128], strides = [1, 1]} : vector<8x128xf32> to vector<1x128xf32>
      %2244 = math.absf %2243 : vector<1x128xf32>
      %2245 = math.absf %2241 : vector<1x128xf32>
      %2246 = math.absf %2242 : vector<1x128xf32>
      %2247 = arith.addf %2245, %2246 : vector<1x128xf32>
      %cst_213 = arith.constant 9.99999996E-13 : f32
      %2248 = vector.broadcast %cst_213 : f32 to vector<1x128xf32>
      %2249 = arith.mulf %2248, %2247 : vector<1x128xf32>
      %cst_214 = arith.constant 1.000000e-30 : f32
      %2250 = vector.broadcast %cst_214 : f32 to vector<1x128xf32>
      %2251 = arith.addf %2249, %2250 : vector<1x128xf32>
      %2252 = arith.cmpf ogt, %2244, %2251 : vector<1x128xf32>
      %cst_215 = arith.constant 1.000000e+00 : f32
      %2253 = vector.broadcast %cst_215 : f32 to vector<1x128xf32>
      %2254 = arith.select %2252, %2243, %2253 : vector<1x128xi1>, vector<1x128xf32>
      %2255 = arith.subf %2242, %2241 : vector<1x128xf32>
      %2256 = tpu.reciprocal %2254 {approx = true} : vector<1x128xf32> -> vector<1x128xf32>
      %cst_216 = arith.constant 5.000000e-01 : f32
      %2257 = vector.broadcast %cst_216 : f32 to vector<1x128xf32>
      %2258 = arith.mulf %2257, %2256 : vector<1x128xf32>
      %2259 = arith.mulf %2255, %2258 : vector<1x128xf32>
      %2260 = arith.mulf %2259, %2259 : vector<1x128xf32>
      %cst_217 = arith.constant 1.000000e+00 : f32
      %2261 = vector.broadcast %cst_217 : f32 to vector<1x128xf32>
      %2262 = arith.addf %2260, %2261 : vector<1x128xf32>
      %2263 = math.rsqrt %2262 : vector<1x128xf32>
      %cst_218 = arith.constant 0.000000e+00 : f32
      %2264 = vector.broadcast %cst_218 : f32 to vector<1x128xf32>
      %2265 = arith.cmpf oge, %2259, %2264 : vector<1x128xf32>
      %cst_219 = arith.constant 1.000000e+00 : f32
      %cst_220 = arith.constant -1.000000e+00 : f32
      %2266 = vector.broadcast %cst_219 : f32 to vector<1x128xf32>
      %2267 = vector.broadcast %cst_220 : f32 to vector<1x128xf32>
      %2268 = arith.select %2265, %2266, %2267 : vector<1x128xi1>, vector<1x128xf32>
      %2269 = math.absf %2259 : vector<1x128xf32>
      %2270 = arith.mulf %2262, %2263 : vector<1x128xf32>
      %2271 = arith.addf %2269, %2270 : vector<1x128xf32>
      %2272 = tpu.reciprocal %2271 {approx = true} : vector<1x128xf32> -> vector<1x128xf32>
      %2273 = arith.mulf %2268, %2272 : vector<1x128xf32>
      %cst_221 = arith.constant 0.000000e+00 : f32
      %2274 = vector.broadcast %cst_221 : f32 to vector<1x128xf32>
      %2275 = arith.select %2252, %2273, %2274 : vector<1x128xi1>, vector<1x128xf32>
      %2276 = arith.mulf %2275, %2275 : vector<1x128xf32>
      %cst_222 = arith.constant 1.000000e+00 : f32
      %2277 = vector.broadcast %cst_222 : f32 to vector<1x128xf32>
      %2278 = arith.addf %2276, %2277 : vector<1x128xf32>
      %2279 = math.rsqrt %2278 : vector<1x128xf32>
      %2280 = arith.mulf %2275, %2279 : vector<1x128xf32>
      %2281 = vector.shape_cast %2279 : vector<1x128xf32> to vector<1x128xf32>
      %2282 = vector.broadcast %2281 : vector<1x128xf32> to vector<8x128xf32>
      %2283 = vector.shape_cast %2280 : vector<1x128xf32> to vector<1x128xf32>
      %2284 = vector.broadcast %2283 : vector<1x128xf32> to vector<8x128xf32>
      %2285 = arith.mulf %2282, %2172 : vector<8x128xf32>
      %2286 = arith.mulf %2284, %2224 : vector<8x128xf32>
      %2287 = arith.subf %2285, %2286 : vector<8x128xf32>
      %2288 = arith.mulf %2284, %2172 : vector<8x128xf32>
      %2289 = arith.mulf %2282, %2224 : vector<8x128xf32>
      %2290 = arith.addf %2288, %2289 : vector<8x128xf32>
      %2291 = vector.extract_strided_slice %2287 {offsets = [2, 0], sizes = [1, 128], strides = [1, 1]} : vector<8x128xf32> to vector<1x128xf32>
      %2292 = vector.extract_strided_slice %2287 {offsets = [6, 0], sizes = [1, 128], strides = [1, 1]} : vector<8x128xf32> to vector<1x128xf32>
      %2293 = vector.extract_strided_slice %2290 {offsets = [2, 0], sizes = [1, 128], strides = [1, 1]} : vector<8x128xf32> to vector<1x128xf32>
      %2294 = vector.extract_strided_slice %2290 {offsets = [6, 0], sizes = [1, 128], strides = [1, 1]} : vector<8x128xf32> to vector<1x128xf32>
      %2295 = arith.mulf %2279, %2291 : vector<1x128xf32>
      %2296 = arith.mulf %2280, %2292 : vector<1x128xf32>
      %2297 = arith.subf %2295, %2296 : vector<1x128xf32>
      %2298 = arith.mulf %2280, %2291 : vector<1x128xf32>
      %2299 = arith.mulf %2279, %2292 : vector<1x128xf32>
      %2300 = arith.addf %2298, %2299 : vector<1x128xf32>
      %2301 = vector.shape_cast %2300 : vector<1x128xf32> to vector<1x128xf32>
      %2302 = vector.broadcast %2301 : vector<1x128xf32> to vector<8x128xf32>
      %2303 = arith.select %2240, %2302, %2287 : vector<8x128xi1>, vector<8x128xf32>
      %2304 = vector.shape_cast %2297 : vector<1x128xf32> to vector<1x128xf32>
      %2305 = vector.broadcast %2304 : vector<1x128xf32> to vector<8x128xf32>
      %2306 = arith.select %1836, %2305, %2303 : vector<8x128xi1>, vector<8x128xf32>
      %2307 = arith.mulf %2279, %2293 : vector<1x128xf32>
      %2308 = arith.mulf %2280, %2294 : vector<1x128xf32>
      %2309 = arith.subf %2307, %2308 : vector<1x128xf32>
      %2310 = arith.mulf %2280, %2293 : vector<1x128xf32>
      %2311 = arith.mulf %2279, %2294 : vector<1x128xf32>
      %2312 = arith.addf %2310, %2311 : vector<1x128xf32>
      %2313 = vector.shape_cast %2312 : vector<1x128xf32> to vector<1x128xf32>
      %2314 = vector.broadcast %2313 : vector<1x128xf32> to vector<8x128xf32>
      %2315 = arith.select %2240, %2314, %2290 : vector<8x128xi1>, vector<8x128xf32>
      %2316 = vector.shape_cast %2309 : vector<1x128xf32> to vector<1x128xf32>
      %2317 = vector.broadcast %2316 : vector<1x128xf32> to vector<8x128xf32>
      %2318 = arith.select %1836, %2317, %2315 : vector<8x128xi1>, vector<8x128xf32>
      %2319 = vector.extract_strided_slice %2287 {offsets = [0, 0], sizes = [1, 128], strides = [1, 1]} : vector<8x128xf32> to vector<1x128xf32>
      %2320 = vector.extract_strided_slice %2290 {offsets = [0, 0], sizes = [1, 128], strides = [1, 1]} : vector<8x128xf32> to vector<1x128xf32>
      %2321 = vector.shape_cast %2320 : vector<1x128xf32> to vector<1x128xf32>
      %2322 = vector.broadcast %2321 : vector<1x128xf32> to vector<8x128xf32>
      %2323 = arith.select %2240, %2322, %2192 : vector<8x128xi1>, vector<8x128xf32>
      %2324 = vector.shape_cast %2319 : vector<1x128xf32> to vector<1x128xf32>
      %2325 = vector.broadcast %2324 : vector<1x128xf32> to vector<8x128xf32>
      %2326 = arith.select %1836, %2325, %2323 : vector<8x128xi1>, vector<8x128xf32>
      %2327 = vector.extract_strided_slice %2287 {offsets = [1, 0], sizes = [1, 128], strides = [1, 1]} : vector<8x128xf32> to vector<1x128xf32>
      %2328 = vector.extract_strided_slice %2290 {offsets = [1, 0], sizes = [1, 128], strides = [1, 1]} : vector<8x128xf32> to vector<1x128xf32>
      %2329 = vector.shape_cast %2328 : vector<1x128xf32> to vector<1x128xf32>
      %2330 = vector.broadcast %2329 : vector<1x128xf32> to vector<8x128xf32>
      %2331 = arith.select %2240, %2330, %2200 : vector<8x128xi1>, vector<8x128xf32>
      %2332 = vector.shape_cast %2327 : vector<1x128xf32> to vector<1x128xf32>
      %2333 = vector.broadcast %2332 : vector<1x128xf32> to vector<8x128xf32>
      %2334 = arith.select %1836, %2333, %2331 : vector<8x128xi1>, vector<8x128xf32>
      %2335 = vector.extract_strided_slice %2287 {offsets = [3, 0], sizes = [1, 128], strides = [1, 1]} : vector<8x128xf32> to vector<1x128xf32>
      %2336 = vector.extract_strided_slice %2290 {offsets = [3, 0], sizes = [1, 128], strides = [1, 1]} : vector<8x128xf32> to vector<1x128xf32>
      %2337 = vector.shape_cast %2336 : vector<1x128xf32> to vector<1x128xf32>
      %2338 = vector.broadcast %2337 : vector<1x128xf32> to vector<8x128xf32>
      %2339 = arith.select %2240, %2338, %2208 : vector<8x128xi1>, vector<8x128xf32>
      %2340 = vector.shape_cast %2335 : vector<1x128xf32> to vector<1x128xf32>
      %2341 = vector.broadcast %2340 : vector<1x128xf32> to vector<8x128xf32>
      %2342 = arith.select %1836, %2341, %2339 : vector<8x128xi1>, vector<8x128xf32>
      %2343 = vector.extract_strided_slice %2287 {offsets = [4, 0], sizes = [1, 128], strides = [1, 1]} : vector<8x128xf32> to vector<1x128xf32>
      %2344 = vector.extract_strided_slice %2290 {offsets = [4, 0], sizes = [1, 128], strides = [1, 1]} : vector<8x128xf32> to vector<1x128xf32>
      %2345 = vector.shape_cast %2344 : vector<1x128xf32> to vector<1x128xf32>
      %2346 = vector.broadcast %2345 : vector<1x128xf32> to vector<8x128xf32>
      %2347 = arith.select %2240, %2346, %2216 : vector<8x128xi1>, vector<8x128xf32>
      %2348 = vector.shape_cast %2343 : vector<1x128xf32> to vector<1x128xf32>
      %2349 = vector.broadcast %2348 : vector<1x128xf32> to vector<8x128xf32>
      %2350 = arith.select %1836, %2349, %2347 : vector<8x128xi1>, vector<8x128xf32>
      %2351 = vector.extract_strided_slice %2287 {offsets = [5, 0], sizes = [1, 128], strides = [1, 1]} : vector<8x128xf32> to vector<1x128xf32>
      %2352 = vector.extract_strided_slice %2290 {offsets = [5, 0], sizes = [1, 128], strides = [1, 1]} : vector<8x128xf32> to vector<1x128xf32>
      %2353 = vector.shape_cast %2352 : vector<1x128xf32> to vector<1x128xf32>
      %2354 = vector.broadcast %2353 : vector<1x128xf32> to vector<8x128xf32>
      %2355 = arith.select %2240, %2354, %2184 : vector<8x128xi1>, vector<8x128xf32>
      %2356 = vector.shape_cast %2351 : vector<1x128xf32> to vector<1x128xf32>
      %2357 = vector.broadcast %2356 : vector<1x128xf32> to vector<8x128xf32>
      %2358 = arith.select %1836, %2357, %2355 : vector<8x128xi1>, vector<8x128xf32>
      %2359 = vector.extract_strided_slice %2287 {offsets = [7, 0], sizes = [1, 128], strides = [1, 1]} : vector<8x128xf32> to vector<1x128xf32>
      %2360 = vector.extract_strided_slice %2290 {offsets = [7, 0], sizes = [1, 128], strides = [1, 1]} : vector<8x128xf32> to vector<1x128xf32>
      %2361 = vector.shape_cast %2360 : vector<1x128xf32> to vector<1x128xf32>
      %2362 = vector.broadcast %2361 : vector<1x128xf32> to vector<8x128xf32>
      %2363 = arith.select %2240, %2362, %2232 : vector<8x128xi1>, vector<8x128xf32>
      %2364 = vector.shape_cast %2359 : vector<1x128xf32> to vector<1x128xf32>
      %2365 = vector.broadcast %2364 : vector<1x128xf32> to vector<8x128xf32>
      %2366 = arith.select %1836, %2365, %2363 : vector<8x128xi1>, vector<8x128xf32>
      %2367 = arith.mulf %2282, %2235 : vector<8x128xf32>
      %2368 = arith.mulf %2284, %1700 : vector<8x128xf32>
      %2369 = arith.subf %2367, %2368 : vector<8x128xf32>
      %2370 = arith.mulf %2284, %2235 : vector<8x128xf32>
      %2371 = arith.mulf %2282, %1700 : vector<8x128xf32>
      %2372 = arith.addf %2370, %2371 : vector<8x128xf32>
      %c7_i32_223 = arith.constant 7 : i32
      %2373 = vector.broadcast %c7_i32_223 : i32 to vector<8x128xi32>
      %2374 = arith.cmpi eq, %0, %2373 : vector<8x128xi32>
      %2375 = vector.extract_strided_slice %2306 {offsets = [2, 0], sizes = [1, 128], strides = [1, 1]} : vector<8x128xf32> to vector<1x128xf32>
      %2376 = vector.extract_strided_slice %2366 {offsets = [7, 0], sizes = [1, 128], strides = [1, 1]} : vector<8x128xf32> to vector<1x128xf32>
      %2377 = vector.extract_strided_slice %2306 {offsets = [7, 0], sizes = [1, 128], strides = [1, 1]} : vector<8x128xf32> to vector<1x128xf32>
      %2378 = math.absf %2377 : vector<1x128xf32>
      %2379 = math.absf %2375 : vector<1x128xf32>
      %2380 = math.absf %2376 : vector<1x128xf32>
      %2381 = arith.addf %2379, %2380 : vector<1x128xf32>
      %cst_224 = arith.constant 9.99999996E-13 : f32
      %2382 = vector.broadcast %cst_224 : f32 to vector<1x128xf32>
      %2383 = arith.mulf %2382, %2381 : vector<1x128xf32>
      %cst_225 = arith.constant 1.000000e-30 : f32
      %2384 = vector.broadcast %cst_225 : f32 to vector<1x128xf32>
      %2385 = arith.addf %2383, %2384 : vector<1x128xf32>
      %2386 = arith.cmpf ogt, %2378, %2385 : vector<1x128xf32>
      %cst_226 = arith.constant 1.000000e+00 : f32
      %2387 = vector.broadcast %cst_226 : f32 to vector<1x128xf32>
      %2388 = arith.select %2386, %2377, %2387 : vector<1x128xi1>, vector<1x128xf32>
      %2389 = arith.subf %2376, %2375 : vector<1x128xf32>
      %2390 = tpu.reciprocal %2388 {approx = true} : vector<1x128xf32> -> vector<1x128xf32>
      %cst_227 = arith.constant 5.000000e-01 : f32
      %2391 = vector.broadcast %cst_227 : f32 to vector<1x128xf32>
      %2392 = arith.mulf %2391, %2390 : vector<1x128xf32>
      %2393 = arith.mulf %2389, %2392 : vector<1x128xf32>
      %2394 = arith.mulf %2393, %2393 : vector<1x128xf32>
      %cst_228 = arith.constant 1.000000e+00 : f32
      %2395 = vector.broadcast %cst_228 : f32 to vector<1x128xf32>
      %2396 = arith.addf %2394, %2395 : vector<1x128xf32>
      %2397 = math.rsqrt %2396 : vector<1x128xf32>
      %cst_229 = arith.constant 0.000000e+00 : f32
      %2398 = vector.broadcast %cst_229 : f32 to vector<1x128xf32>
      %2399 = arith.cmpf oge, %2393, %2398 : vector<1x128xf32>
      %cst_230 = arith.constant 1.000000e+00 : f32
      %cst_231 = arith.constant -1.000000e+00 : f32
      %2400 = vector.broadcast %cst_230 : f32 to vector<1x128xf32>
      %2401 = vector.broadcast %cst_231 : f32 to vector<1x128xf32>
      %2402 = arith.select %2399, %2400, %2401 : vector<1x128xi1>, vector<1x128xf32>
      %2403 = math.absf %2393 : vector<1x128xf32>
      %2404 = arith.mulf %2396, %2397 : vector<1x128xf32>
      %2405 = arith.addf %2403, %2404 : vector<1x128xf32>
      %2406 = tpu.reciprocal %2405 {approx = true} : vector<1x128xf32> -> vector<1x128xf32>
      %2407 = arith.mulf %2402, %2406 : vector<1x128xf32>
      %cst_232 = arith.constant 0.000000e+00 : f32
      %2408 = vector.broadcast %cst_232 : f32 to vector<1x128xf32>
      %2409 = arith.select %2386, %2407, %2408 : vector<1x128xi1>, vector<1x128xf32>
      %2410 = arith.mulf %2409, %2409 : vector<1x128xf32>
      %cst_233 = arith.constant 1.000000e+00 : f32
      %2411 = vector.broadcast %cst_233 : f32 to vector<1x128xf32>
      %2412 = arith.addf %2410, %2411 : vector<1x128xf32>
      %2413 = math.rsqrt %2412 : vector<1x128xf32>
      %2414 = arith.mulf %2409, %2413 : vector<1x128xf32>
      %2415 = vector.shape_cast %2413 : vector<1x128xf32> to vector<1x128xf32>
      %2416 = vector.broadcast %2415 : vector<1x128xf32> to vector<8x128xf32>
      %2417 = vector.shape_cast %2414 : vector<1x128xf32> to vector<1x128xf32>
      %2418 = vector.broadcast %2417 : vector<1x128xf32> to vector<8x128xf32>
      %2419 = arith.mulf %2416, %2306 : vector<8x128xf32>
      %2420 = arith.mulf %2418, %2366 : vector<8x128xf32>
      %2421 = arith.subf %2419, %2420 : vector<8x128xf32>
      %2422 = arith.mulf %2418, %2306 : vector<8x128xf32>
      %2423 = arith.mulf %2416, %2366 : vector<8x128xf32>
      %2424 = arith.addf %2422, %2423 : vector<8x128xf32>
      %2425 = vector.extract_strided_slice %2421 {offsets = [2, 0], sizes = [1, 128], strides = [1, 1]} : vector<8x128xf32> to vector<1x128xf32>
      %2426 = vector.extract_strided_slice %2421 {offsets = [7, 0], sizes = [1, 128], strides = [1, 1]} : vector<8x128xf32> to vector<1x128xf32>
      %2427 = vector.extract_strided_slice %2424 {offsets = [2, 0], sizes = [1, 128], strides = [1, 1]} : vector<8x128xf32> to vector<1x128xf32>
      %2428 = vector.extract_strided_slice %2424 {offsets = [7, 0], sizes = [1, 128], strides = [1, 1]} : vector<8x128xf32> to vector<1x128xf32>
      %2429 = arith.mulf %2413, %2425 : vector<1x128xf32>
      %2430 = arith.mulf %2414, %2426 : vector<1x128xf32>
      %2431 = arith.subf %2429, %2430 : vector<1x128xf32>
      %2432 = arith.mulf %2414, %2425 : vector<1x128xf32>
      %2433 = arith.mulf %2413, %2426 : vector<1x128xf32>
      %2434 = arith.addf %2432, %2433 : vector<1x128xf32>
      %2435 = vector.shape_cast %2434 : vector<1x128xf32> to vector<1x128xf32>
      %2436 = vector.broadcast %2435 : vector<1x128xf32> to vector<8x128xf32>
      %2437 = arith.select %2374, %2436, %2421 : vector<8x128xi1>, vector<8x128xf32>
      %2438 = vector.shape_cast %2431 : vector<1x128xf32> to vector<1x128xf32>
      %2439 = vector.broadcast %2438 : vector<1x128xf32> to vector<8x128xf32>
      %2440 = arith.select %1836, %2439, %2437 : vector<8x128xi1>, vector<8x128xf32>
      %2441 = arith.mulf %2413, %2427 : vector<1x128xf32>
      %2442 = arith.mulf %2414, %2428 : vector<1x128xf32>
      %2443 = arith.subf %2441, %2442 : vector<1x128xf32>
      %2444 = arith.mulf %2414, %2427 : vector<1x128xf32>
      %2445 = arith.mulf %2413, %2428 : vector<1x128xf32>
      %2446 = arith.addf %2444, %2445 : vector<1x128xf32>
      %2447 = vector.shape_cast %2446 : vector<1x128xf32> to vector<1x128xf32>
      %2448 = vector.broadcast %2447 : vector<1x128xf32> to vector<8x128xf32>
      %2449 = arith.select %2374, %2448, %2424 : vector<8x128xi1>, vector<8x128xf32>
      %2450 = vector.shape_cast %2443 : vector<1x128xf32> to vector<1x128xf32>
      %2451 = vector.broadcast %2450 : vector<1x128xf32> to vector<8x128xf32>
      %2452 = arith.select %1836, %2451, %2449 : vector<8x128xi1>, vector<8x128xf32>
      %2453 = vector.extract_strided_slice %2421 {offsets = [0, 0], sizes = [1, 128], strides = [1, 1]} : vector<8x128xf32> to vector<1x128xf32>
      %2454 = vector.extract_strided_slice %2424 {offsets = [0, 0], sizes = [1, 128], strides = [1, 1]} : vector<8x128xf32> to vector<1x128xf32>
      %2455 = vector.shape_cast %2454 : vector<1x128xf32> to vector<1x128xf32>
      %2456 = vector.broadcast %2455 : vector<1x128xf32> to vector<8x128xf32>
      %2457 = arith.select %2374, %2456, %2326 : vector<8x128xi1>, vector<8x128xf32>
      %2458 = vector.shape_cast %2453 : vector<1x128xf32> to vector<1x128xf32>
      %2459 = vector.broadcast %2458 : vector<1x128xf32> to vector<8x128xf32>
      %2460 = arith.select %1836, %2459, %2457 : vector<8x128xi1>, vector<8x128xf32>
      %2461 = vector.extract_strided_slice %2421 {offsets = [1, 0], sizes = [1, 128], strides = [1, 1]} : vector<8x128xf32> to vector<1x128xf32>
      %2462 = vector.extract_strided_slice %2424 {offsets = [1, 0], sizes = [1, 128], strides = [1, 1]} : vector<8x128xf32> to vector<1x128xf32>
      %2463 = vector.shape_cast %2462 : vector<1x128xf32> to vector<1x128xf32>
      %2464 = vector.broadcast %2463 : vector<1x128xf32> to vector<8x128xf32>
      %2465 = arith.select %2374, %2464, %2334 : vector<8x128xi1>, vector<8x128xf32>
      %2466 = vector.shape_cast %2461 : vector<1x128xf32> to vector<1x128xf32>
      %2467 = vector.broadcast %2466 : vector<1x128xf32> to vector<8x128xf32>
      %2468 = arith.select %1836, %2467, %2465 : vector<8x128xi1>, vector<8x128xf32>
      %2469 = vector.extract_strided_slice %2421 {offsets = [3, 0], sizes = [1, 128], strides = [1, 1]} : vector<8x128xf32> to vector<1x128xf32>
      %2470 = vector.extract_strided_slice %2424 {offsets = [3, 0], sizes = [1, 128], strides = [1, 1]} : vector<8x128xf32> to vector<1x128xf32>
      %2471 = vector.shape_cast %2470 : vector<1x128xf32> to vector<1x128xf32>
      %2472 = vector.broadcast %2471 : vector<1x128xf32> to vector<8x128xf32>
      %2473 = arith.select %2374, %2472, %2342 : vector<8x128xi1>, vector<8x128xf32>
      %2474 = vector.shape_cast %2469 : vector<1x128xf32> to vector<1x128xf32>
      %2475 = vector.broadcast %2474 : vector<1x128xf32> to vector<8x128xf32>
      %2476 = arith.select %1836, %2475, %2473 : vector<8x128xi1>, vector<8x128xf32>
      %2477 = vector.extract_strided_slice %2421 {offsets = [4, 0], sizes = [1, 128], strides = [1, 1]} : vector<8x128xf32> to vector<1x128xf32>
      %2478 = vector.extract_strided_slice %2424 {offsets = [4, 0], sizes = [1, 128], strides = [1, 1]} : vector<8x128xf32> to vector<1x128xf32>
      %2479 = vector.shape_cast %2478 : vector<1x128xf32> to vector<1x128xf32>
      %2480 = vector.broadcast %2479 : vector<1x128xf32> to vector<8x128xf32>
      %2481 = arith.select %2374, %2480, %2350 : vector<8x128xi1>, vector<8x128xf32>
      %2482 = vector.shape_cast %2477 : vector<1x128xf32> to vector<1x128xf32>
      %2483 = vector.broadcast %2482 : vector<1x128xf32> to vector<8x128xf32>
      %2484 = arith.select %1836, %2483, %2481 : vector<8x128xi1>, vector<8x128xf32>
      %2485 = vector.extract_strided_slice %2421 {offsets = [5, 0], sizes = [1, 128], strides = [1, 1]} : vector<8x128xf32> to vector<1x128xf32>
      %2486 = vector.extract_strided_slice %2424 {offsets = [5, 0], sizes = [1, 128], strides = [1, 1]} : vector<8x128xf32> to vector<1x128xf32>
      %2487 = vector.shape_cast %2486 : vector<1x128xf32> to vector<1x128xf32>
      %2488 = vector.broadcast %2487 : vector<1x128xf32> to vector<8x128xf32>
      %2489 = arith.select %2374, %2488, %2358 : vector<8x128xi1>, vector<8x128xf32>
      %2490 = vector.shape_cast %2485 : vector<1x128xf32> to vector<1x128xf32>
      %2491 = vector.broadcast %2490 : vector<1x128xf32> to vector<8x128xf32>
      %2492 = arith.select %1836, %2491, %2489 : vector<8x128xi1>, vector<8x128xf32>
      %2493 = vector.extract_strided_slice %2421 {offsets = [6, 0], sizes = [1, 128], strides = [1, 1]} : vector<8x128xf32> to vector<1x128xf32>
      %2494 = vector.extract_strided_slice %2424 {offsets = [6, 0], sizes = [1, 128], strides = [1, 1]} : vector<8x128xf32> to vector<1x128xf32>
      %2495 = vector.shape_cast %2494 : vector<1x128xf32> to vector<1x128xf32>
      %2496 = vector.broadcast %2495 : vector<1x128xf32> to vector<8x128xf32>
      %2497 = arith.select %2374, %2496, %2318 : vector<8x128xi1>, vector<8x128xf32>
      %2498 = vector.shape_cast %2493 : vector<1x128xf32> to vector<1x128xf32>
      %2499 = vector.broadcast %2498 : vector<1x128xf32> to vector<8x128xf32>
      %2500 = arith.select %1836, %2499, %2497 : vector<8x128xi1>, vector<8x128xf32>
      %2501 = arith.mulf %2416, %2369 : vector<8x128xf32>
      %2502 = arith.mulf %2418, %1834 : vector<8x128xf32>
      %2503 = arith.subf %2501, %2502 : vector<8x128xf32>
      %2504 = arith.mulf %2418, %2369 : vector<8x128xf32>
      %2505 = arith.mulf %2416, %1834 : vector<8x128xf32>
      %2506 = arith.addf %2504, %2505 : vector<8x128xf32>
      %c3_i32_234 = arith.constant 3 : i32
      %2507 = vector.broadcast %c3_i32_234 : i32 to vector<8x128xi32>
      %2508 = arith.cmpi eq, %0, %2507 : vector<8x128xi32>
      %c4_i32_235 = arith.constant 4 : i32
      %2509 = vector.broadcast %c4_i32_235 : i32 to vector<8x128xi32>
      %2510 = arith.cmpi eq, %0, %2509 : vector<8x128xi32>
      %2511 = vector.extract_strided_slice %2476 {offsets = [3, 0], sizes = [1, 128], strides = [1, 1]} : vector<8x128xf32> to vector<1x128xf32>
      %2512 = vector.extract_strided_slice %2484 {offsets = [4, 0], sizes = [1, 128], strides = [1, 1]} : vector<8x128xf32> to vector<1x128xf32>
      %2513 = vector.extract_strided_slice %2476 {offsets = [4, 0], sizes = [1, 128], strides = [1, 1]} : vector<8x128xf32> to vector<1x128xf32>
      %2514 = math.absf %2513 : vector<1x128xf32>
      %2515 = math.absf %2511 : vector<1x128xf32>
      %2516 = math.absf %2512 : vector<1x128xf32>
      %2517 = arith.addf %2515, %2516 : vector<1x128xf32>
      %cst_236 = arith.constant 9.99999996E-13 : f32
      %2518 = vector.broadcast %cst_236 : f32 to vector<1x128xf32>
      %2519 = arith.mulf %2518, %2517 : vector<1x128xf32>
      %cst_237 = arith.constant 1.000000e-30 : f32
      %2520 = vector.broadcast %cst_237 : f32 to vector<1x128xf32>
      %2521 = arith.addf %2519, %2520 : vector<1x128xf32>
      %2522 = arith.cmpf ogt, %2514, %2521 : vector<1x128xf32>
      %cst_238 = arith.constant 1.000000e+00 : f32
      %2523 = vector.broadcast %cst_238 : f32 to vector<1x128xf32>
      %2524 = arith.select %2522, %2513, %2523 : vector<1x128xi1>, vector<1x128xf32>
      %2525 = arith.subf %2512, %2511 : vector<1x128xf32>
      %2526 = tpu.reciprocal %2524 {approx = true} : vector<1x128xf32> -> vector<1x128xf32>
      %cst_239 = arith.constant 5.000000e-01 : f32
      %2527 = vector.broadcast %cst_239 : f32 to vector<1x128xf32>
      %2528 = arith.mulf %2527, %2526 : vector<1x128xf32>
      %2529 = arith.mulf %2525, %2528 : vector<1x128xf32>
      %2530 = arith.mulf %2529, %2529 : vector<1x128xf32>
      %cst_240 = arith.constant 1.000000e+00 : f32
      %2531 = vector.broadcast %cst_240 : f32 to vector<1x128xf32>
      %2532 = arith.addf %2530, %2531 : vector<1x128xf32>
      %2533 = math.rsqrt %2532 : vector<1x128xf32>
      %cst_241 = arith.constant 0.000000e+00 : f32
      %2534 = vector.broadcast %cst_241 : f32 to vector<1x128xf32>
      %2535 = arith.cmpf oge, %2529, %2534 : vector<1x128xf32>
      %cst_242 = arith.constant 1.000000e+00 : f32
      %cst_243 = arith.constant -1.000000e+00 : f32
      %2536 = vector.broadcast %cst_242 : f32 to vector<1x128xf32>
      %2537 = vector.broadcast %cst_243 : f32 to vector<1x128xf32>
      %2538 = arith.select %2535, %2536, %2537 : vector<1x128xi1>, vector<1x128xf32>
      %2539 = math.absf %2529 : vector<1x128xf32>
      %2540 = arith.mulf %2532, %2533 : vector<1x128xf32>
      %2541 = arith.addf %2539, %2540 : vector<1x128xf32>
      %2542 = tpu.reciprocal %2541 {approx = true} : vector<1x128xf32> -> vector<1x128xf32>
      %2543 = arith.mulf %2538, %2542 : vector<1x128xf32>
      %cst_244 = arith.constant 0.000000e+00 : f32
      %2544 = vector.broadcast %cst_244 : f32 to vector<1x128xf32>
      %2545 = arith.select %2522, %2543, %2544 : vector<1x128xi1>, vector<1x128xf32>
      %2546 = arith.mulf %2545, %2545 : vector<1x128xf32>
      %cst_245 = arith.constant 1.000000e+00 : f32
      %2547 = vector.broadcast %cst_245 : f32 to vector<1x128xf32>
      %2548 = arith.addf %2546, %2547 : vector<1x128xf32>
      %2549 = math.rsqrt %2548 : vector<1x128xf32>
      %2550 = arith.mulf %2545, %2549 : vector<1x128xf32>
      %2551 = vector.shape_cast %2549 : vector<1x128xf32> to vector<1x128xf32>
      %2552 = vector.broadcast %2551 : vector<1x128xf32> to vector<8x128xf32>
      %2553 = vector.shape_cast %2550 : vector<1x128xf32> to vector<1x128xf32>
      %2554 = vector.broadcast %2553 : vector<1x128xf32> to vector<8x128xf32>
      %2555 = arith.mulf %2552, %2476 : vector<8x128xf32>
      %2556 = arith.mulf %2554, %2484 : vector<8x128xf32>
      %2557 = arith.subf %2555, %2556 : vector<8x128xf32>
      %2558 = arith.mulf %2554, %2476 : vector<8x128xf32>
      %2559 = arith.mulf %2552, %2484 : vector<8x128xf32>
      %2560 = arith.addf %2558, %2559 : vector<8x128xf32>
      %2561 = vector.extract_strided_slice %2557 {offsets = [3, 0], sizes = [1, 128], strides = [1, 1]} : vector<8x128xf32> to vector<1x128xf32>
      %2562 = vector.extract_strided_slice %2557 {offsets = [4, 0], sizes = [1, 128], strides = [1, 1]} : vector<8x128xf32> to vector<1x128xf32>
      %2563 = vector.extract_strided_slice %2560 {offsets = [3, 0], sizes = [1, 128], strides = [1, 1]} : vector<8x128xf32> to vector<1x128xf32>
      %2564 = vector.extract_strided_slice %2560 {offsets = [4, 0], sizes = [1, 128], strides = [1, 1]} : vector<8x128xf32> to vector<1x128xf32>
      %2565 = arith.mulf %2549, %2561 : vector<1x128xf32>
      %2566 = arith.mulf %2550, %2562 : vector<1x128xf32>
      %2567 = arith.subf %2565, %2566 : vector<1x128xf32>
      %2568 = arith.mulf %2550, %2561 : vector<1x128xf32>
      %2569 = arith.mulf %2549, %2562 : vector<1x128xf32>
      %2570 = arith.addf %2568, %2569 : vector<1x128xf32>
      %2571 = vector.shape_cast %2570 : vector<1x128xf32> to vector<1x128xf32>
      %2572 = vector.broadcast %2571 : vector<1x128xf32> to vector<8x128xf32>
      %2573 = arith.select %2510, %2572, %2557 : vector<8x128xi1>, vector<8x128xf32>
      %2574 = vector.shape_cast %2567 : vector<1x128xf32> to vector<1x128xf32>
      %2575 = vector.broadcast %2574 : vector<1x128xf32> to vector<8x128xf32>
      %2576 = arith.select %2508, %2575, %2573 : vector<8x128xi1>, vector<8x128xf32>
      %2577 = arith.mulf %2549, %2563 : vector<1x128xf32>
      %2578 = arith.mulf %2550, %2564 : vector<1x128xf32>
      %2579 = arith.subf %2577, %2578 : vector<1x128xf32>
      %2580 = arith.mulf %2550, %2563 : vector<1x128xf32>
      %2581 = arith.mulf %2549, %2564 : vector<1x128xf32>
      %2582 = arith.addf %2580, %2581 : vector<1x128xf32>
      %2583 = vector.shape_cast %2582 : vector<1x128xf32> to vector<1x128xf32>
      %2584 = vector.broadcast %2583 : vector<1x128xf32> to vector<8x128xf32>
      %2585 = arith.select %2510, %2584, %2560 : vector<8x128xi1>, vector<8x128xf32>
      %2586 = vector.shape_cast %2579 : vector<1x128xf32> to vector<1x128xf32>
      %2587 = vector.broadcast %2586 : vector<1x128xf32> to vector<8x128xf32>
      %2588 = arith.select %2508, %2587, %2585 : vector<8x128xi1>, vector<8x128xf32>
      %2589 = vector.extract_strided_slice %2557 {offsets = [0, 0], sizes = [1, 128], strides = [1, 1]} : vector<8x128xf32> to vector<1x128xf32>
      %2590 = vector.extract_strided_slice %2560 {offsets = [0, 0], sizes = [1, 128], strides = [1, 1]} : vector<8x128xf32> to vector<1x128xf32>
      %2591 = vector.shape_cast %2590 : vector<1x128xf32> to vector<1x128xf32>
      %2592 = vector.broadcast %2591 : vector<1x128xf32> to vector<8x128xf32>
      %2593 = arith.select %2510, %2592, %2460 : vector<8x128xi1>, vector<8x128xf32>
      %2594 = vector.shape_cast %2589 : vector<1x128xf32> to vector<1x128xf32>
      %2595 = vector.broadcast %2594 : vector<1x128xf32> to vector<8x128xf32>
      %2596 = arith.select %2508, %2595, %2593 : vector<8x128xi1>, vector<8x128xf32>
      %2597 = vector.extract_strided_slice %2557 {offsets = [1, 0], sizes = [1, 128], strides = [1, 1]} : vector<8x128xf32> to vector<1x128xf32>
      %2598 = vector.extract_strided_slice %2560 {offsets = [1, 0], sizes = [1, 128], strides = [1, 1]} : vector<8x128xf32> to vector<1x128xf32>
      %2599 = vector.shape_cast %2598 : vector<1x128xf32> to vector<1x128xf32>
      %2600 = vector.broadcast %2599 : vector<1x128xf32> to vector<8x128xf32>
      %2601 = arith.select %2510, %2600, %2468 : vector<8x128xi1>, vector<8x128xf32>
      %2602 = vector.shape_cast %2597 : vector<1x128xf32> to vector<1x128xf32>
      %2603 = vector.broadcast %2602 : vector<1x128xf32> to vector<8x128xf32>
      %2604 = arith.select %2508, %2603, %2601 : vector<8x128xi1>, vector<8x128xf32>
      %2605 = vector.extract_strided_slice %2557 {offsets = [2, 0], sizes = [1, 128], strides = [1, 1]} : vector<8x128xf32> to vector<1x128xf32>
      %2606 = vector.extract_strided_slice %2560 {offsets = [2, 0], sizes = [1, 128], strides = [1, 1]} : vector<8x128xf32> to vector<1x128xf32>
      %2607 = vector.shape_cast %2606 : vector<1x128xf32> to vector<1x128xf32>
      %2608 = vector.broadcast %2607 : vector<1x128xf32> to vector<8x128xf32>
      %2609 = arith.select %2510, %2608, %2440 : vector<8x128xi1>, vector<8x128xf32>
      %2610 = vector.shape_cast %2605 : vector<1x128xf32> to vector<1x128xf32>
      %2611 = vector.broadcast %2610 : vector<1x128xf32> to vector<8x128xf32>
      %2612 = arith.select %2508, %2611, %2609 : vector<8x128xi1>, vector<8x128xf32>
      %2613 = vector.extract_strided_slice %2557 {offsets = [5, 0], sizes = [1, 128], strides = [1, 1]} : vector<8x128xf32> to vector<1x128xf32>
      %2614 = vector.extract_strided_slice %2560 {offsets = [5, 0], sizes = [1, 128], strides = [1, 1]} : vector<8x128xf32> to vector<1x128xf32>
      %2615 = vector.shape_cast %2614 : vector<1x128xf32> to vector<1x128xf32>
      %2616 = vector.broadcast %2615 : vector<1x128xf32> to vector<8x128xf32>
      %2617 = arith.select %2510, %2616, %2492 : vector<8x128xi1>, vector<8x128xf32>
      %2618 = vector.shape_cast %2613 : vector<1x128xf32> to vector<1x128xf32>
      %2619 = vector.broadcast %2618 : vector<1x128xf32> to vector<8x128xf32>
      %2620 = arith.select %2508, %2619, %2617 : vector<8x128xi1>, vector<8x128xf32>
      %2621 = vector.extract_strided_slice %2557 {offsets = [6, 0], sizes = [1, 128], strides = [1, 1]} : vector<8x128xf32> to vector<1x128xf32>
      %2622 = vector.extract_strided_slice %2560 {offsets = [6, 0], sizes = [1, 128], strides = [1, 1]} : vector<8x128xf32> to vector<1x128xf32>
      %2623 = vector.shape_cast %2622 : vector<1x128xf32> to vector<1x128xf32>
      %2624 = vector.broadcast %2623 : vector<1x128xf32> to vector<8x128xf32>
      %2625 = arith.select %2510, %2624, %2500 : vector<8x128xi1>, vector<8x128xf32>
      %2626 = vector.shape_cast %2621 : vector<1x128xf32> to vector<1x128xf32>
      %2627 = vector.broadcast %2626 : vector<1x128xf32> to vector<8x128xf32>
      %2628 = arith.select %2508, %2627, %2625 : vector<8x128xi1>, vector<8x128xf32>
      %2629 = vector.extract_strided_slice %2557 {offsets = [7, 0], sizes = [1, 128], strides = [1, 1]} : vector<8x128xf32> to vector<1x128xf32>
      %2630 = vector.extract_strided_slice %2560 {offsets = [7, 0], sizes = [1, 128], strides = [1, 1]} : vector<8x128xf32> to vector<1x128xf32>
      %2631 = vector.shape_cast %2630 : vector<1x128xf32> to vector<1x128xf32>
      %2632 = vector.broadcast %2631 : vector<1x128xf32> to vector<8x128xf32>
      %2633 = arith.select %2510, %2632, %2452 : vector<8x128xi1>, vector<8x128xf32>
      %2634 = vector.shape_cast %2629 : vector<1x128xf32> to vector<1x128xf32>
      %2635 = vector.broadcast %2634 : vector<1x128xf32> to vector<8x128xf32>
      %2636 = arith.select %2508, %2635, %2633 : vector<8x128xi1>, vector<8x128xf32>
      %2637 = arith.mulf %2552, %1970 : vector<8x128xf32>
      %2638 = arith.mulf %2554, %2104 : vector<8x128xf32>
      %2639 = arith.subf %2637, %2638 : vector<8x128xf32>
      %2640 = arith.mulf %2554, %1970 : vector<8x128xf32>
      %2641 = arith.mulf %2552, %2104 : vector<8x128xf32>
      %2642 = arith.addf %2640, %2641 : vector<8x128xf32>
      %c5_i32_246 = arith.constant 5 : i32
      %2643 = vector.broadcast %c5_i32_246 : i32 to vector<8x128xi32>
      %2644 = arith.cmpi eq, %0, %2643 : vector<8x128xi32>
      %2645 = vector.extract_strided_slice %2576 {offsets = [3, 0], sizes = [1, 128], strides = [1, 1]} : vector<8x128xf32> to vector<1x128xf32>
      %2646 = vector.extract_strided_slice %2620 {offsets = [5, 0], sizes = [1, 128], strides = [1, 1]} : vector<8x128xf32> to vector<1x128xf32>
      %2647 = vector.extract_strided_slice %2576 {offsets = [5, 0], sizes = [1, 128], strides = [1, 1]} : vector<8x128xf32> to vector<1x128xf32>
      %2648 = math.absf %2647 : vector<1x128xf32>
      %2649 = math.absf %2645 : vector<1x128xf32>
      %2650 = math.absf %2646 : vector<1x128xf32>
      %2651 = arith.addf %2649, %2650 : vector<1x128xf32>
      %cst_247 = arith.constant 9.99999996E-13 : f32
      %2652 = vector.broadcast %cst_247 : f32 to vector<1x128xf32>
      %2653 = arith.mulf %2652, %2651 : vector<1x128xf32>
      %cst_248 = arith.constant 1.000000e-30 : f32
      %2654 = vector.broadcast %cst_248 : f32 to vector<1x128xf32>
      %2655 = arith.addf %2653, %2654 : vector<1x128xf32>
      %2656 = arith.cmpf ogt, %2648, %2655 : vector<1x128xf32>
      %cst_249 = arith.constant 1.000000e+00 : f32
      %2657 = vector.broadcast %cst_249 : f32 to vector<1x128xf32>
      %2658 = arith.select %2656, %2647, %2657 : vector<1x128xi1>, vector<1x128xf32>
      %2659 = arith.subf %2646, %2645 : vector<1x128xf32>
      %2660 = tpu.reciprocal %2658 {approx = true} : vector<1x128xf32> -> vector<1x128xf32>
      %cst_250 = arith.constant 5.000000e-01 : f32
      %2661 = vector.broadcast %cst_250 : f32 to vector<1x128xf32>
      %2662 = arith.mulf %2661, %2660 : vector<1x128xf32>
      %2663 = arith.mulf %2659, %2662 : vector<1x128xf32>
      %2664 = arith.mulf %2663, %2663 : vector<1x128xf32>
      %cst_251 = arith.constant 1.000000e+00 : f32
      %2665 = vector.broadcast %cst_251 : f32 to vector<1x128xf32>
      %2666 = arith.addf %2664, %2665 : vector<1x128xf32>
      %2667 = math.rsqrt %2666 : vector<1x128xf32>
      %cst_252 = arith.constant 0.000000e+00 : f32
      %2668 = vector.broadcast %cst_252 : f32 to vector<1x128xf32>
      %2669 = arith.cmpf oge, %2663, %2668 : vector<1x128xf32>
      %cst_253 = arith.constant 1.000000e+00 : f32
      %cst_254 = arith.constant -1.000000e+00 : f32
      %2670 = vector.broadcast %cst_253 : f32 to vector<1x128xf32>
      %2671 = vector.broadcast %cst_254 : f32 to vector<1x128xf32>
      %2672 = arith.select %2669, %2670, %2671 : vector<1x128xi1>, vector<1x128xf32>
      %2673 = math.absf %2663 : vector<1x128xf32>
      %2674 = arith.mulf %2666, %2667 : vector<1x128xf32>
      %2675 = arith.addf %2673, %2674 : vector<1x128xf32>
      %2676 = tpu.reciprocal %2675 {approx = true} : vector<1x128xf32> -> vector<1x128xf32>
      %2677 = arith.mulf %2672, %2676 : vector<1x128xf32>
      %cst_255 = arith.constant 0.000000e+00 : f32
      %2678 = vector.broadcast %cst_255 : f32 to vector<1x128xf32>
      %2679 = arith.select %2656, %2677, %2678 : vector<1x128xi1>, vector<1x128xf32>
      %2680 = arith.mulf %2679, %2679 : vector<1x128xf32>
      %cst_256 = arith.constant 1.000000e+00 : f32
      %2681 = vector.broadcast %cst_256 : f32 to vector<1x128xf32>
      %2682 = arith.addf %2680, %2681 : vector<1x128xf32>
      %2683 = math.rsqrt %2682 : vector<1x128xf32>
      %2684 = arith.mulf %2679, %2683 : vector<1x128xf32>
      %2685 = vector.shape_cast %2683 : vector<1x128xf32> to vector<1x128xf32>
      %2686 = vector.broadcast %2685 : vector<1x128xf32> to vector<8x128xf32>
      %2687 = vector.shape_cast %2684 : vector<1x128xf32> to vector<1x128xf32>
      %2688 = vector.broadcast %2687 : vector<1x128xf32> to vector<8x128xf32>
      %2689 = arith.mulf %2686, %2576 : vector<8x128xf32>
      %2690 = arith.mulf %2688, %2620 : vector<8x128xf32>
      %2691 = arith.subf %2689, %2690 : vector<8x128xf32>
      %2692 = arith.mulf %2688, %2576 : vector<8x128xf32>
      %2693 = arith.mulf %2686, %2620 : vector<8x128xf32>
      %2694 = arith.addf %2692, %2693 : vector<8x128xf32>
      %2695 = vector.extract_strided_slice %2691 {offsets = [3, 0], sizes = [1, 128], strides = [1, 1]} : vector<8x128xf32> to vector<1x128xf32>
      %2696 = vector.extract_strided_slice %2691 {offsets = [5, 0], sizes = [1, 128], strides = [1, 1]} : vector<8x128xf32> to vector<1x128xf32>
      %2697 = vector.extract_strided_slice %2694 {offsets = [3, 0], sizes = [1, 128], strides = [1, 1]} : vector<8x128xf32> to vector<1x128xf32>
      %2698 = vector.extract_strided_slice %2694 {offsets = [5, 0], sizes = [1, 128], strides = [1, 1]} : vector<8x128xf32> to vector<1x128xf32>
      %2699 = arith.mulf %2683, %2695 : vector<1x128xf32>
      %2700 = arith.mulf %2684, %2696 : vector<1x128xf32>
      %2701 = arith.subf %2699, %2700 : vector<1x128xf32>
      %2702 = arith.mulf %2684, %2695 : vector<1x128xf32>
      %2703 = arith.mulf %2683, %2696 : vector<1x128xf32>
      %2704 = arith.addf %2702, %2703 : vector<1x128xf32>
      %2705 = vector.shape_cast %2704 : vector<1x128xf32> to vector<1x128xf32>
      %2706 = vector.broadcast %2705 : vector<1x128xf32> to vector<8x128xf32>
      %2707 = arith.select %2644, %2706, %2691 : vector<8x128xi1>, vector<8x128xf32>
      %2708 = vector.shape_cast %2701 : vector<1x128xf32> to vector<1x128xf32>
      %2709 = vector.broadcast %2708 : vector<1x128xf32> to vector<8x128xf32>
      %2710 = arith.select %2508, %2709, %2707 : vector<8x128xi1>, vector<8x128xf32>
      %2711 = arith.mulf %2683, %2697 : vector<1x128xf32>
      %2712 = arith.mulf %2684, %2698 : vector<1x128xf32>
      %2713 = arith.subf %2711, %2712 : vector<1x128xf32>
      %2714 = arith.mulf %2684, %2697 : vector<1x128xf32>
      %2715 = arith.mulf %2683, %2698 : vector<1x128xf32>
      %2716 = arith.addf %2714, %2715 : vector<1x128xf32>
      %2717 = vector.shape_cast %2716 : vector<1x128xf32> to vector<1x128xf32>
      %2718 = vector.broadcast %2717 : vector<1x128xf32> to vector<8x128xf32>
      %2719 = arith.select %2644, %2718, %2694 : vector<8x128xi1>, vector<8x128xf32>
      %2720 = vector.shape_cast %2713 : vector<1x128xf32> to vector<1x128xf32>
      %2721 = vector.broadcast %2720 : vector<1x128xf32> to vector<8x128xf32>
      %2722 = arith.select %2508, %2721, %2719 : vector<8x128xi1>, vector<8x128xf32>
      %2723 = vector.extract_strided_slice %2691 {offsets = [0, 0], sizes = [1, 128], strides = [1, 1]} : vector<8x128xf32> to vector<1x128xf32>
      %2724 = vector.extract_strided_slice %2694 {offsets = [0, 0], sizes = [1, 128], strides = [1, 1]} : vector<8x128xf32> to vector<1x128xf32>
      %2725 = vector.shape_cast %2724 : vector<1x128xf32> to vector<1x128xf32>
      %2726 = vector.broadcast %2725 : vector<1x128xf32> to vector<8x128xf32>
      %2727 = arith.select %2644, %2726, %2596 : vector<8x128xi1>, vector<8x128xf32>
      %2728 = vector.shape_cast %2723 : vector<1x128xf32> to vector<1x128xf32>
      %2729 = vector.broadcast %2728 : vector<1x128xf32> to vector<8x128xf32>
      %2730 = arith.select %2508, %2729, %2727 : vector<8x128xi1>, vector<8x128xf32>
      %2731 = vector.extract_strided_slice %2691 {offsets = [1, 0], sizes = [1, 128], strides = [1, 1]} : vector<8x128xf32> to vector<1x128xf32>
      %2732 = vector.extract_strided_slice %2694 {offsets = [1, 0], sizes = [1, 128], strides = [1, 1]} : vector<8x128xf32> to vector<1x128xf32>
      %2733 = vector.shape_cast %2732 : vector<1x128xf32> to vector<1x128xf32>
      %2734 = vector.broadcast %2733 : vector<1x128xf32> to vector<8x128xf32>
      %2735 = arith.select %2644, %2734, %2604 : vector<8x128xi1>, vector<8x128xf32>
      %2736 = vector.shape_cast %2731 : vector<1x128xf32> to vector<1x128xf32>
      %2737 = vector.broadcast %2736 : vector<1x128xf32> to vector<8x128xf32>
      %2738 = arith.select %2508, %2737, %2735 : vector<8x128xi1>, vector<8x128xf32>
      %2739 = vector.extract_strided_slice %2691 {offsets = [2, 0], sizes = [1, 128], strides = [1, 1]} : vector<8x128xf32> to vector<1x128xf32>
      %2740 = vector.extract_strided_slice %2694 {offsets = [2, 0], sizes = [1, 128], strides = [1, 1]} : vector<8x128xf32> to vector<1x128xf32>
      %2741 = vector.shape_cast %2740 : vector<1x128xf32> to vector<1x128xf32>
      %2742 = vector.broadcast %2741 : vector<1x128xf32> to vector<8x128xf32>
      %2743 = arith.select %2644, %2742, %2612 : vector<8x128xi1>, vector<8x128xf32>
      %2744 = vector.shape_cast %2739 : vector<1x128xf32> to vector<1x128xf32>
      %2745 = vector.broadcast %2744 : vector<1x128xf32> to vector<8x128xf32>
      %2746 = arith.select %2508, %2745, %2743 : vector<8x128xi1>, vector<8x128xf32>
      %2747 = vector.extract_strided_slice %2691 {offsets = [4, 0], sizes = [1, 128], strides = [1, 1]} : vector<8x128xf32> to vector<1x128xf32>
      %2748 = vector.extract_strided_slice %2694 {offsets = [4, 0], sizes = [1, 128], strides = [1, 1]} : vector<8x128xf32> to vector<1x128xf32>
      %2749 = vector.shape_cast %2748 : vector<1x128xf32> to vector<1x128xf32>
      %2750 = vector.broadcast %2749 : vector<1x128xf32> to vector<8x128xf32>
      %2751 = arith.select %2644, %2750, %2588 : vector<8x128xi1>, vector<8x128xf32>
      %2752 = vector.shape_cast %2747 : vector<1x128xf32> to vector<1x128xf32>
      %2753 = vector.broadcast %2752 : vector<1x128xf32> to vector<8x128xf32>
      %2754 = arith.select %2508, %2753, %2751 : vector<8x128xi1>, vector<8x128xf32>
      %2755 = vector.extract_strided_slice %2691 {offsets = [6, 0], sizes = [1, 128], strides = [1, 1]} : vector<8x128xf32> to vector<1x128xf32>
      %2756 = vector.extract_strided_slice %2694 {offsets = [6, 0], sizes = [1, 128], strides = [1, 1]} : vector<8x128xf32> to vector<1x128xf32>
      %2757 = vector.shape_cast %2756 : vector<1x128xf32> to vector<1x128xf32>
      %2758 = vector.broadcast %2757 : vector<1x128xf32> to vector<8x128xf32>
      %2759 = arith.select %2644, %2758, %2628 : vector<8x128xi1>, vector<8x128xf32>
      %2760 = vector.shape_cast %2755 : vector<1x128xf32> to vector<1x128xf32>
      %2761 = vector.broadcast %2760 : vector<1x128xf32> to vector<8x128xf32>
      %2762 = arith.select %2508, %2761, %2759 : vector<8x128xi1>, vector<8x128xf32>
      %2763 = vector.extract_strided_slice %2691 {offsets = [7, 0], sizes = [1, 128], strides = [1, 1]} : vector<8x128xf32> to vector<1x128xf32>
      %2764 = vector.extract_strided_slice %2694 {offsets = [7, 0], sizes = [1, 128], strides = [1, 1]} : vector<8x128xf32> to vector<1x128xf32>
      %2765 = vector.shape_cast %2764 : vector<1x128xf32> to vector<1x128xf32>
      %2766 = vector.broadcast %2765 : vector<1x128xf32> to vector<8x128xf32>
      %2767 = arith.select %2644, %2766, %2636 : vector<8x128xi1>, vector<8x128xf32>
      %2768 = vector.shape_cast %2763 : vector<1x128xf32> to vector<1x128xf32>
      %2769 = vector.broadcast %2768 : vector<1x128xf32> to vector<8x128xf32>
      %2770 = arith.select %2508, %2769, %2767 : vector<8x128xi1>, vector<8x128xf32>
      %2771 = arith.mulf %2686, %2639 : vector<8x128xf32>
      %2772 = arith.mulf %2688, %2238 : vector<8x128xf32>
      %2773 = arith.subf %2771, %2772 : vector<8x128xf32>
      %2774 = arith.mulf %2688, %2639 : vector<8x128xf32>
      %2775 = arith.mulf %2686, %2238 : vector<8x128xf32>
      %2776 = arith.addf %2774, %2775 : vector<8x128xf32>
      %c6_i32_257 = arith.constant 6 : i32
      %2777 = vector.broadcast %c6_i32_257 : i32 to vector<8x128xi32>
      %2778 = arith.cmpi eq, %0, %2777 : vector<8x128xi32>
      %2779 = vector.extract_strided_slice %2710 {offsets = [3, 0], sizes = [1, 128], strides = [1, 1]} : vector<8x128xf32> to vector<1x128xf32>
      %2780 = vector.extract_strided_slice %2762 {offsets = [6, 0], sizes = [1, 128], strides = [1, 1]} : vector<8x128xf32> to vector<1x128xf32>
      %2781 = vector.extract_strided_slice %2710 {offsets = [6, 0], sizes = [1, 128], strides = [1, 1]} : vector<8x128xf32> to vector<1x128xf32>
      %2782 = math.absf %2781 : vector<1x128xf32>
      %2783 = math.absf %2779 : vector<1x128xf32>
      %2784 = math.absf %2780 : vector<1x128xf32>
      %2785 = arith.addf %2783, %2784 : vector<1x128xf32>
      %cst_258 = arith.constant 9.99999996E-13 : f32
      %2786 = vector.broadcast %cst_258 : f32 to vector<1x128xf32>
      %2787 = arith.mulf %2786, %2785 : vector<1x128xf32>
      %cst_259 = arith.constant 1.000000e-30 : f32
      %2788 = vector.broadcast %cst_259 : f32 to vector<1x128xf32>
      %2789 = arith.addf %2787, %2788 : vector<1x128xf32>
      %2790 = arith.cmpf ogt, %2782, %2789 : vector<1x128xf32>
      %cst_260 = arith.constant 1.000000e+00 : f32
      %2791 = vector.broadcast %cst_260 : f32 to vector<1x128xf32>
      %2792 = arith.select %2790, %2781, %2791 : vector<1x128xi1>, vector<1x128xf32>
      %2793 = arith.subf %2780, %2779 : vector<1x128xf32>
      %2794 = tpu.reciprocal %2792 {approx = true} : vector<1x128xf32> -> vector<1x128xf32>
      %cst_261 = arith.constant 5.000000e-01 : f32
      %2795 = vector.broadcast %cst_261 : f32 to vector<1x128xf32>
      %2796 = arith.mulf %2795, %2794 : vector<1x128xf32>
      %2797 = arith.mulf %2793, %2796 : vector<1x128xf32>
      %2798 = arith.mulf %2797, %2797 : vector<1x128xf32>
      %cst_262 = arith.constant 1.000000e+00 : f32
      %2799 = vector.broadcast %cst_262 : f32 to vector<1x128xf32>
      %2800 = arith.addf %2798, %2799 : vector<1x128xf32>
      %2801 = math.rsqrt %2800 : vector<1x128xf32>
      %cst_263 = arith.constant 0.000000e+00 : f32
      %2802 = vector.broadcast %cst_263 : f32 to vector<1x128xf32>
      %2803 = arith.cmpf oge, %2797, %2802 : vector<1x128xf32>
      %cst_264 = arith.constant 1.000000e+00 : f32
      %cst_265 = arith.constant -1.000000e+00 : f32
      %2804 = vector.broadcast %cst_264 : f32 to vector<1x128xf32>
      %2805 = vector.broadcast %cst_265 : f32 to vector<1x128xf32>
      %2806 = arith.select %2803, %2804, %2805 : vector<1x128xi1>, vector<1x128xf32>
      %2807 = math.absf %2797 : vector<1x128xf32>
      %2808 = arith.mulf %2800, %2801 : vector<1x128xf32>
      %2809 = arith.addf %2807, %2808 : vector<1x128xf32>
      %2810 = tpu.reciprocal %2809 {approx = true} : vector<1x128xf32> -> vector<1x128xf32>
      %2811 = arith.mulf %2806, %2810 : vector<1x128xf32>
      %cst_266 = arith.constant 0.000000e+00 : f32
      %2812 = vector.broadcast %cst_266 : f32 to vector<1x128xf32>
      %2813 = arith.select %2790, %2811, %2812 : vector<1x128xi1>, vector<1x128xf32>
      %2814 = arith.mulf %2813, %2813 : vector<1x128xf32>
      %cst_267 = arith.constant 1.000000e+00 : f32
      %2815 = vector.broadcast %cst_267 : f32 to vector<1x128xf32>
      %2816 = arith.addf %2814, %2815 : vector<1x128xf32>
      %2817 = math.rsqrt %2816 : vector<1x128xf32>
      %2818 = arith.mulf %2813, %2817 : vector<1x128xf32>
      %2819 = vector.shape_cast %2817 : vector<1x128xf32> to vector<1x128xf32>
      %2820 = vector.broadcast %2819 : vector<1x128xf32> to vector<8x128xf32>
      %2821 = vector.shape_cast %2818 : vector<1x128xf32> to vector<1x128xf32>
      %2822 = vector.broadcast %2821 : vector<1x128xf32> to vector<8x128xf32>
      %2823 = arith.mulf %2820, %2710 : vector<8x128xf32>
      %2824 = arith.mulf %2822, %2762 : vector<8x128xf32>
      %2825 = arith.subf %2823, %2824 : vector<8x128xf32>
      %2826 = arith.mulf %2822, %2710 : vector<8x128xf32>
      %2827 = arith.mulf %2820, %2762 : vector<8x128xf32>
      %2828 = arith.addf %2826, %2827 : vector<8x128xf32>
      %2829 = vector.extract_strided_slice %2825 {offsets = [3, 0], sizes = [1, 128], strides = [1, 1]} : vector<8x128xf32> to vector<1x128xf32>
      %2830 = vector.extract_strided_slice %2825 {offsets = [6, 0], sizes = [1, 128], strides = [1, 1]} : vector<8x128xf32> to vector<1x128xf32>
      %2831 = vector.extract_strided_slice %2828 {offsets = [3, 0], sizes = [1, 128], strides = [1, 1]} : vector<8x128xf32> to vector<1x128xf32>
      %2832 = vector.extract_strided_slice %2828 {offsets = [6, 0], sizes = [1, 128], strides = [1, 1]} : vector<8x128xf32> to vector<1x128xf32>
      %2833 = arith.mulf %2817, %2829 : vector<1x128xf32>
      %2834 = arith.mulf %2818, %2830 : vector<1x128xf32>
      %2835 = arith.subf %2833, %2834 : vector<1x128xf32>
      %2836 = arith.mulf %2818, %2829 : vector<1x128xf32>
      %2837 = arith.mulf %2817, %2830 : vector<1x128xf32>
      %2838 = arith.addf %2836, %2837 : vector<1x128xf32>
      %2839 = vector.shape_cast %2838 : vector<1x128xf32> to vector<1x128xf32>
      %2840 = vector.broadcast %2839 : vector<1x128xf32> to vector<8x128xf32>
      %2841 = arith.select %2778, %2840, %2825 : vector<8x128xi1>, vector<8x128xf32>
      %2842 = vector.shape_cast %2835 : vector<1x128xf32> to vector<1x128xf32>
      %2843 = vector.broadcast %2842 : vector<1x128xf32> to vector<8x128xf32>
      %2844 = arith.select %2508, %2843, %2841 : vector<8x128xi1>, vector<8x128xf32>
      %2845 = arith.mulf %2817, %2831 : vector<1x128xf32>
      %2846 = arith.mulf %2818, %2832 : vector<1x128xf32>
      %2847 = arith.subf %2845, %2846 : vector<1x128xf32>
      %2848 = arith.mulf %2818, %2831 : vector<1x128xf32>
      %2849 = arith.mulf %2817, %2832 : vector<1x128xf32>
      %2850 = arith.addf %2848, %2849 : vector<1x128xf32>
      %2851 = vector.shape_cast %2850 : vector<1x128xf32> to vector<1x128xf32>
      %2852 = vector.broadcast %2851 : vector<1x128xf32> to vector<8x128xf32>
      %2853 = arith.select %2778, %2852, %2828 : vector<8x128xi1>, vector<8x128xf32>
      %2854 = vector.shape_cast %2847 : vector<1x128xf32> to vector<1x128xf32>
      %2855 = vector.broadcast %2854 : vector<1x128xf32> to vector<8x128xf32>
      %2856 = arith.select %2508, %2855, %2853 : vector<8x128xi1>, vector<8x128xf32>
      %2857 = vector.extract_strided_slice %2825 {offsets = [0, 0], sizes = [1, 128], strides = [1, 1]} : vector<8x128xf32> to vector<1x128xf32>
      %2858 = vector.extract_strided_slice %2828 {offsets = [0, 0], sizes = [1, 128], strides = [1, 1]} : vector<8x128xf32> to vector<1x128xf32>
      %2859 = vector.shape_cast %2858 : vector<1x128xf32> to vector<1x128xf32>
      %2860 = vector.broadcast %2859 : vector<1x128xf32> to vector<8x128xf32>
      %2861 = arith.select %2778, %2860, %2730 : vector<8x128xi1>, vector<8x128xf32>
      %2862 = vector.shape_cast %2857 : vector<1x128xf32> to vector<1x128xf32>
      %2863 = vector.broadcast %2862 : vector<1x128xf32> to vector<8x128xf32>
      %2864 = arith.select %2508, %2863, %2861 : vector<8x128xi1>, vector<8x128xf32>
      %2865 = vector.extract_strided_slice %2825 {offsets = [1, 0], sizes = [1, 128], strides = [1, 1]} : vector<8x128xf32> to vector<1x128xf32>
      %2866 = vector.extract_strided_slice %2828 {offsets = [1, 0], sizes = [1, 128], strides = [1, 1]} : vector<8x128xf32> to vector<1x128xf32>
      %2867 = vector.shape_cast %2866 : vector<1x128xf32> to vector<1x128xf32>
      %2868 = vector.broadcast %2867 : vector<1x128xf32> to vector<8x128xf32>
      %2869 = arith.select %2778, %2868, %2738 : vector<8x128xi1>, vector<8x128xf32>
      %2870 = vector.shape_cast %2865 : vector<1x128xf32> to vector<1x128xf32>
      %2871 = vector.broadcast %2870 : vector<1x128xf32> to vector<8x128xf32>
      %2872 = arith.select %2508, %2871, %2869 : vector<8x128xi1>, vector<8x128xf32>
      %2873 = vector.extract_strided_slice %2825 {offsets = [2, 0], sizes = [1, 128], strides = [1, 1]} : vector<8x128xf32> to vector<1x128xf32>
      %2874 = vector.extract_strided_slice %2828 {offsets = [2, 0], sizes = [1, 128], strides = [1, 1]} : vector<8x128xf32> to vector<1x128xf32>
      %2875 = vector.shape_cast %2874 : vector<1x128xf32> to vector<1x128xf32>
      %2876 = vector.broadcast %2875 : vector<1x128xf32> to vector<8x128xf32>
      %2877 = arith.select %2778, %2876, %2746 : vector<8x128xi1>, vector<8x128xf32>
      %2878 = vector.shape_cast %2873 : vector<1x128xf32> to vector<1x128xf32>
      %2879 = vector.broadcast %2878 : vector<1x128xf32> to vector<8x128xf32>
      %2880 = arith.select %2508, %2879, %2877 : vector<8x128xi1>, vector<8x128xf32>
      %2881 = vector.extract_strided_slice %2825 {offsets = [4, 0], sizes = [1, 128], strides = [1, 1]} : vector<8x128xf32> to vector<1x128xf32>
      %2882 = vector.extract_strided_slice %2828 {offsets = [4, 0], sizes = [1, 128], strides = [1, 1]} : vector<8x128xf32> to vector<1x128xf32>
      %2883 = vector.shape_cast %2882 : vector<1x128xf32> to vector<1x128xf32>
      %2884 = vector.broadcast %2883 : vector<1x128xf32> to vector<8x128xf32>
      %2885 = arith.select %2778, %2884, %2754 : vector<8x128xi1>, vector<8x128xf32>
      %2886 = vector.shape_cast %2881 : vector<1x128xf32> to vector<1x128xf32>
      %2887 = vector.broadcast %2886 : vector<1x128xf32> to vector<8x128xf32>
      %2888 = arith.select %2508, %2887, %2885 : vector<8x128xi1>, vector<8x128xf32>
      %2889 = vector.extract_strided_slice %2825 {offsets = [5, 0], sizes = [1, 128], strides = [1, 1]} : vector<8x128xf32> to vector<1x128xf32>
      %2890 = vector.extract_strided_slice %2828 {offsets = [5, 0], sizes = [1, 128], strides = [1, 1]} : vector<8x128xf32> to vector<1x128xf32>
      %2891 = vector.shape_cast %2890 : vector<1x128xf32> to vector<1x128xf32>
      %2892 = vector.broadcast %2891 : vector<1x128xf32> to vector<8x128xf32>
      %2893 = arith.select %2778, %2892, %2722 : vector<8x128xi1>, vector<8x128xf32>
      %2894 = vector.shape_cast %2889 : vector<1x128xf32> to vector<1x128xf32>
      %2895 = vector.broadcast %2894 : vector<1x128xf32> to vector<8x128xf32>
      %2896 = arith.select %2508, %2895, %2893 : vector<8x128xi1>, vector<8x128xf32>
      %2897 = vector.extract_strided_slice %2825 {offsets = [7, 0], sizes = [1, 128], strides = [1, 1]} : vector<8x128xf32> to vector<1x128xf32>
      %2898 = vector.extract_strided_slice %2828 {offsets = [7, 0], sizes = [1, 128], strides = [1, 1]} : vector<8x128xf32> to vector<1x128xf32>
      %2899 = vector.shape_cast %2898 : vector<1x128xf32> to vector<1x128xf32>
      %2900 = vector.broadcast %2899 : vector<1x128xf32> to vector<8x128xf32>
      %2901 = arith.select %2778, %2900, %2770 : vector<8x128xi1>, vector<8x128xf32>
      %2902 = vector.shape_cast %2897 : vector<1x128xf32> to vector<1x128xf32>
      %2903 = vector.broadcast %2902 : vector<1x128xf32> to vector<8x128xf32>
      %2904 = arith.select %2508, %2903, %2901 : vector<8x128xi1>, vector<8x128xf32>
      %2905 = arith.mulf %2820, %2773 : vector<8x128xf32>
      %2906 = arith.mulf %2822, %2372 : vector<8x128xf32>
      %2907 = arith.subf %2905, %2906 : vector<8x128xf32>
      %2908 = arith.mulf %2822, %2773 : vector<8x128xf32>
      %2909 = arith.mulf %2820, %2372 : vector<8x128xf32>
      %2910 = arith.addf %2908, %2909 : vector<8x128xf32>
      %c7_i32_268 = arith.constant 7 : i32
      %2911 = vector.broadcast %c7_i32_268 : i32 to vector<8x128xi32>
      %2912 = arith.cmpi eq, %0, %2911 : vector<8x128xi32>
      %2913 = vector.extract_strided_slice %2844 {offsets = [3, 0], sizes = [1, 128], strides = [1, 1]} : vector<8x128xf32> to vector<1x128xf32>
      %2914 = vector.extract_strided_slice %2904 {offsets = [7, 0], sizes = [1, 128], strides = [1, 1]} : vector<8x128xf32> to vector<1x128xf32>
      %2915 = vector.extract_strided_slice %2844 {offsets = [7, 0], sizes = [1, 128], strides = [1, 1]} : vector<8x128xf32> to vector<1x128xf32>
      %2916 = math.absf %2915 : vector<1x128xf32>
      %2917 = math.absf %2913 : vector<1x128xf32>
      %2918 = math.absf %2914 : vector<1x128xf32>
      %2919 = arith.addf %2917, %2918 : vector<1x128xf32>
      %cst_269 = arith.constant 9.99999996E-13 : f32
      %2920 = vector.broadcast %cst_269 : f32 to vector<1x128xf32>
      %2921 = arith.mulf %2920, %2919 : vector<1x128xf32>
      %cst_270 = arith.constant 1.000000e-30 : f32
      %2922 = vector.broadcast %cst_270 : f32 to vector<1x128xf32>
      %2923 = arith.addf %2921, %2922 : vector<1x128xf32>
      %2924 = arith.cmpf ogt, %2916, %2923 : vector<1x128xf32>
      %cst_271 = arith.constant 1.000000e+00 : f32
      %2925 = vector.broadcast %cst_271 : f32 to vector<1x128xf32>
      %2926 = arith.select %2924, %2915, %2925 : vector<1x128xi1>, vector<1x128xf32>
      %2927 = arith.subf %2914, %2913 : vector<1x128xf32>
      %2928 = tpu.reciprocal %2926 {approx = true} : vector<1x128xf32> -> vector<1x128xf32>
      %cst_272 = arith.constant 5.000000e-01 : f32
      %2929 = vector.broadcast %cst_272 : f32 to vector<1x128xf32>
      %2930 = arith.mulf %2929, %2928 : vector<1x128xf32>
      %2931 = arith.mulf %2927, %2930 : vector<1x128xf32>
      %2932 = arith.mulf %2931, %2931 : vector<1x128xf32>
      %cst_273 = arith.constant 1.000000e+00 : f32
      %2933 = vector.broadcast %cst_273 : f32 to vector<1x128xf32>
      %2934 = arith.addf %2932, %2933 : vector<1x128xf32>
      %2935 = math.rsqrt %2934 : vector<1x128xf32>
      %cst_274 = arith.constant 0.000000e+00 : f32
      %2936 = vector.broadcast %cst_274 : f32 to vector<1x128xf32>
      %2937 = arith.cmpf oge, %2931, %2936 : vector<1x128xf32>
      %cst_275 = arith.constant 1.000000e+00 : f32
      %cst_276 = arith.constant -1.000000e+00 : f32
      %2938 = vector.broadcast %cst_275 : f32 to vector<1x128xf32>
      %2939 = vector.broadcast %cst_276 : f32 to vector<1x128xf32>
      %2940 = arith.select %2937, %2938, %2939 : vector<1x128xi1>, vector<1x128xf32>
      %2941 = math.absf %2931 : vector<1x128xf32>
      %2942 = arith.mulf %2934, %2935 : vector<1x128xf32>
      %2943 = arith.addf %2941, %2942 : vector<1x128xf32>
      %2944 = tpu.reciprocal %2943 {approx = true} : vector<1x128xf32> -> vector<1x128xf32>
      %2945 = arith.mulf %2940, %2944 : vector<1x128xf32>
      %cst_277 = arith.constant 0.000000e+00 : f32
      %2946 = vector.broadcast %cst_277 : f32 to vector<1x128xf32>
      %2947 = arith.select %2924, %2945, %2946 : vector<1x128xi1>, vector<1x128xf32>
      %2948 = arith.mulf %2947, %2947 : vector<1x128xf32>
      %cst_278 = arith.constant 1.000000e+00 : f32
      %2949 = vector.broadcast %cst_278 : f32 to vector<1x128xf32>
      %2950 = arith.addf %2948, %2949 : vector<1x128xf32>
      %2951 = math.rsqrt %2950 : vector<1x128xf32>
      %2952 = arith.mulf %2947, %2951 : vector<1x128xf32>
      %2953 = vector.shape_cast %2951 : vector<1x128xf32> to vector<1x128xf32>
      %2954 = vector.broadcast %2953 : vector<1x128xf32> to vector<8x128xf32>
      %2955 = vector.shape_cast %2952 : vector<1x128xf32> to vector<1x128xf32>
      %2956 = vector.broadcast %2955 : vector<1x128xf32> to vector<8x128xf32>
      %2957 = arith.mulf %2954, %2844 : vector<8x128xf32>
      %2958 = arith.mulf %2956, %2904 : vector<8x128xf32>
      %2959 = arith.subf %2957, %2958 : vector<8x128xf32>
      %2960 = arith.mulf %2956, %2844 : vector<8x128xf32>
      %2961 = arith.mulf %2954, %2904 : vector<8x128xf32>
      %2962 = arith.addf %2960, %2961 : vector<8x128xf32>
      %2963 = vector.extract_strided_slice %2959 {offsets = [3, 0], sizes = [1, 128], strides = [1, 1]} : vector<8x128xf32> to vector<1x128xf32>
      %2964 = vector.extract_strided_slice %2959 {offsets = [7, 0], sizes = [1, 128], strides = [1, 1]} : vector<8x128xf32> to vector<1x128xf32>
      %2965 = vector.extract_strided_slice %2962 {offsets = [3, 0], sizes = [1, 128], strides = [1, 1]} : vector<8x128xf32> to vector<1x128xf32>
      %2966 = vector.extract_strided_slice %2962 {offsets = [7, 0], sizes = [1, 128], strides = [1, 1]} : vector<8x128xf32> to vector<1x128xf32>
      %2967 = arith.mulf %2951, %2963 : vector<1x128xf32>
      %2968 = arith.mulf %2952, %2964 : vector<1x128xf32>
      %2969 = arith.subf %2967, %2968 : vector<1x128xf32>
      %2970 = arith.mulf %2952, %2963 : vector<1x128xf32>
      %2971 = arith.mulf %2951, %2964 : vector<1x128xf32>
      %2972 = arith.addf %2970, %2971 : vector<1x128xf32>
      %2973 = vector.shape_cast %2972 : vector<1x128xf32> to vector<1x128xf32>
      %2974 = vector.broadcast %2973 : vector<1x128xf32> to vector<8x128xf32>
      %2975 = arith.select %2912, %2974, %2959 : vector<8x128xi1>, vector<8x128xf32>
      %2976 = vector.shape_cast %2969 : vector<1x128xf32> to vector<1x128xf32>
      %2977 = vector.broadcast %2976 : vector<1x128xf32> to vector<8x128xf32>
      %2978 = arith.select %2508, %2977, %2975 : vector<8x128xi1>, vector<8x128xf32>
      %2979 = arith.mulf %2951, %2965 : vector<1x128xf32>
      %2980 = arith.mulf %2952, %2966 : vector<1x128xf32>
      %2981 = arith.subf %2979, %2980 : vector<1x128xf32>
      %2982 = arith.mulf %2952, %2965 : vector<1x128xf32>
      %2983 = arith.mulf %2951, %2966 : vector<1x128xf32>
      %2984 = arith.addf %2982, %2983 : vector<1x128xf32>
      %2985 = vector.shape_cast %2984 : vector<1x128xf32> to vector<1x128xf32>
      %2986 = vector.broadcast %2985 : vector<1x128xf32> to vector<8x128xf32>
      %2987 = arith.select %2912, %2986, %2962 : vector<8x128xi1>, vector<8x128xf32>
      %2988 = vector.shape_cast %2981 : vector<1x128xf32> to vector<1x128xf32>
      %2989 = vector.broadcast %2988 : vector<1x128xf32> to vector<8x128xf32>
      %2990 = arith.select %2508, %2989, %2987 : vector<8x128xi1>, vector<8x128xf32>
      %2991 = vector.extract_strided_slice %2959 {offsets = [0, 0], sizes = [1, 128], strides = [1, 1]} : vector<8x128xf32> to vector<1x128xf32>
      %2992 = vector.extract_strided_slice %2962 {offsets = [0, 0], sizes = [1, 128], strides = [1, 1]} : vector<8x128xf32> to vector<1x128xf32>
      %2993 = vector.shape_cast %2992 : vector<1x128xf32> to vector<1x128xf32>
      %2994 = vector.broadcast %2993 : vector<1x128xf32> to vector<8x128xf32>
      %2995 = arith.select %2912, %2994, %2864 : vector<8x128xi1>, vector<8x128xf32>
      %2996 = vector.shape_cast %2991 : vector<1x128xf32> to vector<1x128xf32>
      %2997 = vector.broadcast %2996 : vector<1x128xf32> to vector<8x128xf32>
      %2998 = arith.select %2508, %2997, %2995 : vector<8x128xi1>, vector<8x128xf32>
      %2999 = vector.extract_strided_slice %2959 {offsets = [1, 0], sizes = [1, 128], strides = [1, 1]} : vector<8x128xf32> to vector<1x128xf32>
      %3000 = vector.extract_strided_slice %2962 {offsets = [1, 0], sizes = [1, 128], strides = [1, 1]} : vector<8x128xf32> to vector<1x128xf32>
      %3001 = vector.shape_cast %3000 : vector<1x128xf32> to vector<1x128xf32>
      %3002 = vector.broadcast %3001 : vector<1x128xf32> to vector<8x128xf32>
      %3003 = arith.select %2912, %3002, %2872 : vector<8x128xi1>, vector<8x128xf32>
      %3004 = vector.shape_cast %2999 : vector<1x128xf32> to vector<1x128xf32>
      %3005 = vector.broadcast %3004 : vector<1x128xf32> to vector<8x128xf32>
      %3006 = arith.select %2508, %3005, %3003 : vector<8x128xi1>, vector<8x128xf32>
      %3007 = vector.extract_strided_slice %2959 {offsets = [2, 0], sizes = [1, 128], strides = [1, 1]} : vector<8x128xf32> to vector<1x128xf32>
      %3008 = vector.extract_strided_slice %2962 {offsets = [2, 0], sizes = [1, 128], strides = [1, 1]} : vector<8x128xf32> to vector<1x128xf32>
      %3009 = vector.shape_cast %3008 : vector<1x128xf32> to vector<1x128xf32>
      %3010 = vector.broadcast %3009 : vector<1x128xf32> to vector<8x128xf32>
      %3011 = arith.select %2912, %3010, %2880 : vector<8x128xi1>, vector<8x128xf32>
      %3012 = vector.shape_cast %3007 : vector<1x128xf32> to vector<1x128xf32>
      %3013 = vector.broadcast %3012 : vector<1x128xf32> to vector<8x128xf32>
      %3014 = arith.select %2508, %3013, %3011 : vector<8x128xi1>, vector<8x128xf32>
      %3015 = vector.extract_strided_slice %2959 {offsets = [4, 0], sizes = [1, 128], strides = [1, 1]} : vector<8x128xf32> to vector<1x128xf32>
      %3016 = vector.extract_strided_slice %2962 {offsets = [4, 0], sizes = [1, 128], strides = [1, 1]} : vector<8x128xf32> to vector<1x128xf32>
      %3017 = vector.shape_cast %3016 : vector<1x128xf32> to vector<1x128xf32>
      %3018 = vector.broadcast %3017 : vector<1x128xf32> to vector<8x128xf32>
      %3019 = arith.select %2912, %3018, %2888 : vector<8x128xi1>, vector<8x128xf32>
      %3020 = vector.shape_cast %3015 : vector<1x128xf32> to vector<1x128xf32>
      %3021 = vector.broadcast %3020 : vector<1x128xf32> to vector<8x128xf32>
      %3022 = arith.select %2508, %3021, %3019 : vector<8x128xi1>, vector<8x128xf32>
      %3023 = vector.extract_strided_slice %2959 {offsets = [5, 0], sizes = [1, 128], strides = [1, 1]} : vector<8x128xf32> to vector<1x128xf32>
      %3024 = vector.extract_strided_slice %2962 {offsets = [5, 0], sizes = [1, 128], strides = [1, 1]} : vector<8x128xf32> to vector<1x128xf32>
      %3025 = vector.shape_cast %3024 : vector<1x128xf32> to vector<1x128xf32>
      %3026 = vector.broadcast %3025 : vector<1x128xf32> to vector<8x128xf32>
      %3027 = arith.select %2912, %3026, %2896 : vector<8x128xi1>, vector<8x128xf32>
      %3028 = vector.shape_cast %3023 : vector<1x128xf32> to vector<1x128xf32>
      %3029 = vector.broadcast %3028 : vector<1x128xf32> to vector<8x128xf32>
      %3030 = arith.select %2508, %3029, %3027 : vector<8x128xi1>, vector<8x128xf32>
      %3031 = vector.extract_strided_slice %2959 {offsets = [6, 0], sizes = [1, 128], strides = [1, 1]} : vector<8x128xf32> to vector<1x128xf32>
      %3032 = vector.extract_strided_slice %2962 {offsets = [6, 0], sizes = [1, 128], strides = [1, 1]} : vector<8x128xf32> to vector<1x128xf32>
      %3033 = vector.shape_cast %3032 : vector<1x128xf32> to vector<1x128xf32>
      %3034 = vector.broadcast %3033 : vector<1x128xf32> to vector<8x128xf32>
      %3035 = arith.select %2912, %3034, %2856 : vector<8x128xi1>, vector<8x128xf32>
      %3036 = vector.shape_cast %3031 : vector<1x128xf32> to vector<1x128xf32>
      %3037 = vector.broadcast %3036 : vector<1x128xf32> to vector<8x128xf32>
      %3038 = arith.select %2508, %3037, %3035 : vector<8x128xi1>, vector<8x128xf32>
      %3039 = arith.mulf %2954, %2907 : vector<8x128xf32>
      %3040 = arith.mulf %2956, %2506 : vector<8x128xf32>
      %3041 = arith.subf %3039, %3040 : vector<8x128xf32>
      %3042 = arith.mulf %2956, %2907 : vector<8x128xf32>
      %3043 = arith.mulf %2954, %2506 : vector<8x128xf32>
      %3044 = arith.addf %3042, %3043 : vector<8x128xf32>
      %c4_i32_279 = arith.constant 4 : i32
      %3045 = vector.broadcast %c4_i32_279 : i32 to vector<8x128xi32>
      %3046 = arith.cmpi eq, %0, %3045 : vector<8x128xi32>
      %c5_i32_280 = arith.constant 5 : i32
      %3047 = vector.broadcast %c5_i32_280 : i32 to vector<8x128xi32>
      %3048 = arith.cmpi eq, %0, %3047 : vector<8x128xi32>
      %3049 = vector.extract_strided_slice %3022 {offsets = [4, 0], sizes = [1, 128], strides = [1, 1]} : vector<8x128xf32> to vector<1x128xf32>
      %3050 = vector.extract_strided_slice %3030 {offsets = [5, 0], sizes = [1, 128], strides = [1, 1]} : vector<8x128xf32> to vector<1x128xf32>
      %3051 = vector.extract_strided_slice %3022 {offsets = [5, 0], sizes = [1, 128], strides = [1, 1]} : vector<8x128xf32> to vector<1x128xf32>
      %3052 = math.absf %3051 : vector<1x128xf32>
      %3053 = math.absf %3049 : vector<1x128xf32>
      %3054 = math.absf %3050 : vector<1x128xf32>
      %3055 = arith.addf %3053, %3054 : vector<1x128xf32>
      %cst_281 = arith.constant 9.99999996E-13 : f32
      %3056 = vector.broadcast %cst_281 : f32 to vector<1x128xf32>
      %3057 = arith.mulf %3056, %3055 : vector<1x128xf32>
      %cst_282 = arith.constant 1.000000e-30 : f32
      %3058 = vector.broadcast %cst_282 : f32 to vector<1x128xf32>
      %3059 = arith.addf %3057, %3058 : vector<1x128xf32>
      %3060 = arith.cmpf ogt, %3052, %3059 : vector<1x128xf32>
      %cst_283 = arith.constant 1.000000e+00 : f32
      %3061 = vector.broadcast %cst_283 : f32 to vector<1x128xf32>
      %3062 = arith.select %3060, %3051, %3061 : vector<1x128xi1>, vector<1x128xf32>
      %3063 = arith.subf %3050, %3049 : vector<1x128xf32>
      %3064 = tpu.reciprocal %3062 {approx = true} : vector<1x128xf32> -> vector<1x128xf32>
      %cst_284 = arith.constant 5.000000e-01 : f32
      %3065 = vector.broadcast %cst_284 : f32 to vector<1x128xf32>
      %3066 = arith.mulf %3065, %3064 : vector<1x128xf32>
      %3067 = arith.mulf %3063, %3066 : vector<1x128xf32>
      %3068 = arith.mulf %3067, %3067 : vector<1x128xf32>
      %cst_285 = arith.constant 1.000000e+00 : f32
      %3069 = vector.broadcast %cst_285 : f32 to vector<1x128xf32>
      %3070 = arith.addf %3068, %3069 : vector<1x128xf32>
      %3071 = math.rsqrt %3070 : vector<1x128xf32>
      %cst_286 = arith.constant 0.000000e+00 : f32
      %3072 = vector.broadcast %cst_286 : f32 to vector<1x128xf32>
      %3073 = arith.cmpf oge, %3067, %3072 : vector<1x128xf32>
      %cst_287 = arith.constant 1.000000e+00 : f32
      %cst_288 = arith.constant -1.000000e+00 : f32
      %3074 = vector.broadcast %cst_287 : f32 to vector<1x128xf32>
      %3075 = vector.broadcast %cst_288 : f32 to vector<1x128xf32>
      %3076 = arith.select %3073, %3074, %3075 : vector<1x128xi1>, vector<1x128xf32>
      %3077 = math.absf %3067 : vector<1x128xf32>
      %3078 = arith.mulf %3070, %3071 : vector<1x128xf32>
      %3079 = arith.addf %3077, %3078 : vector<1x128xf32>
      %3080 = tpu.reciprocal %3079 {approx = true} : vector<1x128xf32> -> vector<1x128xf32>
      %3081 = arith.mulf %3076, %3080 : vector<1x128xf32>
      %cst_289 = arith.constant 0.000000e+00 : f32
      %3082 = vector.broadcast %cst_289 : f32 to vector<1x128xf32>
      %3083 = arith.select %3060, %3081, %3082 : vector<1x128xi1>, vector<1x128xf32>
      %3084 = arith.mulf %3083, %3083 : vector<1x128xf32>
      %cst_290 = arith.constant 1.000000e+00 : f32
      %3085 = vector.broadcast %cst_290 : f32 to vector<1x128xf32>
      %3086 = arith.addf %3084, %3085 : vector<1x128xf32>
      %3087 = math.rsqrt %3086 : vector<1x128xf32>
      %3088 = arith.mulf %3083, %3087 : vector<1x128xf32>
      %3089 = vector.shape_cast %3087 : vector<1x128xf32> to vector<1x128xf32>
      %3090 = vector.broadcast %3089 : vector<1x128xf32> to vector<8x128xf32>
      %3091 = vector.shape_cast %3088 : vector<1x128xf32> to vector<1x128xf32>
      %3092 = vector.broadcast %3091 : vector<1x128xf32> to vector<8x128xf32>
      %3093 = arith.mulf %3090, %3022 : vector<8x128xf32>
      %3094 = arith.mulf %3092, %3030 : vector<8x128xf32>
      %3095 = arith.subf %3093, %3094 : vector<8x128xf32>
      %3096 = arith.mulf %3092, %3022 : vector<8x128xf32>
      %3097 = arith.mulf %3090, %3030 : vector<8x128xf32>
      %3098 = arith.addf %3096, %3097 : vector<8x128xf32>
      %3099 = vector.extract_strided_slice %3095 {offsets = [4, 0], sizes = [1, 128], strides = [1, 1]} : vector<8x128xf32> to vector<1x128xf32>
      %3100 = vector.extract_strided_slice %3095 {offsets = [5, 0], sizes = [1, 128], strides = [1, 1]} : vector<8x128xf32> to vector<1x128xf32>
      %3101 = vector.extract_strided_slice %3098 {offsets = [4, 0], sizes = [1, 128], strides = [1, 1]} : vector<8x128xf32> to vector<1x128xf32>
      %3102 = vector.extract_strided_slice %3098 {offsets = [5, 0], sizes = [1, 128], strides = [1, 1]} : vector<8x128xf32> to vector<1x128xf32>
      %3103 = arith.mulf %3087, %3099 : vector<1x128xf32>
      %3104 = arith.mulf %3088, %3100 : vector<1x128xf32>
      %3105 = arith.subf %3103, %3104 : vector<1x128xf32>
      %3106 = arith.mulf %3088, %3099 : vector<1x128xf32>
      %3107 = arith.mulf %3087, %3100 : vector<1x128xf32>
      %3108 = arith.addf %3106, %3107 : vector<1x128xf32>
      %3109 = vector.shape_cast %3108 : vector<1x128xf32> to vector<1x128xf32>
      %3110 = vector.broadcast %3109 : vector<1x128xf32> to vector<8x128xf32>
      %3111 = arith.select %3048, %3110, %3095 : vector<8x128xi1>, vector<8x128xf32>
      %3112 = vector.shape_cast %3105 : vector<1x128xf32> to vector<1x128xf32>
      %3113 = vector.broadcast %3112 : vector<1x128xf32> to vector<8x128xf32>
      %3114 = arith.select %3046, %3113, %3111 : vector<8x128xi1>, vector<8x128xf32>
      %3115 = arith.mulf %3087, %3101 : vector<1x128xf32>
      %3116 = arith.mulf %3088, %3102 : vector<1x128xf32>
      %3117 = arith.subf %3115, %3116 : vector<1x128xf32>
      %3118 = arith.mulf %3088, %3101 : vector<1x128xf32>
      %3119 = arith.mulf %3087, %3102 : vector<1x128xf32>
      %3120 = arith.addf %3118, %3119 : vector<1x128xf32>
      %3121 = vector.shape_cast %3120 : vector<1x128xf32> to vector<1x128xf32>
      %3122 = vector.broadcast %3121 : vector<1x128xf32> to vector<8x128xf32>
      %3123 = arith.select %3048, %3122, %3098 : vector<8x128xi1>, vector<8x128xf32>
      %3124 = vector.shape_cast %3117 : vector<1x128xf32> to vector<1x128xf32>
      %3125 = vector.broadcast %3124 : vector<1x128xf32> to vector<8x128xf32>
      %3126 = arith.select %3046, %3125, %3123 : vector<8x128xi1>, vector<8x128xf32>
      %3127 = vector.extract_strided_slice %3095 {offsets = [0, 0], sizes = [1, 128], strides = [1, 1]} : vector<8x128xf32> to vector<1x128xf32>
      %3128 = vector.extract_strided_slice %3098 {offsets = [0, 0], sizes = [1, 128], strides = [1, 1]} : vector<8x128xf32> to vector<1x128xf32>
      %3129 = vector.shape_cast %3128 : vector<1x128xf32> to vector<1x128xf32>
      %3130 = vector.broadcast %3129 : vector<1x128xf32> to vector<8x128xf32>
      %3131 = arith.select %3048, %3130, %2998 : vector<8x128xi1>, vector<8x128xf32>
      %3132 = vector.shape_cast %3127 : vector<1x128xf32> to vector<1x128xf32>
      %3133 = vector.broadcast %3132 : vector<1x128xf32> to vector<8x128xf32>
      %3134 = arith.select %3046, %3133, %3131 : vector<8x128xi1>, vector<8x128xf32>
      %3135 = vector.extract_strided_slice %3095 {offsets = [1, 0], sizes = [1, 128], strides = [1, 1]} : vector<8x128xf32> to vector<1x128xf32>
      %3136 = vector.extract_strided_slice %3098 {offsets = [1, 0], sizes = [1, 128], strides = [1, 1]} : vector<8x128xf32> to vector<1x128xf32>
      %3137 = vector.shape_cast %3136 : vector<1x128xf32> to vector<1x128xf32>
      %3138 = vector.broadcast %3137 : vector<1x128xf32> to vector<8x128xf32>
      %3139 = arith.select %3048, %3138, %3006 : vector<8x128xi1>, vector<8x128xf32>
      %3140 = vector.shape_cast %3135 : vector<1x128xf32> to vector<1x128xf32>
      %3141 = vector.broadcast %3140 : vector<1x128xf32> to vector<8x128xf32>
      %3142 = arith.select %3046, %3141, %3139 : vector<8x128xi1>, vector<8x128xf32>
      %3143 = vector.extract_strided_slice %3095 {offsets = [2, 0], sizes = [1, 128], strides = [1, 1]} : vector<8x128xf32> to vector<1x128xf32>
      %3144 = vector.extract_strided_slice %3098 {offsets = [2, 0], sizes = [1, 128], strides = [1, 1]} : vector<8x128xf32> to vector<1x128xf32>
      %3145 = vector.shape_cast %3144 : vector<1x128xf32> to vector<1x128xf32>
      %3146 = vector.broadcast %3145 : vector<1x128xf32> to vector<8x128xf32>
      %3147 = arith.select %3048, %3146, %3014 : vector<8x128xi1>, vector<8x128xf32>
      %3148 = vector.shape_cast %3143 : vector<1x128xf32> to vector<1x128xf32>
      %3149 = vector.broadcast %3148 : vector<1x128xf32> to vector<8x128xf32>
      %3150 = arith.select %3046, %3149, %3147 : vector<8x128xi1>, vector<8x128xf32>
      %3151 = vector.extract_strided_slice %3095 {offsets = [3, 0], sizes = [1, 128], strides = [1, 1]} : vector<8x128xf32> to vector<1x128xf32>
      %3152 = vector.extract_strided_slice %3098 {offsets = [3, 0], sizes = [1, 128], strides = [1, 1]} : vector<8x128xf32> to vector<1x128xf32>
      %3153 = vector.shape_cast %3152 : vector<1x128xf32> to vector<1x128xf32>
      %3154 = vector.broadcast %3153 : vector<1x128xf32> to vector<8x128xf32>
      %3155 = arith.select %3048, %3154, %2978 : vector<8x128xi1>, vector<8x128xf32>
      %3156 = vector.shape_cast %3151 : vector<1x128xf32> to vector<1x128xf32>
      %3157 = vector.broadcast %3156 : vector<1x128xf32> to vector<8x128xf32>
      %3158 = arith.select %3046, %3157, %3155 : vector<8x128xi1>, vector<8x128xf32>
      %3159 = vector.extract_strided_slice %3095 {offsets = [6, 0], sizes = [1, 128], strides = [1, 1]} : vector<8x128xf32> to vector<1x128xf32>
      %3160 = vector.extract_strided_slice %3098 {offsets = [6, 0], sizes = [1, 128], strides = [1, 1]} : vector<8x128xf32> to vector<1x128xf32>
      %3161 = vector.shape_cast %3160 : vector<1x128xf32> to vector<1x128xf32>
      %3162 = vector.broadcast %3161 : vector<1x128xf32> to vector<8x128xf32>
      %3163 = arith.select %3048, %3162, %3038 : vector<8x128xi1>, vector<8x128xf32>
      %3164 = vector.shape_cast %3159 : vector<1x128xf32> to vector<1x128xf32>
      %3165 = vector.broadcast %3164 : vector<1x128xf32> to vector<8x128xf32>
      %3166 = arith.select %3046, %3165, %3163 : vector<8x128xi1>, vector<8x128xf32>
      %3167 = vector.extract_strided_slice %3095 {offsets = [7, 0], sizes = [1, 128], strides = [1, 1]} : vector<8x128xf32> to vector<1x128xf32>
      %3168 = vector.extract_strided_slice %3098 {offsets = [7, 0], sizes = [1, 128], strides = [1, 1]} : vector<8x128xf32> to vector<1x128xf32>
      %3169 = vector.shape_cast %3168 : vector<1x128xf32> to vector<1x128xf32>
      %3170 = vector.broadcast %3169 : vector<1x128xf32> to vector<8x128xf32>
      %3171 = arith.select %3048, %3170, %2990 : vector<8x128xi1>, vector<8x128xf32>
      %3172 = vector.shape_cast %3167 : vector<1x128xf32> to vector<1x128xf32>
      %3173 = vector.broadcast %3172 : vector<1x128xf32> to vector<8x128xf32>
      %3174 = arith.select %3046, %3173, %3171 : vector<8x128xi1>, vector<8x128xf32>
      %3175 = arith.mulf %3090, %2642 : vector<8x128xf32>
      %3176 = arith.mulf %3092, %2776 : vector<8x128xf32>
      %3177 = arith.subf %3175, %3176 : vector<8x128xf32>
      %3178 = arith.mulf %3092, %2642 : vector<8x128xf32>
      %3179 = arith.mulf %3090, %2776 : vector<8x128xf32>
      %3180 = arith.addf %3178, %3179 : vector<8x128xf32>
      %c6_i32_291 = arith.constant 6 : i32
      %3181 = vector.broadcast %c6_i32_291 : i32 to vector<8x128xi32>
      %3182 = arith.cmpi eq, %0, %3181 : vector<8x128xi32>
      %3183 = vector.extract_strided_slice %3114 {offsets = [4, 0], sizes = [1, 128], strides = [1, 1]} : vector<8x128xf32> to vector<1x128xf32>
      %3184 = vector.extract_strided_slice %3166 {offsets = [6, 0], sizes = [1, 128], strides = [1, 1]} : vector<8x128xf32> to vector<1x128xf32>
      %3185 = vector.extract_strided_slice %3114 {offsets = [6, 0], sizes = [1, 128], strides = [1, 1]} : vector<8x128xf32> to vector<1x128xf32>
      %3186 = math.absf %3185 : vector<1x128xf32>
      %3187 = math.absf %3183 : vector<1x128xf32>
      %3188 = math.absf %3184 : vector<1x128xf32>
      %3189 = arith.addf %3187, %3188 : vector<1x128xf32>
      %cst_292 = arith.constant 9.99999996E-13 : f32
      %3190 = vector.broadcast %cst_292 : f32 to vector<1x128xf32>
      %3191 = arith.mulf %3190, %3189 : vector<1x128xf32>
      %cst_293 = arith.constant 1.000000e-30 : f32
      %3192 = vector.broadcast %cst_293 : f32 to vector<1x128xf32>
      %3193 = arith.addf %3191, %3192 : vector<1x128xf32>
      %3194 = arith.cmpf ogt, %3186, %3193 : vector<1x128xf32>
      %cst_294 = arith.constant 1.000000e+00 : f32
      %3195 = vector.broadcast %cst_294 : f32 to vector<1x128xf32>
      %3196 = arith.select %3194, %3185, %3195 : vector<1x128xi1>, vector<1x128xf32>
      %3197 = arith.subf %3184, %3183 : vector<1x128xf32>
      %3198 = tpu.reciprocal %3196 {approx = true} : vector<1x128xf32> -> vector<1x128xf32>
      %cst_295 = arith.constant 5.000000e-01 : f32
      %3199 = vector.broadcast %cst_295 : f32 to vector<1x128xf32>
      %3200 = arith.mulf %3199, %3198 : vector<1x128xf32>
      %3201 = arith.mulf %3197, %3200 : vector<1x128xf32>
      %3202 = arith.mulf %3201, %3201 : vector<1x128xf32>
      %cst_296 = arith.constant 1.000000e+00 : f32
      %3203 = vector.broadcast %cst_296 : f32 to vector<1x128xf32>
      %3204 = arith.addf %3202, %3203 : vector<1x128xf32>
      %3205 = math.rsqrt %3204 : vector<1x128xf32>
      %cst_297 = arith.constant 0.000000e+00 : f32
      %3206 = vector.broadcast %cst_297 : f32 to vector<1x128xf32>
      %3207 = arith.cmpf oge, %3201, %3206 : vector<1x128xf32>
      %cst_298 = arith.constant 1.000000e+00 : f32
      %cst_299 = arith.constant -1.000000e+00 : f32
      %3208 = vector.broadcast %cst_298 : f32 to vector<1x128xf32>
      %3209 = vector.broadcast %cst_299 : f32 to vector<1x128xf32>
      %3210 = arith.select %3207, %3208, %3209 : vector<1x128xi1>, vector<1x128xf32>
      %3211 = math.absf %3201 : vector<1x128xf32>
      %3212 = arith.mulf %3204, %3205 : vector<1x128xf32>
      %3213 = arith.addf %3211, %3212 : vector<1x128xf32>
      %3214 = tpu.reciprocal %3213 {approx = true} : vector<1x128xf32> -> vector<1x128xf32>
      %3215 = arith.mulf %3210, %3214 : vector<1x128xf32>
      %cst_300 = arith.constant 0.000000e+00 : f32
      %3216 = vector.broadcast %cst_300 : f32 to vector<1x128xf32>
      %3217 = arith.select %3194, %3215, %3216 : vector<1x128xi1>, vector<1x128xf32>
      %3218 = arith.mulf %3217, %3217 : vector<1x128xf32>
      %cst_301 = arith.constant 1.000000e+00 : f32
      %3219 = vector.broadcast %cst_301 : f32 to vector<1x128xf32>
      %3220 = arith.addf %3218, %3219 : vector<1x128xf32>
      %3221 = math.rsqrt %3220 : vector<1x128xf32>
      %3222 = arith.mulf %3217, %3221 : vector<1x128xf32>
      %3223 = vector.shape_cast %3221 : vector<1x128xf32> to vector<1x128xf32>
      %3224 = vector.broadcast %3223 : vector<1x128xf32> to vector<8x128xf32>
      %3225 = vector.shape_cast %3222 : vector<1x128xf32> to vector<1x128xf32>
      %3226 = vector.broadcast %3225 : vector<1x128xf32> to vector<8x128xf32>
      %3227 = arith.mulf %3224, %3114 : vector<8x128xf32>
      %3228 = arith.mulf %3226, %3166 : vector<8x128xf32>
      %3229 = arith.subf %3227, %3228 : vector<8x128xf32>
      %3230 = arith.mulf %3226, %3114 : vector<8x128xf32>
      %3231 = arith.mulf %3224, %3166 : vector<8x128xf32>
      %3232 = arith.addf %3230, %3231 : vector<8x128xf32>
      %3233 = vector.extract_strided_slice %3229 {offsets = [4, 0], sizes = [1, 128], strides = [1, 1]} : vector<8x128xf32> to vector<1x128xf32>
      %3234 = vector.extract_strided_slice %3229 {offsets = [6, 0], sizes = [1, 128], strides = [1, 1]} : vector<8x128xf32> to vector<1x128xf32>
      %3235 = vector.extract_strided_slice %3232 {offsets = [4, 0], sizes = [1, 128], strides = [1, 1]} : vector<8x128xf32> to vector<1x128xf32>
      %3236 = vector.extract_strided_slice %3232 {offsets = [6, 0], sizes = [1, 128], strides = [1, 1]} : vector<8x128xf32> to vector<1x128xf32>
      %3237 = arith.mulf %3221, %3233 : vector<1x128xf32>
      %3238 = arith.mulf %3222, %3234 : vector<1x128xf32>
      %3239 = arith.subf %3237, %3238 : vector<1x128xf32>
      %3240 = arith.mulf %3222, %3233 : vector<1x128xf32>
      %3241 = arith.mulf %3221, %3234 : vector<1x128xf32>
      %3242 = arith.addf %3240, %3241 : vector<1x128xf32>
      %3243 = vector.shape_cast %3242 : vector<1x128xf32> to vector<1x128xf32>
      %3244 = vector.broadcast %3243 : vector<1x128xf32> to vector<8x128xf32>
      %3245 = arith.select %3182, %3244, %3229 : vector<8x128xi1>, vector<8x128xf32>
      %3246 = vector.shape_cast %3239 : vector<1x128xf32> to vector<1x128xf32>
      %3247 = vector.broadcast %3246 : vector<1x128xf32> to vector<8x128xf32>
      %3248 = arith.select %3046, %3247, %3245 : vector<8x128xi1>, vector<8x128xf32>
      %3249 = arith.mulf %3221, %3235 : vector<1x128xf32>
      %3250 = arith.mulf %3222, %3236 : vector<1x128xf32>
      %3251 = arith.subf %3249, %3250 : vector<1x128xf32>
      %3252 = arith.mulf %3222, %3235 : vector<1x128xf32>
      %3253 = arith.mulf %3221, %3236 : vector<1x128xf32>
      %3254 = arith.addf %3252, %3253 : vector<1x128xf32>
      %3255 = vector.shape_cast %3254 : vector<1x128xf32> to vector<1x128xf32>
      %3256 = vector.broadcast %3255 : vector<1x128xf32> to vector<8x128xf32>
      %3257 = arith.select %3182, %3256, %3232 : vector<8x128xi1>, vector<8x128xf32>
      %3258 = vector.shape_cast %3251 : vector<1x128xf32> to vector<1x128xf32>
      %3259 = vector.broadcast %3258 : vector<1x128xf32> to vector<8x128xf32>
      %3260 = arith.select %3046, %3259, %3257 : vector<8x128xi1>, vector<8x128xf32>
      %3261 = vector.extract_strided_slice %3229 {offsets = [0, 0], sizes = [1, 128], strides = [1, 1]} : vector<8x128xf32> to vector<1x128xf32>
      %3262 = vector.extract_strided_slice %3232 {offsets = [0, 0], sizes = [1, 128], strides = [1, 1]} : vector<8x128xf32> to vector<1x128xf32>
      %3263 = vector.shape_cast %3262 : vector<1x128xf32> to vector<1x128xf32>
      %3264 = vector.broadcast %3263 : vector<1x128xf32> to vector<8x128xf32>
      %3265 = arith.select %3182, %3264, %3134 : vector<8x128xi1>, vector<8x128xf32>
      %3266 = vector.shape_cast %3261 : vector<1x128xf32> to vector<1x128xf32>
      %3267 = vector.broadcast %3266 : vector<1x128xf32> to vector<8x128xf32>
      %3268 = arith.select %3046, %3267, %3265 : vector<8x128xi1>, vector<8x128xf32>
      %3269 = vector.extract_strided_slice %3229 {offsets = [1, 0], sizes = [1, 128], strides = [1, 1]} : vector<8x128xf32> to vector<1x128xf32>
      %3270 = vector.extract_strided_slice %3232 {offsets = [1, 0], sizes = [1, 128], strides = [1, 1]} : vector<8x128xf32> to vector<1x128xf32>
      %3271 = vector.shape_cast %3270 : vector<1x128xf32> to vector<1x128xf32>
      %3272 = vector.broadcast %3271 : vector<1x128xf32> to vector<8x128xf32>
      %3273 = arith.select %3182, %3272, %3142 : vector<8x128xi1>, vector<8x128xf32>
      %3274 = vector.shape_cast %3269 : vector<1x128xf32> to vector<1x128xf32>
      %3275 = vector.broadcast %3274 : vector<1x128xf32> to vector<8x128xf32>
      %3276 = arith.select %3046, %3275, %3273 : vector<8x128xi1>, vector<8x128xf32>
      %3277 = vector.extract_strided_slice %3229 {offsets = [2, 0], sizes = [1, 128], strides = [1, 1]} : vector<8x128xf32> to vector<1x128xf32>
      %3278 = vector.extract_strided_slice %3232 {offsets = [2, 0], sizes = [1, 128], strides = [1, 1]} : vector<8x128xf32> to vector<1x128xf32>
      %3279 = vector.shape_cast %3278 : vector<1x128xf32> to vector<1x128xf32>
      %3280 = vector.broadcast %3279 : vector<1x128xf32> to vector<8x128xf32>
      %3281 = arith.select %3182, %3280, %3150 : vector<8x128xi1>, vector<8x128xf32>
      %3282 = vector.shape_cast %3277 : vector<1x128xf32> to vector<1x128xf32>
      %3283 = vector.broadcast %3282 : vector<1x128xf32> to vector<8x128xf32>
      %3284 = arith.select %3046, %3283, %3281 : vector<8x128xi1>, vector<8x128xf32>
      %3285 = vector.extract_strided_slice %3229 {offsets = [3, 0], sizes = [1, 128], strides = [1, 1]} : vector<8x128xf32> to vector<1x128xf32>
      %3286 = vector.extract_strided_slice %3232 {offsets = [3, 0], sizes = [1, 128], strides = [1, 1]} : vector<8x128xf32> to vector<1x128xf32>
      %3287 = vector.shape_cast %3286 : vector<1x128xf32> to vector<1x128xf32>
      %3288 = vector.broadcast %3287 : vector<1x128xf32> to vector<8x128xf32>
      %3289 = arith.select %3182, %3288, %3158 : vector<8x128xi1>, vector<8x128xf32>
      %3290 = vector.shape_cast %3285 : vector<1x128xf32> to vector<1x128xf32>
      %3291 = vector.broadcast %3290 : vector<1x128xf32> to vector<8x128xf32>
      %3292 = arith.select %3046, %3291, %3289 : vector<8x128xi1>, vector<8x128xf32>
      %3293 = vector.extract_strided_slice %3229 {offsets = [5, 0], sizes = [1, 128], strides = [1, 1]} : vector<8x128xf32> to vector<1x128xf32>
      %3294 = vector.extract_strided_slice %3232 {offsets = [5, 0], sizes = [1, 128], strides = [1, 1]} : vector<8x128xf32> to vector<1x128xf32>
      %3295 = vector.shape_cast %3294 : vector<1x128xf32> to vector<1x128xf32>
      %3296 = vector.broadcast %3295 : vector<1x128xf32> to vector<8x128xf32>
      %3297 = arith.select %3182, %3296, %3126 : vector<8x128xi1>, vector<8x128xf32>
      %3298 = vector.shape_cast %3293 : vector<1x128xf32> to vector<1x128xf32>
      %3299 = vector.broadcast %3298 : vector<1x128xf32> to vector<8x128xf32>
      %3300 = arith.select %3046, %3299, %3297 : vector<8x128xi1>, vector<8x128xf32>
      %3301 = vector.extract_strided_slice %3229 {offsets = [7, 0], sizes = [1, 128], strides = [1, 1]} : vector<8x128xf32> to vector<1x128xf32>
      %3302 = vector.extract_strided_slice %3232 {offsets = [7, 0], sizes = [1, 128], strides = [1, 1]} : vector<8x128xf32> to vector<1x128xf32>
      %3303 = vector.shape_cast %3302 : vector<1x128xf32> to vector<1x128xf32>
      %3304 = vector.broadcast %3303 : vector<1x128xf32> to vector<8x128xf32>
      %3305 = arith.select %3182, %3304, %3174 : vector<8x128xi1>, vector<8x128xf32>
      %3306 = vector.shape_cast %3301 : vector<1x128xf32> to vector<1x128xf32>
      %3307 = vector.broadcast %3306 : vector<1x128xf32> to vector<8x128xf32>
      %3308 = arith.select %3046, %3307, %3305 : vector<8x128xi1>, vector<8x128xf32>
      %3309 = arith.mulf %3224, %3177 : vector<8x128xf32>
      %3310 = arith.mulf %3226, %2910 : vector<8x128xf32>
      %3311 = arith.subf %3309, %3310 : vector<8x128xf32>
      %3312 = arith.mulf %3226, %3177 : vector<8x128xf32>
      %3313 = arith.mulf %3224, %2910 : vector<8x128xf32>
      %3314 = arith.addf %3312, %3313 : vector<8x128xf32>
      %c7_i32_302 = arith.constant 7 : i32
      %3315 = vector.broadcast %c7_i32_302 : i32 to vector<8x128xi32>
      %3316 = arith.cmpi eq, %0, %3315 : vector<8x128xi32>
      %3317 = vector.extract_strided_slice %3248 {offsets = [4, 0], sizes = [1, 128], strides = [1, 1]} : vector<8x128xf32> to vector<1x128xf32>
      %3318 = vector.extract_strided_slice %3308 {offsets = [7, 0], sizes = [1, 128], strides = [1, 1]} : vector<8x128xf32> to vector<1x128xf32>
      %3319 = vector.extract_strided_slice %3248 {offsets = [7, 0], sizes = [1, 128], strides = [1, 1]} : vector<8x128xf32> to vector<1x128xf32>
      %3320 = math.absf %3319 : vector<1x128xf32>
      %3321 = math.absf %3317 : vector<1x128xf32>
      %3322 = math.absf %3318 : vector<1x128xf32>
      %3323 = arith.addf %3321, %3322 : vector<1x128xf32>
      %cst_303 = arith.constant 9.99999996E-13 : f32
      %3324 = vector.broadcast %cst_303 : f32 to vector<1x128xf32>
      %3325 = arith.mulf %3324, %3323 : vector<1x128xf32>
      %cst_304 = arith.constant 1.000000e-30 : f32
      %3326 = vector.broadcast %cst_304 : f32 to vector<1x128xf32>
      %3327 = arith.addf %3325, %3326 : vector<1x128xf32>
      %3328 = arith.cmpf ogt, %3320, %3327 : vector<1x128xf32>
      %cst_305 = arith.constant 1.000000e+00 : f32
      %3329 = vector.broadcast %cst_305 : f32 to vector<1x128xf32>
      %3330 = arith.select %3328, %3319, %3329 : vector<1x128xi1>, vector<1x128xf32>
      %3331 = arith.subf %3318, %3317 : vector<1x128xf32>
      %3332 = tpu.reciprocal %3330 {approx = true} : vector<1x128xf32> -> vector<1x128xf32>
      %cst_306 = arith.constant 5.000000e-01 : f32
      %3333 = vector.broadcast %cst_306 : f32 to vector<1x128xf32>
      %3334 = arith.mulf %3333, %3332 : vector<1x128xf32>
      %3335 = arith.mulf %3331, %3334 : vector<1x128xf32>
      %3336 = arith.mulf %3335, %3335 : vector<1x128xf32>
      %cst_307 = arith.constant 1.000000e+00 : f32
      %3337 = vector.broadcast %cst_307 : f32 to vector<1x128xf32>
      %3338 = arith.addf %3336, %3337 : vector<1x128xf32>
      %3339 = math.rsqrt %3338 : vector<1x128xf32>
      %cst_308 = arith.constant 0.000000e+00 : f32
      %3340 = vector.broadcast %cst_308 : f32 to vector<1x128xf32>
      %3341 = arith.cmpf oge, %3335, %3340 : vector<1x128xf32>
      %cst_309 = arith.constant 1.000000e+00 : f32
      %cst_310 = arith.constant -1.000000e+00 : f32
      %3342 = vector.broadcast %cst_309 : f32 to vector<1x128xf32>
      %3343 = vector.broadcast %cst_310 : f32 to vector<1x128xf32>
      %3344 = arith.select %3341, %3342, %3343 : vector<1x128xi1>, vector<1x128xf32>
      %3345 = math.absf %3335 : vector<1x128xf32>
      %3346 = arith.mulf %3338, %3339 : vector<1x128xf32>
      %3347 = arith.addf %3345, %3346 : vector<1x128xf32>
      %3348 = tpu.reciprocal %3347 {approx = true} : vector<1x128xf32> -> vector<1x128xf32>
      %3349 = arith.mulf %3344, %3348 : vector<1x128xf32>
      %cst_311 = arith.constant 0.000000e+00 : f32
      %3350 = vector.broadcast %cst_311 : f32 to vector<1x128xf32>
      %3351 = arith.select %3328, %3349, %3350 : vector<1x128xi1>, vector<1x128xf32>
      %3352 = arith.mulf %3351, %3351 : vector<1x128xf32>
      %cst_312 = arith.constant 1.000000e+00 : f32
      %3353 = vector.broadcast %cst_312 : f32 to vector<1x128xf32>
      %3354 = arith.addf %3352, %3353 : vector<1x128xf32>
      %3355 = math.rsqrt %3354 : vector<1x128xf32>
      %3356 = arith.mulf %3351, %3355 : vector<1x128xf32>
      %3357 = vector.shape_cast %3355 : vector<1x128xf32> to vector<1x128xf32>
      %3358 = vector.broadcast %3357 : vector<1x128xf32> to vector<8x128xf32>
      %3359 = vector.shape_cast %3356 : vector<1x128xf32> to vector<1x128xf32>
      %3360 = vector.broadcast %3359 : vector<1x128xf32> to vector<8x128xf32>
      %3361 = arith.mulf %3358, %3248 : vector<8x128xf32>
      %3362 = arith.mulf %3360, %3308 : vector<8x128xf32>
      %3363 = arith.subf %3361, %3362 : vector<8x128xf32>
      %3364 = arith.mulf %3360, %3248 : vector<8x128xf32>
      %3365 = arith.mulf %3358, %3308 : vector<8x128xf32>
      %3366 = arith.addf %3364, %3365 : vector<8x128xf32>
      %3367 = vector.extract_strided_slice %3363 {offsets = [4, 0], sizes = [1, 128], strides = [1, 1]} : vector<8x128xf32> to vector<1x128xf32>
      %3368 = vector.extract_strided_slice %3363 {offsets = [7, 0], sizes = [1, 128], strides = [1, 1]} : vector<8x128xf32> to vector<1x128xf32>
      %3369 = vector.extract_strided_slice %3366 {offsets = [4, 0], sizes = [1, 128], strides = [1, 1]} : vector<8x128xf32> to vector<1x128xf32>
      %3370 = vector.extract_strided_slice %3366 {offsets = [7, 0], sizes = [1, 128], strides = [1, 1]} : vector<8x128xf32> to vector<1x128xf32>
      %3371 = arith.mulf %3355, %3367 : vector<1x128xf32>
      %3372 = arith.mulf %3356, %3368 : vector<1x128xf32>
      %3373 = arith.subf %3371, %3372 : vector<1x128xf32>
      %3374 = arith.mulf %3356, %3367 : vector<1x128xf32>
      %3375 = arith.mulf %3355, %3368 : vector<1x128xf32>
      %3376 = arith.addf %3374, %3375 : vector<1x128xf32>
      %3377 = vector.shape_cast %3376 : vector<1x128xf32> to vector<1x128xf32>
      %3378 = vector.broadcast %3377 : vector<1x128xf32> to vector<8x128xf32>
      %3379 = arith.select %3316, %3378, %3363 : vector<8x128xi1>, vector<8x128xf32>
      %3380 = vector.shape_cast %3373 : vector<1x128xf32> to vector<1x128xf32>
      %3381 = vector.broadcast %3380 : vector<1x128xf32> to vector<8x128xf32>
      %3382 = arith.select %3046, %3381, %3379 : vector<8x128xi1>, vector<8x128xf32>
      %3383 = arith.mulf %3355, %3369 : vector<1x128xf32>
      %3384 = arith.mulf %3356, %3370 : vector<1x128xf32>
      %3385 = arith.subf %3383, %3384 : vector<1x128xf32>
      %3386 = arith.mulf %3356, %3369 : vector<1x128xf32>
      %3387 = arith.mulf %3355, %3370 : vector<1x128xf32>
      %3388 = arith.addf %3386, %3387 : vector<1x128xf32>
      %3389 = vector.shape_cast %3388 : vector<1x128xf32> to vector<1x128xf32>
      %3390 = vector.broadcast %3389 : vector<1x128xf32> to vector<8x128xf32>
      %3391 = arith.select %3316, %3390, %3366 : vector<8x128xi1>, vector<8x128xf32>
      %3392 = vector.shape_cast %3385 : vector<1x128xf32> to vector<1x128xf32>
      %3393 = vector.broadcast %3392 : vector<1x128xf32> to vector<8x128xf32>
      %3394 = arith.select %3046, %3393, %3391 : vector<8x128xi1>, vector<8x128xf32>
      %3395 = vector.extract_strided_slice %3363 {offsets = [0, 0], sizes = [1, 128], strides = [1, 1]} : vector<8x128xf32> to vector<1x128xf32>
      %3396 = vector.extract_strided_slice %3366 {offsets = [0, 0], sizes = [1, 128], strides = [1, 1]} : vector<8x128xf32> to vector<1x128xf32>
      %3397 = vector.shape_cast %3396 : vector<1x128xf32> to vector<1x128xf32>
      %3398 = vector.broadcast %3397 : vector<1x128xf32> to vector<8x128xf32>
      %3399 = arith.select %3316, %3398, %3268 : vector<8x128xi1>, vector<8x128xf32>
      %3400 = vector.shape_cast %3395 : vector<1x128xf32> to vector<1x128xf32>
      %3401 = vector.broadcast %3400 : vector<1x128xf32> to vector<8x128xf32>
      %3402 = arith.select %3046, %3401, %3399 : vector<8x128xi1>, vector<8x128xf32>
      %3403 = vector.extract_strided_slice %3363 {offsets = [1, 0], sizes = [1, 128], strides = [1, 1]} : vector<8x128xf32> to vector<1x128xf32>
      %3404 = vector.extract_strided_slice %3366 {offsets = [1, 0], sizes = [1, 128], strides = [1, 1]} : vector<8x128xf32> to vector<1x128xf32>
      %3405 = vector.shape_cast %3404 : vector<1x128xf32> to vector<1x128xf32>
      %3406 = vector.broadcast %3405 : vector<1x128xf32> to vector<8x128xf32>
      %3407 = arith.select %3316, %3406, %3276 : vector<8x128xi1>, vector<8x128xf32>
      %3408 = vector.shape_cast %3403 : vector<1x128xf32> to vector<1x128xf32>
      %3409 = vector.broadcast %3408 : vector<1x128xf32> to vector<8x128xf32>
      %3410 = arith.select %3046, %3409, %3407 : vector<8x128xi1>, vector<8x128xf32>
      %3411 = vector.extract_strided_slice %3363 {offsets = [2, 0], sizes = [1, 128], strides = [1, 1]} : vector<8x128xf32> to vector<1x128xf32>
      %3412 = vector.extract_strided_slice %3366 {offsets = [2, 0], sizes = [1, 128], strides = [1, 1]} : vector<8x128xf32> to vector<1x128xf32>
      %3413 = vector.shape_cast %3412 : vector<1x128xf32> to vector<1x128xf32>
      %3414 = vector.broadcast %3413 : vector<1x128xf32> to vector<8x128xf32>
      %3415 = arith.select %3316, %3414, %3284 : vector<8x128xi1>, vector<8x128xf32>
      %3416 = vector.shape_cast %3411 : vector<1x128xf32> to vector<1x128xf32>
      %3417 = vector.broadcast %3416 : vector<1x128xf32> to vector<8x128xf32>
      %3418 = arith.select %3046, %3417, %3415 : vector<8x128xi1>, vector<8x128xf32>
      %3419 = vector.extract_strided_slice %3363 {offsets = [3, 0], sizes = [1, 128], strides = [1, 1]} : vector<8x128xf32> to vector<1x128xf32>
      %3420 = vector.extract_strided_slice %3366 {offsets = [3, 0], sizes = [1, 128], strides = [1, 1]} : vector<8x128xf32> to vector<1x128xf32>
      %3421 = vector.shape_cast %3420 : vector<1x128xf32> to vector<1x128xf32>
      %3422 = vector.broadcast %3421 : vector<1x128xf32> to vector<8x128xf32>
      %3423 = arith.select %3316, %3422, %3292 : vector<8x128xi1>, vector<8x128xf32>
      %3424 = vector.shape_cast %3419 : vector<1x128xf32> to vector<1x128xf32>
      %3425 = vector.broadcast %3424 : vector<1x128xf32> to vector<8x128xf32>
      %3426 = arith.select %3046, %3425, %3423 : vector<8x128xi1>, vector<8x128xf32>
      %3427 = vector.extract_strided_slice %3363 {offsets = [5, 0], sizes = [1, 128], strides = [1, 1]} : vector<8x128xf32> to vector<1x128xf32>
      %3428 = vector.extract_strided_slice %3366 {offsets = [5, 0], sizes = [1, 128], strides = [1, 1]} : vector<8x128xf32> to vector<1x128xf32>
      %3429 = vector.shape_cast %3428 : vector<1x128xf32> to vector<1x128xf32>
      %3430 = vector.broadcast %3429 : vector<1x128xf32> to vector<8x128xf32>
      %3431 = arith.select %3316, %3430, %3300 : vector<8x128xi1>, vector<8x128xf32>
      %3432 = vector.shape_cast %3427 : vector<1x128xf32> to vector<1x128xf32>
      %3433 = vector.broadcast %3432 : vector<1x128xf32> to vector<8x128xf32>
      %3434 = arith.select %3046, %3433, %3431 : vector<8x128xi1>, vector<8x128xf32>
      %3435 = vector.extract_strided_slice %3363 {offsets = [6, 0], sizes = [1, 128], strides = [1, 1]} : vector<8x128xf32> to vector<1x128xf32>
      %3436 = vector.extract_strided_slice %3366 {offsets = [6, 0], sizes = [1, 128], strides = [1, 1]} : vector<8x128xf32> to vector<1x128xf32>
      %3437 = vector.shape_cast %3436 : vector<1x128xf32> to vector<1x128xf32>
      %3438 = vector.broadcast %3437 : vector<1x128xf32> to vector<8x128xf32>
      %3439 = arith.select %3316, %3438, %3260 : vector<8x128xi1>, vector<8x128xf32>
      %3440 = vector.shape_cast %3435 : vector<1x128xf32> to vector<1x128xf32>
      %3441 = vector.broadcast %3440 : vector<1x128xf32> to vector<8x128xf32>
      %3442 = arith.select %3046, %3441, %3439 : vector<8x128xi1>, vector<8x128xf32>
      %3443 = arith.mulf %3358, %3311 : vector<8x128xf32>
      %3444 = arith.mulf %3360, %3044 : vector<8x128xf32>
      %3445 = arith.subf %3443, %3444 : vector<8x128xf32>
      %3446 = arith.mulf %3360, %3311 : vector<8x128xf32>
      %3447 = arith.mulf %3358, %3044 : vector<8x128xf32>
      %3448 = arith.addf %3446, %3447 : vector<8x128xf32>
      %c5_i32_313 = arith.constant 5 : i32
      %3449 = vector.broadcast %c5_i32_313 : i32 to vector<8x128xi32>
      %3450 = arith.cmpi eq, %0, %3449 : vector<8x128xi32>
      %c6_i32_314 = arith.constant 6 : i32
      %3451 = vector.broadcast %c6_i32_314 : i32 to vector<8x128xi32>
      %3452 = arith.cmpi eq, %0, %3451 : vector<8x128xi32>
      %3453 = vector.extract_strided_slice %3434 {offsets = [5, 0], sizes = [1, 128], strides = [1, 1]} : vector<8x128xf32> to vector<1x128xf32>
      %3454 = vector.extract_strided_slice %3442 {offsets = [6, 0], sizes = [1, 128], strides = [1, 1]} : vector<8x128xf32> to vector<1x128xf32>
      %3455 = vector.extract_strided_slice %3434 {offsets = [6, 0], sizes = [1, 128], strides = [1, 1]} : vector<8x128xf32> to vector<1x128xf32>
      %3456 = math.absf %3455 : vector<1x128xf32>
      %3457 = math.absf %3453 : vector<1x128xf32>
      %3458 = math.absf %3454 : vector<1x128xf32>
      %3459 = arith.addf %3457, %3458 : vector<1x128xf32>
      %cst_315 = arith.constant 9.99999996E-13 : f32
      %3460 = vector.broadcast %cst_315 : f32 to vector<1x128xf32>
      %3461 = arith.mulf %3460, %3459 : vector<1x128xf32>
      %cst_316 = arith.constant 1.000000e-30 : f32
      %3462 = vector.broadcast %cst_316 : f32 to vector<1x128xf32>
      %3463 = arith.addf %3461, %3462 : vector<1x128xf32>
      %3464 = arith.cmpf ogt, %3456, %3463 : vector<1x128xf32>
      %cst_317 = arith.constant 1.000000e+00 : f32
      %3465 = vector.broadcast %cst_317 : f32 to vector<1x128xf32>
      %3466 = arith.select %3464, %3455, %3465 : vector<1x128xi1>, vector<1x128xf32>
      %3467 = arith.subf %3454, %3453 : vector<1x128xf32>
      %3468 = tpu.reciprocal %3466 {approx = true} : vector<1x128xf32> -> vector<1x128xf32>
      %cst_318 = arith.constant 5.000000e-01 : f32
      %3469 = vector.broadcast %cst_318 : f32 to vector<1x128xf32>
      %3470 = arith.mulf %3469, %3468 : vector<1x128xf32>
      %3471 = arith.mulf %3467, %3470 : vector<1x128xf32>
      %3472 = arith.mulf %3471, %3471 : vector<1x128xf32>
      %cst_319 = arith.constant 1.000000e+00 : f32
      %3473 = vector.broadcast %cst_319 : f32 to vector<1x128xf32>
      %3474 = arith.addf %3472, %3473 : vector<1x128xf32>
      %3475 = math.rsqrt %3474 : vector<1x128xf32>
      %cst_320 = arith.constant 0.000000e+00 : f32
      %3476 = vector.broadcast %cst_320 : f32 to vector<1x128xf32>
      %3477 = arith.cmpf oge, %3471, %3476 : vector<1x128xf32>
      %cst_321 = arith.constant 1.000000e+00 : f32
      %cst_322 = arith.constant -1.000000e+00 : f32
      %3478 = vector.broadcast %cst_321 : f32 to vector<1x128xf32>
      %3479 = vector.broadcast %cst_322 : f32 to vector<1x128xf32>
      %3480 = arith.select %3477, %3478, %3479 : vector<1x128xi1>, vector<1x128xf32>
      %3481 = math.absf %3471 : vector<1x128xf32>
      %3482 = arith.mulf %3474, %3475 : vector<1x128xf32>
      %3483 = arith.addf %3481, %3482 : vector<1x128xf32>
      %3484 = tpu.reciprocal %3483 {approx = true} : vector<1x128xf32> -> vector<1x128xf32>
      %3485 = arith.mulf %3480, %3484 : vector<1x128xf32>
      %cst_323 = arith.constant 0.000000e+00 : f32
      %3486 = vector.broadcast %cst_323 : f32 to vector<1x128xf32>
      %3487 = arith.select %3464, %3485, %3486 : vector<1x128xi1>, vector<1x128xf32>
      %3488 = arith.mulf %3487, %3487 : vector<1x128xf32>
      %cst_324 = arith.constant 1.000000e+00 : f32
      %3489 = vector.broadcast %cst_324 : f32 to vector<1x128xf32>
      %3490 = arith.addf %3488, %3489 : vector<1x128xf32>
      %3491 = math.rsqrt %3490 : vector<1x128xf32>
      %3492 = arith.mulf %3487, %3491 : vector<1x128xf32>
      %3493 = vector.shape_cast %3491 : vector<1x128xf32> to vector<1x128xf32>
      %3494 = vector.broadcast %3493 : vector<1x128xf32> to vector<8x128xf32>
      %3495 = vector.shape_cast %3492 : vector<1x128xf32> to vector<1x128xf32>
      %3496 = vector.broadcast %3495 : vector<1x128xf32> to vector<8x128xf32>
      %3497 = arith.mulf %3494, %3434 : vector<8x128xf32>
      %3498 = arith.mulf %3496, %3442 : vector<8x128xf32>
      %3499 = arith.subf %3497, %3498 : vector<8x128xf32>
      %3500 = arith.mulf %3496, %3434 : vector<8x128xf32>
      %3501 = arith.mulf %3494, %3442 : vector<8x128xf32>
      %3502 = arith.addf %3500, %3501 : vector<8x128xf32>
      %3503 = vector.extract_strided_slice %3499 {offsets = [5, 0], sizes = [1, 128], strides = [1, 1]} : vector<8x128xf32> to vector<1x128xf32>
      %3504 = vector.extract_strided_slice %3499 {offsets = [6, 0], sizes = [1, 128], strides = [1, 1]} : vector<8x128xf32> to vector<1x128xf32>
      %3505 = vector.extract_strided_slice %3502 {offsets = [5, 0], sizes = [1, 128], strides = [1, 1]} : vector<8x128xf32> to vector<1x128xf32>
      %3506 = vector.extract_strided_slice %3502 {offsets = [6, 0], sizes = [1, 128], strides = [1, 1]} : vector<8x128xf32> to vector<1x128xf32>
      %3507 = arith.mulf %3491, %3503 : vector<1x128xf32>
      %3508 = arith.mulf %3492, %3504 : vector<1x128xf32>
      %3509 = arith.subf %3507, %3508 : vector<1x128xf32>
      %3510 = arith.mulf %3492, %3503 : vector<1x128xf32>
      %3511 = arith.mulf %3491, %3504 : vector<1x128xf32>
      %3512 = arith.addf %3510, %3511 : vector<1x128xf32>
      %3513 = vector.shape_cast %3512 : vector<1x128xf32> to vector<1x128xf32>
      %3514 = vector.broadcast %3513 : vector<1x128xf32> to vector<8x128xf32>
      %3515 = arith.select %3452, %3514, %3499 : vector<8x128xi1>, vector<8x128xf32>
      %3516 = vector.shape_cast %3509 : vector<1x128xf32> to vector<1x128xf32>
      %3517 = vector.broadcast %3516 : vector<1x128xf32> to vector<8x128xf32>
      %3518 = arith.select %3450, %3517, %3515 : vector<8x128xi1>, vector<8x128xf32>
      %3519 = arith.mulf %3491, %3505 : vector<1x128xf32>
      %3520 = arith.mulf %3492, %3506 : vector<1x128xf32>
      %3521 = arith.subf %3519, %3520 : vector<1x128xf32>
      %3522 = arith.mulf %3492, %3505 : vector<1x128xf32>
      %3523 = arith.mulf %3491, %3506 : vector<1x128xf32>
      %3524 = arith.addf %3522, %3523 : vector<1x128xf32>
      %3525 = vector.shape_cast %3524 : vector<1x128xf32> to vector<1x128xf32>
      %3526 = vector.broadcast %3525 : vector<1x128xf32> to vector<8x128xf32>
      %3527 = arith.select %3452, %3526, %3502 : vector<8x128xi1>, vector<8x128xf32>
      %3528 = vector.shape_cast %3521 : vector<1x128xf32> to vector<1x128xf32>
      %3529 = vector.broadcast %3528 : vector<1x128xf32> to vector<8x128xf32>
      %3530 = arith.select %3450, %3529, %3527 : vector<8x128xi1>, vector<8x128xf32>
      %3531 = vector.extract_strided_slice %3499 {offsets = [0, 0], sizes = [1, 128], strides = [1, 1]} : vector<8x128xf32> to vector<1x128xf32>
      %3532 = vector.extract_strided_slice %3502 {offsets = [0, 0], sizes = [1, 128], strides = [1, 1]} : vector<8x128xf32> to vector<1x128xf32>
      %3533 = vector.shape_cast %3532 : vector<1x128xf32> to vector<1x128xf32>
      %3534 = vector.broadcast %3533 : vector<1x128xf32> to vector<8x128xf32>
      %3535 = arith.select %3452, %3534, %3402 : vector<8x128xi1>, vector<8x128xf32>
      %3536 = vector.shape_cast %3531 : vector<1x128xf32> to vector<1x128xf32>
      %3537 = vector.broadcast %3536 : vector<1x128xf32> to vector<8x128xf32>
      %3538 = arith.select %3450, %3537, %3535 : vector<8x128xi1>, vector<8x128xf32>
      %3539 = vector.extract_strided_slice %3499 {offsets = [1, 0], sizes = [1, 128], strides = [1, 1]} : vector<8x128xf32> to vector<1x128xf32>
      %3540 = vector.extract_strided_slice %3502 {offsets = [1, 0], sizes = [1, 128], strides = [1, 1]} : vector<8x128xf32> to vector<1x128xf32>
      %3541 = vector.shape_cast %3540 : vector<1x128xf32> to vector<1x128xf32>
      %3542 = vector.broadcast %3541 : vector<1x128xf32> to vector<8x128xf32>
      %3543 = arith.select %3452, %3542, %3410 : vector<8x128xi1>, vector<8x128xf32>
      %3544 = vector.shape_cast %3539 : vector<1x128xf32> to vector<1x128xf32>
      %3545 = vector.broadcast %3544 : vector<1x128xf32> to vector<8x128xf32>
      %3546 = arith.select %3450, %3545, %3543 : vector<8x128xi1>, vector<8x128xf32>
      %3547 = vector.extract_strided_slice %3499 {offsets = [2, 0], sizes = [1, 128], strides = [1, 1]} : vector<8x128xf32> to vector<1x128xf32>
      %3548 = vector.extract_strided_slice %3502 {offsets = [2, 0], sizes = [1, 128], strides = [1, 1]} : vector<8x128xf32> to vector<1x128xf32>
      %3549 = vector.shape_cast %3548 : vector<1x128xf32> to vector<1x128xf32>
      %3550 = vector.broadcast %3549 : vector<1x128xf32> to vector<8x128xf32>
      %3551 = arith.select %3452, %3550, %3418 : vector<8x128xi1>, vector<8x128xf32>
      %3552 = vector.shape_cast %3547 : vector<1x128xf32> to vector<1x128xf32>
      %3553 = vector.broadcast %3552 : vector<1x128xf32> to vector<8x128xf32>
      %3554 = arith.select %3450, %3553, %3551 : vector<8x128xi1>, vector<8x128xf32>
      %3555 = vector.extract_strided_slice %3499 {offsets = [3, 0], sizes = [1, 128], strides = [1, 1]} : vector<8x128xf32> to vector<1x128xf32>
      %3556 = vector.extract_strided_slice %3502 {offsets = [3, 0], sizes = [1, 128], strides = [1, 1]} : vector<8x128xf32> to vector<1x128xf32>
      %3557 = vector.shape_cast %3556 : vector<1x128xf32> to vector<1x128xf32>
      %3558 = vector.broadcast %3557 : vector<1x128xf32> to vector<8x128xf32>
      %3559 = arith.select %3452, %3558, %3426 : vector<8x128xi1>, vector<8x128xf32>
      %3560 = vector.shape_cast %3555 : vector<1x128xf32> to vector<1x128xf32>
      %3561 = vector.broadcast %3560 : vector<1x128xf32> to vector<8x128xf32>
      %3562 = arith.select %3450, %3561, %3559 : vector<8x128xi1>, vector<8x128xf32>
      %3563 = vector.extract_strided_slice %3499 {offsets = [4, 0], sizes = [1, 128], strides = [1, 1]} : vector<8x128xf32> to vector<1x128xf32>
      %3564 = vector.extract_strided_slice %3502 {offsets = [4, 0], sizes = [1, 128], strides = [1, 1]} : vector<8x128xf32> to vector<1x128xf32>
      %3565 = vector.shape_cast %3564 : vector<1x128xf32> to vector<1x128xf32>
      %3566 = vector.broadcast %3565 : vector<1x128xf32> to vector<8x128xf32>
      %3567 = arith.select %3452, %3566, %3382 : vector<8x128xi1>, vector<8x128xf32>
      %3568 = vector.shape_cast %3563 : vector<1x128xf32> to vector<1x128xf32>
      %3569 = vector.broadcast %3568 : vector<1x128xf32> to vector<8x128xf32>
      %3570 = arith.select %3450, %3569, %3567 : vector<8x128xi1>, vector<8x128xf32>
      %3571 = vector.extract_strided_slice %3499 {offsets = [7, 0], sizes = [1, 128], strides = [1, 1]} : vector<8x128xf32> to vector<1x128xf32>
      %3572 = vector.extract_strided_slice %3502 {offsets = [7, 0], sizes = [1, 128], strides = [1, 1]} : vector<8x128xf32> to vector<1x128xf32>
      %3573 = vector.shape_cast %3572 : vector<1x128xf32> to vector<1x128xf32>
      %3574 = vector.broadcast %3573 : vector<1x128xf32> to vector<8x128xf32>
      %3575 = arith.select %3452, %3574, %3394 : vector<8x128xi1>, vector<8x128xf32>
      %3576 = vector.shape_cast %3571 : vector<1x128xf32> to vector<1x128xf32>
      %3577 = vector.broadcast %3576 : vector<1x128xf32> to vector<8x128xf32>
      %3578 = arith.select %3450, %3577, %3575 : vector<8x128xi1>, vector<8x128xf32>
      %3579 = arith.mulf %3494, %3180 : vector<8x128xf32>
      %3580 = arith.mulf %3496, %3314 : vector<8x128xf32>
      %3581 = arith.subf %3579, %3580 : vector<8x128xf32>
      %3582 = arith.mulf %3496, %3180 : vector<8x128xf32>
      %3583 = arith.mulf %3494, %3314 : vector<8x128xf32>
      %3584 = arith.addf %3582, %3583 : vector<8x128xf32>
      %c7_i32_325 = arith.constant 7 : i32
      %3585 = vector.broadcast %c7_i32_325 : i32 to vector<8x128xi32>
      %3586 = arith.cmpi eq, %0, %3585 : vector<8x128xi32>
      %3587 = vector.extract_strided_slice %3518 {offsets = [5, 0], sizes = [1, 128], strides = [1, 1]} : vector<8x128xf32> to vector<1x128xf32>
      %3588 = vector.extract_strided_slice %3578 {offsets = [7, 0], sizes = [1, 128], strides = [1, 1]} : vector<8x128xf32> to vector<1x128xf32>
      %3589 = vector.extract_strided_slice %3518 {offsets = [7, 0], sizes = [1, 128], strides = [1, 1]} : vector<8x128xf32> to vector<1x128xf32>
      %3590 = math.absf %3589 : vector<1x128xf32>
      %3591 = math.absf %3587 : vector<1x128xf32>
      %3592 = math.absf %3588 : vector<1x128xf32>
      %3593 = arith.addf %3591, %3592 : vector<1x128xf32>
      %cst_326 = arith.constant 9.99999996E-13 : f32
      %3594 = vector.broadcast %cst_326 : f32 to vector<1x128xf32>
      %3595 = arith.mulf %3594, %3593 : vector<1x128xf32>
      %cst_327 = arith.constant 1.000000e-30 : f32
      %3596 = vector.broadcast %cst_327 : f32 to vector<1x128xf32>
      %3597 = arith.addf %3595, %3596 : vector<1x128xf32>
      %3598 = arith.cmpf ogt, %3590, %3597 : vector<1x128xf32>
      %cst_328 = arith.constant 1.000000e+00 : f32
      %3599 = vector.broadcast %cst_328 : f32 to vector<1x128xf32>
      %3600 = arith.select %3598, %3589, %3599 : vector<1x128xi1>, vector<1x128xf32>
      %3601 = arith.subf %3588, %3587 : vector<1x128xf32>
      %3602 = tpu.reciprocal %3600 {approx = true} : vector<1x128xf32> -> vector<1x128xf32>
      %cst_329 = arith.constant 5.000000e-01 : f32
      %3603 = vector.broadcast %cst_329 : f32 to vector<1x128xf32>
      %3604 = arith.mulf %3603, %3602 : vector<1x128xf32>
      %3605 = arith.mulf %3601, %3604 : vector<1x128xf32>
      %3606 = arith.mulf %3605, %3605 : vector<1x128xf32>
      %cst_330 = arith.constant 1.000000e+00 : f32
      %3607 = vector.broadcast %cst_330 : f32 to vector<1x128xf32>
      %3608 = arith.addf %3606, %3607 : vector<1x128xf32>
      %3609 = math.rsqrt %3608 : vector<1x128xf32>
      %cst_331 = arith.constant 0.000000e+00 : f32
      %3610 = vector.broadcast %cst_331 : f32 to vector<1x128xf32>
      %3611 = arith.cmpf oge, %3605, %3610 : vector<1x128xf32>
      %cst_332 = arith.constant 1.000000e+00 : f32
      %cst_333 = arith.constant -1.000000e+00 : f32
      %3612 = vector.broadcast %cst_332 : f32 to vector<1x128xf32>
      %3613 = vector.broadcast %cst_333 : f32 to vector<1x128xf32>
      %3614 = arith.select %3611, %3612, %3613 : vector<1x128xi1>, vector<1x128xf32>
      %3615 = math.absf %3605 : vector<1x128xf32>
      %3616 = arith.mulf %3608, %3609 : vector<1x128xf32>
      %3617 = arith.addf %3615, %3616 : vector<1x128xf32>
      %3618 = tpu.reciprocal %3617 {approx = true} : vector<1x128xf32> -> vector<1x128xf32>
      %3619 = arith.mulf %3614, %3618 : vector<1x128xf32>
      %cst_334 = arith.constant 0.000000e+00 : f32
      %3620 = vector.broadcast %cst_334 : f32 to vector<1x128xf32>
      %3621 = arith.select %3598, %3619, %3620 : vector<1x128xi1>, vector<1x128xf32>
      %3622 = arith.mulf %3621, %3621 : vector<1x128xf32>
      %cst_335 = arith.constant 1.000000e+00 : f32
      %3623 = vector.broadcast %cst_335 : f32 to vector<1x128xf32>
      %3624 = arith.addf %3622, %3623 : vector<1x128xf32>
      %3625 = math.rsqrt %3624 : vector<1x128xf32>
      %3626 = arith.mulf %3621, %3625 : vector<1x128xf32>
      %3627 = vector.shape_cast %3625 : vector<1x128xf32> to vector<1x128xf32>
      %3628 = vector.broadcast %3627 : vector<1x128xf32> to vector<8x128xf32>
      %3629 = vector.shape_cast %3626 : vector<1x128xf32> to vector<1x128xf32>
      %3630 = vector.broadcast %3629 : vector<1x128xf32> to vector<8x128xf32>
      %3631 = arith.mulf %3628, %3518 : vector<8x128xf32>
      %3632 = arith.mulf %3630, %3578 : vector<8x128xf32>
      %3633 = arith.subf %3631, %3632 : vector<8x128xf32>
      %3634 = arith.mulf %3630, %3518 : vector<8x128xf32>
      %3635 = arith.mulf %3628, %3578 : vector<8x128xf32>
      %3636 = arith.addf %3634, %3635 : vector<8x128xf32>
      %3637 = vector.extract_strided_slice %3633 {offsets = [5, 0], sizes = [1, 128], strides = [1, 1]} : vector<8x128xf32> to vector<1x128xf32>
      %3638 = vector.extract_strided_slice %3633 {offsets = [7, 0], sizes = [1, 128], strides = [1, 1]} : vector<8x128xf32> to vector<1x128xf32>
      %3639 = vector.extract_strided_slice %3636 {offsets = [5, 0], sizes = [1, 128], strides = [1, 1]} : vector<8x128xf32> to vector<1x128xf32>
      %3640 = vector.extract_strided_slice %3636 {offsets = [7, 0], sizes = [1, 128], strides = [1, 1]} : vector<8x128xf32> to vector<1x128xf32>
      %3641 = arith.mulf %3625, %3637 : vector<1x128xf32>
      %3642 = arith.mulf %3626, %3638 : vector<1x128xf32>
      %3643 = arith.subf %3641, %3642 : vector<1x128xf32>
      %3644 = arith.mulf %3626, %3637 : vector<1x128xf32>
      %3645 = arith.mulf %3625, %3638 : vector<1x128xf32>
      %3646 = arith.addf %3644, %3645 : vector<1x128xf32>
      %3647 = vector.shape_cast %3646 : vector<1x128xf32> to vector<1x128xf32>
      %3648 = vector.broadcast %3647 : vector<1x128xf32> to vector<8x128xf32>
      %3649 = arith.select %3586, %3648, %3633 : vector<8x128xi1>, vector<8x128xf32>
      %3650 = vector.shape_cast %3643 : vector<1x128xf32> to vector<1x128xf32>
      %3651 = vector.broadcast %3650 : vector<1x128xf32> to vector<8x128xf32>
      %3652 = arith.select %3450, %3651, %3649 : vector<8x128xi1>, vector<8x128xf32>
      %3653 = arith.mulf %3625, %3639 : vector<1x128xf32>
      %3654 = arith.mulf %3626, %3640 : vector<1x128xf32>
      %3655 = arith.subf %3653, %3654 : vector<1x128xf32>
      %3656 = arith.mulf %3626, %3639 : vector<1x128xf32>
      %3657 = arith.mulf %3625, %3640 : vector<1x128xf32>
      %3658 = arith.addf %3656, %3657 : vector<1x128xf32>
      %3659 = vector.shape_cast %3658 : vector<1x128xf32> to vector<1x128xf32>
      %3660 = vector.broadcast %3659 : vector<1x128xf32> to vector<8x128xf32>
      %3661 = arith.select %3586, %3660, %3636 : vector<8x128xi1>, vector<8x128xf32>
      %3662 = vector.shape_cast %3655 : vector<1x128xf32> to vector<1x128xf32>
      %3663 = vector.broadcast %3662 : vector<1x128xf32> to vector<8x128xf32>
      %3664 = arith.select %3450, %3663, %3661 : vector<8x128xi1>, vector<8x128xf32>
      %3665 = vector.extract_strided_slice %3633 {offsets = [0, 0], sizes = [1, 128], strides = [1, 1]} : vector<8x128xf32> to vector<1x128xf32>
      %3666 = vector.extract_strided_slice %3636 {offsets = [0, 0], sizes = [1, 128], strides = [1, 1]} : vector<8x128xf32> to vector<1x128xf32>
      %3667 = vector.shape_cast %3666 : vector<1x128xf32> to vector<1x128xf32>
      %3668 = vector.broadcast %3667 : vector<1x128xf32> to vector<8x128xf32>
      %3669 = arith.select %3586, %3668, %3538 : vector<8x128xi1>, vector<8x128xf32>
      %3670 = vector.shape_cast %3665 : vector<1x128xf32> to vector<1x128xf32>
      %3671 = vector.broadcast %3670 : vector<1x128xf32> to vector<8x128xf32>
      %3672 = arith.select %3450, %3671, %3669 : vector<8x128xi1>, vector<8x128xf32>
      %3673 = vector.extract_strided_slice %3633 {offsets = [1, 0], sizes = [1, 128], strides = [1, 1]} : vector<8x128xf32> to vector<1x128xf32>
      %3674 = vector.extract_strided_slice %3636 {offsets = [1, 0], sizes = [1, 128], strides = [1, 1]} : vector<8x128xf32> to vector<1x128xf32>
      %3675 = vector.shape_cast %3674 : vector<1x128xf32> to vector<1x128xf32>
      %3676 = vector.broadcast %3675 : vector<1x128xf32> to vector<8x128xf32>
      %3677 = arith.select %3586, %3676, %3546 : vector<8x128xi1>, vector<8x128xf32>
      %3678 = vector.shape_cast %3673 : vector<1x128xf32> to vector<1x128xf32>
      %3679 = vector.broadcast %3678 : vector<1x128xf32> to vector<8x128xf32>
      %3680 = arith.select %3450, %3679, %3677 : vector<8x128xi1>, vector<8x128xf32>
      %3681 = vector.extract_strided_slice %3633 {offsets = [2, 0], sizes = [1, 128], strides = [1, 1]} : vector<8x128xf32> to vector<1x128xf32>
      %3682 = vector.extract_strided_slice %3636 {offsets = [2, 0], sizes = [1, 128], strides = [1, 1]} : vector<8x128xf32> to vector<1x128xf32>
      %3683 = vector.shape_cast %3682 : vector<1x128xf32> to vector<1x128xf32>
      %3684 = vector.broadcast %3683 : vector<1x128xf32> to vector<8x128xf32>
      %3685 = arith.select %3586, %3684, %3554 : vector<8x128xi1>, vector<8x128xf32>
      %3686 = vector.shape_cast %3681 : vector<1x128xf32> to vector<1x128xf32>
      %3687 = vector.broadcast %3686 : vector<1x128xf32> to vector<8x128xf32>
      %3688 = arith.select %3450, %3687, %3685 : vector<8x128xi1>, vector<8x128xf32>
      %3689 = vector.extract_strided_slice %3633 {offsets = [3, 0], sizes = [1, 128], strides = [1, 1]} : vector<8x128xf32> to vector<1x128xf32>
      %3690 = vector.extract_strided_slice %3636 {offsets = [3, 0], sizes = [1, 128], strides = [1, 1]} : vector<8x128xf32> to vector<1x128xf32>
      %3691 = vector.shape_cast %3690 : vector<1x128xf32> to vector<1x128xf32>
      %3692 = vector.broadcast %3691 : vector<1x128xf32> to vector<8x128xf32>
      %3693 = arith.select %3586, %3692, %3562 : vector<8x128xi1>, vector<8x128xf32>
      %3694 = vector.shape_cast %3689 : vector<1x128xf32> to vector<1x128xf32>
      %3695 = vector.broadcast %3694 : vector<1x128xf32> to vector<8x128xf32>
      %3696 = arith.select %3450, %3695, %3693 : vector<8x128xi1>, vector<8x128xf32>
      %3697 = vector.extract_strided_slice %3633 {offsets = [4, 0], sizes = [1, 128], strides = [1, 1]} : vector<8x128xf32> to vector<1x128xf32>
      %3698 = vector.extract_strided_slice %3636 {offsets = [4, 0], sizes = [1, 128], strides = [1, 1]} : vector<8x128xf32> to vector<1x128xf32>
      %3699 = vector.shape_cast %3698 : vector<1x128xf32> to vector<1x128xf32>
      %3700 = vector.broadcast %3699 : vector<1x128xf32> to vector<8x128xf32>
      %3701 = arith.select %3586, %3700, %3570 : vector<8x128xi1>, vector<8x128xf32>
      %3702 = vector.shape_cast %3697 : vector<1x128xf32> to vector<1x128xf32>
      %3703 = vector.broadcast %3702 : vector<1x128xf32> to vector<8x128xf32>
      %3704 = arith.select %3450, %3703, %3701 : vector<8x128xi1>, vector<8x128xf32>
      %3705 = vector.extract_strided_slice %3633 {offsets = [6, 0], sizes = [1, 128], strides = [1, 1]} : vector<8x128xf32> to vector<1x128xf32>
      %3706 = vector.extract_strided_slice %3636 {offsets = [6, 0], sizes = [1, 128], strides = [1, 1]} : vector<8x128xf32> to vector<1x128xf32>
      %3707 = vector.shape_cast %3706 : vector<1x128xf32> to vector<1x128xf32>
      %3708 = vector.broadcast %3707 : vector<1x128xf32> to vector<8x128xf32>
      %3709 = arith.select %3586, %3708, %3530 : vector<8x128xi1>, vector<8x128xf32>
      %3710 = vector.shape_cast %3705 : vector<1x128xf32> to vector<1x128xf32>
      %3711 = vector.broadcast %3710 : vector<1x128xf32> to vector<8x128xf32>
      %3712 = arith.select %3450, %3711, %3709 : vector<8x128xi1>, vector<8x128xf32>
      %3713 = arith.mulf %3628, %3581 : vector<8x128xf32>
      %3714 = arith.mulf %3630, %3448 : vector<8x128xf32>
      %3715 = arith.subf %3713, %3714 : vector<8x128xf32>
      %3716 = arith.mulf %3630, %3581 : vector<8x128xf32>
      %3717 = arith.mulf %3628, %3448 : vector<8x128xf32>
      %3718 = arith.addf %3716, %3717 : vector<8x128xf32>
      %c6_i32_336 = arith.constant 6 : i32
      %3719 = vector.broadcast %c6_i32_336 : i32 to vector<8x128xi32>
      %3720 = arith.cmpi eq, %0, %3719 : vector<8x128xi32>
      %c7_i32_337 = arith.constant 7 : i32
      %3721 = vector.broadcast %c7_i32_337 : i32 to vector<8x128xi32>
      %3722 = arith.cmpi eq, %0, %3721 : vector<8x128xi32>
      %3723 = vector.extract_strided_slice %3712 {offsets = [6, 0], sizes = [1, 128], strides = [1, 1]} : vector<8x128xf32> to vector<1x128xf32>
      %3724 = vector.extract_strided_slice %3664 {offsets = [7, 0], sizes = [1, 128], strides = [1, 1]} : vector<8x128xf32> to vector<1x128xf32>
      %3725 = vector.extract_strided_slice %3712 {offsets = [7, 0], sizes = [1, 128], strides = [1, 1]} : vector<8x128xf32> to vector<1x128xf32>
      %3726 = math.absf %3725 : vector<1x128xf32>
      %3727 = math.absf %3723 : vector<1x128xf32>
      %3728 = math.absf %3724 : vector<1x128xf32>
      %3729 = arith.addf %3727, %3728 : vector<1x128xf32>
      %cst_338 = arith.constant 9.99999996E-13 : f32
      %3730 = vector.broadcast %cst_338 : f32 to vector<1x128xf32>
      %3731 = arith.mulf %3730, %3729 : vector<1x128xf32>
      %cst_339 = arith.constant 1.000000e-30 : f32
      %3732 = vector.broadcast %cst_339 : f32 to vector<1x128xf32>
      %3733 = arith.addf %3731, %3732 : vector<1x128xf32>
      %3734 = arith.cmpf ogt, %3726, %3733 : vector<1x128xf32>
      %cst_340 = arith.constant 1.000000e+00 : f32
      %3735 = vector.broadcast %cst_340 : f32 to vector<1x128xf32>
      %3736 = arith.select %3734, %3725, %3735 : vector<1x128xi1>, vector<1x128xf32>
      %3737 = arith.subf %3724, %3723 : vector<1x128xf32>
      %3738 = tpu.reciprocal %3736 {approx = true} : vector<1x128xf32> -> vector<1x128xf32>
      %cst_341 = arith.constant 5.000000e-01 : f32
      %3739 = vector.broadcast %cst_341 : f32 to vector<1x128xf32>
      %3740 = arith.mulf %3739, %3738 : vector<1x128xf32>
      %3741 = arith.mulf %3737, %3740 : vector<1x128xf32>
      %3742 = arith.mulf %3741, %3741 : vector<1x128xf32>
      %cst_342 = arith.constant 1.000000e+00 : f32
      %3743 = vector.broadcast %cst_342 : f32 to vector<1x128xf32>
      %3744 = arith.addf %3742, %3743 : vector<1x128xf32>
      %3745 = math.rsqrt %3744 : vector<1x128xf32>
      %cst_343 = arith.constant 0.000000e+00 : f32
      %3746 = vector.broadcast %cst_343 : f32 to vector<1x128xf32>
      %3747 = arith.cmpf oge, %3741, %3746 : vector<1x128xf32>
      %cst_344 = arith.constant 1.000000e+00 : f32
      %cst_345 = arith.constant -1.000000e+00 : f32
      %3748 = vector.broadcast %cst_344 : f32 to vector<1x128xf32>
      %3749 = vector.broadcast %cst_345 : f32 to vector<1x128xf32>
      %3750 = arith.select %3747, %3748, %3749 : vector<1x128xi1>, vector<1x128xf32>
      %3751 = math.absf %3741 : vector<1x128xf32>
      %3752 = arith.mulf %3744, %3745 : vector<1x128xf32>
      %3753 = arith.addf %3751, %3752 : vector<1x128xf32>
      %3754 = tpu.reciprocal %3753 {approx = true} : vector<1x128xf32> -> vector<1x128xf32>
      %3755 = arith.mulf %3750, %3754 : vector<1x128xf32>
      %cst_346 = arith.constant 0.000000e+00 : f32
      %3756 = vector.broadcast %cst_346 : f32 to vector<1x128xf32>
      %3757 = arith.select %3734, %3755, %3756 : vector<1x128xi1>, vector<1x128xf32>
      %3758 = arith.mulf %3757, %3757 : vector<1x128xf32>
      %cst_347 = arith.constant 1.000000e+00 : f32
      %3759 = vector.broadcast %cst_347 : f32 to vector<1x128xf32>
      %3760 = arith.addf %3758, %3759 : vector<1x128xf32>
      %3761 = math.rsqrt %3760 : vector<1x128xf32>
      %3762 = arith.mulf %3757, %3761 : vector<1x128xf32>
      %3763 = vector.shape_cast %3761 : vector<1x128xf32> to vector<1x128xf32>
      %3764 = vector.broadcast %3763 : vector<1x128xf32> to vector<8x128xf32>
      %3765 = vector.shape_cast %3762 : vector<1x128xf32> to vector<1x128xf32>
      %3766 = vector.broadcast %3765 : vector<1x128xf32> to vector<8x128xf32>
      %3767 = arith.mulf %3764, %3712 : vector<8x128xf32>
      %3768 = arith.mulf %3766, %3664 : vector<8x128xf32>
      %3769 = arith.subf %3767, %3768 : vector<8x128xf32>
      %3770 = arith.mulf %3766, %3712 : vector<8x128xf32>
      %3771 = arith.mulf %3764, %3664 : vector<8x128xf32>
      %3772 = arith.addf %3770, %3771 : vector<8x128xf32>
      %3773 = vector.extract_strided_slice %3769 {offsets = [6, 0], sizes = [1, 128], strides = [1, 1]} : vector<8x128xf32> to vector<1x128xf32>
      %3774 = vector.extract_strided_slice %3769 {offsets = [7, 0], sizes = [1, 128], strides = [1, 1]} : vector<8x128xf32> to vector<1x128xf32>
      %3775 = vector.extract_strided_slice %3772 {offsets = [6, 0], sizes = [1, 128], strides = [1, 1]} : vector<8x128xf32> to vector<1x128xf32>
      %3776 = vector.extract_strided_slice %3772 {offsets = [7, 0], sizes = [1, 128], strides = [1, 1]} : vector<8x128xf32> to vector<1x128xf32>
      %3777 = arith.mulf %3761, %3773 : vector<1x128xf32>
      %3778 = arith.mulf %3762, %3774 : vector<1x128xf32>
      %3779 = arith.subf %3777, %3778 : vector<1x128xf32>
      %3780 = arith.mulf %3762, %3773 : vector<1x128xf32>
      %3781 = arith.mulf %3761, %3774 : vector<1x128xf32>
      %3782 = arith.addf %3780, %3781 : vector<1x128xf32>
      %3783 = vector.shape_cast %3782 : vector<1x128xf32> to vector<1x128xf32>
      %3784 = vector.broadcast %3783 : vector<1x128xf32> to vector<8x128xf32>
      %3785 = arith.select %3722, %3784, %3769 : vector<8x128xi1>, vector<8x128xf32>
      %3786 = vector.shape_cast %3779 : vector<1x128xf32> to vector<1x128xf32>
      %3787 = vector.broadcast %3786 : vector<1x128xf32> to vector<8x128xf32>
      %3788 = arith.select %3720, %3787, %3785 : vector<8x128xi1>, vector<8x128xf32>
      %3789 = arith.mulf %3761, %3775 : vector<1x128xf32>
      %3790 = arith.mulf %3762, %3776 : vector<1x128xf32>
      %3791 = arith.subf %3789, %3790 : vector<1x128xf32>
      %3792 = arith.mulf %3762, %3775 : vector<1x128xf32>
      %3793 = arith.mulf %3761, %3776 : vector<1x128xf32>
      %3794 = arith.addf %3792, %3793 : vector<1x128xf32>
      %3795 = vector.shape_cast %3794 : vector<1x128xf32> to vector<1x128xf32>
      %3796 = vector.broadcast %3795 : vector<1x128xf32> to vector<8x128xf32>
      %3797 = arith.select %3722, %3796, %3772 : vector<8x128xi1>, vector<8x128xf32>
      %3798 = vector.shape_cast %3791 : vector<1x128xf32> to vector<1x128xf32>
      %3799 = vector.broadcast %3798 : vector<1x128xf32> to vector<8x128xf32>
      %3800 = arith.select %3720, %3799, %3797 : vector<8x128xi1>, vector<8x128xf32>
      %3801 = vector.extract_strided_slice %3769 {offsets = [0, 0], sizes = [1, 128], strides = [1, 1]} : vector<8x128xf32> to vector<1x128xf32>
      %3802 = vector.extract_strided_slice %3772 {offsets = [0, 0], sizes = [1, 128], strides = [1, 1]} : vector<8x128xf32> to vector<1x128xf32>
      %3803 = vector.shape_cast %3802 : vector<1x128xf32> to vector<1x128xf32>
      %3804 = vector.broadcast %3803 : vector<1x128xf32> to vector<8x128xf32>
      %3805 = arith.select %3722, %3804, %3672 : vector<8x128xi1>, vector<8x128xf32>
      %3806 = vector.shape_cast %3801 : vector<1x128xf32> to vector<1x128xf32>
      %3807 = vector.broadcast %3806 : vector<1x128xf32> to vector<8x128xf32>
      %3808 = arith.select %3720, %3807, %3805 : vector<8x128xi1>, vector<8x128xf32>
      %3809 = vector.extract_strided_slice %3769 {offsets = [1, 0], sizes = [1, 128], strides = [1, 1]} : vector<8x128xf32> to vector<1x128xf32>
      %3810 = vector.extract_strided_slice %3772 {offsets = [1, 0], sizes = [1, 128], strides = [1, 1]} : vector<8x128xf32> to vector<1x128xf32>
      %3811 = vector.shape_cast %3810 : vector<1x128xf32> to vector<1x128xf32>
      %3812 = vector.broadcast %3811 : vector<1x128xf32> to vector<8x128xf32>
      %3813 = arith.select %3722, %3812, %3680 : vector<8x128xi1>, vector<8x128xf32>
      %3814 = vector.shape_cast %3809 : vector<1x128xf32> to vector<1x128xf32>
      %3815 = vector.broadcast %3814 : vector<1x128xf32> to vector<8x128xf32>
      %3816 = arith.select %3720, %3815, %3813 : vector<8x128xi1>, vector<8x128xf32>
      %3817 = vector.extract_strided_slice %3769 {offsets = [2, 0], sizes = [1, 128], strides = [1, 1]} : vector<8x128xf32> to vector<1x128xf32>
      %3818 = vector.extract_strided_slice %3772 {offsets = [2, 0], sizes = [1, 128], strides = [1, 1]} : vector<8x128xf32> to vector<1x128xf32>
      %3819 = vector.shape_cast %3818 : vector<1x128xf32> to vector<1x128xf32>
      %3820 = vector.broadcast %3819 : vector<1x128xf32> to vector<8x128xf32>
      %3821 = arith.select %3722, %3820, %3688 : vector<8x128xi1>, vector<8x128xf32>
      %3822 = vector.shape_cast %3817 : vector<1x128xf32> to vector<1x128xf32>
      %3823 = vector.broadcast %3822 : vector<1x128xf32> to vector<8x128xf32>
      %3824 = arith.select %3720, %3823, %3821 : vector<8x128xi1>, vector<8x128xf32>
      %3825 = vector.extract_strided_slice %3769 {offsets = [3, 0], sizes = [1, 128], strides = [1, 1]} : vector<8x128xf32> to vector<1x128xf32>
      %3826 = vector.extract_strided_slice %3772 {offsets = [3, 0], sizes = [1, 128], strides = [1, 1]} : vector<8x128xf32> to vector<1x128xf32>
      %3827 = vector.shape_cast %3826 : vector<1x128xf32> to vector<1x128xf32>
      %3828 = vector.broadcast %3827 : vector<1x128xf32> to vector<8x128xf32>
      %3829 = arith.select %3722, %3828, %3696 : vector<8x128xi1>, vector<8x128xf32>
      %3830 = vector.shape_cast %3825 : vector<1x128xf32> to vector<1x128xf32>
      %3831 = vector.broadcast %3830 : vector<1x128xf32> to vector<8x128xf32>
      %3832 = arith.select %3720, %3831, %3829 : vector<8x128xi1>, vector<8x128xf32>
      %3833 = vector.extract_strided_slice %3769 {offsets = [4, 0], sizes = [1, 128], strides = [1, 1]} : vector<8x128xf32> to vector<1x128xf32>
      %3834 = vector.extract_strided_slice %3772 {offsets = [4, 0], sizes = [1, 128], strides = [1, 1]} : vector<8x128xf32> to vector<1x128xf32>
      %3835 = vector.shape_cast %3834 : vector<1x128xf32> to vector<1x128xf32>
      %3836 = vector.broadcast %3835 : vector<1x128xf32> to vector<8x128xf32>
      %3837 = arith.select %3722, %3836, %3704 : vector<8x128xi1>, vector<8x128xf32>
      %3838 = vector.shape_cast %3833 : vector<1x128xf32> to vector<1x128xf32>
      %3839 = vector.broadcast %3838 : vector<1x128xf32> to vector<8x128xf32>
      %3840 = arith.select %3720, %3839, %3837 : vector<8x128xi1>, vector<8x128xf32>
      %3841 = vector.extract_strided_slice %3769 {offsets = [5, 0], sizes = [1, 128], strides = [1, 1]} : vector<8x128xf32> to vector<1x128xf32>
      %3842 = vector.extract_strided_slice %3772 {offsets = [5, 0], sizes = [1, 128], strides = [1, 1]} : vector<8x128xf32> to vector<1x128xf32>
      %3843 = vector.shape_cast %3842 : vector<1x128xf32> to vector<1x128xf32>
      %3844 = vector.broadcast %3843 : vector<1x128xf32> to vector<8x128xf32>
      %3845 = arith.select %3722, %3844, %3652 : vector<8x128xi1>, vector<8x128xf32>
      %3846 = vector.shape_cast %3841 : vector<1x128xf32> to vector<1x128xf32>
      %3847 = vector.broadcast %3846 : vector<1x128xf32> to vector<8x128xf32>
      %3848 = arith.select %3720, %3847, %3845 : vector<8x128xi1>, vector<8x128xf32>
      %3849 = arith.mulf %3764, %3584 : vector<8x128xf32>
      %3850 = arith.mulf %3766, %3718 : vector<8x128xf32>
      %3851 = arith.subf %3849, %3850 : vector<8x128xf32>
      %3852 = arith.mulf %3766, %3584 : vector<8x128xf32>
      %3853 = arith.mulf %3764, %3718 : vector<8x128xf32>
      %3854 = arith.addf %3852, %3853 : vector<8x128xf32>
      scf.yield %3808, %3816, %3824, %3832, %3840, %3848, %3788, %3800, %1025, %1831, %2503, %3041, %3445, %3715, %3851, %3854 : vector<8x128xf32>, vector<8x128xf32>, vector<8x128xf32>, vector<8x128xf32>, vector<8x128xf32>, vector<8x128xf32>, vector<8x128xf32>, vector<8x128xf32>, vector<8x128xf32>, vector<8x128xf32>, vector<8x128xf32>, vector<8x128xf32>, vector<8x128xf32>, vector<8x128xf32>, vector<8x128xf32>, vector<8x128xf32>
    }
    %53 = vector.extract_strided_slice %52#0 {offsets = [0, 0], sizes = [1, 128], strides = [1, 1]} : vector<8x128xf32> to vector<1x128xf32>
    %54 = vector.extract_strided_slice %52#1 {offsets = [1, 0], sizes = [1, 128], strides = [1, 1]} : vector<8x128xf32> to vector<1x128xf32>
    %55 = vector.extract_strided_slice %52#2 {offsets = [2, 0], sizes = [1, 128], strides = [1, 1]} : vector<8x128xf32> to vector<1x128xf32>
    %56 = vector.extract_strided_slice %52#3 {offsets = [3, 0], sizes = [1, 128], strides = [1, 1]} : vector<8x128xf32> to vector<1x128xf32>
    %57 = vector.extract_strided_slice %52#4 {offsets = [4, 0], sizes = [1, 128], strides = [1, 1]} : vector<8x128xf32> to vector<1x128xf32>
    %58 = vector.extract_strided_slice %52#5 {offsets = [5, 0], sizes = [1, 128], strides = [1, 1]} : vector<8x128xf32> to vector<1x128xf32>
    %59 = vector.extract_strided_slice %52#6 {offsets = [6, 0], sizes = [1, 128], strides = [1, 1]} : vector<8x128xf32> to vector<1x128xf32>
    %60 = vector.extract_strided_slice %52#7 {offsets = [7, 0], sizes = [1, 128], strides = [1, 1]} : vector<8x128xf32> to vector<1x128xf32>
    %61 = tpu.concatenate %53, %54, %55, %56, %57, %58, %59, %60 in 0 : vector<1x128xf32>, vector<1x128xf32>, vector<1x128xf32>, vector<1x128xf32>, vector<1x128xf32>, vector<1x128xf32>, vector<1x128xf32>, vector<1x128xf32> -> vector<8x128xf32>
    %c0_6 = arith.constant 0 : index
    %c0_7 = arith.constant 0 : index
    %c0_8 = arith.constant 0 : index
    %62 = vector.load %arg2[%c0_6, %c0_7, %c0_8] : memref<1x8x128xf32, #tpu.memory_space<vmem>>, vector<1x8x128xf32>
    %63 = vector.shape_cast %62 : vector<1x8x128xf32> to vector<8x128xf32>
    %64 = vector.shape_cast %61 : vector<8x128xf32> to vector<1x8x128xf32>
    tpu.vector_store %arg2[%c0_6, %c0_7, %c0_8], %64 {strides = array<i32>} : memref<1x8x128xf32, #tpu.memory_space<vmem>>, vector<1x8x128xf32>,
    %c0_9 = arith.constant 0 : index
    %c0_10 = arith.constant 0 : index
    %c0_11 = arith.constant 0 : index
    %c0_12 = arith.constant 0 : index
    %65 = vector.load %arg3[%c0_9, %c0_10, %c0_11, %c0_12] : memref<1x8x8x128xf32, #tpu.memory_space<vmem>>, vector<1x1x8x128xf32>
    %66 = vector.shape_cast %65 : vector<1x1x8x128xf32> to vector<8x128xf32>
    %67 = vector.shape_cast %52#8 : vector<8x128xf32> to vector<1x1x8x128xf32>
    tpu.vector_store %arg3[%c0_9, %c0_10, %c0_11, %c0_12], %67 {strides = array<i32>} : memref<1x8x8x128xf32, #tpu.memory_space<vmem>>, vector<1x1x8x128xf32>,
    %c0_13 = arith.constant 0 : index
    %c1 = arith.constant 1 : index
    %c0_14 = arith.constant 0 : index
    %c0_15 = arith.constant 0 : index
    %68 = vector.load %arg3[%c0_13, %c1, %c0_14, %c0_15] : memref<1x8x8x128xf32, #tpu.memory_space<vmem>>, vector<1x1x8x128xf32>
    %69 = vector.shape_cast %68 : vector<1x1x8x128xf32> to vector<8x128xf32>
    %70 = vector.shape_cast %52#9 : vector<8x128xf32> to vector<1x1x8x128xf32>
    tpu.vector_store %arg3[%c0_13, %c1, %c0_14, %c0_15], %70 {strides = array<i32>} : memref<1x8x8x128xf32, #tpu.memory_space<vmem>>, vector<1x1x8x128xf32>,
    %c0_16 = arith.constant 0 : index
    %c2 = arith.constant 2 : index
    %c0_17 = arith.constant 0 : index
    %c0_18 = arith.constant 0 : index
    %71 = vector.load %arg3[%c0_16, %c2, %c0_17, %c0_18] : memref<1x8x8x128xf32, #tpu.memory_space<vmem>>, vector<1x1x8x128xf32>
    %72 = vector.shape_cast %71 : vector<1x1x8x128xf32> to vector<8x128xf32>
    %73 = vector.shape_cast %52#10 : vector<8x128xf32> to vector<1x1x8x128xf32>
    tpu.vector_store %arg3[%c0_16, %c2, %c0_17, %c0_18], %73 {strides = array<i32>} : memref<1x8x8x128xf32, #tpu.memory_space<vmem>>, vector<1x1x8x128xf32>,
    %c0_19 = arith.constant 0 : index
    %c3 = arith.constant 3 : index
    %c0_20 = arith.constant 0 : index
    %c0_21 = arith.constant 0 : index
    %74 = vector.load %arg3[%c0_19, %c3, %c0_20, %c0_21] : memref<1x8x8x128xf32, #tpu.memory_space<vmem>>, vector<1x1x8x128xf32>
    %75 = vector.shape_cast %74 : vector<1x1x8x128xf32> to vector<8x128xf32>
    %76 = vector.shape_cast %52#11 : vector<8x128xf32> to vector<1x1x8x128xf32>
    tpu.vector_store %arg3[%c0_19, %c3, %c0_20, %c0_21], %76 {strides = array<i32>} : memref<1x8x8x128xf32, #tpu.memory_space<vmem>>, vector<1x1x8x128xf32>,
    %c0_22 = arith.constant 0 : index
    %c4 = arith.constant 4 : index
    %c0_23 = arith.constant 0 : index
    %c0_24 = arith.constant 0 : index
    %77 = vector.load %arg3[%c0_22, %c4, %c0_23, %c0_24] : memref<1x8x8x128xf32, #tpu.memory_space<vmem>>, vector<1x1x8x128xf32>
    %78 = vector.shape_cast %77 : vector<1x1x8x128xf32> to vector<8x128xf32>
    %79 = vector.shape_cast %52#12 : vector<8x128xf32> to vector<1x1x8x128xf32>
    tpu.vector_store %arg3[%c0_22, %c4, %c0_23, %c0_24], %79 {strides = array<i32>} : memref<1x8x8x128xf32, #tpu.memory_space<vmem>>, vector<1x1x8x128xf32>,
    %c0_25 = arith.constant 0 : index
    %c5 = arith.constant 5 : index
    %c0_26 = arith.constant 0 : index
    %c0_27 = arith.constant 0 : index
    %80 = vector.load %arg3[%c0_25, %c5, %c0_26, %c0_27] : memref<1x8x8x128xf32, #tpu.memory_space<vmem>>, vector<1x1x8x128xf32>
    %81 = vector.shape_cast %80 : vector<1x1x8x128xf32> to vector<8x128xf32>
    %82 = vector.shape_cast %52#13 : vector<8x128xf32> to vector<1x1x8x128xf32>
    tpu.vector_store %arg3[%c0_25, %c5, %c0_26, %c0_27], %82 {strides = array<i32>} : memref<1x8x8x128xf32, #tpu.memory_space<vmem>>, vector<1x1x8x128xf32>,
    %c0_28 = arith.constant 0 : index
    %c6 = arith.constant 6 : index
    %c0_29 = arith.constant 0 : index
    %c0_30 = arith.constant 0 : index
    %83 = vector.load %arg3[%c0_28, %c6, %c0_29, %c0_30] : memref<1x8x8x128xf32, #tpu.memory_space<vmem>>, vector<1x1x8x128xf32>
    %84 = vector.shape_cast %83 : vector<1x1x8x128xf32> to vector<8x128xf32>
    %85 = vector.shape_cast %52#14 : vector<8x128xf32> to vector<1x1x8x128xf32>
    tpu.vector_store %arg3[%c0_28, %c6, %c0_29, %c0_30], %85 {strides = array<i32>} : memref<1x8x8x128xf32, #tpu.memory_space<vmem>>, vector<1x1x8x128xf32>,
    %c0_31 = arith.constant 0 : index
    %c7 = arith.constant 7 : index
    %c0_32 = arith.constant 0 : index
    %c0_33 = arith.constant 0 : index
    %86 = vector.load %arg3[%c0_31, %c7, %c0_32, %c0_33] : memref<1x8x8x128xf32, #tpu.memory_space<vmem>>, vector<1x1x8x128xf32>
    %87 = vector.shape_cast %86 : vector<1x1x8x128xf32> to vector<8x128xf32>
    %88 = vector.shape_cast %52#15 : vector<8x128xf32> to vector<1x1x8x128xf32>
    tpu.vector_store %arg3[%c0_31, %c7, %c0_32, %c0_33], %88 {strides = array<i32>} : memref<1x8x8x128xf32, #tpu.memory_space<vmem>>, vector<1x1x8x128xf32>,
    return
  }
  func.func @transform_0(%arg0: i32) -> (i32, i32, i32, i32) {
    %c0_i32 = arith.constant 0 : i32
    %c0_i32_0 = arith.constant 0 : i32
    %c0_i32_1 = arith.constant 0 : i32
    %c0_i32_2 = arith.constant 0 : i32
    return %arg0, %c0_i32, %c0_i32_0, %c0_i32_1 : i32, i32, i32, i32
  }
  func.func @transform_1(%arg0: i32) -> (i32, i32, i32) {
    %c0_i32 = arith.constant 0 : i32
    %c0_i32_0 = arith.constant 0 : i32
    %c0_i32_1 = arith.constant 0 : i32
    return %arg0, %c0_i32, %c0_i32_0 : i32, i32, i32
  }
  func.func @transform_2(%arg0: i32) -> (i32, i32, i32, i32) {
    %c0_i32 = arith.constant 0 : i32
    %c0_i32_0 = arith.constant 0 : i32
    %c0_i32_1 = arith.constant 0 : i32
    %c0_i32_2 = arith.constant 0 : i32
    return %arg0, %c0_i32, %c0_i32_0, %c0_i32_1 : i32, i32, i32, i32
  }
}

</mosaic_0001>

<llo_original>
// kernel: eig_layer.1
$region0: #{eig_layer.1}
  #allocation0 [shape = 'u32[]', space=smem, size = 0x4, offset = 0x4, fixed_abs, tag = 'smem constant byte address 0x4 - core index']
  #allocation1 [shape = 'u32[144,128]{1,0:T(1,128)}', space=vmem, size = 0x12000, scoped, tag = 'internal scratch']
  %s0 = inlined_call_operand.vmem [shape: f32[1,8,8,128], index: 0, kind: input, shape index: {}]
  %s1 = inlined_call_operand.vmem [shape: f32[1,8,128], index: 1, kind: output, shape index: {0}]
  %s2 = inlined_call_operand.vmem [shape: f32[1,8,8,128], index: 2, kind: output, shape index: {1}]
  %3 = xla_tuple %s1, %s2
  %s4 = sld [smem:[#allocation0]]
  $region29: #{eig_layer.1} parent=0
    _
  %s6 = ssub.s32 1, %s4
  %s7 = scalar_select 0, %s6, %s4
  // Predicated region
  $region2: #{eig_layer.1} parent=0 // pred_check
    _
  $region3: #{eig_layer.1} parent=0 // pred_check_branch
    %9 = sbr.rel (0) target = $region5
  $region4: #{eig_layer.1} parent=0 // pred_region
    _
  $region5: #{eig_layer.1} parent=0 // pred_fallthru
    _
  %v10 = vlaneseq
  %v11 = vshrl.u32 %v10, 7
  %v12 = vld [vmem:[%s0] sm:$0xff]
  %v13 = vld [vmem:[%s0 + $0x8] sm:$0xff]
  %v14 = vld [vmem:[%s0 + $0x10] sm:$0xff]
  %v15 = vld [vmem:[%s0 + $0x18] sm:$0xff]
  %v16 = vld [vmem:[%s0 + $0x20] sm:$0xff]
  %v17 = vld [vmem:[%s0 + $0x28] sm:$0xff]
  %v18 = vld [vmem:[%s0 + $0x30] sm:$0xff]
  %v19 = vld [vmem:[%s0 + $0x38] sm:$0xff]
  %vm20 = vcmp.eq.s32.totalorder %v11, 0
  %v21 = vsel %vm20, 1, 0
  %v22 = vcvt.s32.f32 %v21
  %vm23 = vcmp.eq.s32.totalorder %v11, 1
  %v24 = vsel %vm23, 1, 0
  %v25 = vcvt.s32.f32 %v24
  %vm26 = vcmp.eq.s32.totalorder %v11, 2
  %v27 = vsel %vm26, 1, 0
  %v28 = vcvt.s32.f32 %v27
  %vm29 = vcmp.eq.s32.totalorder %v11, 3
  %v30 = vsel %vm29, 1, 0
  %v31 = vcvt.s32.f32 %v30
  %vm32 = vcmp.eq.s32.totalorder %v11, 4
  %v33 = vsel %vm32, 1, 0
  %v34 = vcvt.s32.f32 %v33
  %vm35 = vcmp.eq.s32.totalorder %v11, 5
  %v36 = vsel %vm35, 1, 0
  %v37 = vcvt.s32.f32 %v36
  %vm38 = vcmp.eq.s32.totalorder %v11, 6
  %v39 = vsel %vm38, 1, 0
  %v40 = vcvt.s32.f32 %v39
  %vm41 = vcmp.eq.s32.totalorder %v11, 7
  %v42 = vsel %vm41, 1, 0
  %v43 = vcvt.s32.f32 %v42
  loop: start=0, step=1, limit=6
  $region6: #{eig_layer.1} parent=0 // loop_pre_header
    _
  $region7: #{eig_layer.1} parent=0 // loop_header
    %s45 = sphi 0, %s49
    %p46 = scmp.ge.s32.totalorder %s45, 6
    %v50 = vphi %v12, %v4293
    %v51 = vphi %v13, %v4303
    %v52 = vphi %v14, %v4313
    %v53 = vphi %v15, %v4323
    %v54 = vphi %v16, %v4333
    %v55 = vphi %v17, %v4343
    %v56 = vphi %v18, %v4264
    %v57 = vphi %v19, %v4283
    %v58 = vphi %v22, %v1133
    %v59 = vphi %v25, %v2051
    %v60 = vphi %v28, %v2816
    %v61 = vphi %v31, %v3428
    %v62 = vphi %v34, %v3887
    %v63 = vphi %v37, %v4193
    %v64 = vphi %v40, %v4346
    %v65 = vphi %v43, %v4349
  $region8: #{eig_layer.1} parent=0 // loop_header_branch
    %48 = sbr.rel (%p46) target = $region12
  $region9: #{eig_layer.1} parent=0 // loop_body
    %v66 = vand.u32 2147483647, %v50
    %v67 = vand.u32 2147483647, %v51
    %v69 = vrot.slane %v67, 1
    %v71 = vadd.f32 %v66, %v69
    %v72 = vmul.f32 %v71, 1e-12
    %v73 = vadd.f32 %v72, 1e-30
    %v75 = vrot.slane %v73, 7
    %vm77 = vcmp.gt.f32.partialorder %v66, %v75
    %v78 = vsel %vm77, %v50, 1.0
    %v80 = vrot.slane %v50, 7
    %v82 = vsub.f32 %v51, %v80
    %v83 = vrcp.pop %v78
    %v84 = vmul.f32 %v83, 0.5
    %v85 = vmul.f32 %v82, %v84
    %v86 = vmul.f32 %v85, %v85
    %v87 = vadd.f32 %v86, 1.0
    %v88 = vrsqrt.pop %v87
    %vm89 = vcmp.ge.f32.partialorder %v85, 0.0
    %v90 = vsel %vm89, 1.0, -1.0
    %v91 = vand.u32 2147483647, %v85
    %v92 = vmul.f32 %v87, %v88
    %v93 = vadd.f32 %v91, %v92
    %v94 = vrcp.pop %v93
    %v95 = vmul.f32 %v90, %v94
    %v96 = vsel %vm77, %v95, 0.0
    %v97 = vmul.f32 %v96, %v96
    %v98 = vadd.f32 %v97, 1.0
    %v99 = vrsqrt.pop %v98
    %v100 = vmul.f32 %v96, %v99
    %v101 = vlaneseq
    %v102 = vshrl.u32 %v101, 7
    %v103 = vsub.s32 1, %v102
    %v104 = vrot.slane %v99, %v103
    %v105 = vlaneseq
    %v106 = vshrl.u32 %v105, 7
    %v107 = vsub.s32 1, %v106
    %v108 = vrot.slane %v100, %v107
    %v109 = vmul.f32 %v104, %v50
    %v110 = vmul.f32 %v108, %v51
    %v111 = vsub.f32 %v109, %v110
    %v112 = vmul.f32 %v108, %v50
    %v113 = vmul.f32 %v104, %v51
    %v114 = vadd.f32 %v112, %v113
    %v116 = vrot.slane %v111, 7
    %v118 = vmul.f32 %v99, %v116
    %v119 = vmul.f32 %v100, %v111
    %v120 = vsub.f32 %v118, %v119
    %v121 = vmul.f32 %v100, %v116
    %v122 = vmul.f32 %v99, %v111
    %v123 = vadd.f32 %v121, %v122
    %v124 = vlaneseq
    %v125 = vshrl.u32 %v124, 7
    %v126 = vsub.s32 1, %v125
    %v127 = vrot.slane %v123, %v126
    %v128 = vsel %vm23, %v127, %v111
    %v129 = vlaneseq
    %v130 = vshrl.u32 %v129, 7
    %v131 = vsub.s32 1, %v130
    %v132 = vrot.slane %v120, %v131
    %v133 = vsel %vm20, %v132, %v128
    %v135 = vrot.slane %v114, 7
    %v137 = vmul.f32 %v99, %v135
    %v138 = vmul.f32 %v100, %v114
    %v139 = vsub.f32 %v137, %v138
    %v140 = vmul.f32 %v100, %v135
    %v141 = vmul.f32 %v99, %v114
    %v142 = vadd.f32 %v140, %v141
    %v143 = vlaneseq
    %v144 = vshrl.u32 %v143, 7
    %v145 = vsub.s32 1, %v144
    %v146 = vrot.slane %v142, %v145
    %v147 = vsel %vm23, %v146, %v114
    %v148 = vlaneseq
    %v149 = vshrl.u32 %v148, 7
    %v150 = vsub.s32 1, %v149
    %v151 = vrot.slane %v139, %v150
    %v152 = vsel %vm20, %v151, %v147
    %v153 = vlaneseq
    %v154 = vshrl.u32 %v153, 7
    %v155 = vsub.s32 2, %v154
    %v156 = vrot.slane %v114, %v155
    %v157 = vsel %vm23, %v156, %v52
    %v158 = vlaneseq
    %v159 = vshrl.u32 %v158, 7
    %v160 = vsub.s32 2, %v159
    %v161 = vrot.slane %v111, %v160
    %v162 = vsel %vm20, %v161, %v157
    %v163 = vlaneseq
    %v164 = vshrl.u32 %v163, 7
    %v165 = vsub.s32 3, %v164
    %v166 = vrot.slane %v114, %v165
    %v167 = vsel %vm23, %v166, %v53
    %v168 = vlaneseq
    %v169 = vshrl.u32 %v168, 7
    %v170 = vsub.s32 3, %v169
    %v171 = vrot.slane %v111, %v170
    %v172 = vsel %vm20, %v171, %v167
    %v173 = vlaneseq
    %v174 = vshrl.u32 %v173, 7
    %v175 = vsub.s32 4, %v174
    %v176 = vrot.slane %v114, %v175
    %v177 = vsel %vm23, %v176, %v54
    %v178 = vlaneseq
    %v179 = vshrl.u32 %v178, 7
    %v180 = vsub.s32 4, %v179
    %v181 = vrot.slane %v111, %v180
    %v182 = vsel %vm20, %v181, %v177
    %v183 = vlaneseq
    %v184 = vshrl.u32 %v183, 7
    %v185 = vsub.s32 5, %v184
    %v186 = vrot.slane %v114, %v185
    %v187 = vsel %vm23, %v186, %v55
    %v188 = vlaneseq
    %v189 = vshrl.u32 %v188, 7
    %v190 = vsub.s32 5, %v189
    %v191 = vrot.slane %v111, %v190
    %v192 = vsel %vm20, %v191, %v187
    %v193 = vlaneseq
    %v194 = vshrl.u32 %v193, 7
    %v195 = vsub.s32 6, %v194
    %v196 = vrot.slane %v114, %v195
    %v197 = vsel %vm23, %v196, %v56
    %v198 = vlaneseq
    %v199 = vshrl.u32 %v198, 7
    %v200 = vsub.s32 6, %v199
    %v201 = vrot.slane %v111, %v200
    %v202 = vsel %vm20, %v201, %v197
    %v203 = vlaneseq
    %v204 = vshrl.u32 %v203, 7
    %v205 = vsub.s32 7, %v204
    %v206 = vrot.slane %v114, %v205
    %v207 = vsel %vm23, %v206, %v57
    %v208 = vlaneseq
    %v209 = vshrl.u32 %v208, 7
    %v210 = vsub.s32 7, %v209
    %v211 = vrot.slane %v111, %v210
    %v212 = vsel %vm20, %v211, %v207
    %v213 = vmul.f32 %v104, %v58
    %v214 = vmul.f32 %v108, %v59
    %v215 = vsub.f32 %v213, %v214
    %v216 = vmul.f32 %v108, %v58
    %v217 = vmul.f32 %v104, %v59
    %v218 = vadd.f32 %v216, %v217
    %v219 = vand.u32 2147483647, %v133
    %v220 = vand.u32 2147483647, %v162
    %v222 = vrot.slane %v220, 2
    %v224 = vadd.f32 %v219, %v222
    %v225 = vmul.f32 %v224, 1e-12
    %v226 = vadd.f32 %v225, 1e-30
    %v228 = vrot.slane %v226, 6
    %vm230 = vcmp.gt.f32.partialorder %v219, %v228
    %v231 = vsel %vm230, %v133, 1.0
    %v233 = vrot.slane %v133, 6
    %v235 = vsub.f32 %v162, %v233
    %v236 = vrcp.pop %v231
    %v237 = vmul.f32 %v236, 0.5
    %v238 = vmul.f32 %v235, %v237
    %v239 = vmul.f32 %v238, %v238
    %v240 = vadd.f32 %v239, 1.0
    %v241 = vrsqrt.pop %v240
    %vm242 = vcmp.ge.f32.partialorder %v238, 0.0
    %v243 = vsel %vm242, 1.0, -1.0
    %v244 = vand.u32 2147483647, %v238
    %v245 = vmul.f32 %v240, %v241
    %v246 = vadd.f32 %v244, %v245
    %v247 = vrcp.pop %v246
    %v248 = vmul.f32 %v243, %v247
    %v249 = vsel %vm230, %v248, 0.0
    %v250 = vmul.f32 %v249, %v249
    %v251 = vadd.f32 %v250, 1.0
    %v252 = vrsqrt.pop %v251
    %v253 = vmul.f32 %v249, %v252
    %v254 = vlaneseq
    %v255 = vshrl.u32 %v254, 7
    %v256 = vsub.s32 2, %v255
    %v257 = vrot.slane %v252, %v256
    %v258 = vlaneseq
    %v259 = vshrl.u32 %v258, 7
    %v260 = vsub.s32 2, %v259
    %v261 = vrot.slane %v253, %v260
    %v262 = vmul.f32 %v257, %v133
    %v263 = vmul.f32 %v261, %v162
    %v264 = vsub.f32 %v262, %v263
    %v265 = vmul.f32 %v261, %v133
    %v266 = vmul.f32 %v257, %v162
    %v267 = vadd.f32 %v265, %v266
    %v269 = vrot.slane %v264, 6
    %v271 = vmul.f32 %v252, %v269
    %v272 = vmul.f32 %v253, %v264
    %v273 = vsub.f32 %v271, %v272
    %v274 = vmul.f32 %v253, %v269
    %v275 = vmul.f32 %v252, %v264
    %v276 = vadd.f32 %v274, %v275
    %v277 = vlaneseq
    %v278 = vshrl.u32 %v277, 7
    %v279 = vsub.s32 2, %v278
    %v280 = vrot.slane %v276, %v279
    %v281 = vsel %vm26, %v280, %v264
    %v282 = vlaneseq
    %v283 = vshrl.u32 %v282, 7
    %v284 = vsub.s32 2, %v283
    %v285 = vrot.slane %v273, %v284
    %v286 = vsel %vm20, %v285, %v281
    %v288 = vrot.slane %v267, 6
    %v290 = vmul.f32 %v252, %v288
    %v291 = vmul.f32 %v253, %v267
    %v292 = vsub.f32 %v290, %v291
    %v293 = vmul.f32 %v253, %v288
    %v294 = vmul.f32 %v252, %v267
    %v295 = vadd.f32 %v293, %v294
    %v296 = vlaneseq
    %v297 = vshrl.u32 %v296, 7
    %v298 = vsub.s32 2, %v297
    %v299 = vrot.slane %v295, %v298
    %v300 = vsel %vm26, %v299, %v267
    %v301 = vlaneseq
    %v302 = vshrl.u32 %v301, 7
    %v303 = vsub.s32 2, %v302
    %v304 = vrot.slane %v292, %v303
    %v305 = vsel %vm20, %v304, %v300
    %v306 = vlaneseq
    %v307 = vshrl.u32 %v306, 7
    %v308 = vsub.s32 1, %v307
    %v309 = vrot.slane %v267, %v308
    %v310 = vsel %vm26, %v309, %v152
    %v311 = vlaneseq
    %v312 = vshrl.u32 %v311, 7
    %v313 = vsub.s32 1, %v312
    %v314 = vrot.slane %v264, %v313
    %v315 = vsel %vm20, %v314, %v310
    %v316 = vlaneseq
    %v317 = vshrl.u32 %v316, 7
    %v318 = vsub.s32 3, %v317
    %v319 = vrot.slane %v267, %v318
    %v320 = vsel %vm26, %v319, %v172
    %v321 = vlaneseq
    %v322 = vshrl.u32 %v321, 7
    %v323 = vsub.s32 3, %v322
    %v324 = vrot.slane %v264, %v323
    %v325 = vsel %vm20, %v324, %v320
    %v326 = vlaneseq
    %v327 = vshrl.u32 %v326, 7
    %v328 = vsub.s32 4, %v327
    %v329 = vrot.slane %v267, %v328
    %v330 = vsel %vm26, %v329, %v182
    %v331 = vlaneseq
    %v332 = vshrl.u32 %v331, 7
    %v333 = vsub.s32 4, %v332
    %v334 = vrot.slane %v264, %v333
    %v335 = vsel %vm20, %v334, %v330
    %v336 = vlaneseq
    %v337 = vshrl.u32 %v336, 7
    %v338 = vsub.s32 5, %v337
    %v339 = vrot.slane %v267, %v338
    %v340 = vsel %vm26, %v339, %v192
    %v341 = vlaneseq
    %v342 = vshrl.u32 %v341, 7
    %v343 = vsub.s32 5, %v342
    %v344 = vrot.slane %v264, %v343
    %v345 = vsel %vm20, %v344, %v340
    %v346 = vlaneseq
    %v347 = vshrl.u32 %v346, 7
    %v348 = vsub.s32 6, %v347
    %v349 = vrot.slane %v267, %v348
    %v350 = vsel %vm26, %v349, %v202
    %v351 = vlaneseq
    %v352 = vshrl.u32 %v351, 7
    %v353 = vsub.s32 6, %v352
    %v354 = vrot.slane %v264, %v353
    %v355 = vsel %vm20, %v354, %v350
    %v356 = vlaneseq
    %v357 = vshrl.u32 %v356, 7
    %v358 = vsub.s32 7, %v357
    %v359 = vrot.slane %v267, %v358
    %v360 = vsel %vm26, %v359, %v212
    %v361 = vlaneseq
    %v362 = vshrl.u32 %v361, 7
    %v363 = vsub.s32 7, %v362
    %v364 = vrot.slane %v264, %v363
    %v365 = vsel %vm20, %v364, %v360
    %v366 = vmul.f32 %v257, %v215
    %v367 = vmul.f32 %v261, %v60
    %v368 = vsub.f32 %v366, %v367
    %v369 = vmul.f32 %v261, %v215
    %v370 = vmul.f32 %v257, %v60
    %v371 = vadd.f32 %v369, %v370
    %v372 = vand.u32 2147483647, %v286
    %v373 = vand.u32 2147483647, %v325
    %v375 = vrot.slane %v373, 3
    %v377 = vadd.f32 %v372, %v375
    %v378 = vmul.f32 %v377, 1e-12
    %v379 = vadd.f32 %v378, 1e-30
    %v381 = vrot.slane %v379, 5
    %vm383 = vcmp.gt.f32.partialorder %v372, %v381
    %v384 = vsel %vm383, %v286, 1.0
    %v386 = vrot.slane %v286, 5
    %v388 = vsub.f32 %v325, %v386
    %v389 = vrcp.pop %v384
    %v390 = vmul.f32 %v389, 0.5
    %v391 = vmul.f32 %v388, %v390
    %v392 = vmul.f32 %v391, %v391
    %v393 = vadd.f32 %v392, 1.0
    %v394 = vrsqrt.pop %v393
    %vm395 = vcmp.ge.f32.partialorder %v391, 0.0
    %v396 = vsel %vm395, 1.0, -1.0
    %v397 = vand.u32 2147483647, %v391
    %v398 = vmul.f32 %v393, %v394
    %v399 = vadd.f32 %v397, %v398
    %v400 = vrcp.pop %v399
    %v401 = vmul.f32 %v396, %v400
    %v402 = vsel %vm383, %v401, 0.0
    %v403 = vmul.f32 %v402, %v402
    %v404 = vadd.f32 %v403, 1.0
    %v405 = vrsqrt.pop %v404
    %v406 = vmul.f32 %v402, %v405
    %v407 = vlaneseq
    %v408 = vshrl.u32 %v407, 7
    %v409 = vsub.s32 3, %v408
    %v410 = vrot.slane %v405, %v409
    %v411 = vlaneseq
    %v412 = vshrl.u32 %v411, 7
    %v413 = vsub.s32 3, %v412
    %v414 = vrot.slane %v406, %v413
    %v415 = vmul.f32 %v410, %v286
    %v416 = vmul.f32 %v414, %v325
    %v417 = vsub.f32 %v415, %v416
    %v418 = vmul.f32 %v414, %v286
    %v419 = vmul.f32 %v410, %v325
    %v420 = vadd.f32 %v418, %v419
    %v422 = vrot.slane %v417, 5
    %v424 = vmul.f32 %v405, %v422
    %v425 = vmul.f32 %v406, %v417
    %v426 = vsub.f32 %v424, %v425
    %v427 = vmul.f32 %v406, %v422
    %v428 = vmul.f32 %v405, %v417
    %v429 = vadd.f32 %v427, %v428
    %v430 = vlaneseq
    %v431 = vshrl.u32 %v430, 7
    %v432 = vsub.s32 3, %v431
    %v433 = vrot.slane %v429, %v432
    %v434 = vsel %vm29, %v433, %v417
    %v435 = vlaneseq
    %v436 = vshrl.u32 %v435, 7
    %v437 = vsub.s32 3, %v436
    %v438 = vrot.slane %v426, %v437
    %v439 = vsel %vm20, %v438, %v434
    %v441 = vrot.slane %v420, 5
    %v443 = vmul.f32 %v405, %v441
    %v444 = vmul.f32 %v406, %v420
    %v445 = vsub.f32 %v443, %v444
    %v446 = vmul.f32 %v406, %v441
    %v447 = vmul.f32 %v405, %v420
    %v448 = vadd.f32 %v446, %v447
    %v449 = vlaneseq
    %v450 = vshrl.u32 %v449, 7
    %v451 = vsub.s32 3, %v450
    %v452 = vrot.slane %v448, %v451
    %v453 = vsel %vm29, %v452, %v420
    %v454 = vlaneseq
    %v455 = vshrl.u32 %v454, 7
    %v456 = vsub.s32 3, %v455
    %v457 = vrot.slane %v445, %v456
    %v458 = vsel %vm20, %v457, %v453
    %v459 = vlaneseq
    %v460 = vshrl.u32 %v459, 7
    %v461 = vsub.s32 1, %v460
    %v462 = vrot.slane %v420, %v461
    %v463 = vsel %vm29, %v462, %v315
    %v464 = vlaneseq
    %v465 = vshrl.u32 %v464, 7
    %v466 = vsub.s32 1, %v465
    %v467 = vrot.slane %v417, %v466
    %v468 = vsel %vm20, %v467, %v463
    %v469 = vlaneseq
    %v470 = vshrl.u32 %v469, 7
    %v471 = vsub.s32 2, %v470
    %v472 = vrot.slane %v420, %v471
    %v473 = vsel %vm29, %v472, %v305
    %v474 = vlaneseq
    %v475 = vshrl.u32 %v474, 7
    %v476 = vsub.s32 2, %v475
    %v477 = vrot.slane %v417, %v476
    %v478 = vsel %vm20, %v477, %v473
    %v479 = vlaneseq
    %v480 = vshrl.u32 %v479, 7
    %v481 = vsub.s32 4, %v480
    %v482 = vrot.slane %v420, %v481
    %v483 = vsel %vm29, %v482, %v335
    %v484 = vlaneseq
    %v485 = vshrl.u32 %v484, 7
    %v486 = vsub.s32 4, %v485
    %v487 = vrot.slane %v417, %v486
    %v488 = vsel %vm20, %v487, %v483
    %v489 = vlaneseq
    %v490 = vshrl.u32 %v489, 7
    %v491 = vsub.s32 5, %v490
    %v492 = vrot.slane %v420, %v491
    %v493 = vsel %vm29, %v492, %v345
    %v494 = vlaneseq
    %v495 = vshrl.u32 %v494, 7
    %v496 = vsub.s32 5, %v495
    %v497 = vrot.slane %v417, %v496
    %v498 = vsel %vm20, %v497, %v493
    %v499 = vlaneseq
    %v500 = vshrl.u32 %v499, 7
    %v501 = vsub.s32 6, %v500
    %v502 = vrot.slane %v420, %v501
    %v503 = vsel %vm29, %v502, %v355
    %v504 = vlaneseq
    %v505 = vshrl.u32 %v504, 7
    %v506 = vsub.s32 6, %v505
    %v507 = vrot.slane %v417, %v506
    %v508 = vsel %vm20, %v507, %v503
    %v509 = vlaneseq
    %v510 = vshrl.u32 %v509, 7
    %v511 = vsub.s32 7, %v510
    %v512 = vrot.slane %v420, %v511
    %v513 = vsel %vm29, %v512, %v365
    %v514 = vlaneseq
    %v515 = vshrl.u32 %v514, 7
    %v516 = vsub.s32 7, %v515
    %v517 = vrot.slane %v417, %v516
    %v518 = vsel %vm20, %v517, %v513
    %v519 = vmul.f32 %v410, %v368
    %v520 = vmul.f32 %v414, %v61
    %v521 = vsub.f32 %v519, %v520
    %v522 = vmul.f32 %v414, %v368
    %v523 = vmul.f32 %v410, %v61
    %v524 = vadd.f32 %v522, %v523
    %v525 = vand.u32 2147483647, %v439
    %v526 = vand.u32 2147483647, %v488
    %v528 = vrot.slane %v526, 4
    %v530 = vadd.f32 %v525, %v528
    %v531 = vmul.f32 %v530, 1e-12
    %v532 = vadd.f32 %v531, 1e-30
    %v534 = vrot.slane %v532, 4
    %vm536 = vcmp.gt.f32.partialorder %v525, %v534
    %v537 = vsel %vm536, %v439, 1.0
    %v539 = vrot.slane %v439, 4
    %v541 = vsub.f32 %v488, %v539
    %v542 = vrcp.pop %v537
    %v543 = vmul.f32 %v542, 0.5
    %v544 = vmul.f32 %v541, %v543
    %v545 = vmul.f32 %v544, %v544
    %v546 = vadd.f32 %v545, 1.0
    %v547 = vrsqrt.pop %v546
    %vm548 = vcmp.ge.f32.partialorder %v544, 0.0
    %v549 = vsel %vm548, 1.0, -1.0
    %v550 = vand.u32 2147483647, %v544
    %v551 = vmul.f32 %v546, %v547
    %v552 = vadd.f32 %v550, %v551
    %v553 = vrcp.pop %v552
    %v554 = vmul.f32 %v549, %v553
    %v555 = vsel %vm536, %v554, 0.0
    %v556 = vmul.f32 %v555, %v555
    %v557 = vadd.f32 %v556, 1.0
    %v558 = vrsqrt.pop %v557
    %v559 = vmul.f32 %v555, %v558
    %v560 = vlaneseq
    %v561 = vshrl.u32 %v560, 7
    %v562 = vsub.s32 4, %v561
    %v563 = vrot.slane %v558, %v562
    %v564 = vlaneseq
    %v565 = vshrl.u32 %v564, 7
    %v566 = vsub.s32 4, %v565
    %v567 = vrot.slane %v559, %v566
    %v568 = vmul.f32 %v563, %v439
    %v569 = vmul.f32 %v567, %v488
    %v570 = vsub.f32 %v568, %v569
    %v571 = vmul.f32 %v567, %v439
    %v572 = vmul.f32 %v563, %v488
    %v573 = vadd.f32 %v571, %v572
    %v575 = vrot.slane %v570, 4
    %v577 = vmul.f32 %v558, %v575
    %v578 = vmul.f32 %v559, %v570
    %v579 = vsub.f32 %v577, %v578
    %v580 = vmul.f32 %v559, %v575
    %v581 = vmul.f32 %v558, %v570
    %v582 = vadd.f32 %v580, %v581
    %v583 = vlaneseq
    %v584 = vshrl.u32 %v583, 7
    %v585 = vsub.s32 4, %v584
    %v586 = vrot.slane %v582, %v585
    %v587 = vsel %vm32, %v586, %v570
    %v588 = vlaneseq
    %v589 = vshrl.u32 %v588, 7
    %v590 = vsub.s32 4, %v589
    %v591 = vrot.slane %v579, %v590
    %v592 = vsel %vm20, %v591, %v587
    %v594 = vrot.slane %v573, 4
    %v596 = vmul.f32 %v558, %v594
    %v597 = vmul.f32 %v559, %v573
    %v598 = vsub.f32 %v596, %v597
    %v599 = vmul.f32 %v559, %v594
    %v600 = vmul.f32 %v558, %v573
    %v601 = vadd.f32 %v599, %v600
    %v602 = vlaneseq
    %v603 = vshrl.u32 %v602, 7
    %v604 = vsub.s32 4, %v603
    %v605 = vrot.slane %v601, %v604
    %v606 = vsel %vm32, %v605, %v573
    %v607 = vlaneseq
    %v608 = vshrl.u32 %v607, 7
    %v609 = vsub.s32 4, %v608
    %v610 = vrot.slane %v598, %v609
    %v611 = vsel %vm20, %v610, %v606
    %v612 = vlaneseq
    %v613 = vshrl.u32 %v612, 7
    %v614 = vsub.s32 1, %v613
    %v615 = vrot.slane %v573, %v614
    %v616 = vsel %vm32, %v615, %v468
    %v617 = vlaneseq
    %v618 = vshrl.u32 %v617, 7
    %v619 = vsub.s32 1, %v618
    %v620 = vrot.slane %v570, %v619
    %v621 = vsel %vm20, %v620, %v616
    %v622 = vlaneseq
    %v623 = vshrl.u32 %v622, 7
    %v624 = vsub.s32 2, %v623
    %v625 = vrot.slane %v573, %v624
    %v626 = vsel %vm32, %v625, %v478
    %v627 = vlaneseq
    %v628 = vshrl.u32 %v627, 7
    %v629 = vsub.s32 2, %v628
    %v630 = vrot.slane %v570, %v629
    %v631 = vsel %vm20, %v630, %v626
    %v632 = vlaneseq
    %v633 = vshrl.u32 %v632, 7
    %v634 = vsub.s32 3, %v633
    %v635 = vrot.slane %v573, %v634
    %v636 = vsel %vm32, %v635, %v458
    %v637 = vlaneseq
    %v638 = vshrl.u32 %v637, 7
    %v639 = vsub.s32 3, %v638
    %v640 = vrot.slane %v570, %v639
    %v641 = vsel %vm20, %v640, %v636
    %v642 = vlaneseq
    %v643 = vshrl.u32 %v642, 7
    %v644 = vsub.s32 5, %v643
    %v645 = vrot.slane %v573, %v644
    %v646 = vsel %vm32, %v645, %v498
    %v647 = vlaneseq
    %v648 = vshrl.u32 %v647, 7
    %v649 = vsub.s32 5, %v648
    %v650 = vrot.slane %v570, %v649
    %v651 = vsel %vm20, %v650, %v646
    %v652 = vlaneseq
    %v653 = vshrl.u32 %v652, 7
    %v654 = vsub.s32 6, %v653
    %v655 = vrot.slane %v573, %v654
    %v656 = vsel %vm32, %v655, %v508
    %v657 = vlaneseq
    %v658 = vshrl.u32 %v657, 7
    %v659 = vsub.s32 6, %v658
    %v660 = vrot.slane %v570, %v659
    %v661 = vsel %vm20, %v660, %v656
    %v662 = vlaneseq
    %v663 = vshrl.u32 %v662, 7
    %v664 = vsub.s32 7, %v663
    %v665 = vrot.slane %v573, %v664
    %v666 = vsel %vm32, %v665, %v518
    %v667 = vlaneseq
    %v668 = vshrl.u32 %v667, 7
    %v669 = vsub.s32 7, %v668
    %v670 = vrot.slane %v570, %v669
    %v671 = vsel %vm20, %v670, %v666
    %v672 = vmul.f32 %v563, %v521
    %v673 = vmul.f32 %v567, %v62
    %v674 = vsub.f32 %v672, %v673
    %v675 = vmul.f32 %v567, %v521
    %v676 = vmul.f32 %v563, %v62
    %v677 = vadd.f32 %v675, %v676
    %v678 = vand.u32 2147483647, %v592
    %v679 = vand.u32 2147483647, %v651
    %v681 = vrot.slane %v679, 5
    %v683 = vadd.f32 %v678, %v681
    %v684 = vmul.f32 %v683, 1e-12
    %v685 = vadd.f32 %v684, 1e-30
    %v687 = vrot.slane %v685, 3
    %vm689 = vcmp.gt.f32.partialorder %v678, %v687
    %v690 = vsel %vm689, %v592, 1.0
    %v692 = vrot.slane %v592, 3
    %v694 = vsub.f32 %v651, %v692
    %v695 = vrcp.pop %v690
    %v696 = vmul.f32 %v695, 0.5
    %v697 = vmul.f32 %v694, %v696
    %v698 = vmul.f32 %v697, %v697
    %v699 = vadd.f32 %v698, 1.0
    %v700 = vrsqrt.pop %v699
    %vm701 = vcmp.ge.f32.partialorder %v697, 0.0
    %v702 = vsel %vm701, 1.0, -1.0
    %v703 = vand.u32 2147483647, %v697
    %v704 = vmul.f32 %v699, %v700
    %v705 = vadd.f32 %v703, %v704
    %v706 = vrcp.pop %v705
    %v707 = vmul.f32 %v702, %v706
    %v708 = vsel %vm689, %v707, 0.0
    %v709 = vmul.f32 %v708, %v708
    %v710 = vadd.f32 %v709, 1.0
    %v711 = vrsqrt.pop %v710
    %v712 = vmul.f32 %v708, %v711
    %v713 = vlaneseq
    %v714 = vshrl.u32 %v713, 7
    %v715 = vsub.s32 5, %v714
    %v716 = vrot.slane %v711, %v715
    %v717 = vlaneseq
    %v718 = vshrl.u32 %v717, 7
    %v719 = vsub.s32 5, %v718
    %v720 = vrot.slane %v712, %v719
    %v721 = vmul.f32 %v716, %v592
    %v722 = vmul.f32 %v720, %v651
    %v723 = vsub.f32 %v721, %v722
    %v724 = vmul.f32 %v720, %v592
    %v725 = vmul.f32 %v716, %v651
    %v726 = vadd.f32 %v724, %v725
    %v728 = vrot.slane %v723, 3
    %v730 = vmul.f32 %v711, %v728
    %v731 = vmul.f32 %v712, %v723
    %v732 = vsub.f32 %v730, %v731
    %v733 = vmul.f32 %v712, %v728
    %v734 = vmul.f32 %v711, %v723
    %v735 = vadd.f32 %v733, %v734
    %v736 = vlaneseq
    %v737 = vshrl.u32 %v736, 7
    %v738 = vsub.s32 5, %v737
    %v739 = vrot.slane %v735, %v738
    %v740 = vsel %vm35, %v739, %v723
    %v741 = vlaneseq
    %v742 = vshrl.u32 %v741, 7
    %v743 = vsub.s32 5, %v742
    %v744 = vrot.slane %v732, %v743
    %v745 = vsel %vm20, %v744, %v740
    %v747 = vrot.slane %v726, 3
    %v749 = vmul.f32 %v711, %v747
    %v750 = vmul.f32 %v712, %v726
    %v751 = vsub.f32 %v749, %v750
    %v752 = vmul.f32 %v712, %v747
    %v753 = vmul.f32 %v711, %v726
    %v754 = vadd.f32 %v752, %v753
    %v755 = vlaneseq
    %v756 = vshrl.u32 %v755, 7
    %v757 = vsub.s32 5, %v756
    %v758 = vrot.slane %v754, %v757
    %v759 = vsel %vm35, %v758, %v726
    %v760 = vlaneseq
    %v761 = vshrl.u32 %v760, 7
    %v762 = vsub.s32 5, %v761
    %v763 = vrot.slane %v751, %v762
    %v764 = vsel %vm20, %v763, %v759
    %v765 = vlaneseq
    %v766 = vshrl.u32 %v765, 7
    %v767 = vsub.s32 1, %v766
    %v768 = vrot.slane %v726, %v767
    %v769 = vsel %vm35, %v768, %v621
    %v770 = vlaneseq
    %v771 = vshrl.u32 %v770, 7
    %v772 = vsub.s32 1, %v771
    %v773 = vrot.slane %v723, %v772
    %v774 = vsel %vm20, %v773, %v769
    %v775 = vlaneseq
    %v776 = vshrl.u32 %v775, 7
    %v777 = vsub.s32 2, %v776
    %v778 = vrot.slane %v726, %v777
    %v779 = vsel %vm35, %v778, %v631
    %v780 = vlaneseq
    %v781 = vshrl.u32 %v780, 7
    %v782 = vsub.s32 2, %v781
    %v783 = vrot.slane %v723, %v782
    %v784 = vsel %vm20, %v783, %v779
    %v785 = vlaneseq
    %v786 = vshrl.u32 %v785, 7
    %v787 = vsub.s32 3, %v786
    %v788 = vrot.slane %v726, %v787
    %v789 = vsel %vm35, %v788, %v641
    %v790 = vlaneseq
    %v791 = vshrl.u32 %v790, 7
    %v792 = vsub.s32 3, %v791
    %v793 = vrot.slane %v723, %v792
    %v794 = vsel %vm20, %v793, %v789
    %v795 = vlaneseq
    %v796 = vshrl.u32 %v795, 7
    %v797 = vsub.s32 4, %v796
    %v798 = vrot.slane %v726, %v797
    %v799 = vsel %vm35, %v798, %v611
    %v800 = vlaneseq
    %v801 = vshrl.u32 %v800, 7
    %v802 = vsub.s32 4, %v801
    %v803 = vrot.slane %v723, %v802
    %v804 = vsel %vm20, %v803, %v799
    %v805 = vlaneseq
    %v806 = vshrl.u32 %v805, 7
    %v807 = vsub.s32 6, %v806
    %v808 = vrot.slane %v726, %v807
    %v809 = vsel %vm35, %v808, %v661
    %v810 = vlaneseq
    %v811 = vshrl.u32 %v810, 7
    %v812 = vsub.s32 6, %v811
    %v813 = vrot.slane %v723, %v812
    %v814 = vsel %vm20, %v813, %v809
    %v815 = vlaneseq
    %v816 = vshrl.u32 %v815, 7
    %v817 = vsub.s32 7, %v816
    %v818 = vrot.slane %v726, %v817
    %v819 = vsel %vm35, %v818, %v671
    %v820 = vlaneseq
    %v821 = vshrl.u32 %v820, 7
    %v822 = vsub.s32 7, %v821
    %v823 = vrot.slane %v723, %v822
    %v824 = vsel %vm20, %v823, %v819
    %v825 = vmul.f32 %v716, %v674
    %v826 = vmul.f32 %v720, %v63
    %v827 = vsub.f32 %v825, %v826
    %v828 = vmul.f32 %v720, %v674
    %v829 = vmul.f32 %v716, %v63
    %v830 = vadd.f32 %v828, %v829
    %v831 = vand.u32 2147483647, %v745
    %v832 = vand.u32 2147483647, %v814
    %v834 = vrot.slane %v832, 6
    %v836 = vadd.f32 %v831, %v834
    %v837 = vmul.f32 %v836, 1e-12
    %v838 = vadd.f32 %v837, 1e-30
    %v840 = vrot.slane %v838, 2
    %vm842 = vcmp.gt.f32.partialorder %v831, %v840
    %v843 = vsel %vm842, %v745, 1.0
    %v845 = vrot.slane %v745, 2
    %v847 = vsub.f32 %v814, %v845
    %v848 = vrcp.pop %v843
    %v849 = vmul.f32 %v848, 0.5
    %v850 = vmul.f32 %v847, %v849
    %v851 = vmul.f32 %v850, %v850
    %v852 = vadd.f32 %v851, 1.0
    %v853 = vrsqrt.pop %v852
    %vm854 = vcmp.ge.f32.partialorder %v850, 0.0
    %v855 = vsel %vm854, 1.0, -1.0
    %v856 = vand.u32 2147483647, %v850
    %v857 = vmul.f32 %v852, %v853
    %v858 = vadd.f32 %v856, %v857
    %v859 = vrcp.pop %v858
    %v860 = vmul.f32 %v855, %v859
    %v861 = vsel %vm842, %v860, 0.0
    %v862 = vmul.f32 %v861, %v861
    %v863 = vadd.f32 %v862, 1.0
    %v864 = vrsqrt.pop %v863
    %v865 = vmul.f32 %v861, %v864
    %v866 = vlaneseq
    %v867 = vshrl.u32 %v866, 7
    %v868 = vsub.s32 6, %v867
    %v869 = vrot.slane %v864, %v868
    %v870 = vlaneseq
    %v871 = vshrl.u32 %v870, 7
    %v872 = vsub.s32 6, %v871
    %v873 = vrot.slane %v865, %v872
    %v874 = vmul.f32 %v869, %v745
    %v875 = vmul.f32 %v873, %v814
    %v876 = vsub.f32 %v874, %v875
    %v877 = vmul.f32 %v873, %v745
    %v878 = vmul.f32 %v869, %v814
    %v879 = vadd.f32 %v877, %v878
    %v881 = vrot.slane %v876, 2
    %v883 = vmul.f32 %v864, %v881
    %v884 = vmul.f32 %v865, %v876
    %v885 = vsub.f32 %v883, %v884
    %v886 = vmul.f32 %v865, %v881
    %v887 = vmul.f32 %v864, %v876
    %v888 = vadd.f32 %v886, %v887
    %v889 = vlaneseq
    %v890 = vshrl.u32 %v889, 7
    %v891 = vsub.s32 6, %v890
    %v892 = vrot.slane %v888, %v891
    %v893 = vsel %vm38, %v892, %v876
    %v894 = vlaneseq
    %v895 = vshrl.u32 %v894, 7
    %v896 = vsub.s32 6, %v895
    %v897 = vrot.slane %v885, %v896
    %v898 = vsel %vm20, %v897, %v893
    %v900 = vrot.slane %v879, 2
    %v902 = vmul.f32 %v864, %v900
    %v903 = vmul.f32 %v865, %v879
    %v904 = vsub.f32 %v902, %v903
    %v905 = vmul.f32 %v865, %v900
    %v906 = vmul.f32 %v864, %v879
    %v907 = vadd.f32 %v905, %v906
    %v908 = vlaneseq
    %v909 = vshrl.u32 %v908, 7
    %v910 = vsub.s32 6, %v909
    %v911 = vrot.slane %v907, %v910
    %v912 = vsel %vm38, %v911, %v879
    %v913 = vlaneseq
    %v914 = vshrl.u32 %v913, 7
    %v915 = vsub.s32 6, %v914
    %v916 = vrot.slane %v904, %v915
    %v917 = vsel %vm20, %v916, %v912
    %v918 = vlaneseq
    %v919 = vshrl.u32 %v918, 7
    %v920 = vsub.s32 1, %v919
    %v921 = vrot.slane %v879, %v920
    %v922 = vsel %vm38, %v921, %v774
    %v923 = vlaneseq
    %v924 = vshrl.u32 %v923, 7
    %v925 = vsub.s32 1, %v924
    %v926 = vrot.slane %v876, %v925
    %v927 = vsel %vm20, %v926, %v922
    %v928 = vlaneseq
    %v929 = vshrl.u32 %v928, 7
    %v930 = vsub.s32 2, %v929
    %v931 = vrot.slane %v879, %v930
    %v932 = vsel %vm38, %v931, %v784
    %v933 = vlaneseq
    %v934 = vshrl.u32 %v933, 7
    %v935 = vsub.s32 2, %v934
    %v936 = vrot.slane %v876, %v935
    %v937 = vsel %vm20, %v936, %v932
    %v938 = vlaneseq
    %v939 = vshrl.u32 %v938, 7
    %v940 = vsub.s32 3, %v939
    %v941 = vrot.slane %v879, %v940
    %v942 = vsel %vm38, %v941, %v794
    %v943 = vlaneseq
    %v944 = vshrl.u32 %v943, 7
    %v945 = vsub.s32 3, %v944
    %v946 = vrot.slane %v876, %v945
    %v947 = vsel %vm20, %v946, %v942
    %v948 = vlaneseq
    %v949 = vshrl.u32 %v948, 7
    %v950 = vsub.s32 4, %v949
    %v951 = vrot.slane %v879, %v950
    %v952 = vsel %vm38, %v951, %v804
    %v953 = vlaneseq
    %v954 = vshrl.u32 %v953, 7
    %v955 = vsub.s32 4, %v954
    %v956 = vrot.slane %v876, %v955
    %v957 = vsel %vm20, %v956, %v952
    %v958 = vlaneseq
    %v959 = vshrl.u32 %v958, 7
    %v960 = vsub.s32 5, %v959
    %v961 = vrot.slane %v879, %v960
    %v962 = vsel %vm38, %v961, %v764
    %v963 = vlaneseq
    %v964 = vshrl.u32 %v963, 7
    %v965 = vsub.s32 5, %v964
    %v966 = vrot.slane %v876, %v965
    %v967 = vsel %vm20, %v966, %v962
    %v968 = vlaneseq
    %v969 = vshrl.u32 %v968, 7
    %v970 = vsub.s32 7, %v969
    %v971 = vrot.slane %v879, %v970
    %v972 = vsel %vm38, %v971, %v824
    %v973 = vlaneseq
    %v974 = vshrl.u32 %v973, 7
    %v975 = vsub.s32 7, %v974
    %v976 = vrot.slane %v876, %v975
    %v977 = vsel %vm20, %v976, %v972
    %v978 = vmul.f32 %v869, %v827
    %v979 = vmul.f32 %v873, %v64
    %v980 = vsub.f32 %v978, %v979
    %v981 = vmul.f32 %v873, %v827
    %v982 = vmul.f32 %v869, %v64
    %v983 = vadd.f32 %v981, %v982
    %v984 = vand.u32 2147483647, %v898
    %v985 = vand.u32 2147483647, %v977
    %v987 = vrot.slane %v985, 7
    %v989 = vadd.f32 %v984, %v987
    %v990 = vmul.f32 %v989, 1e-12
    %v991 = vadd.f32 %v990, 1e-30
    %v993 = vrot.slane %v991, 1
    %vm995 = vcmp.gt.f32.partialorder %v984, %v993
    %v996 = vsel %vm995, %v898, 1.0
    %v998 = vrot.slane %v898, 1
    %v1000 = vsub.f32 %v977, %v998
    %v1001 = vrcp.pop %v996
    %v1002 = vmul.f32 %v1001, 0.5
    %v1003 = vmul.f32 %v1000, %v1002
    %v1004 = vmul.f32 %v1003, %v1003
    %v1005 = vadd.f32 %v1004, 1.0
    %v1006 = vrsqrt.pop %v1005
    %vm1007 = vcmp.ge.f32.partialorder %v1003, 0.0
    %v1008 = vsel %vm1007, 1.0, -1.0
    %v1009 = vand.u32 2147483647, %v1003
    %v1010 = vmul.f32 %v1005, %v1006
    %v1011 = vadd.f32 %v1009, %v1010
    %v1012 = vrcp.pop %v1011
    %v1013 = vmul.f32 %v1008, %v1012
    %v1014 = vsel %vm995, %v1013, 0.0
    %v1015 = vmul.f32 %v1014, %v1014
    %v1016 = vadd.f32 %v1015, 1.0
    %v1017 = vrsqrt.pop %v1016
    %v1018 = vmul.f32 %v1014, %v1017
    %v1019 = vlaneseq
    %v1020 = vshrl.u32 %v1019, 7
    %v1021 = vsub.s32 7, %v1020
    %v1022 = vrot.slane %v1017, %v1021
    %v1023 = vlaneseq
    %v1024 = vshrl.u32 %v1023, 7
    %v1025 = vsub.s32 7, %v1024
    %v1026 = vrot.slane %v1018, %v1025
    %v1027 = vmul.f32 %v1022, %v898
    %v1028 = vmul.f32 %v1026, %v977
    %v1029 = vsub.f32 %v1027, %v1028
    %v1030 = vmul.f32 %v1026, %v898
    %v1031 = vmul.f32 %v1022, %v977
    %v1032 = vadd.f32 %v1030, %v1031
    %v1034 = vrot.slane %v1029, 1
    %v1036 = vmul.f32 %v1017, %v1034
    %v1037 = vmul.f32 %v1018, %v1029
    %v1038 = vsub.f32 %v1036, %v1037
    %v1039 = vmul.f32 %v1018, %v1034
    %v1040 = vmul.f32 %v1017, %v1029
    %v1041 = vadd.f32 %v1039, %v1040
    %v1042 = vlaneseq
    %v1043 = vshrl.u32 %v1042, 7
    %v1044 = vsub.s32 7, %v1043
    %v1045 = vrot.slane %v1041, %v1044
    %v1046 = vsel %vm41, %v1045, %v1029
    %v1047 = vlaneseq
    %v1048 = vshrl.u32 %v1047, 7
    %v1049 = vsub.s32 7, %v1048
    %v1050 = vrot.slane %v1038, %v1049
    %v1051 = vsel %vm20, %v1050, %v1046
    %v1053 = vrot.slane %v1032, 1
    %v1055 = vmul.f32 %v1017, %v1053
    %v1056 = vmul.f32 %v1018, %v1032
    %v1057 = vsub.f32 %v1055, %v1056
    %v1058 = vmul.f32 %v1018, %v1053
    %v1059 = vmul.f32 %v1017, %v1032
    %v1060 = vadd.f32 %v1058, %v1059
    %v1061 = vlaneseq
    %v1062 = vshrl.u32 %v1061, 7
    %v1063 = vsub.s32 7, %v1062
    %v1064 = vrot.slane %v1060, %v1063
    %v1065 = vsel %vm41, %v1064, %v1032
    %v1066 = vlaneseq
    %v1067 = vshrl.u32 %v1066, 7
    %v1068 = vsub.s32 7, %v1067
    %v1069 = vrot.slane %v1057, %v1068
    %v1070 = vsel %vm20, %v1069, %v1065
    %v1071 = vlaneseq
    %v1072 = vshrl.u32 %v1071, 7
    %v1073 = vsub.s32 1, %v1072
    %v1074 = vrot.slane %v1032, %v1073
    %v1075 = vsel %vm41, %v1074, %v927
    %v1076 = vlaneseq
    %v1077 = vshrl.u32 %v1076, 7
    %v1078 = vsub.s32 1, %v1077
    %v1079 = vrot.slane %v1029, %v1078
    %v1080 = vsel %vm20, %v1079, %v1075
    %v1081 = vlaneseq
    %v1082 = vshrl.u32 %v1081, 7
    %v1083 = vsub.s32 2, %v1082
    %v1084 = vrot.slane %v1032, %v1083
    %v1085 = vsel %vm41, %v1084, %v937
    %v1086 = vlaneseq
    %v1087 = vshrl.u32 %v1086, 7
    %v1088 = vsub.s32 2, %v1087
    %v1089 = vrot.slane %v1029, %v1088
    %v1090 = vsel %vm20, %v1089, %v1085
    %v1091 = vlaneseq
    %v1092 = vshrl.u32 %v1091, 7
    %v1093 = vsub.s32 3, %v1092
    %v1094 = vrot.slane %v1032, %v1093
    %v1095 = vsel %vm41, %v1094, %v947
    %v1096 = vlaneseq
    %v1097 = vshrl.u32 %v1096, 7
    %v1098 = vsub.s32 3, %v1097
    %v1099 = vrot.slane %v1029, %v1098
    %v1100 = vsel %vm20, %v1099, %v1095
    %v1101 = vlaneseq
    %v1102 = vshrl.u32 %v1101, 7
    %v1103 = vsub.s32 4, %v1102
    %v1104 = vrot.slane %v1032, %v1103
    %v1105 = vsel %vm41, %v1104, %v957
    %v1106 = vlaneseq
    %v1107 = vshrl.u32 %v1106, 7
    %v1108 = vsub.s32 4, %v1107
    %v1109 = vrot.slane %v1029, %v1108
    %v1110 = vsel %vm20, %v1109, %v1105
    %v1111 = vlaneseq
    %v1112 = vshrl.u32 %v1111, 7
    %v1113 = vsub.s32 5, %v1112
    %v1114 = vrot.slane %v1032, %v1113
    %v1115 = vsel %vm41, %v1114, %v967
    %v1116 = vlaneseq
    %v1117 = vshrl.u32 %v1116, 7
    %v1118 = vsub.s32 5, %v1117
    %v1119 = vrot.slane %v1029, %v1118
    %v1120 = vsel %vm20, %v1119, %v1115
    %v1121 = vlaneseq
    %v1122 = vshrl.u32 %v1121, 7
    %v1123 = vsub.s32 6, %v1122
    %v1124 = vrot.slane %v1032, %v1123
    %v1125 = vsel %vm41, %v1124, %v917
    %v1126 = vlaneseq
    %v1127 = vshrl.u32 %v1126, 7
    %v1128 = vsub.s32 6, %v1127
    %v1129 = vrot.slane %v1029, %v1128
    %v1130 = vsel %vm20, %v1129, %v1125
    %v1131 = vmul.f32 %v1022, %v980
    %v1132 = vmul.f32 %v1026, %v65
    %v1133 = vsub.f32 %v1131, %v1132
    %v1134 = vmul.f32 %v1026, %v980
    %v1135 = vmul.f32 %v1022, %v65
    %v1136 = vadd.f32 %v1134, %v1135
    %v1137 = vand.u32 2147483647, %v1080
    %v1138 = vand.u32 2147483647, %v1090
    %v1140 = vrot.slane %v1138, 1
    %v1142 = vadd.f32 %v1137, %v1140
    %v1143 = vmul.f32 %v1142, 1e-12
    %v1144 = vadd.f32 %v1143, 1e-30
    %v1146 = vrot.slane %v1144, 7
    %vm1148 = vcmp.gt.f32.partialorder %v1137, %v1146
    %v1149 = vsel %vm1148, %v1080, 1.0
    %v1151 = vrot.slane %v1080, 7
    %v1153 = vsub.f32 %v1090, %v1151
    %v1154 = vrcp.pop %v1149
    %v1155 = vmul.f32 %v1154, 0.5
    %v1156 = vmul.f32 %v1153, %v1155
    %v1157 = vmul.f32 %v1156, %v1156
    %v1158 = vadd.f32 %v1157, 1.0
    %v1159 = vrsqrt.pop %v1158
    %vm1160 = vcmp.ge.f32.partialorder %v1156, 0.0
    %v1161 = vsel %vm1160, 1.0, -1.0
    %v1162 = vand.u32 2147483647, %v1156
    %v1163 = vmul.f32 %v1158, %v1159
    %v1164 = vadd.f32 %v1162, %v1163
    %v1165 = vrcp.pop %v1164
    %v1166 = vmul.f32 %v1161, %v1165
    %v1167 = vsel %vm1148, %v1166, 0.0
    %v1168 = vmul.f32 %v1167, %v1167
    %v1169 = vadd.f32 %v1168, 1.0
    %v1170 = vrsqrt.pop %v1169
    %v1171 = vmul.f32 %v1167, %v1170
    %v1172 = vlaneseq
    %v1173 = vshrl.u32 %v1172, 7
    %v1174 = vsub.s32 2, %v1173
    %v1175 = vrot.slane %v1170, %v1174
    %v1176 = vlaneseq
    %v1177 = vshrl.u32 %v1176, 7
    %v1178 = vsub.s32 2, %v1177
    %v1179 = vrot.slane %v1171, %v1178
    %v1180 = vmul.f32 %v1175, %v1080
    %v1181 = vmul.f32 %v1179, %v1090
    %v1182 = vsub.f32 %v1180, %v1181
    %v1183 = vmul.f32 %v1179, %v1080
    %v1184 = vmul.f32 %v1175, %v1090
    %v1185 = vadd.f32 %v1183, %v1184
    %v1187 = vrot.slane %v1182, 7
    %v1189 = vmul.f32 %v1170, %v1187
    %v1190 = vmul.f32 %v1171, %v1182
    %v1191 = vsub.f32 %v1189, %v1190
    %v1192 = vmul.f32 %v1171, %v1187
    %v1193 = vmul.f32 %v1170, %v1182
    %v1194 = vadd.f32 %v1192, %v1193
    %v1195 = vlaneseq
    %v1196 = vshrl.u32 %v1195, 7
    %v1197 = vsub.s32 2, %v1196
    %v1198 = vrot.slane %v1194, %v1197
    %v1199 = vsel %vm26, %v1198, %v1182
    %v1200 = vlaneseq
    %v1201 = vshrl.u32 %v1200, 7
    %v1202 = vsub.s32 2, %v1201
    %v1203 = vrot.slane %v1191, %v1202
    %v1204 = vsel %vm23, %v1203, %v1199
    %v1206 = vrot.slane %v1185, 7
    %v1208 = vmul.f32 %v1170, %v1206
    %v1209 = vmul.f32 %v1171, %v1185
    %v1210 = vsub.f32 %v1208, %v1209
    %v1211 = vmul.f32 %v1171, %v1206
    %v1212 = vmul.f32 %v1170, %v1185
    %v1213 = vadd.f32 %v1211, %v1212
    %v1214 = vlaneseq
    %v1215 = vshrl.u32 %v1214, 7
    %v1216 = vsub.s32 2, %v1215
    %v1217 = vrot.slane %v1213, %v1216
    %v1218 = vsel %vm26, %v1217, %v1185
    %v1219 = vlaneseq
    %v1220 = vshrl.u32 %v1219, 7
    %v1221 = vsub.s32 2, %v1220
    %v1222 = vrot.slane %v1210, %v1221
    %v1223 = vsel %vm23, %v1222, %v1218
    %v1224 = vlaneseq
    %v1225 = vshrl.u32 %v1224, 7
    %v1226 = vsub.s32 0, %v1225
    %v1227 = vrot.slane %v1185, %v1226
    %v1228 = vsel %vm26, %v1227, %v1051
    %v1229 = vlaneseq
    %v1230 = vshrl.u32 %v1229, 7
    %v1231 = vsub.s32 0, %v1230
    %v1232 = vrot.slane %v1182, %v1231
    %v1233 = vsel %vm23, %v1232, %v1228
    %v1234 = vlaneseq
    %v1235 = vshrl.u32 %v1234, 7
    %v1236 = vsub.s32 3, %v1235
    %v1237 = vrot.slane %v1185, %v1236
    %v1238 = vsel %vm26, %v1237, %v1100
    %v1239 = vlaneseq
    %v1240 = vshrl.u32 %v1239, 7
    %v1241 = vsub.s32 3, %v1240
    %v1242 = vrot.slane %v1182, %v1241
    %v1243 = vsel %vm23, %v1242, %v1238
    %v1244 = vlaneseq
    %v1245 = vshrl.u32 %v1244, 7
    %v1246 = vsub.s32 4, %v1245
    %v1247 = vrot.slane %v1185, %v1246
    %v1248 = vsel %vm26, %v1247, %v1110
    %v1249 = vlaneseq
    %v1250 = vshrl.u32 %v1249, 7
    %v1251 = vsub.s32 4, %v1250
    %v1252 = vrot.slane %v1182, %v1251
    %v1253 = vsel %vm23, %v1252, %v1248
    %v1254 = vlaneseq
    %v1255 = vshrl.u32 %v1254, 7
    %v1256 = vsub.s32 5, %v1255
    %v1257 = vrot.slane %v1185, %v1256
    %v1258 = vsel %vm26, %v1257, %v1120
    %v1259 = vlaneseq
    %v1260 = vshrl.u32 %v1259, 7
    %v1261 = vsub.s32 5, %v1260
    %v1262 = vrot.slane %v1182, %v1261
    %v1263 = vsel %vm23, %v1262, %v1258
    %v1264 = vlaneseq
    %v1265 = vshrl.u32 %v1264, 7
    %v1266 = vsub.s32 6, %v1265
    %v1267 = vrot.slane %v1185, %v1266
    %v1268 = vsel %vm26, %v1267, %v1130
    %v1269 = vlaneseq
    %v1270 = vshrl.u32 %v1269, 7
    %v1271 = vsub.s32 6, %v1270
    %v1272 = vrot.slane %v1182, %v1271
    %v1273 = vsel %vm23, %v1272, %v1268
    %v1274 = vlaneseq
    %v1275 = vshrl.u32 %v1274, 7
    %v1276 = vsub.s32 7, %v1275
    %v1277 = vrot.slane %v1185, %v1276
    %v1278 = vsel %vm26, %v1277, %v1070
    %v1279 = vlaneseq
    %v1280 = vshrl.u32 %v1279, 7
    %v1281 = vsub.s32 7, %v1280
    %v1282 = vrot.slane %v1182, %v1281
    %v1283 = vsel %vm23, %v1282, %v1278
    %v1284 = vmul.f32 %v1175, %v218
    %v1285 = vmul.f32 %v1179, %v371
    %v1286 = vsub.f32 %v1284, %v1285
    %v1287 = vmul.f32 %v1179, %v218
    %v1288 = vmul.f32 %v1175, %v371
    %v1289 = vadd.f32 %v1287, %v1288
    %v1290 = vand.u32 2147483647, %v1204
    %v1291 = vand.u32 2147483647, %v1243
    %v1293 = vrot.slane %v1291, 2
    %v1295 = vadd.f32 %v1290, %v1293
    %v1296 = vmul.f32 %v1295, 1e-12
    %v1297 = vadd.f32 %v1296, 1e-30
    %v1299 = vrot.slane %v1297, 6
    %vm1301 = vcmp.gt.f32.partialorder %v1290, %v1299
    %v1302 = vsel %vm1301, %v1204, 1.0
    %v1304 = vrot.slane %v1204, 6
    %v1306 = vsub.f32 %v1243, %v1304
    %v1307 = vrcp.pop %v1302
    %v1308 = vmul.f32 %v1307, 0.5
    %v1309 = vmul.f32 %v1306, %v1308
    %v1310 = vmul.f32 %v1309, %v1309
    %v1311 = vadd.f32 %v1310, 1.0
    %v1312 = vrsqrt.pop %v1311
    %vm1313 = vcmp.ge.f32.partialorder %v1309, 0.0
    %v1314 = vsel %vm1313, 1.0, -1.0
    %v1315 = vand.u32 2147483647, %v1309
    %v1316 = vmul.f32 %v1311, %v1312
    %v1317 = vadd.f32 %v1315, %v1316
    %v1318 = vrcp.pop %v1317
    %v1319 = vmul.f32 %v1314, %v1318
    %v1320 = vsel %vm1301, %v1319, 0.0
    %v1321 = vmul.f32 %v1320, %v1320
    %v1322 = vadd.f32 %v1321, 1.0
    %v1323 = vrsqrt.pop %v1322
    %v1324 = vmul.f32 %v1320, %v1323
    %v1325 = vlaneseq
    %v1326 = vshrl.u32 %v1325, 7
    %v1327 = vsub.s32 3, %v1326
    %v1328 = vrot.slane %v1323, %v1327
    %v1329 = vlaneseq
    %v1330 = vshrl.u32 %v1329, 7
    %v1331 = vsub.s32 3, %v1330
    %v1332 = vrot.slane %v1324, %v1331
    %v1333 = vmul.f32 %v1328, %v1204
    %v1334 = vmul.f32 %v1332, %v1243
    %v1335 = vsub.f32 %v1333, %v1334
    %v1336 = vmul.f32 %v1332, %v1204
    %v1337 = vmul.f32 %v1328, %v1243
    %v1338 = vadd.f32 %v1336, %v1337
    %v1340 = vrot.slane %v1335, 6
    %v1342 = vmul.f32 %v1323, %v1340
    %v1343 = vmul.f32 %v1324, %v1335
    %v1344 = vsub.f32 %v1342, %v1343
    %v1345 = vmul.f32 %v1324, %v1340
    %v1346 = vmul.f32 %v1323, %v1335
    %v1347 = vadd.f32 %v1345, %v1346
    %v1348 = vlaneseq
    %v1349 = vshrl.u32 %v1348, 7
    %v1350 = vsub.s32 3, %v1349
    %v1351 = vrot.slane %v1347, %v1350
    %v1352 = vsel %vm29, %v1351, %v1335
    %v1353 = vlaneseq
    %v1354 = vshrl.u32 %v1353, 7
    %v1355 = vsub.s32 3, %v1354
    %v1356 = vrot.slane %v1344, %v1355
    %v1357 = vsel %vm23, %v1356, %v1352
    %v1359 = vrot.slane %v1338, 6
    %v1361 = vmul.f32 %v1323, %v1359
    %v1362 = vmul.f32 %v1324, %v1338
    %v1363 = vsub.f32 %v1361, %v1362
    %v1364 = vmul.f32 %v1324, %v1359
    %v1365 = vmul.f32 %v1323, %v1338
    %v1366 = vadd.f32 %v1364, %v1365
    %v1367 = vlaneseq
    %v1368 = vshrl.u32 %v1367, 7
    %v1369 = vsub.s32 3, %v1368
    %v1370 = vrot.slane %v1366, %v1369
    %v1371 = vsel %vm29, %v1370, %v1338
    %v1372 = vlaneseq
    %v1373 = vshrl.u32 %v1372, 7
    %v1374 = vsub.s32 3, %v1373
    %v1375 = vrot.slane %v1363, %v1374
    %v1376 = vsel %vm23, %v1375, %v1371
    %v1377 = vlaneseq
    %v1378 = vshrl.u32 %v1377, 7
    %v1379 = vsub.s32 0, %v1378
    %v1380 = vrot.slane %v1338, %v1379
    %v1381 = vsel %vm29, %v1380, %v1233
    %v1382 = vlaneseq
    %v1383 = vshrl.u32 %v1382, 7
    %v1384 = vsub.s32 0, %v1383
    %v1385 = vrot.slane %v1335, %v1384
    %v1386 = vsel %vm23, %v1385, %v1381
    %v1387 = vlaneseq
    %v1388 = vshrl.u32 %v1387, 7
    %v1389 = vsub.s32 2, %v1388
    %v1390 = vrot.slane %v1338, %v1389
    %v1391 = vsel %vm29, %v1390, %v1223
    %v1392 = vlaneseq
    %v1393 = vshrl.u32 %v1392, 7
    %v1394 = vsub.s32 2, %v1393
    %v1395 = vrot.slane %v1335, %v1394
    %v1396 = vsel %vm23, %v1395, %v1391
    %v1397 = vlaneseq
    %v1398 = vshrl.u32 %v1397, 7
    %v1399 = vsub.s32 4, %v1398
    %v1400 = vrot.slane %v1338, %v1399
    %v1401 = vsel %vm29, %v1400, %v1253
    %v1402 = vlaneseq
    %v1403 = vshrl.u32 %v1402, 7
    %v1404 = vsub.s32 4, %v1403
    %v1405 = vrot.slane %v1335, %v1404
    %v1406 = vsel %vm23, %v1405, %v1401
    %v1407 = vlaneseq
    %v1408 = vshrl.u32 %v1407, 7
    %v1409 = vsub.s32 5, %v1408
    %v1410 = vrot.slane %v1338, %v1409
    %v1411 = vsel %vm29, %v1410, %v1263
    %v1412 = vlaneseq
    %v1413 = vshrl.u32 %v1412, 7
    %v1414 = vsub.s32 5, %v1413
    %v1415 = vrot.slane %v1335, %v1414
    %v1416 = vsel %vm23, %v1415, %v1411
    %v1417 = vlaneseq
    %v1418 = vshrl.u32 %v1417, 7
    %v1419 = vsub.s32 6, %v1418
    %v1420 = vrot.slane %v1338, %v1419
    %v1421 = vsel %vm29, %v1420, %v1273
    %v1422 = vlaneseq
    %v1423 = vshrl.u32 %v1422, 7
    %v1424 = vsub.s32 6, %v1423
    %v1425 = vrot.slane %v1335, %v1424
    %v1426 = vsel %vm23, %v1425, %v1421
    %v1427 = vlaneseq
    %v1428 = vshrl.u32 %v1427, 7
    %v1429 = vsub.s32 7, %v1428
    %v1430 = vrot.slane %v1338, %v1429
    %v1431 = vsel %vm29, %v1430, %v1283
    %v1432 = vlaneseq
    %v1433 = vshrl.u32 %v1432, 7
    %v1434 = vsub.s32 7, %v1433
    %v1435 = vrot.slane %v1335, %v1434
    %v1436 = vsel %vm23, %v1435, %v1431
    %v1437 = vmul.f32 %v1328, %v1286
    %v1438 = vmul.f32 %v1332, %v524
    %v1439 = vsub.f32 %v1437, %v1438
    %v1440 = vmul.f32 %v1332, %v1286
    %v1441 = vmul.f32 %v1328, %v524
    %v1442 = vadd.f32 %v1440, %v1441
    %v1443 = vand.u32 2147483647, %v1357
    %v1444 = vand.u32 2147483647, %v1406
    %v1446 = vrot.slane %v1444, 3
    %v1448 = vadd.f32 %v1443, %v1446
    %v1449 = vmul.f32 %v1448, 1e-12
    %v1450 = vadd.f32 %v1449, 1e-30
    %v1452 = vrot.slane %v1450, 5
    %vm1454 = vcmp.gt.f32.partialorder %v1443, %v1452
    %v1455 = vsel %vm1454, %v1357, 1.0
    %v1457 = vrot.slane %v1357, 5
    %v1459 = vsub.f32 %v1406, %v1457
    %v1460 = vrcp.pop %v1455
    %v1461 = vmul.f32 %v1460, 0.5
    %v1462 = vmul.f32 %v1459, %v1461
    %v1463 = vmul.f32 %v1462, %v1462
    %v1464 = vadd.f32 %v1463, 1.0
    %v1465 = vrsqrt.pop %v1464
    %vm1466 = vcmp.ge.f32.partialorder %v1462, 0.0
    %v1467 = vsel %vm1466, 1.0, -1.0
    %v1468 = vand.u32 2147483647, %v1462
    %v1469 = vmul.f32 %v1464, %v1465
    %v1470 = vadd.f32 %v1468, %v1469
    %v1471 = vrcp.pop %v1470
    %v1472 = vmul.f32 %v1467, %v1471
    %v1473 = vsel %vm1454, %v1472, 0.0
    %v1474 = vmul.f32 %v1473, %v1473
    %v1475 = vadd.f32 %v1474, 1.0
    %v1476 = vrsqrt.pop %v1475
    %v1477 = vmul.f32 %v1473, %v1476
    %v1478 = vlaneseq
    %v1479 = vshrl.u32 %v1478, 7
    %v1480 = vsub.s32 4, %v1479
    %v1481 = vrot.slane %v1476, %v1480
    %v1482 = vlaneseq
    %v1483 = vshrl.u32 %v1482, 7
    %v1484 = vsub.s32 4, %v1483
    %v1485 = vrot.slane %v1477, %v1484
    %v1486 = vmul.f32 %v1481, %v1357
    %v1487 = vmul.f32 %v1485, %v1406
    %v1488 = vsub.f32 %v1486, %v1487
    %v1489 = vmul.f32 %v1485, %v1357
    %v1490 = vmul.f32 %v1481, %v1406
    %v1491 = vadd.f32 %v1489, %v1490
    %v1493 = vrot.slane %v1488, 5
    %v1495 = vmul.f32 %v1476, %v1493
    %v1496 = vmul.f32 %v1477, %v1488
    %v1497 = vsub.f32 %v1495, %v1496
    %v1498 = vmul.f32 %v1477, %v1493
    %v1499 = vmul.f32 %v1476, %v1488
    %v1500 = vadd.f32 %v1498, %v1499
    %v1501 = vlaneseq
    %v1502 = vshrl.u32 %v1501, 7
    %v1503 = vsub.s32 4, %v1502
    %v1504 = vrot.slane %v1500, %v1503
    %v1505 = vsel %vm32, %v1504, %v1488
    %v1506 = vlaneseq
    %v1507 = vshrl.u32 %v1506, 7
    %v1508 = vsub.s32 4, %v1507
    %v1509 = vrot.slane %v1497, %v1508
    %v1510 = vsel %vm23, %v1509, %v1505
    %v1512 = vrot.slane %v1491, 5
    %v1514 = vmul.f32 %v1476, %v1512
    %v1515 = vmul.f32 %v1477, %v1491
    %v1516 = vsub.f32 %v1514, %v1515
    %v1517 = vmul.f32 %v1477, %v1512
    %v1518 = vmul.f32 %v1476, %v1491
    %v1519 = vadd.f32 %v1517, %v1518
    %v1520 = vlaneseq
    %v1521 = vshrl.u32 %v1520, 7
    %v1522 = vsub.s32 4, %v1521
    %v1523 = vrot.slane %v1519, %v1522
    %v1524 = vsel %vm32, %v1523, %v1491
    %v1525 = vlaneseq
    %v1526 = vshrl.u32 %v1525, 7
    %v1527 = vsub.s32 4, %v1526
    %v1528 = vrot.slane %v1516, %v1527
    %v1529 = vsel %vm23, %v1528, %v1524
    %v1530 = vlaneseq
    %v1531 = vshrl.u32 %v1530, 7
    %v1532 = vsub.s32 0, %v1531
    %v1533 = vrot.slane %v1491, %v1532
    %v1534 = vsel %vm32, %v1533, %v1386
    %v1535 = vlaneseq
    %v1536 = vshrl.u32 %v1535, 7
    %v1537 = vsub.s32 0, %v1536
    %v1538 = vrot.slane %v1488, %v1537
    %v1539 = vsel %vm23, %v1538, %v1534
    %v1540 = vlaneseq
    %v1541 = vshrl.u32 %v1540, 7
    %v1542 = vsub.s32 2, %v1541
    %v1543 = vrot.slane %v1491, %v1542
    %v1544 = vsel %vm32, %v1543, %v1396
    %v1545 = vlaneseq
    %v1546 = vshrl.u32 %v1545, 7
    %v1547 = vsub.s32 2, %v1546
    %v1548 = vrot.slane %v1488, %v1547
    %v1549 = vsel %vm23, %v1548, %v1544
    %v1550 = vlaneseq
    %v1551 = vshrl.u32 %v1550, 7
    %v1552 = vsub.s32 3, %v1551
    %v1553 = vrot.slane %v1491, %v1552
    %v1554 = vsel %vm32, %v1553, %v1376
    %v1555 = vlaneseq
    %v1556 = vshrl.u32 %v1555, 7
    %v1557 = vsub.s32 3, %v1556
    %v1558 = vrot.slane %v1488, %v1557
    %v1559 = vsel %vm23, %v1558, %v1554
    %v1560 = vlaneseq
    %v1561 = vshrl.u32 %v1560, 7
    %v1562 = vsub.s32 5, %v1561
    %v1563 = vrot.slane %v1491, %v1562
    %v1564 = vsel %vm32, %v1563, %v1416
    %v1565 = vlaneseq
    %v1566 = vshrl.u32 %v1565, 7
    %v1567 = vsub.s32 5, %v1566
    %v1568 = vrot.slane %v1488, %v1567
    %v1569 = vsel %vm23, %v1568, %v1564
    %v1570 = vlaneseq
    %v1571 = vshrl.u32 %v1570, 7
    %v1572 = vsub.s32 6, %v1571
    %v1573 = vrot.slane %v1491, %v1572
    %v1574 = vsel %vm32, %v1573, %v1426
    %v1575 = vlaneseq
    %v1576 = vshrl.u32 %v1575, 7
    %v1577 = vsub.s32 6, %v1576
    %v1578 = vrot.slane %v1488, %v1577
    %v1579 = vsel %vm23, %v1578, %v1574
    %v1580 = vlaneseq
    %v1581 = vshrl.u32 %v1580, 7
    %v1582 = vsub.s32 7, %v1581
    %v1583 = vrot.slane %v1491, %v1582
    %v1584 = vsel %vm32, %v1583, %v1436
    %v1585 = vlaneseq
    %v1586 = vshrl.u32 %v1585, 7
    %v1587 = vsub.s32 7, %v1586
    %v1588 = vrot.slane %v1488, %v1587
    %v1589 = vsel %vm23, %v1588, %v1584
    %v1590 = vmul.f32 %v1481, %v1439
    %v1591 = vmul.f32 %v1485, %v677
    %v1592 = vsub.f32 %v1590, %v1591
    %v1593 = vmul.f32 %v1485, %v1439
    %v1594 = vmul.f32 %v1481, %v677
    %v1595 = vadd.f32 %v1593, %v1594
    %v1596 = vand.u32 2147483647, %v1510
    %v1597 = vand.u32 2147483647, %v1569
    %v1599 = vrot.slane %v1597, 4
    %v1601 = vadd.f32 %v1596, %v1599
    %v1602 = vmul.f32 %v1601, 1e-12
    %v1603 = vadd.f32 %v1602, 1e-30
    %v1605 = vrot.slane %v1603, 4
    %vm1607 = vcmp.gt.f32.partialorder %v1596, %v1605
    %v1608 = vsel %vm1607, %v1510, 1.0
    %v1610 = vrot.slane %v1510, 4
    %v1612 = vsub.f32 %v1569, %v1610
    %v1613 = vrcp.pop %v1608
    %v1614 = vmul.f32 %v1613, 0.5
    %v1615 = vmul.f32 %v1612, %v1614
    %v1616 = vmul.f32 %v1615, %v1615
    %v1617 = vadd.f32 %v1616, 1.0
    %v1618 = vrsqrt.pop %v1617
    %vm1619 = vcmp.ge.f32.partialorder %v1615, 0.0
    %v1620 = vsel %vm1619, 1.0, -1.0
    %v1621 = vand.u32 2147483647, %v1615
    %v1622 = vmul.f32 %v1617, %v1618
    %v1623 = vadd.f32 %v1621, %v1622
    %v1624 = vrcp.pop %v1623
    %v1625 = vmul.f32 %v1620, %v1624
    %v1626 = vsel %vm1607, %v1625, 0.0
    %v1627 = vmul.f32 %v1626, %v1626
    %v1628 = vadd.f32 %v1627, 1.0
    %v1629 = vrsqrt.pop %v1628
    %v1630 = vmul.f32 %v1626, %v1629
    %v1631 = vlaneseq
    %v1632 = vshrl.u32 %v1631, 7
    %v1633 = vsub.s32 5, %v1632
    %v1634 = vrot.slane %v1629, %v1633
    %v1635 = vlaneseq
    %v1636 = vshrl.u32 %v1635, 7
    %v1637 = vsub.s32 5, %v1636
    %v1638 = vrot.slane %v1630, %v1637
    %v1639 = vmul.f32 %v1634, %v1510
    %v1640 = vmul.f32 %v1638, %v1569
    %v1641 = vsub.f32 %v1639, %v1640
    %v1642 = vmul.f32 %v1638, %v1510
    %v1643 = vmul.f32 %v1634, %v1569
    %v1644 = vadd.f32 %v1642, %v1643
    %v1646 = vrot.slane %v1641, 4
    %v1648 = vmul.f32 %v1629, %v1646
    %v1649 = vmul.f32 %v1630, %v1641
    %v1650 = vsub.f32 %v1648, %v1649
    %v1651 = vmul.f32 %v1630, %v1646
    %v1652 = vmul.f32 %v1629, %v1641
    %v1653 = vadd.f32 %v1651, %v1652
    %v1654 = vlaneseq
    %v1655 = vshrl.u32 %v1654, 7
    %v1656 = vsub.s32 5, %v1655
    %v1657 = vrot.slane %v1653, %v1656
    %v1658 = vsel %vm35, %v1657, %v1641
    %v1659 = vlaneseq
    %v1660 = vshrl.u32 %v1659, 7
    %v1661 = vsub.s32 5, %v1660
    %v1662 = vrot.slane %v1650, %v1661
    %v1663 = vsel %vm23, %v1662, %v1658
    %v1665 = vrot.slane %v1644, 4
    %v1667 = vmul.f32 %v1629, %v1665
    %v1668 = vmul.f32 %v1630, %v1644
    %v1669 = vsub.f32 %v1667, %v1668
    %v1670 = vmul.f32 %v1630, %v1665
    %v1671 = vmul.f32 %v1629, %v1644
    %v1672 = vadd.f32 %v1670, %v1671
    %v1673 = vlaneseq
    %v1674 = vshrl.u32 %v1673, 7
    %v1675 = vsub.s32 5, %v1674
    %v1676 = vrot.slane %v1672, %v1675
    %v1677 = vsel %vm35, %v1676, %v1644
    %v1678 = vlaneseq
    %v1679 = vshrl.u32 %v1678, 7
    %v1680 = vsub.s32 5, %v1679
    %v1681 = vrot.slane %v1669, %v1680
    %v1682 = vsel %vm23, %v1681, %v1677
    %v1683 = vlaneseq
    %v1684 = vshrl.u32 %v1683, 7
    %v1685 = vsub.s32 0, %v1684
    %v1686 = vrot.slane %v1644, %v1685
    %v1687 = vsel %vm35, %v1686, %v1539
    %v1688 = vlaneseq
    %v1689 = vshrl.u32 %v1688, 7
    %v1690 = vsub.s32 0, %v1689
    %v1691 = vrot.slane %v1641, %v1690
    %v1692 = vsel %vm23, %v1691, %v1687
    %v1693 = vlaneseq
    %v1694 = vshrl.u32 %v1693, 7
    %v1695 = vsub.s32 2, %v1694
    %v1696 = vrot.slane %v1644, %v1695
    %v1697 = vsel %vm35, %v1696, %v1549
    %v1698 = vlaneseq
    %v1699 = vshrl.u32 %v1698, 7
    %v1700 = vsub.s32 2, %v1699
    %v1701 = vrot.slane %v1641, %v1700
    %v1702 = vsel %vm23, %v1701, %v1697
    %v1703 = vlaneseq
    %v1704 = vshrl.u32 %v1703, 7
    %v1705 = vsub.s32 3, %v1704
    %v1706 = vrot.slane %v1644, %v1705
    %v1707 = vsel %vm35, %v1706, %v1559
    %v1708 = vlaneseq
    %v1709 = vshrl.u32 %v1708, 7
    %v1710 = vsub.s32 3, %v1709
    %v1711 = vrot.slane %v1641, %v1710
    %v1712 = vsel %vm23, %v1711, %v1707
    %v1713 = vlaneseq
    %v1714 = vshrl.u32 %v1713, 7
    %v1715 = vsub.s32 4, %v1714
    %v1716 = vrot.slane %v1644, %v1715
    %v1717 = vsel %vm35, %v1716, %v1529
    %v1718 = vlaneseq
    %v1719 = vshrl.u32 %v1718, 7
    %v1720 = vsub.s32 4, %v1719
    %v1721 = vrot.slane %v1641, %v1720
    %v1722 = vsel %vm23, %v1721, %v1717
    %v1723 = vlaneseq
    %v1724 = vshrl.u32 %v1723, 7
    %v1725 = vsub.s32 6, %v1724
    %v1726 = vrot.slane %v1644, %v1725
    %v1727 = vsel %vm35, %v1726, %v1579
    %v1728 = vlaneseq
    %v1729 = vshrl.u32 %v1728, 7
    %v1730 = vsub.s32 6, %v1729
    %v1731 = vrot.slane %v1641, %v1730
    %v1732 = vsel %vm23, %v1731, %v1727
    %v1733 = vlaneseq
    %v1734 = vshrl.u32 %v1733, 7
    %v1735 = vsub.s32 7, %v1734
    %v1736 = vrot.slane %v1644, %v1735
    %v1737 = vsel %vm35, %v1736, %v1589
    %v1738 = vlaneseq
    %v1739 = vshrl.u32 %v1738, 7
    %v1740 = vsub.s32 7, %v1739
    %v1741 = vrot.slane %v1641, %v1740
    %v1742 = vsel %vm23, %v1741, %v1737
    %v1743 = vmul.f32 %v1634, %v1592
    %v1744 = vmul.f32 %v1638, %v830
    %v1745 = vsub.f32 %v1743, %v1744
    %v1746 = vmul.f32 %v1638, %v1592
    %v1747 = vmul.f32 %v1634, %v830
    %v1748 = vadd.f32 %v1746, %v1747
    %v1749 = vand.u32 2147483647, %v1663
    %v1750 = vand.u32 2147483647, %v1732
    %v1752 = vrot.slane %v1750, 5
    %v1754 = vadd.f32 %v1749, %v1752
    %v1755 = vmul.f32 %v1754, 1e-12
    %v1756 = vadd.f32 %v1755, 1e-30
    %v1758 = vrot.slane %v1756, 3
    %vm1760 = vcmp.gt.f32.partialorder %v1749, %v1758
    %v1761 = vsel %vm1760, %v1663, 1.0
    %v1763 = vrot.slane %v1663, 3
    %v1765 = vsub.f32 %v1732, %v1763
    %v1766 = vrcp.pop %v1761
    %v1767 = vmul.f32 %v1766, 0.5
    %v1768 = vmul.f32 %v1765, %v1767
    %v1769 = vmul.f32 %v1768, %v1768
    %v1770 = vadd.f32 %v1769, 1.0
    %v1771 = vrsqrt.pop %v1770
    %vm1772 = vcmp.ge.f32.partialorder %v1768, 0.0
    %v1773 = vsel %vm1772, 1.0, -1.0
    %v1774 = vand.u32 2147483647, %v1768
    %v1775 = vmul.f32 %v1770, %v1771
    %v1776 = vadd.f32 %v1774, %v1775
    %v1777 = vrcp.pop %v1776
    %v1778 = vmul.f32 %v1773, %v1777
    %v1779 = vsel %vm1760, %v1778, 0.0
    %v1780 = vmul.f32 %v1779, %v1779
    %v1781 = vadd.f32 %v1780, 1.0
    %v1782 = vrsqrt.pop %v1781
    %v1783 = vmul.f32 %v1779, %v1782
    %v1784 = vlaneseq
    %v1785 = vshrl.u32 %v1784, 7
    %v1786 = vsub.s32 6, %v1785
    %v1787 = vrot.slane %v1782, %v1786
    %v1788 = vlaneseq
    %v1789 = vshrl.u32 %v1788, 7
    %v1790 = vsub.s32 6, %v1789
    %v1791 = vrot.slane %v1783, %v1790
    %v1792 = vmul.f32 %v1787, %v1663
    %v1793 = vmul.f32 %v1791, %v1732
    %v1794 = vsub.f32 %v1792, %v1793
    %v1795 = vmul.f32 %v1791, %v1663
    %v1796 = vmul.f32 %v1787, %v1732
    %v1797 = vadd.f32 %v1795, %v1796
    %v1799 = vrot.slane %v1794, 3
    %v1801 = vmul.f32 %v1782, %v1799
    %v1802 = vmul.f32 %v1783, %v1794
    %v1803 = vsub.f32 %v1801, %v1802
    %v1804 = vmul.f32 %v1783, %v1799
    %v1805 = vmul.f32 %v1782, %v1794
    %v1806 = vadd.f32 %v1804, %v1805
    %v1807 = vlaneseq
    %v1808 = vshrl.u32 %v1807, 7
    %v1809 = vsub.s32 6, %v1808
    %v1810 = vrot.slane %v1806, %v1809
    %v1811 = vsel %vm38, %v1810, %v1794
    %v1812 = vlaneseq
    %v1813 = vshrl.u32 %v1812, 7
    %v1814 = vsub.s32 6, %v1813
    %v1815 = vrot.slane %v1803, %v1814
    %v1816 = vsel %vm23, %v1815, %v1811
    %v1818 = vrot.slane %v1797, 3
    %v1820 = vmul.f32 %v1782, %v1818
    %v1821 = vmul.f32 %v1783, %v1797
    %v1822 = vsub.f32 %v1820, %v1821
    %v1823 = vmul.f32 %v1783, %v1818
    %v1824 = vmul.f32 %v1782, %v1797
    %v1825 = vadd.f32 %v1823, %v1824
    %v1826 = vlaneseq
    %v1827 = vshrl.u32 %v1826, 7
    %v1828 = vsub.s32 6, %v1827
    %v1829 = vrot.slane %v1825, %v1828
    %v1830 = vsel %vm38, %v1829, %v1797
    %v1831 = vlaneseq
    %v1832 = vshrl.u32 %v1831, 7
    %v1833 = vsub.s32 6, %v1832
    %v1834 = vrot.slane %v1822, %v1833
    %v1835 = vsel %vm23, %v1834, %v1830
    %v1836 = vlaneseq
    %v1837 = vshrl.u32 %v1836, 7
    %v1838 = vsub.s32 0, %v1837
    %v1839 = vrot.slane %v1797, %v1838
    %v1840 = vsel %vm38, %v1839, %v1692
    %v1841 = vlaneseq
    %v1842 = vshrl.u32 %v1841, 7
    %v1843 = vsub.s32 0, %v1842
    %v1844 = vrot.slane %v1794, %v1843
    %v1845 = vsel %vm23, %v1844, %v1840
    %v1846 = vlaneseq
    %v1847 = vshrl.u32 %v1846, 7
    %v1848 = vsub.s32 2, %v1847
    %v1849 = vrot.slane %v1797, %v1848
    %v1850 = vsel %vm38, %v1849, %v1702
    %v1851 = vlaneseq
    %v1852 = vshrl.u32 %v1851, 7
    %v1853 = vsub.s32 2, %v1852
    %v1854 = vrot.slane %v1794, %v1853
    %v1855 = vsel %vm23, %v1854, %v1850
    %v1856 = vlaneseq
    %v1857 = vshrl.u32 %v1856, 7
    %v1858 = vsub.s32 3, %v1857
    %v1859 = vrot.slane %v1797, %v1858
    %v1860 = vsel %vm38, %v1859, %v1712
    %v1861 = vlaneseq
    %v1862 = vshrl.u32 %v1861, 7
    %v1863 = vsub.s32 3, %v1862
    %v1864 = vrot.slane %v1794, %v1863
    %v1865 = vsel %vm23, %v1864, %v1860
    %v1866 = vlaneseq
    %v1867 = vshrl.u32 %v1866, 7
    %v1868 = vsub.s32 4, %v1867
    %v1869 = vrot.slane %v1797, %v1868
    %v1870 = vsel %vm38, %v1869, %v1722
    %v1871 = vlaneseq
    %v1872 = vshrl.u32 %v1871, 7
    %v1873 = vsub.s32 4, %v1872
    %v1874 = vrot.slane %v1794, %v1873
    %v1875 = vsel %vm23, %v1874, %v1870
    %v1876 = vlaneseq
    %v1877 = vshrl.u32 %v1876, 7
    %v1878 = vsub.s32 5, %v1877
    %v1879 = vrot.slane %v1797, %v1878
    %v1880 = vsel %vm38, %v1879, %v1682
    %v1881 = vlaneseq
    %v1882 = vshrl.u32 %v1881, 7
    %v1883 = vsub.s32 5, %v1882
    %v1884 = vrot.slane %v1794, %v1883
    %v1885 = vsel %vm23, %v1884, %v1880
    %v1886 = vlaneseq
    %v1887 = vshrl.u32 %v1886, 7
    %v1888 = vsub.s32 7, %v1887
    %v1889 = vrot.slane %v1797, %v1888
    %v1890 = vsel %vm38, %v1889, %v1742
    %v1891 = vlaneseq
    %v1892 = vshrl.u32 %v1891, 7
    %v1893 = vsub.s32 7, %v1892
    %v1894 = vrot.slane %v1794, %v1893
    %v1895 = vsel %vm23, %v1894, %v1890
    %v1896 = vmul.f32 %v1787, %v1745
    %v1897 = vmul.f32 %v1791, %v983
    %v1898 = vsub.f32 %v1896, %v1897
    %v1899 = vmul.f32 %v1791, %v1745
    %v1900 = vmul.f32 %v1787, %v983
    %v1901 = vadd.f32 %v1899, %v1900
    %v1902 = vand.u32 2147483647, %v1816
    %v1903 = vand.u32 2147483647, %v1895
    %v1905 = vrot.slane %v1903, 6
    %v1907 = vadd.f32 %v1902, %v1905
    %v1908 = vmul.f32 %v1907, 1e-12
    %v1909 = vadd.f32 %v1908, 1e-30
    %v1911 = vrot.slane %v1909, 2
    %vm1913 = vcmp.gt.f32.partialorder %v1902, %v1911
    %v1914 = vsel %vm1913, %v1816, 1.0
    %v1916 = vrot.slane %v1816, 2
    %v1918 = vsub.f32 %v1895, %v1916
    %v1919 = vrcp.pop %v1914
    %v1920 = vmul.f32 %v1919, 0.5
    %v1921 = vmul.f32 %v1918, %v1920
    %v1922 = vmul.f32 %v1921, %v1921
    %v1923 = vadd.f32 %v1922, 1.0
    %v1924 = vrsqrt.pop %v1923
    %vm1925 = vcmp.ge.f32.partialorder %v1921, 0.0
    %v1926 = vsel %vm1925, 1.0, -1.0
    %v1927 = vand.u32 2147483647, %v1921
    %v1928 = vmul.f32 %v1923, %v1924
    %v1929 = vadd.f32 %v1927, %v1928
    %v1930 = vrcp.pop %v1929
    %v1931 = vmul.f32 %v1926, %v1930
    %v1932 = vsel %vm1913, %v1931, 0.0
    %v1933 = vmul.f32 %v1932, %v1932
    %v1934 = vadd.f32 %v1933, 1.0
    %v1935 = vrsqrt.pop %v1934
    %v1936 = vmul.f32 %v1932, %v1935
    %v1937 = vlaneseq
    %v1938 = vshrl.u32 %v1937, 7
    %v1939 = vsub.s32 7, %v1938
    %v1940 = vrot.slane %v1935, %v1939
    %v1941 = vlaneseq
    %v1942 = vshrl.u32 %v1941, 7
    %v1943 = vsub.s32 7, %v1942
    %v1944 = vrot.slane %v1936, %v1943
    %v1945 = vmul.f32 %v1940, %v1816
    %v1946 = vmul.f32 %v1944, %v1895
    %v1947 = vsub.f32 %v1945, %v1946
    %v1948 = vmul.f32 %v1944, %v1816
    %v1949 = vmul.f32 %v1940, %v1895
    %v1950 = vadd.f32 %v1948, %v1949
    %v1952 = vrot.slane %v1947, 2
    %v1954 = vmul.f32 %v1935, %v1952
    %v1955 = vmul.f32 %v1936, %v1947
    %v1956 = vsub.f32 %v1954, %v1955
    %v1957 = vmul.f32 %v1936, %v1952
    %v1958 = vmul.f32 %v1935, %v1947
    %v1959 = vadd.f32 %v1957, %v1958
    %v1960 = vlaneseq
    %v1961 = vshrl.u32 %v1960, 7
    %v1962 = vsub.s32 7, %v1961
    %v1963 = vrot.slane %v1959, %v1962
    %v1964 = vsel %vm41, %v1963, %v1947
    %v1965 = vlaneseq
    %v1966 = vshrl.u32 %v1965, 7
    %v1967 = vsub.s32 7, %v1966
    %v1968 = vrot.slane %v1956, %v1967
    %v1969 = vsel %vm23, %v1968, %v1964
    %v1971 = vrot.slane %v1950, 2
    %v1973 = vmul.f32 %v1935, %v1971
    %v1974 = vmul.f32 %v1936, %v1950
    %v1975 = vsub.f32 %v1973, %v1974
    %v1976 = vmul.f32 %v1936, %v1971
    %v1977 = vmul.f32 %v1935, %v1950
    %v1978 = vadd.f32 %v1976, %v1977
    %v1979 = vlaneseq
    %v1980 = vshrl.u32 %v1979, 7
    %v1981 = vsub.s32 7, %v1980
    %v1982 = vrot.slane %v1978, %v1981
    %v1983 = vsel %vm41, %v1982, %v1950
    %v1984 = vlaneseq
    %v1985 = vshrl.u32 %v1984, 7
    %v1986 = vsub.s32 7, %v1985
    %v1987 = vrot.slane %v1975, %v1986
    %v1988 = vsel %vm23, %v1987, %v1983
    %v1989 = vlaneseq
    %v1990 = vshrl.u32 %v1989, 7
    %v1991 = vsub.s32 0, %v1990
    %v1992 = vrot.slane %v1950, %v1991
    %v1993 = vsel %vm41, %v1992, %v1845
    %v1994 = vlaneseq
    %v1995 = vshrl.u32 %v1994, 7
    %v1996 = vsub.s32 0, %v1995
    %v1997 = vrot.slane %v1947, %v1996
    %v1998 = vsel %vm23, %v1997, %v1993
    %v1999 = vlaneseq
    %v2000 = vshrl.u32 %v1999, 7
    %v2001 = vsub.s32 2, %v2000
    %v2002 = vrot.slane %v1950, %v2001
    %v2003 = vsel %vm41, %v2002, %v1855
    %v2004 = vlaneseq
    %v2005 = vshrl.u32 %v2004, 7
    %v2006 = vsub.s32 2, %v2005
    %v2007 = vrot.slane %v1947, %v2006
    %v2008 = vsel %vm23, %v2007, %v2003
    %v2009 = vlaneseq
    %v2010 = vshrl.u32 %v2009, 7
    %v2011 = vsub.s32 3, %v2010
    %v2012 = vrot.slane %v1950, %v2011
    %v2013 = vsel %vm41, %v2012, %v1865
    %v2014 = vlaneseq
    %v2015 = vshrl.u32 %v2014, 7
    %v2016 = vsub.s32 3, %v2015
    %v2017 = vrot.slane %v1947, %v2016
    %v2018 = vsel %vm23, %v2017, %v2013
    %v2019 = vlaneseq
    %v2020 = vshrl.u32 %v2019, 7
    %v2021 = vsub.s32 4, %v2020
    %v2022 = vrot.slane %v1950, %v2021
    %v2023 = vsel %vm41, %v2022, %v1875
    %v2024 = vlaneseq
    %v2025 = vshrl.u32 %v2024, 7
    %v2026 = vsub.s32 4, %v2025
    %v2027 = vrot.slane %v1947, %v2026
    %v2028 = vsel %vm23, %v2027, %v2023
    %v2029 = vlaneseq
    %v2030 = vshrl.u32 %v2029, 7
    %v2031 = vsub.s32 5, %v2030
    %v2032 = vrot.slane %v1950, %v2031
    %v2033 = vsel %vm41, %v2032, %v1885
    %v2034 = vlaneseq
    %v2035 = vshrl.u32 %v2034, 7
    %v2036 = vsub.s32 5, %v2035
    %v2037 = vrot.slane %v1947, %v2036
    %v2038 = vsel %vm23, %v2037, %v2033
    %v2039 = vlaneseq
    %v2040 = vshrl.u32 %v2039, 7
    %v2041 = vsub.s32 6, %v2040
    %v2042 = vrot.slane %v1950, %v2041
    %v2043 = vsel %vm41, %v2042, %v1835
    %v2044 = vlaneseq
    %v2045 = vshrl.u32 %v2044, 7
    %v2046 = vsub.s32 6, %v2045
    %v2047 = vrot.slane %v1947, %v2046
    %v2048 = vsel %vm23, %v2047, %v2043
    %v2049 = vmul.f32 %v1940, %v1898
    %v2050 = vmul.f32 %v1944, %v1136
    %v2051 = vsub.f32 %v2049, %v2050
    %v2052 = vmul.f32 %v1944, %v1898
    %v2053 = vmul.f32 %v1940, %v1136
    %v2054 = vadd.f32 %v2052, %v2053
    %v2055 = vand.u32 2147483647, %v2008
    %v2056 = vand.u32 2147483647, %v2018
    %v2058 = vrot.slane %v2056, 1
    %v2060 = vadd.f32 %v2055, %v2058
    %v2061 = vmul.f32 %v2060, 1e-12
    %v2062 = vadd.f32 %v2061, 1e-30
    %v2064 = vrot.slane %v2062, 7
    %vm2066 = vcmp.gt.f32.partialorder %v2055, %v2064
    %v2067 = vsel %vm2066, %v2008, 1.0
    %v2069 = vrot.slane %v2008, 7
    %v2071 = vsub.f32 %v2018, %v2069
    %v2072 = vrcp.pop %v2067
    %v2073 = vmul.f32 %v2072, 0.5
    %v2074 = vmul.f32 %v2071, %v2073
    %v2075 = vmul.f32 %v2074, %v2074
    %v2076 = vadd.f32 %v2075, 1.0
    %v2077 = vrsqrt.pop %v2076
    %vm2078 = vcmp.ge.f32.partialorder %v2074, 0.0
    %v2079 = vsel %vm2078, 1.0, -1.0
    %v2080 = vand.u32 2147483647, %v2074
    %v2081 = vmul.f32 %v2076, %v2077
    %v2082 = vadd.f32 %v2080, %v2081
    %v2083 = vrcp.pop %v2082
    %v2084 = vmul.f32 %v2079, %v2083
    %v2085 = vsel %vm2066, %v2084, 0.0
    %v2086 = vmul.f32 %v2085, %v2085
    %v2087 = vadd.f32 %v2086, 1.0
    %v2088 = vrsqrt.pop %v2087
    %v2089 = vmul.f32 %v2085, %v2088
    %v2090 = vlaneseq
    %v2091 = vshrl.u32 %v2090, 7
    %v2092 = vsub.s32 3, %v2091
    %v2093 = vrot.slane %v2088, %v2092
    %v2094 = vlaneseq
    %v2095 = vshrl.u32 %v2094, 7
    %v2096 = vsub.s32 3, %v2095
    %v2097 = vrot.slane %v2089, %v2096
    %v2098 = vmul.f32 %v2093, %v2008
    %v2099 = vmul.f32 %v2097, %v2018
    %v2100 = vsub.f32 %v2098, %v2099
    %v2101 = vmul.f32 %v2097, %v2008
    %v2102 = vmul.f32 %v2093, %v2018
    %v2103 = vadd.f32 %v2101, %v2102
    %v2105 = vrot.slane %v2100, 7
    %v2107 = vmul.f32 %v2088, %v2105
    %v2108 = vmul.f32 %v2089, %v2100
    %v2109 = vsub.f32 %v2107, %v2108
    %v2110 = vmul.f32 %v2089, %v2105
    %v2111 = vmul.f32 %v2088, %v2100
    %v2112 = vadd.f32 %v2110, %v2111
    %v2113 = vlaneseq
    %v2114 = vshrl.u32 %v2113, 7
    %v2115 = vsub.s32 3, %v2114
    %v2116 = vrot.slane %v2112, %v2115
    %v2117 = vsel %vm29, %v2116, %v2100
    %v2118 = vlaneseq
    %v2119 = vshrl.u32 %v2118, 7
    %v2120 = vsub.s32 3, %v2119
    %v2121 = vrot.slane %v2109, %v2120
    %v2122 = vsel %vm26, %v2121, %v2117
    %v2124 = vrot.slane %v2103, 7
    %v2126 = vmul.f32 %v2088, %v2124
    %v2127 = vmul.f32 %v2089, %v2103
    %v2128 = vsub.f32 %v2126, %v2127
    %v2129 = vmul.f32 %v2089, %v2124
    %v2130 = vmul.f32 %v2088, %v2103
    %v2131 = vadd.f32 %v2129, %v2130
    %v2132 = vlaneseq
    %v2133 = vshrl.u32 %v2132, 7
    %v2134 = vsub.s32 3, %v2133
    %v2135 = vrot.slane %v2131, %v2134
    %v2136 = vsel %vm29, %v2135, %v2103
    %v2137 = vlaneseq
    %v2138 = vshrl.u32 %v2137, 7
    %v2139 = vsub.s32 3, %v2138
    %v2140 = vrot.slane %v2128, %v2139
    %v2141 = vsel %vm26, %v2140, %v2136
    %v2142 = vlaneseq
    %v2143 = vshrl.u32 %v2142, 7
    %v2144 = vsub.s32 0, %v2143
    %v2145 = vrot.slane %v2103, %v2144
    %v2146 = vsel %vm29, %v2145, %v1998
    %v2147 = vlaneseq
    %v2148 = vshrl.u32 %v2147, 7
    %v2149 = vsub.s32 0, %v2148
    %v2150 = vrot.slane %v2100, %v2149
    %v2151 = vsel %vm26, %v2150, %v2146
    %v2152 = vlaneseq
    %v2153 = vshrl.u32 %v2152, 7
    %v2154 = vsub.s32 1, %v2153
    %v2155 = vrot.slane %v2103, %v2154
    %v2156 = vsel %vm29, %v2155, %v1969
    %v2157 = vlaneseq
    %v2158 = vshrl.u32 %v2157, 7
    %v2159 = vsub.s32 1, %v2158
    %v2160 = vrot.slane %v2100, %v2159
    %v2161 = vsel %vm26, %v2160, %v2156
    %v2162 = vlaneseq
    %v2163 = vshrl.u32 %v2162, 7
    %v2164 = vsub.s32 4, %v2163
    %v2165 = vrot.slane %v2103, %v2164
    %v2166 = vsel %vm29, %v2165, %v2028
    %v2167 = vlaneseq
    %v2168 = vshrl.u32 %v2167, 7
    %v2169 = vsub.s32 4, %v2168
    %v2170 = vrot.slane %v2100, %v2169
    %v2171 = vsel %vm26, %v2170, %v2166
    %v2172 = vlaneseq
    %v2173 = vshrl.u32 %v2172, 7
    %v2174 = vsub.s32 5, %v2173
    %v2175 = vrot.slane %v2103, %v2174
    %v2176 = vsel %vm29, %v2175, %v2038
    %v2177 = vlaneseq
    %v2178 = vshrl.u32 %v2177, 7
    %v2179 = vsub.s32 5, %v2178
    %v2180 = vrot.slane %v2100, %v2179
    %v2181 = vsel %vm26, %v2180, %v2176
    %v2182 = vlaneseq
    %v2183 = vshrl.u32 %v2182, 7
    %v2184 = vsub.s32 6, %v2183
    %v2185 = vrot.slane %v2103, %v2184
    %v2186 = vsel %vm29, %v2185, %v2048
    %v2187 = vlaneseq
    %v2188 = vshrl.u32 %v2187, 7
    %v2189 = vsub.s32 6, %v2188
    %v2190 = vrot.slane %v2100, %v2189
    %v2191 = vsel %vm26, %v2190, %v2186
    %v2192 = vlaneseq
    %v2193 = vshrl.u32 %v2192, 7
    %v2194 = vsub.s32 7, %v2193
    %v2195 = vrot.slane %v2103, %v2194
    %v2196 = vsel %vm29, %v2195, %v1988
    %v2197 = vlaneseq
    %v2198 = vshrl.u32 %v2197, 7
    %v2199 = vsub.s32 7, %v2198
    %v2200 = vrot.slane %v2100, %v2199
    %v2201 = vsel %vm26, %v2200, %v2196
    %v2202 = vmul.f32 %v2093, %v1289
    %v2203 = vmul.f32 %v2097, %v1442
    %v2204 = vsub.f32 %v2202, %v2203
    %v2205 = vmul.f32 %v2097, %v1289
    %v2206 = vmul.f32 %v2093, %v1442
    %v2207 = vadd.f32 %v2205, %v2206
    %v2208 = vand.u32 2147483647, %v2122
    %v2209 = vand.u32 2147483647, %v2171
    %v2211 = vrot.slane %v2209, 2
    %v2213 = vadd.f32 %v2208, %v2211
    %v2214 = vmul.f32 %v2213, 1e-12
    %v2215 = vadd.f32 %v2214, 1e-30
    %v2217 = vrot.slane %v2215, 6
    %vm2219 = vcmp.gt.f32.partialorder %v2208, %v2217
    %v2220 = vsel %vm2219, %v2122, 1.0
    %v2222 = vrot.slane %v2122, 6
    %v2224 = vsub.f32 %v2171, %v2222
    %v2225 = vrcp.pop %v2220
    %v2226 = vmul.f32 %v2225, 0.5
    %v2227 = vmul.f32 %v2224, %v2226
    %v2228 = vmul.f32 %v2227, %v2227
    %v2229 = vadd.f32 %v2228, 1.0
    %v2230 = vrsqrt.pop %v2229
    %vm2231 = vcmp.ge.f32.partialorder %v2227, 0.0
    %v2232 = vsel %vm2231, 1.0, -1.0
    %v2233 = vand.u32 2147483647, %v2227
    %v2234 = vmul.f32 %v2229, %v2230
    %v2235 = vadd.f32 %v2233, %v2234
    %v2236 = vrcp.pop %v2235
    %v2237 = vmul.f32 %v2232, %v2236
    %v2238 = vsel %vm2219, %v2237, 0.0
    %v2239 = vmul.f32 %v2238, %v2238
    %v2240 = vadd.f32 %v2239, 1.0
    %v2241 = vrsqrt.pop %v2240
    %v2242 = vmul.f32 %v2238, %v2241
    %v2243 = vlaneseq
    %v2244 = vshrl.u32 %v2243, 7
    %v2245 = vsub.s32 4, %v2244
    %v2246 = vrot.slane %v2241, %v2245
    %v2247 = vlaneseq
    %v2248 = vshrl.u32 %v2247, 7
    %v2249 = vsub.s32 4, %v2248
    %v2250 = vrot.slane %v2242, %v2249
    %v2251 = vmul.f32 %v2246, %v2122
    %v2252 = vmul.f32 %v2250, %v2171
    %v2253 = vsub.f32 %v2251, %v2252
    %v2254 = vmul.f32 %v2250, %v2122
    %v2255 = vmul.f32 %v2246, %v2171
    %v2256 = vadd.f32 %v2254, %v2255
    %v2258 = vrot.slane %v2253, 6
    %v2260 = vmul.f32 %v2241, %v2258
    %v2261 = vmul.f32 %v2242, %v2253
    %v2262 = vsub.f32 %v2260, %v2261
    %v2263 = vmul.f32 %v2242, %v2258
    %v2264 = vmul.f32 %v2241, %v2253
    %v2265 = vadd.f32 %v2263, %v2264
    %v2266 = vlaneseq
    %v2267 = vshrl.u32 %v2266, 7
    %v2268 = vsub.s32 4, %v2267
    %v2269 = vrot.slane %v2265, %v2268
    %v2270 = vsel %vm32, %v2269, %v2253
    %v2271 = vlaneseq
    %v2272 = vshrl.u32 %v2271, 7
    %v2273 = vsub.s32 4, %v2272
    %v2274 = vrot.slane %v2262, %v2273
    %v2275 = vsel %vm26, %v2274, %v2270
    %v2277 = vrot.slane %v2256, 6
    %v2279 = vmul.f32 %v2241, %v2277
    %v2280 = vmul.f32 %v2242, %v2256
    %v2281 = vsub.f32 %v2279, %v2280
    %v2282 = vmul.f32 %v2242, %v2277
    %v2283 = vmul.f32 %v2241, %v2256
    %v2284 = vadd.f32 %v2282, %v2283
    %v2285 = vlaneseq
    %v2286 = vshrl.u32 %v2285, 7
    %v2287 = vsub.s32 4, %v2286
    %v2288 = vrot.slane %v2284, %v2287
    %v2289 = vsel %vm32, %v2288, %v2256
    %v2290 = vlaneseq
    %v2291 = vshrl.u32 %v2290, 7
    %v2292 = vsub.s32 4, %v2291
    %v2293 = vrot.slane %v2281, %v2292
    %v2294 = vsel %vm26, %v2293, %v2289
    %v2295 = vlaneseq
    %v2296 = vshrl.u32 %v2295, 7
    %v2297 = vsub.s32 0, %v2296
    %v2298 = vrot.slane %v2256, %v2297
    %v2299 = vsel %vm32, %v2298, %v2151
    %v2300 = vlaneseq
    %v2301 = vshrl.u32 %v2300, 7
    %v2302 = vsub.s32 0, %v2301
    %v2303 = vrot.slane %v2253, %v2302
    %v2304 = vsel %vm26, %v2303, %v2299
    %v2305 = vlaneseq
    %v2306 = vshrl.u32 %v2305, 7
    %v2307 = vsub.s32 1, %v2306
    %v2308 = vrot.slane %v2256, %v2307
    %v2309 = vsel %vm32, %v2308, %v2161
    %v2310 = vlaneseq
    %v2311 = vshrl.u32 %v2310, 7
    %v2312 = vsub.s32 1, %v2311
    %v2313 = vrot.slane %v2253, %v2312
    %v2314 = vsel %vm26, %v2313, %v2309
    %v2315 = vlaneseq
    %v2316 = vshrl.u32 %v2315, 7
    %v2317 = vsub.s32 3, %v2316
    %v2318 = vrot.slane %v2256, %v2317
    %v2319 = vsel %vm32, %v2318, %v2141
    %v2320 = vlaneseq
    %v2321 = vshrl.u32 %v2320, 7
    %v2322 = vsub.s32 3, %v2321
    %v2323 = vrot.slane %v2253, %v2322
    %v2324 = vsel %vm26, %v2323, %v2319
    %v2325 = vlaneseq
    %v2326 = vshrl.u32 %v2325, 7
    %v2327 = vsub.s32 5, %v2326
    %v2328 = vrot.slane %v2256, %v2327
    %v2329 = vsel %vm32, %v2328, %v2181
    %v2330 = vlaneseq
    %v2331 = vshrl.u32 %v2330, 7
    %v2332 = vsub.s32 5, %v2331
    %v2333 = vrot.slane %v2253, %v2332
    %v2334 = vsel %vm26, %v2333, %v2329
    %v2335 = vlaneseq
    %v2336 = vshrl.u32 %v2335, 7
    %v2337 = vsub.s32 6, %v2336
    %v2338 = vrot.slane %v2256, %v2337
    %v2339 = vsel %vm32, %v2338, %v2191
    %v2340 = vlaneseq
    %v2341 = vshrl.u32 %v2340, 7
    %v2342 = vsub.s32 6, %v2341
    %v2343 = vrot.slane %v2253, %v2342
    %v2344 = vsel %vm26, %v2343, %v2339
    %v2345 = vlaneseq
    %v2346 = vshrl.u32 %v2345, 7
    %v2347 = vsub.s32 7, %v2346
    %v2348 = vrot.slane %v2256, %v2347
    %v2349 = vsel %vm32, %v2348, %v2201
    %v2350 = vlaneseq
    %v2351 = vshrl.u32 %v2350, 7
    %v2352 = vsub.s32 7, %v2351
    %v2353 = vrot.slane %v2253, %v2352
    %v2354 = vsel %vm26, %v2353, %v2349
    %v2355 = vmul.f32 %v2246, %v2204
    %v2356 = vmul.f32 %v2250, %v1595
    %v2357 = vsub.f32 %v2355, %v2356
    %v2358 = vmul.f32 %v2250, %v2204
    %v2359 = vmul.f32 %v2246, %v1595
    %v2360 = vadd.f32 %v2358, %v2359
    %v2361 = vand.u32 2147483647, %v2275
    %v2362 = vand.u32 2147483647, %v2334
    %v2364 = vrot.slane %v2362, 3
    %v2366 = vadd.f32 %v2361, %v2364
    %v2367 = vmul.f32 %v2366, 1e-12
    %v2368 = vadd.f32 %v2367, 1e-30
    %v2370 = vrot.slane %v2368, 5
    %vm2372 = vcmp.gt.f32.partialorder %v2361, %v2370
    %v2373 = vsel %vm2372, %v2275, 1.0
    %v2375 = vrot.slane %v2275, 5
    %v2377 = vsub.f32 %v2334, %v2375
    %v2378 = vrcp.pop %v2373
    %v2379 = vmul.f32 %v2378, 0.5
    %v2380 = vmul.f32 %v2377, %v2379
    %v2381 = vmul.f32 %v2380, %v2380
    %v2382 = vadd.f32 %v2381, 1.0
    %v2383 = vrsqrt.pop %v2382
    %vm2384 = vcmp.ge.f32.partialorder %v2380, 0.0
    %v2385 = vsel %vm2384, 1.0, -1.0
    %v2386 = vand.u32 2147483647, %v2380
    %v2387 = vmul.f32 %v2382, %v2383
    %v2388 = vadd.f32 %v2386, %v2387
    %v2389 = vrcp.pop %v2388
    %v2390 = vmul.f32 %v2385, %v2389
    %v2391 = vsel %vm2372, %v2390, 0.0
    %v2392 = vmul.f32 %v2391, %v2391
    %v2393 = vadd.f32 %v2392, 1.0
    %v2394 = vrsqrt.pop %v2393
    %v2395 = vmul.f32 %v2391, %v2394
    %v2396 = vlaneseq
    %v2397 = vshrl.u32 %v2396, 7
    %v2398 = vsub.s32 5, %v2397
    %v2399 = vrot.slane %v2394, %v2398
    %v2400 = vlaneseq
    %v2401 = vshrl.u32 %v2400, 7
    %v2402 = vsub.s32 5, %v2401
    %v2403 = vrot.slane %v2395, %v2402
    %v2404 = vmul.f32 %v2399, %v2275
    %v2405 = vmul.f32 %v2403, %v2334
    %v2406 = vsub.f32 %v2404, %v2405
    %v2407 = vmul.f32 %v2403, %v2275
    %v2408 = vmul.f32 %v2399, %v2334
    %v2409 = vadd.f32 %v2407, %v2408
    %v2411 = vrot.slane %v2406, 5
    %v2413 = vmul.f32 %v2394, %v2411
    %v2414 = vmul.f32 %v2395, %v2406
    %v2415 = vsub.f32 %v2413, %v2414
    %v2416 = vmul.f32 %v2395, %v2411
    %v2417 = vmul.f32 %v2394, %v2406
    %v2418 = vadd.f32 %v2416, %v2417
    %v2419 = vlaneseq
    %v2420 = vshrl.u32 %v2419, 7
    %v2421 = vsub.s32 5, %v2420
    %v2422 = vrot.slane %v2418, %v2421
    %v2423 = vsel %vm35, %v2422, %v2406
    %v2424 = vlaneseq
    %v2425 = vshrl.u32 %v2424, 7
    %v2426 = vsub.s32 5, %v2425
    %v2427 = vrot.slane %v2415, %v2426
    %v2428 = vsel %vm26, %v2427, %v2423
    %v2430 = vrot.slane %v2409, 5
    %v2432 = vmul.f32 %v2394, %v2430
    %v2433 = vmul.f32 %v2395, %v2409
    %v2434 = vsub.f32 %v2432, %v2433
    %v2435 = vmul.f32 %v2395, %v2430
    %v2436 = vmul.f32 %v2394, %v2409
    %v2437 = vadd.f32 %v2435, %v2436
    %v2438 = vlaneseq
    %v2439 = vshrl.u32 %v2438, 7
    %v2440 = vsub.s32 5, %v2439
    %v2441 = vrot.slane %v2437, %v2440
    %v2442 = vsel %vm35, %v2441, %v2409
    %v2443 = vlaneseq
    %v2444 = vshrl.u32 %v2443, 7
    %v2445 = vsub.s32 5, %v2444
    %v2446 = vrot.slane %v2434, %v2445
    %v2447 = vsel %vm26, %v2446, %v2442
    %v2448 = vlaneseq
    %v2449 = vshrl.u32 %v2448, 7
    %v2450 = vsub.s32 0, %v2449
    %v2451 = vrot.slane %v2409, %v2450
    %v2452 = vsel %vm35, %v2451, %v2304
    %v2453 = vlaneseq
    %v2454 = vshrl.u32 %v2453, 7
    %v2455 = vsub.s32 0, %v2454
    %v2456 = vrot.slane %v2406, %v2455
    %v2457 = vsel %vm26, %v2456, %v2452
    %v2458 = vlaneseq
    %v2459 = vshrl.u32 %v2458, 7
    %v2460 = vsub.s32 1, %v2459
    %v2461 = vrot.slane %v2409, %v2460
    %v2462 = vsel %vm35, %v2461, %v2314
    %v2463 = vlaneseq
    %v2464 = vshrl.u32 %v2463, 7
    %v2465 = vsub.s32 1, %v2464
    %v2466 = vrot.slane %v2406, %v2465
    %v2467 = vsel %vm26, %v2466, %v2462
    %v2468 = vlaneseq
    %v2469 = vshrl.u32 %v2468, 7
    %v2470 = vsub.s32 3, %v2469
    %v2471 = vrot.slane %v2409, %v2470
    %v2472 = vsel %vm35, %v2471, %v2324
    %v2473 = vlaneseq
    %v2474 = vshrl.u32 %v2473, 7
    %v2475 = vsub.s32 3, %v2474
    %v2476 = vrot.slane %v2406, %v2475
    %v2477 = vsel %vm26, %v2476, %v2472
    %v2478 = vlaneseq
    %v2479 = vshrl.u32 %v2478, 7
    %v2480 = vsub.s32 4, %v2479
    %v2481 = vrot.slane %v2409, %v2480
    %v2482 = vsel %vm35, %v2481, %v2294
    %v2483 = vlaneseq
    %v2484 = vshrl.u32 %v2483, 7
    %v2485 = vsub.s32 4, %v2484
    %v2486 = vrot.slane %v2406, %v2485
    %v2487 = vsel %vm26, %v2486, %v2482
    %v2488 = vlaneseq
    %v2489 = vshrl.u32 %v2488, 7
    %v2490 = vsub.s32 6, %v2489
    %v2491 = vrot.slane %v2409, %v2490
    %v2492 = vsel %vm35, %v2491, %v2344
    %v2493 = vlaneseq
    %v2494 = vshrl.u32 %v2493, 7
    %v2495 = vsub.s32 6, %v2494
    %v2496 = vrot.slane %v2406, %v2495
    %v2497 = vsel %vm26, %v2496, %v2492
    %v2498 = vlaneseq
    %v2499 = vshrl.u32 %v2498, 7
    %v2500 = vsub.s32 7, %v2499
    %v2501 = vrot.slane %v2409, %v2500
    %v2502 = vsel %vm35, %v2501, %v2354
    %v2503 = vlaneseq
    %v2504 = vshrl.u32 %v2503, 7
    %v2505 = vsub.s32 7, %v2504
    %v2506 = vrot.slane %v2406, %v2505
    %v2507 = vsel %vm26, %v2506, %v2502
    %v2508 = vmul.f32 %v2399, %v2357
    %v2509 = vmul.f32 %v2403, %v1748
    %v2510 = vsub.f32 %v2508, %v2509
    %v2511 = vmul.f32 %v2403, %v2357
    %v2512 = vmul.f32 %v2399, %v1748
    %v2513 = vadd.f32 %v2511, %v2512
    %v2514 = vand.u32 2147483647, %v2428
    %v2515 = vand.u32 2147483647, %v2497
    %v2517 = vrot.slane %v2515, 4
    %v2519 = vadd.f32 %v2514, %v2517
    %v2520 = vmul.f32 %v2519, 1e-12
    %v2521 = vadd.f32 %v2520, 1e-30
    %v2523 = vrot.slane %v2521, 4
    %vm2525 = vcmp.gt.f32.partialorder %v2514, %v2523
    %v2526 = vsel %vm2525, %v2428, 1.0
    %v2528 = vrot.slane %v2428, 4
    %v2530 = vsub.f32 %v2497, %v2528
    %v2531 = vrcp.pop %v2526
    %v2532 = vmul.f32 %v2531, 0.5
    %v2533 = vmul.f32 %v2530, %v2532
    %v2534 = vmul.f32 %v2533, %v2533
    %v2535 = vadd.f32 %v2534, 1.0
    %v2536 = vrsqrt.pop %v2535
    %vm2537 = vcmp.ge.f32.partialorder %v2533, 0.0
    %v2538 = vsel %vm2537, 1.0, -1.0
    %v2539 = vand.u32 2147483647, %v2533
    %v2540 = vmul.f32 %v2535, %v2536
    %v2541 = vadd.f32 %v2539, %v2540
    %v2542 = vrcp.pop %v2541
    %v2543 = vmul.f32 %v2538, %v2542
    %v2544 = vsel %vm2525, %v2543, 0.0
    %v2545 = vmul.f32 %v2544, %v2544
    %v2546 = vadd.f32 %v2545, 1.0
    %v2547 = vrsqrt.pop %v2546
    %v2548 = vmul.f32 %v2544, %v2547
    %v2549 = vlaneseq
    %v2550 = vshrl.u32 %v2549, 7
    %v2551 = vsub.s32 6, %v2550
    %v2552 = vrot.slane %v2547, %v2551
    %v2553 = vlaneseq
    %v2554 = vshrl.u32 %v2553, 7
    %v2555 = vsub.s32 6, %v2554
    %v2556 = vrot.slane %v2548, %v2555
    %v2557 = vmul.f32 %v2552, %v2428
    %v2558 = vmul.f32 %v2556, %v2497
    %v2559 = vsub.f32 %v2557, %v2558
    %v2560 = vmul.f32 %v2556, %v2428
    %v2561 = vmul.f32 %v2552, %v2497
    %v2562 = vadd.f32 %v2560, %v2561
    %v2564 = vrot.slane %v2559, 4
    %v2566 = vmul.f32 %v2547, %v2564
    %v2567 = vmul.f32 %v2548, %v2559
    %v2568 = vsub.f32 %v2566, %v2567
    %v2569 = vmul.f32 %v2548, %v2564
    %v2570 = vmul.f32 %v2547, %v2559
    %v2571 = vadd.f32 %v2569, %v2570
    %v2572 = vlaneseq
    %v2573 = vshrl.u32 %v2572, 7
    %v2574 = vsub.s32 6, %v2573
    %v2575 = vrot.slane %v2571, %v2574
    %v2576 = vsel %vm38, %v2575, %v2559
    %v2577 = vlaneseq
    %v2578 = vshrl.u32 %v2577, 7
    %v2579 = vsub.s32 6, %v2578
    %v2580 = vrot.slane %v2568, %v2579
    %v2581 = vsel %vm26, %v2580, %v2576
    %v2583 = vrot.slane %v2562, 4
    %v2585 = vmul.f32 %v2547, %v2583
    %v2586 = vmul.f32 %v2548, %v2562
    %v2587 = vsub.f32 %v2585, %v2586
    %v2588 = vmul.f32 %v2548, %v2583
    %v2589 = vmul.f32 %v2547, %v2562
    %v2590 = vadd.f32 %v2588, %v2589
    %v2591 = vlaneseq
    %v2592 = vshrl.u32 %v2591, 7
    %v2593 = vsub.s32 6, %v2592
    %v2594 = vrot.slane %v2590, %v2593
    %v2595 = vsel %vm38, %v2594, %v2562
    %v2596 = vlaneseq
    %v2597 = vshrl.u32 %v2596, 7
    %v2598 = vsub.s32 6, %v2597
    %v2599 = vrot.slane %v2587, %v2598
    %v2600 = vsel %vm26, %v2599, %v2595
    %v2601 = vlaneseq
    %v2602 = vshrl.u32 %v2601, 7
    %v2603 = vsub.s32 0, %v2602
    %v2604 = vrot.slane %v2562, %v2603
    %v2605 = vsel %vm38, %v2604, %v2457
    %v2606 = vlaneseq
    %v2607 = vshrl.u32 %v2606, 7
    %v2608 = vsub.s32 0, %v2607
    %v2609 = vrot.slane %v2559, %v2608
    %v2610 = vsel %vm26, %v2609, %v2605
    %v2611 = vlaneseq
    %v2612 = vshrl.u32 %v2611, 7
    %v2613 = vsub.s32 1, %v2612
    %v2614 = vrot.slane %v2562, %v2613
    %v2615 = vsel %vm38, %v2614, %v2467
    %v2616 = vlaneseq
    %v2617 = vshrl.u32 %v2616, 7
    %v2618 = vsub.s32 1, %v2617
    %v2619 = vrot.slane %v2559, %v2618
    %v2620 = vsel %vm26, %v2619, %v2615
    %v2621 = vlaneseq
    %v2622 = vshrl.u32 %v2621, 7
    %v2623 = vsub.s32 3, %v2622
    %v2624 = vrot.slane %v2562, %v2623
    %v2625 = vsel %vm38, %v2624, %v2477
    %v2626 = vlaneseq
    %v2627 = vshrl.u32 %v2626, 7
    %v2628 = vsub.s32 3, %v2627
    %v2629 = vrot.slane %v2559, %v2628
    %v2630 = vsel %vm26, %v2629, %v2625
    %v2631 = vlaneseq
    %v2632 = vshrl.u32 %v2631, 7
    %v2633 = vsub.s32 4, %v2632
    %v2634 = vrot.slane %v2562, %v2633
    %v2635 = vsel %vm38, %v2634, %v2487
    %v2636 = vlaneseq
    %v2637 = vshrl.u32 %v2636, 7
    %v2638 = vsub.s32 4, %v2637
    %v2639 = vrot.slane %v2559, %v2638
    %v2640 = vsel %vm26, %v2639, %v2635
    %v2641 = vlaneseq
    %v2642 = vshrl.u32 %v2641, 7
    %v2643 = vsub.s32 5, %v2642
    %v2644 = vrot.slane %v2562, %v2643
    %v2645 = vsel %vm38, %v2644, %v2447
    %v2646 = vlaneseq
    %v2647 = vshrl.u32 %v2646, 7
    %v2648 = vsub.s32 5, %v2647
    %v2649 = vrot.slane %v2559, %v2648
    %v2650 = vsel %vm26, %v2649, %v2645
    %v2651 = vlaneseq
    %v2652 = vshrl.u32 %v2651, 7
    %v2653 = vsub.s32 7, %v2652
    %v2654 = vrot.slane %v2562, %v2653
    %v2655 = vsel %vm38, %v2654, %v2507
    %v2656 = vlaneseq
    %v2657 = vshrl.u32 %v2656, 7
    %v2658 = vsub.s32 7, %v2657
    %v2659 = vrot.slane %v2559, %v2658
    %v2660 = vsel %vm26, %v2659, %v2655
    %v2661 = vmul.f32 %v2552, %v2510
    %v2662 = vmul.f32 %v2556, %v1901
    %v2663 = vsub.f32 %v2661, %v2662
    %v2664 = vmul.f32 %v2556, %v2510
    %v2665 = vmul.f32 %v2552, %v1901
    %v2666 = vadd.f32 %v2664, %v2665
    %v2667 = vand.u32 2147483647, %v2581
    %v2668 = vand.u32 2147483647, %v2660
    %v2670 = vrot.slane %v2668, 5
    %v2672 = vadd.f32 %v2667, %v2670
    %v2673 = vmul.f32 %v2672, 1e-12
    %v2674 = vadd.f32 %v2673, 1e-30
    %v2676 = vrot.slane %v2674, 3
    %vm2678 = vcmp.gt.f32.partialorder %v2667, %v2676
    %v2679 = vsel %vm2678, %v2581, 1.0
    %v2681 = vrot.slane %v2581, 3
    %v2683 = vsub.f32 %v2660, %v2681
    %v2684 = vrcp.pop %v2679
    %v2685 = vmul.f32 %v2684, 0.5
    %v2686 = vmul.f32 %v2683, %v2685
    %v2687 = vmul.f32 %v2686, %v2686
    %v2688 = vadd.f32 %v2687, 1.0
    %v2689 = vrsqrt.pop %v2688
    %vm2690 = vcmp.ge.f32.partialorder %v2686, 0.0
    %v2691 = vsel %vm2690, 1.0, -1.0
    %v2692 = vand.u32 2147483647, %v2686
    %v2693 = vmul.f32 %v2688, %v2689
    %v2694 = vadd.f32 %v2692, %v2693
    %v2695 = vrcp.pop %v2694
    %v2696 = vmul.f32 %v2691, %v2695
    %v2697 = vsel %vm2678, %v2696, 0.0
    %v2698 = vmul.f32 %v2697, %v2697
    %v2699 = vadd.f32 %v2698, 1.0
    %v2700 = vrsqrt.pop %v2699
    %v2701 = vmul.f32 %v2697, %v2700
    %v2702 = vlaneseq
    %v2703 = vshrl.u32 %v2702, 7
    %v2704 = vsub.s32 7, %v2703
    %v2705 = vrot.slane %v2700, %v2704
    %v2706 = vlaneseq
    %v2707 = vshrl.u32 %v2706, 7
    %v2708 = vsub.s32 7, %v2707
    %v2709 = vrot.slane %v2701, %v2708
    %v2710 = vmul.f32 %v2705, %v2581
    %v2711 = vmul.f32 %v2709, %v2660
    %v2712 = vsub.f32 %v2710, %v2711
    %v2713 = vmul.f32 %v2709, %v2581
    %v2714 = vmul.f32 %v2705, %v2660
    %v2715 = vadd.f32 %v2713, %v2714
    %v2717 = vrot.slane %v2712, 3
    %v2719 = vmul.f32 %v2700, %v2717
    %v2720 = vmul.f32 %v2701, %v2712
    %v2721 = vsub.f32 %v2719, %v2720
    %v2722 = vmul.f32 %v2701, %v2717
    %v2723 = vmul.f32 %v2700, %v2712
    %v2724 = vadd.f32 %v2722, %v2723
    %v2725 = vlaneseq
    %v2726 = vshrl.u32 %v2725, 7
    %v2727 = vsub.s32 7, %v2726
    %v2728 = vrot.slane %v2724, %v2727
    %v2729 = vsel %vm41, %v2728, %v2712
    %v2730 = vlaneseq
    %v2731 = vshrl.u32 %v2730, 7
    %v2732 = vsub.s32 7, %v2731
    %v2733 = vrot.slane %v2721, %v2732
    %v2734 = vsel %vm26, %v2733, %v2729
    %v2736 = vrot.slane %v2715, 3
    %v2738 = vmul.f32 %v2700, %v2736
    %v2739 = vmul.f32 %v2701, %v2715
    %v2740 = vsub.f32 %v2738, %v2739
    %v2741 = vmul.f32 %v2701, %v2736
    %v2742 = vmul.f32 %v2700, %v2715
    %v2743 = vadd.f32 %v2741, %v2742
    %v2744 = vlaneseq
    %v2745 = vshrl.u32 %v2744, 7
    %v2746 = vsub.s32 7, %v2745
    %v2747 = vrot.slane %v2743, %v2746
    %v2748 = vsel %vm41, %v2747, %v2715
    %v2749 = vlaneseq
    %v2750 = vshrl.u32 %v2749, 7
    %v2751 = vsub.s32 7, %v2750
    %v2752 = vrot.slane %v2740, %v2751
    %v2753 = vsel %vm26, %v2752, %v2748
    %v2754 = vlaneseq
    %v2755 = vshrl.u32 %v2754, 7
    %v2756 = vsub.s32 0, %v2755
    %v2757 = vrot.slane %v2715, %v2756
    %v2758 = vsel %vm41, %v2757, %v2610
    %v2759 = vlaneseq
    %v2760 = vshrl.u32 %v2759, 7
    %v2761 = vsub.s32 0, %v2760
    %v2762 = vrot.slane %v2712, %v2761
    %v2763 = vsel %vm26, %v2762, %v2758
    %v2764 = vlaneseq
    %v2765 = vshrl.u32 %v2764, 7
    %v2766 = vsub.s32 1, %v2765
    %v2767 = vrot.slane %v2715, %v2766
    %v2768 = vsel %vm41, %v2767, %v2620
    %v2769 = vlaneseq
    %v2770 = vshrl.u32 %v2769, 7
    %v2771 = vsub.s32 1, %v2770
    %v2772 = vrot.slane %v2712, %v2771
    %v2773 = vsel %vm26, %v2772, %v2768
    %v2774 = vlaneseq
    %v2775 = vshrl.u32 %v2774, 7
    %v2776 = vsub.s32 3, %v2775
    %v2777 = vrot.slane %v2715, %v2776
    %v2778 = vsel %vm41, %v2777, %v2630
    %v2779 = vlaneseq
    %v2780 = vshrl.u32 %v2779, 7
    %v2781 = vsub.s32 3, %v2780
    %v2782 = vrot.slane %v2712, %v2781
    %v2783 = vsel %vm26, %v2782, %v2778
    %v2784 = vlaneseq
    %v2785 = vshrl.u32 %v2784, 7
    %v2786 = vsub.s32 4, %v2785
    %v2787 = vrot.slane %v2715, %v2786
    %v2788 = vsel %vm41, %v2787, %v2640
    %v2789 = vlaneseq
    %v2790 = vshrl.u32 %v2789, 7
    %v2791 = vsub.s32 4, %v2790
    %v2792 = vrot.slane %v2712, %v2791
    %v2793 = vsel %vm26, %v2792, %v2788
    %v2794 = vlaneseq
    %v2795 = vshrl.u32 %v2794, 7
    %v2796 = vsub.s32 5, %v2795
    %v2797 = vrot.slane %v2715, %v2796
    %v2798 = vsel %vm41, %v2797, %v2650
    %v2799 = vlaneseq
    %v2800 = vshrl.u32 %v2799, 7
    %v2801 = vsub.s32 5, %v2800
    %v2802 = vrot.slane %v2712, %v2801
    %v2803 = vsel %vm26, %v2802, %v2798
    %v2804 = vlaneseq
    %v2805 = vshrl.u32 %v2804, 7
    %v2806 = vsub.s32 6, %v2805
    %v2807 = vrot.slane %v2715, %v2806
    %v2808 = vsel %vm41, %v2807, %v2600
    %v2809 = vlaneseq
    %v2810 = vshrl.u32 %v2809, 7
    %v2811 = vsub.s32 6, %v2810
    %v2812 = vrot.slane %v2712, %v2811
    %v2813 = vsel %vm26, %v2812, %v2808
    %v2814 = vmul.f32 %v2705, %v2663
    %v2815 = vmul.f32 %v2709, %v2054
    %v2816 = vsub.f32 %v2814, %v2815
    %v2817 = vmul.f32 %v2709, %v2663
    %v2818 = vmul.f32 %v2705, %v2054
    %v2819 = vadd.f32 %v2817, %v2818
    %v2820 = vand.u32 2147483647, %v2783
    %v2821 = vand.u32 2147483647, %v2793
    %v2823 = vrot.slane %v2821, 1
    %v2825 = vadd.f32 %v2820, %v2823
    %v2826 = vmul.f32 %v2825, 1e-12
    %v2827 = vadd.f32 %v2826, 1e-30
    %v2829 = vrot.slane %v2827, 7
    %vm2831 = vcmp.gt.f32.partialorder %v2820, %v2829
    %v2832 = vsel %vm2831, %v2783, 1.0
    %v2834 = vrot.slane %v2783, 7
    %v2836 = vsub.f32 %v2793, %v2834
    %v2837 = vrcp.pop %v2832
    %v2838 = vmul.f32 %v2837, 0.5
    %v2839 = vmul.f32 %v2836, %v2838
    %v2840 = vmul.f32 %v2839, %v2839
    %v2841 = vadd.f32 %v2840, 1.0
    %v2842 = vrsqrt.pop %v2841
    %vm2843 = vcmp.ge.f32.partialorder %v2839, 0.0
    %v2844 = vsel %vm2843, 1.0, -1.0
    %v2845 = vand.u32 2147483647, %v2839
    %v2846 = vmul.f32 %v2841, %v2842
    %v2847 = vadd.f32 %v2845, %v2846
    %v2848 = vrcp.pop %v2847
    %v2849 = vmul.f32 %v2844, %v2848
    %v2850 = vsel %vm2831, %v2849, 0.0
    %v2851 = vmul.f32 %v2850, %v2850
    %v2852 = vadd.f32 %v2851, 1.0
    %v2853 = vrsqrt.pop %v2852
    %v2854 = vmul.f32 %v2850, %v2853
    %v2855 = vlaneseq
    %v2856 = vshrl.u32 %v2855, 7
    %v2857 = vsub.s32 4, %v2856
    %v2858 = vrot.slane %v2853, %v2857
    %v2859 = vlaneseq
    %v2860 = vshrl.u32 %v2859, 7
    %v2861 = vsub.s32 4, %v2860
    %v2862 = vrot.slane %v2854, %v2861
    %v2863 = vmul.f32 %v2858, %v2783
    %v2864 = vmul.f32 %v2862, %v2793
    %v2865 = vsub.f32 %v2863, %v2864
    %v2866 = vmul.f32 %v2862, %v2783
    %v2867 = vmul.f32 %v2858, %v2793
    %v2868 = vadd.f32 %v2866, %v2867
    %v2870 = vrot.slane %v2865, 7
    %v2872 = vmul.f32 %v2853, %v2870
    %v2873 = vmul.f32 %v2854, %v2865
    %v2874 = vsub.f32 %v2872, %v2873
    %v2875 = vmul.f32 %v2854, %v2870
    %v2876 = vmul.f32 %v2853, %v2865
    %v2877 = vadd.f32 %v2875, %v2876
    %v2878 = vlaneseq
    %v2879 = vshrl.u32 %v2878, 7
    %v2880 = vsub.s32 4, %v2879
    %v2881 = vrot.slane %v2877, %v2880
    %v2882 = vsel %vm32, %v2881, %v2865
    %v2883 = vlaneseq
    %v2884 = vshrl.u32 %v2883, 7
    %v2885 = vsub.s32 4, %v2884
    %v2886 = vrot.slane %v2874, %v2885
    %v2887 = vsel %vm29, %v2886, %v2882
    %v2889 = vrot.slane %v2868, 7
    %v2891 = vmul.f32 %v2853, %v2889
    %v2892 = vmul.f32 %v2854, %v2868
    %v2893 = vsub.f32 %v2891, %v2892
    %v2894 = vmul.f32 %v2854, %v2889
    %v2895 = vmul.f32 %v2853, %v2868
    %v2896 = vadd.f32 %v2894, %v2895
    %v2897 = vlaneseq
    %v2898 = vshrl.u32 %v2897, 7
    %v2899 = vsub.s32 4, %v2898
    %v2900 = vrot.slane %v2896, %v2899
    %v2901 = vsel %vm32, %v2900, %v2868
    %v2902 = vlaneseq
    %v2903 = vshrl.u32 %v2902, 7
    %v2904 = vsub.s32 4, %v2903
    %v2905 = vrot.slane %v2893, %v2904
    %v2906 = vsel %vm29, %v2905, %v2901
    %v2907 = vlaneseq
    %v2908 = vshrl.u32 %v2907, 7
    %v2909 = vsub.s32 0, %v2908
    %v2910 = vrot.slane %v2868, %v2909
    %v2911 = vsel %vm32, %v2910, %v2763
    %v2912 = vlaneseq
    %v2913 = vshrl.u32 %v2912, 7
    %v2914 = vsub.s32 0, %v2913
    %v2915 = vrot.slane %v2865, %v2914
    %v2916 = vsel %vm29, %v2915, %v2911
    %v2917 = vlaneseq
    %v2918 = vshrl.u32 %v2917, 7
    %v2919 = vsub.s32 1, %v2918
    %v2920 = vrot.slane %v2868, %v2919
    %v2921 = vsel %vm32, %v2920, %v2773
    %v2922 = vlaneseq
    %v2923 = vshrl.u32 %v2922, 7
    %v2924 = vsub.s32 1, %v2923
    %v2925 = vrot.slane %v2865, %v2924
    %v2926 = vsel %vm29, %v2925, %v2921
    %v2927 = vlaneseq
    %v2928 = vshrl.u32 %v2927, 7
    %v2929 = vsub.s32 2, %v2928
    %v2930 = vrot.slane %v2868, %v2929
    %v2931 = vsel %vm32, %v2930, %v2734
    %v2932 = vlaneseq
    %v2933 = vshrl.u32 %v2932, 7
    %v2934 = vsub.s32 2, %v2933
    %v2935 = vrot.slane %v2865, %v2934
    %v2936 = vsel %vm29, %v2935, %v2931
    %v2937 = vlaneseq
    %v2938 = vshrl.u32 %v2937, 7
    %v2939 = vsub.s32 5, %v2938
    %v2940 = vrot.slane %v2868, %v2939
    %v2941 = vsel %vm32, %v2940, %v2803
    %v2942 = vlaneseq
    %v2943 = vshrl.u32 %v2942, 7
    %v2944 = vsub.s32 5, %v2943
    %v2945 = vrot.slane %v2865, %v2944
    %v2946 = vsel %vm29, %v2945, %v2941
    %v2947 = vlaneseq
    %v2948 = vshrl.u32 %v2947, 7
    %v2949 = vsub.s32 6, %v2948
    %v2950 = vrot.slane %v2868, %v2949
    %v2951 = vsel %vm32, %v2950, %v2813
    %v2952 = vlaneseq
    %v2953 = vshrl.u32 %v2952, 7
    %v2954 = vsub.s32 6, %v2953
    %v2955 = vrot.slane %v2865, %v2954
    %v2956 = vsel %vm29, %v2955, %v2951
    %v2957 = vlaneseq
    %v2958 = vshrl.u32 %v2957, 7
    %v2959 = vsub.s32 7, %v2958
    %v2960 = vrot.slane %v2868, %v2959
    %v2961 = vsel %vm32, %v2960, %v2753
    %v2962 = vlaneseq
    %v2963 = vshrl.u32 %v2962, 7
    %v2964 = vsub.s32 7, %v2963
    %v2965 = vrot.slane %v2865, %v2964
    %v2966 = vsel %vm29, %v2965, %v2961
    %v2967 = vmul.f32 %v2858, %v2207
    %v2968 = vmul.f32 %v2862, %v2360
    %v2969 = vsub.f32 %v2967, %v2968
    %v2970 = vmul.f32 %v2862, %v2207
    %v2971 = vmul.f32 %v2858, %v2360
    %v2972 = vadd.f32 %v2970, %v2971
    %v2973 = vand.u32 2147483647, %v2887
    %v2974 = vand.u32 2147483647, %v2946
    %v2976 = vrot.slane %v2974, 2
    %v2978 = vadd.f32 %v2973, %v2976
    %v2979 = vmul.f32 %v2978, 1e-12
    %v2980 = vadd.f32 %v2979, 1e-30
    %v2982 = vrot.slane %v2980, 6
    %vm2984 = vcmp.gt.f32.partialorder %v2973, %v2982
    %v2985 = vsel %vm2984, %v2887, 1.0
    %v2987 = vrot.slane %v2887, 6
    %v2989 = vsub.f32 %v2946, %v2987
    %v2990 = vrcp.pop %v2985
    %v2991 = vmul.f32 %v2990, 0.5
    %v2992 = vmul.f32 %v2989, %v2991
    %v2993 = vmul.f32 %v2992, %v2992
    %v2994 = vadd.f32 %v2993, 1.0
    %v2995 = vrsqrt.pop %v2994
    %vm2996 = vcmp.ge.f32.partialorder %v2992, 0.0
    %v2997 = vsel %vm2996, 1.0, -1.0
    %v2998 = vand.u32 2147483647, %v2992
    %v2999 = vmul.f32 %v2994, %v2995
    %v3000 = vadd.f32 %v2998, %v2999
    %v3001 = vrcp.pop %v3000
    %v3002 = vmul.f32 %v2997, %v3001
    %v3003 = vsel %vm2984, %v3002, 0.0
    %v3004 = vmul.f32 %v3003, %v3003
    %v3005 = vadd.f32 %v3004, 1.0
    %v3006 = vrsqrt.pop %v3005
    %v3007 = vmul.f32 %v3003, %v3006
    %v3008 = vlaneseq
    %v3009 = vshrl.u32 %v3008, 7
    %v3010 = vsub.s32 5, %v3009
    %v3011 = vrot.slane %v3006, %v3010
    %v3012 = vlaneseq
    %v3013 = vshrl.u32 %v3012, 7
    %v3014 = vsub.s32 5, %v3013
    %v3015 = vrot.slane %v3007, %v3014
    %v3016 = vmul.f32 %v3011, %v2887
    %v3017 = vmul.f32 %v3015, %v2946
    %v3018 = vsub.f32 %v3016, %v3017
    %v3019 = vmul.f32 %v3015, %v2887
    %v3020 = vmul.f32 %v3011, %v2946
    %v3021 = vadd.f32 %v3019, %v3020
    %v3023 = vrot.slane %v3018, 6
    %v3025 = vmul.f32 %v3006, %v3023
    %v3026 = vmul.f32 %v3007, %v3018
    %v3027 = vsub.f32 %v3025, %v3026
    %v3028 = vmul.f32 %v3007, %v3023
    %v3029 = vmul.f32 %v3006, %v3018
    %v3030 = vadd.f32 %v3028, %v3029
    %v3031 = vlaneseq
    %v3032 = vshrl.u32 %v3031, 7
    %v3033 = vsub.s32 5, %v3032
    %v3034 = vrot.slane %v3030, %v3033
    %v3035 = vsel %vm35, %v3034, %v3018
    %v3036 = vlaneseq
    %v3037 = vshrl.u32 %v3036, 7
    %v3038 = vsub.s32 5, %v3037
    %v3039 = vrot.slane %v3027, %v3038
    %v3040 = vsel %vm29, %v3039, %v3035
    %v3042 = vrot.slane %v3021, 6
    %v3044 = vmul.f32 %v3006, %v3042
    %v3045 = vmul.f32 %v3007, %v3021
    %v3046 = vsub.f32 %v3044, %v3045
    %v3047 = vmul.f32 %v3007, %v3042
    %v3048 = vmul.f32 %v3006, %v3021
    %v3049 = vadd.f32 %v3047, %v3048
    %v3050 = vlaneseq
    %v3051 = vshrl.u32 %v3050, 7
    %v3052 = vsub.s32 5, %v3051
    %v3053 = vrot.slane %v3049, %v3052
    %v3054 = vsel %vm35, %v3053, %v3021
    %v3055 = vlaneseq
    %v3056 = vshrl.u32 %v3055, 7
    %v3057 = vsub.s32 5, %v3056
    %v3058 = vrot.slane %v3046, %v3057
    %v3059 = vsel %vm29, %v3058, %v3054
    %v3060 = vlaneseq
    %v3061 = vshrl.u32 %v3060, 7
    %v3062 = vsub.s32 0, %v3061
    %v3063 = vrot.slane %v3021, %v3062
    %v3064 = vsel %vm35, %v3063, %v2916
    %v3065 = vlaneseq
    %v3066 = vshrl.u32 %v3065, 7
    %v3067 = vsub.s32 0, %v3066
    %v3068 = vrot.slane %v3018, %v3067
    %v3069 = vsel %vm29, %v3068, %v3064
    %v3070 = vlaneseq
    %v3071 = vshrl.u32 %v3070, 7
    %v3072 = vsub.s32 1, %v3071
    %v3073 = vrot.slane %v3021, %v3072
    %v3074 = vsel %vm35, %v3073, %v2926
    %v3075 = vlaneseq
    %v3076 = vshrl.u32 %v3075, 7
    %v3077 = vsub.s32 1, %v3076
    %v3078 = vrot.slane %v3018, %v3077
    %v3079 = vsel %vm29, %v3078, %v3074
    %v3080 = vlaneseq
    %v3081 = vshrl.u32 %v3080, 7
    %v3082 = vsub.s32 2, %v3081
    %v3083 = vrot.slane %v3021, %v3082
    %v3084 = vsel %vm35, %v3083, %v2936
    %v3085 = vlaneseq
    %v3086 = vshrl.u32 %v3085, 7
    %v3087 = vsub.s32 2, %v3086
    %v3088 = vrot.slane %v3018, %v3087
    %v3089 = vsel %vm29, %v3088, %v3084
    %v3090 = vlaneseq
    %v3091 = vshrl.u32 %v3090, 7
    %v3092 = vsub.s32 4, %v3091
    %v3093 = vrot.slane %v3021, %v3092
    %v3094 = vsel %vm35, %v3093, %v2906
    %v3095 = vlaneseq
    %v3096 = vshrl.u32 %v3095, 7
    %v3097 = vsub.s32 4, %v3096
    %v3098 = vrot.slane %v3018, %v3097
    %v3099 = vsel %vm29, %v3098, %v3094
    %v3100 = vlaneseq
    %v3101 = vshrl.u32 %v3100, 7
    %v3102 = vsub.s32 6, %v3101
    %v3103 = vrot.slane %v3021, %v3102
    %v3104 = vsel %vm35, %v3103, %v2956
    %v3105 = vlaneseq
    %v3106 = vshrl.u32 %v3105, 7
    %v3107 = vsub.s32 6, %v3106
    %v3108 = vrot.slane %v3018, %v3107
    %v3109 = vsel %vm29, %v3108, %v3104
    %v3110 = vlaneseq
    %v3111 = vshrl.u32 %v3110, 7
    %v3112 = vsub.s32 7, %v3111
    %v3113 = vrot.slane %v3021, %v3112
    %v3114 = vsel %vm35, %v3113, %v2966
    %v3115 = vlaneseq
    %v3116 = vshrl.u32 %v3115, 7
    %v3117 = vsub.s32 7, %v3116
    %v3118 = vrot.slane %v3018, %v3117
    %v3119 = vsel %vm29, %v3118, %v3114
    %v3120 = vmul.f32 %v3011, %v2969
    %v3121 = vmul.f32 %v3015, %v2513
    %v3122 = vsub.f32 %v3120, %v3121
    %v3123 = vmul.f32 %v3015, %v2969
    %v3124 = vmul.f32 %v3011, %v2513
    %v3125 = vadd.f32 %v3123, %v3124
    %v3126 = vand.u32 2147483647, %v3040
    %v3127 = vand.u32 2147483647, %v3109
    %v3129 = vrot.slane %v3127, 3
    %v3131 = vadd.f32 %v3126, %v3129
    %v3132 = vmul.f32 %v3131, 1e-12
    %v3133 = vadd.f32 %v3132, 1e-30
    %v3135 = vrot.slane %v3133, 5
    %vm3137 = vcmp.gt.f32.partialorder %v3126, %v3135
    %v3138 = vsel %vm3137, %v3040, 1.0
    %v3140 = vrot.slane %v3040, 5
    %v3142 = vsub.f32 %v3109, %v3140
    %v3143 = vrcp.pop %v3138
    %v3144 = vmul.f32 %v3143, 0.5
    %v3145 = vmul.f32 %v3142, %v3144
    %v3146 = vmul.f32 %v3145, %v3145
    %v3147 = vadd.f32 %v3146, 1.0
    %v3148 = vrsqrt.pop %v3147
    %vm3149 = vcmp.ge.f32.partialorder %v3145, 0.0
    %v3150 = vsel %vm3149, 1.0, -1.0
    %v3151 = vand.u32 2147483647, %v3145
    %v3152 = vmul.f32 %v3147, %v3148
    %v3153 = vadd.f32 %v3151, %v3152
    %v3154 = vrcp.pop %v3153
    %v3155 = vmul.f32 %v3150, %v3154
    %v3156 = vsel %vm3137, %v3155, 0.0
    %v3157 = vmul.f32 %v3156, %v3156
    %v3158 = vadd.f32 %v3157, 1.0
    %v3159 = vrsqrt.pop %v3158
    %v3160 = vmul.f32 %v3156, %v3159
    %v3161 = vlaneseq
    %v3162 = vshrl.u32 %v3161, 7
    %v3163 = vsub.s32 6, %v3162
    %v3164 = vrot.slane %v3159, %v3163
    %v3165 = vlaneseq
    %v3166 = vshrl.u32 %v3165, 7
    %v3167 = vsub.s32 6, %v3166
    %v3168 = vrot.slane %v3160, %v3167
    %v3169 = vmul.f32 %v3164, %v3040
    %v3170 = vmul.f32 %v3168, %v3109
    %v3171 = vsub.f32 %v3169, %v3170
    %v3172 = vmul.f32 %v3168, %v3040
    %v3173 = vmul.f32 %v3164, %v3109
    %v3174 = vadd.f32 %v3172, %v3173
    %v3176 = vrot.slane %v3171, 5
    %v3178 = vmul.f32 %v3159, %v3176
    %v3179 = vmul.f32 %v3160, %v3171
    %v3180 = vsub.f32 %v3178, %v3179
    %v3181 = vmul.f32 %v3160, %v3176
    %v3182 = vmul.f32 %v3159, %v3171
    %v3183 = vadd.f32 %v3181, %v3182
    %v3184 = vlaneseq
    %v3185 = vshrl.u32 %v3184, 7
    %v3186 = vsub.s32 6, %v3185
    %v3187 = vrot.slane %v3183, %v3186
    %v3188 = vsel %vm38, %v3187, %v3171
    %v3189 = vlaneseq
    %v3190 = vshrl.u32 %v3189, 7
    %v3191 = vsub.s32 6, %v3190
    %v3192 = vrot.slane %v3180, %v3191
    %v3193 = vsel %vm29, %v3192, %v3188
    %v3195 = vrot.slane %v3174, 5
    %v3197 = vmul.f32 %v3159, %v3195
    %v3198 = vmul.f32 %v3160, %v3174
    %v3199 = vsub.f32 %v3197, %v3198
    %v3200 = vmul.f32 %v3160, %v3195
    %v3201 = vmul.f32 %v3159, %v3174
    %v3202 = vadd.f32 %v3200, %v3201
    %v3203 = vlaneseq
    %v3204 = vshrl.u32 %v3203, 7
    %v3205 = vsub.s32 6, %v3204
    %v3206 = vrot.slane %v3202, %v3205
    %v3207 = vsel %vm38, %v3206, %v3174
    %v3208 = vlaneseq
    %v3209 = vshrl.u32 %v3208, 7
    %v3210 = vsub.s32 6, %v3209
    %v3211 = vrot.slane %v3199, %v3210
    %v3212 = vsel %vm29, %v3211, %v3207
    %v3213 = vlaneseq
    %v3214 = vshrl.u32 %v3213, 7
    %v3215 = vsub.s32 0, %v3214
    %v3216 = vrot.slane %v3174, %v3215
    %v3217 = vsel %vm38, %v3216, %v3069
    %v3218 = vlaneseq
    %v3219 = vshrl.u32 %v3218, 7
    %v3220 = vsub.s32 0, %v3219
    %v3221 = vrot.slane %v3171, %v3220
    %v3222 = vsel %vm29, %v3221, %v3217
    %v3223 = vlaneseq
    %v3224 = vshrl.u32 %v3223, 7
    %v3225 = vsub.s32 1, %v3224
    %v3226 = vrot.slane %v3174, %v3225
    %v3227 = vsel %vm38, %v3226, %v3079
    %v3228 = vlaneseq
    %v3229 = vshrl.u32 %v3228, 7
    %v3230 = vsub.s32 1, %v3229
    %v3231 = vrot.slane %v3171, %v3230
    %v3232 = vsel %vm29, %v3231, %v3227
    %v3233 = vlaneseq
    %v3234 = vshrl.u32 %v3233, 7
    %v3235 = vsub.s32 2, %v3234
    %v3236 = vrot.slane %v3174, %v3235
    %v3237 = vsel %vm38, %v3236, %v3089
    %v3238 = vlaneseq
    %v3239 = vshrl.u32 %v3238, 7
    %v3240 = vsub.s32 2, %v3239
    %v3241 = vrot.slane %v3171, %v3240
    %v3242 = vsel %vm29, %v3241, %v3237
    %v3243 = vlaneseq
    %v3244 = vshrl.u32 %v3243, 7
    %v3245 = vsub.s32 4, %v3244
    %v3246 = vrot.slane %v3174, %v3245
    %v3247 = vsel %vm38, %v3246, %v3099
    %v3248 = vlaneseq
    %v3249 = vshrl.u32 %v3248, 7
    %v3250 = vsub.s32 4, %v3249
    %v3251 = vrot.slane %v3171, %v3250
    %v3252 = vsel %vm29, %v3251, %v3247
    %v3253 = vlaneseq
    %v3254 = vshrl.u32 %v3253, 7
    %v3255 = vsub.s32 5, %v3254
    %v3256 = vrot.slane %v3174, %v3255
    %v3257 = vsel %vm38, %v3256, %v3059
    %v3258 = vlaneseq
    %v3259 = vshrl.u32 %v3258, 7
    %v3260 = vsub.s32 5, %v3259
    %v3261 = vrot.slane %v3171, %v3260
    %v3262 = vsel %vm29, %v3261, %v3257
    %v3263 = vlaneseq
    %v3264 = vshrl.u32 %v3263, 7
    %v3265 = vsub.s32 7, %v3264
    %v3266 = vrot.slane %v3174, %v3265
    %v3267 = vsel %vm38, %v3266, %v3119
    %v3268 = vlaneseq
    %v3269 = vshrl.u32 %v3268, 7
    %v3270 = vsub.s32 7, %v3269
    %v3271 = vrot.slane %v3171, %v3270
    %v3272 = vsel %vm29, %v3271, %v3267
    %v3273 = vmul.f32 %v3164, %v3122
    %v3274 = vmul.f32 %v3168, %v2666
    %v3275 = vsub.f32 %v3273, %v3274
    %v3276 = vmul.f32 %v3168, %v3122
    %v3277 = vmul.f32 %v3164, %v2666
    %v3278 = vadd.f32 %v3276, %v3277
    %v3279 = vand.u32 2147483647, %v3193
    %v3280 = vand.u32 2147483647, %v3272
    %v3282 = vrot.slane %v3280, 4
    %v3284 = vadd.f32 %v3279, %v3282
    %v3285 = vmul.f32 %v3284, 1e-12
    %v3286 = vadd.f32 %v3285, 1e-30
    %v3288 = vrot.slane %v3286, 4
    %vm3290 = vcmp.gt.f32.partialorder %v3279, %v3288
    %v3291 = vsel %vm3290, %v3193, 1.0
    %v3293 = vrot.slane %v3193, 4
    %v3295 = vsub.f32 %v3272, %v3293
    %v3296 = vrcp.pop %v3291
    %v3297 = vmul.f32 %v3296, 0.5
    %v3298 = vmul.f32 %v3295, %v3297
    %v3299 = vmul.f32 %v3298, %v3298
    %v3300 = vadd.f32 %v3299, 1.0
    %v3301 = vrsqrt.pop %v3300
    %vm3302 = vcmp.ge.f32.partialorder %v3298, 0.0
    %v3303 = vsel %vm3302, 1.0, -1.0
    %v3304 = vand.u32 2147483647, %v3298
    %v3305 = vmul.f32 %v3300, %v3301
    %v3306 = vadd.f32 %v3304, %v3305
    %v3307 = vrcp.pop %v3306
    %v3308 = vmul.f32 %v3303, %v3307
    %v3309 = vsel %vm3290, %v3308, 0.0
    %v3310 = vmul.f32 %v3309, %v3309
    %v3311 = vadd.f32 %v3310, 1.0
    %v3312 = vrsqrt.pop %v3311
    %v3313 = vmul.f32 %v3309, %v3312
    %v3314 = vlaneseq
    %v3315 = vshrl.u32 %v3314, 7
    %v3316 = vsub.s32 7, %v3315
    %v3317 = vrot.slane %v3312, %v3316
    %v3318 = vlaneseq
    %v3319 = vshrl.u32 %v3318, 7
    %v3320 = vsub.s32 7, %v3319
    %v3321 = vrot.slane %v3313, %v3320
    %v3322 = vmul.f32 %v3317, %v3193
    %v3323 = vmul.f32 %v3321, %v3272
    %v3324 = vsub.f32 %v3322, %v3323
    %v3325 = vmul.f32 %v3321, %v3193
    %v3326 = vmul.f32 %v3317, %v3272
    %v3327 = vadd.f32 %v3325, %v3326
    %v3329 = vrot.slane %v3324, 4
    %v3331 = vmul.f32 %v3312, %v3329
    %v3332 = vmul.f32 %v3313, %v3324
    %v3333 = vsub.f32 %v3331, %v3332
    %v3334 = vmul.f32 %v3313, %v3329
    %v3335 = vmul.f32 %v3312, %v3324
    %v3336 = vadd.f32 %v3334, %v3335
    %v3337 = vlaneseq
    %v3338 = vshrl.u32 %v3337, 7
    %v3339 = vsub.s32 7, %v3338
    %v3340 = vrot.slane %v3336, %v3339
    %v3341 = vsel %vm41, %v3340, %v3324
    %v3342 = vlaneseq
    %v3343 = vshrl.u32 %v3342, 7
    %v3344 = vsub.s32 7, %v3343
    %v3345 = vrot.slane %v3333, %v3344
    %v3346 = vsel %vm29, %v3345, %v3341
    %v3348 = vrot.slane %v3327, 4
    %v3350 = vmul.f32 %v3312, %v3348
    %v3351 = vmul.f32 %v3313, %v3327
    %v3352 = vsub.f32 %v3350, %v3351
    %v3353 = vmul.f32 %v3313, %v3348
    %v3354 = vmul.f32 %v3312, %v3327
    %v3355 = vadd.f32 %v3353, %v3354
    %v3356 = vlaneseq
    %v3357 = vshrl.u32 %v3356, 7
    %v3358 = vsub.s32 7, %v3357
    %v3359 = vrot.slane %v3355, %v3358
    %v3360 = vsel %vm41, %v3359, %v3327
    %v3361 = vlaneseq
    %v3362 = vshrl.u32 %v3361, 7
    %v3363 = vsub.s32 7, %v3362
    %v3364 = vrot.slane %v3352, %v3363
    %v3365 = vsel %vm29, %v3364, %v3360
    %v3366 = vlaneseq
    %v3367 = vshrl.u32 %v3366, 7
    %v3368 = vsub.s32 0, %v3367
    %v3369 = vrot.slane %v3327, %v3368
    %v3370 = vsel %vm41, %v3369, %v3222
    %v3371 = vlaneseq
    %v3372 = vshrl.u32 %v3371, 7
    %v3373 = vsub.s32 0, %v3372
    %v3374 = vrot.slane %v3324, %v3373
    %v3375 = vsel %vm29, %v3374, %v3370
    %v3376 = vlaneseq
    %v3377 = vshrl.u32 %v3376, 7
    %v3378 = vsub.s32 1, %v3377
    %v3379 = vrot.slane %v3327, %v3378
    %v3380 = vsel %vm41, %v3379, %v3232
    %v3381 = vlaneseq
    %v3382 = vshrl.u32 %v3381, 7
    %v3383 = vsub.s32 1, %v3382
    %v3384 = vrot.slane %v3324, %v3383
    %v3385 = vsel %vm29, %v3384, %v3380
    %v3386 = vlaneseq
    %v3387 = vshrl.u32 %v3386, 7
    %v3388 = vsub.s32 2, %v3387
    %v3389 = vrot.slane %v3327, %v3388
    %v3390 = vsel %vm41, %v3389, %v3242
    %v3391 = vlaneseq
    %v3392 = vshrl.u32 %v3391, 7
    %v3393 = vsub.s32 2, %v3392
    %v3394 = vrot.slane %v3324, %v3393
    %v3395 = vsel %vm29, %v3394, %v3390
    %v3396 = vlaneseq
    %v3397 = vshrl.u32 %v3396, 7
    %v3398 = vsub.s32 4, %v3397
    %v3399 = vrot.slane %v3327, %v3398
    %v3400 = vsel %vm41, %v3399, %v3252
    %v3401 = vlaneseq
    %v3402 = vshrl.u32 %v3401, 7
    %v3403 = vsub.s32 4, %v3402
    %v3404 = vrot.slane %v3324, %v3403
    %v3405 = vsel %vm29, %v3404, %v3400
    %v3406 = vlaneseq
    %v3407 = vshrl.u32 %v3406, 7
    %v3408 = vsub.s32 5, %v3407
    %v3409 = vrot.slane %v3327, %v3408
    %v3410 = vsel %vm41, %v3409, %v3262
    %v3411 = vlaneseq
    %v3412 = vshrl.u32 %v3411, 7
    %v3413 = vsub.s32 5, %v3412
    %v3414 = vrot.slane %v3324, %v3413
    %v3415 = vsel %vm29, %v3414, %v3410
    %v3416 = vlaneseq
    %v3417 = vshrl.u32 %v3416, 7
    %v3418 = vsub.s32 6, %v3417
    %v3419 = vrot.slane %v3327, %v3418
    %v3420 = vsel %vm41, %v3419, %v3212
    %v3421 = vlaneseq
    %v3422 = vshrl.u32 %v3421, 7
    %v3423 = vsub.s32 6, %v3422
    %v3424 = vrot.slane %v3324, %v3423
    %v3425 = vsel %vm29, %v3424, %v3420
    %v3426 = vmul.f32 %v3317, %v3275
    %v3427 = vmul.f32 %v3321, %v2819
    %v3428 = vsub.f32 %v3426, %v3427
    %v3429 = vmul.f32 %v3321, %v3275
    %v3430 = vmul.f32 %v3317, %v2819
    %v3431 = vadd.f32 %v3429, %v3430
    %v3432 = vand.u32 2147483647, %v3405
    %v3433 = vand.u32 2147483647, %v3415
    %v3435 = vrot.slane %v3433, 1
    %v3437 = vadd.f32 %v3432, %v3435
    %v3438 = vmul.f32 %v3437, 1e-12
    %v3439 = vadd.f32 %v3438, 1e-30
    %v3441 = vrot.slane %v3439, 7
    %vm3443 = vcmp.gt.f32.partialorder %v3432, %v3441
    %v3444 = vsel %vm3443, %v3405, 1.0
    %v3446 = vrot.slane %v3405, 7
    %v3448 = vsub.f32 %v3415, %v3446
    %v3449 = vrcp.pop %v3444
    %v3450 = vmul.f32 %v3449, 0.5
    %v3451 = vmul.f32 %v3448, %v3450
    %v3452 = vmul.f32 %v3451, %v3451
    %v3453 = vadd.f32 %v3452, 1.0
    %v3454 = vrsqrt.pop %v3453
    %vm3455 = vcmp.ge.f32.partialorder %v3451, 0.0
    %v3456 = vsel %vm3455, 1.0, -1.0
    %v3457 = vand.u32 2147483647, %v3451
    %v3458 = vmul.f32 %v3453, %v3454
    %v3459 = vadd.f32 %v3457, %v3458
    %v3460 = vrcp.pop %v3459
    %v3461 = vmul.f32 %v3456, %v3460
    %v3462 = vsel %vm3443, %v3461, 0.0
    %v3463 = vmul.f32 %v3462, %v3462
    %v3464 = vadd.f32 %v3463, 1.0
    %v3465 = vrsqrt.pop %v3464
    %v3466 = vmul.f32 %v3462, %v3465
    %v3467 = vlaneseq
    %v3468 = vshrl.u32 %v3467, 7
    %v3469 = vsub.s32 5, %v3468
    %v3470 = vrot.slane %v3465, %v3469
    %v3471 = vlaneseq
    %v3472 = vshrl.u32 %v3471, 7
    %v3473 = vsub.s32 5, %v3472
    %v3474 = vrot.slane %v3466, %v3473
    %v3475 = vmul.f32 %v3470, %v3405
    %v3476 = vmul.f32 %v3474, %v3415
    %v3477 = vsub.f32 %v3475, %v3476
    %v3478 = vmul.f32 %v3474, %v3405
    %v3479 = vmul.f32 %v3470, %v3415
    %v3480 = vadd.f32 %v3478, %v3479
    %v3482 = vrot.slane %v3477, 7
    %v3484 = vmul.f32 %v3465, %v3482
    %v3485 = vmul.f32 %v3466, %v3477
    %v3486 = vsub.f32 %v3484, %v3485
    %v3487 = vmul.f32 %v3466, %v3482
    %v3488 = vmul.f32 %v3465, %v3477
    %v3489 = vadd.f32 %v3487, %v3488
    %v3490 = vlaneseq
    %v3491 = vshrl.u32 %v3490, 7
    %v3492 = vsub.s32 5, %v3491
    %v3493 = vrot.slane %v3489, %v3492
    %v3494 = vsel %vm35, %v3493, %v3477
    %v3495 = vlaneseq
    %v3496 = vshrl.u32 %v3495, 7
    %v3497 = vsub.s32 5, %v3496
    %v3498 = vrot.slane %v3486, %v3497
    %v3499 = vsel %vm32, %v3498, %v3494
    %v3501 = vrot.slane %v3480, 7
    %v3503 = vmul.f32 %v3465, %v3501
    %v3504 = vmul.f32 %v3466, %v3480
    %v3505 = vsub.f32 %v3503, %v3504
    %v3506 = vmul.f32 %v3466, %v3501
    %v3507 = vmul.f32 %v3465, %v3480
    %v3508 = vadd.f32 %v3506, %v3507
    %v3509 = vlaneseq
    %v3510 = vshrl.u32 %v3509, 7
    %v3511 = vsub.s32 5, %v3510
    %v3512 = vrot.slane %v3508, %v3511
    %v3513 = vsel %vm35, %v3512, %v3480
    %v3514 = vlaneseq
    %v3515 = vshrl.u32 %v3514, 7
    %v3516 = vsub.s32 5, %v3515
    %v3517 = vrot.slane %v3505, %v3516
    %v3518 = vsel %vm32, %v3517, %v3513
    %v3519 = vlaneseq
    %v3520 = vshrl.u32 %v3519, 7
    %v3521 = vsub.s32 0, %v3520
    %v3522 = vrot.slane %v3480, %v3521
    %v3523 = vsel %vm35, %v3522, %v3375
    %v3524 = vlaneseq
    %v3525 = vshrl.u32 %v3524, 7
    %v3526 = vsub.s32 0, %v3525
    %v3527 = vrot.slane %v3477, %v3526
    %v3528 = vsel %vm32, %v3527, %v3523
    %v3529 = vlaneseq
    %v3530 = vshrl.u32 %v3529, 7
    %v3531 = vsub.s32 1, %v3530
    %v3532 = vrot.slane %v3480, %v3531
    %v3533 = vsel %vm35, %v3532, %v3385
    %v3534 = vlaneseq
    %v3535 = vshrl.u32 %v3534, 7
    %v3536 = vsub.s32 1, %v3535
    %v3537 = vrot.slane %v3477, %v3536
    %v3538 = vsel %vm32, %v3537, %v3533
    %v3539 = vlaneseq
    %v3540 = vshrl.u32 %v3539, 7
    %v3541 = vsub.s32 2, %v3540
    %v3542 = vrot.slane %v3480, %v3541
    %v3543 = vsel %vm35, %v3542, %v3395
    %v3544 = vlaneseq
    %v3545 = vshrl.u32 %v3544, 7
    %v3546 = vsub.s32 2, %v3545
    %v3547 = vrot.slane %v3477, %v3546
    %v3548 = vsel %vm32, %v3547, %v3543
    %v3549 = vlaneseq
    %v3550 = vshrl.u32 %v3549, 7
    %v3551 = vsub.s32 3, %v3550
    %v3552 = vrot.slane %v3480, %v3551
    %v3553 = vsel %vm35, %v3552, %v3346
    %v3554 = vlaneseq
    %v3555 = vshrl.u32 %v3554, 7
    %v3556 = vsub.s32 3, %v3555
    %v3557 = vrot.slane %v3477, %v3556
    %v3558 = vsel %vm32, %v3557, %v3553
    %v3559 = vlaneseq
    %v3560 = vshrl.u32 %v3559, 7
    %v3561 = vsub.s32 6, %v3560
    %v3562 = vrot.slane %v3480, %v3561
    %v3563 = vsel %vm35, %v3562, %v3425
    %v3564 = vlaneseq
    %v3565 = vshrl.u32 %v3564, 7
    %v3566 = vsub.s32 6, %v3565
    %v3567 = vrot.slane %v3477, %v3566
    %v3568 = vsel %vm32, %v3567, %v3563
    %v3569 = vlaneseq
    %v3570 = vshrl.u32 %v3569, 7
    %v3571 = vsub.s32 7, %v3570
    %v3572 = vrot.slane %v3480, %v3571
    %v3573 = vsel %vm35, %v3572, %v3365
    %v3574 = vlaneseq
    %v3575 = vshrl.u32 %v3574, 7
    %v3576 = vsub.s32 7, %v3575
    %v3577 = vrot.slane %v3477, %v3576
    %v3578 = vsel %vm32, %v3577, %v3573
    %v3579 = vmul.f32 %v3470, %v2972
    %v3580 = vmul.f32 %v3474, %v3125
    %v3581 = vsub.f32 %v3579, %v3580
    %v3582 = vmul.f32 %v3474, %v2972
    %v3583 = vmul.f32 %v3470, %v3125
    %v3584 = vadd.f32 %v3582, %v3583
    %v3585 = vand.u32 2147483647, %v3499
    %v3586 = vand.u32 2147483647, %v3568
    %v3588 = vrot.slane %v3586, 2
    %v3590 = vadd.f32 %v3585, %v3588
    %v3591 = vmul.f32 %v3590, 1e-12
    %v3592 = vadd.f32 %v3591, 1e-30
    %v3594 = vrot.slane %v3592, 6
    %vm3596 = vcmp.gt.f32.partialorder %v3585, %v3594
    %v3597 = vsel %vm3596, %v3499, 1.0
    %v3599 = vrot.slane %v3499, 6
    %v3601 = vsub.f32 %v3568, %v3599
    %v3602 = vrcp.pop %v3597
    %v3603 = vmul.f32 %v3602, 0.5
    %v3604 = vmul.f32 %v3601, %v3603
    %v3605 = vmul.f32 %v3604, %v3604
    %v3606 = vadd.f32 %v3605, 1.0
    %v3607 = vrsqrt.pop %v3606
    %vm3608 = vcmp.ge.f32.partialorder %v3604, 0.0
    %v3609 = vsel %vm3608, 1.0, -1.0
    %v3610 = vand.u32 2147483647, %v3604
    %v3611 = vmul.f32 %v3606, %v3607
    %v3612 = vadd.f32 %v3610, %v3611
    %v3613 = vrcp.pop %v3612
    %v3614 = vmul.f32 %v3609, %v3613
    %v3615 = vsel %vm3596, %v3614, 0.0
    %v3616 = vmul.f32 %v3615, %v3615
    %v3617 = vadd.f32 %v3616, 1.0
    %v3618 = vrsqrt.pop %v3617
    %v3619 = vmul.f32 %v3615, %v3618
    %v3620 = vlaneseq
    %v3621 = vshrl.u32 %v3620, 7
    %v3622 = vsub.s32 6, %v3621
    %v3623 = vrot.slane %v3618, %v3622
    %v3624 = vlaneseq
    %v3625 = vshrl.u32 %v3624, 7
    %v3626 = vsub.s32 6, %v3625
    %v3627 = vrot.slane %v3619, %v3626
    %v3628 = vmul.f32 %v3623, %v3499
    %v3629 = vmul.f32 %v3627, %v3568
    %v3630 = vsub.f32 %v3628, %v3629
    %v3631 = vmul.f32 %v3627, %v3499
    %v3632 = vmul.f32 %v3623, %v3568
    %v3633 = vadd.f32 %v3631, %v3632
    %v3635 = vrot.slane %v3630, 6
    %v3637 = vmul.f32 %v3618, %v3635
    %v3638 = vmul.f32 %v3619, %v3630
    %v3639 = vsub.f32 %v3637, %v3638
    %v3640 = vmul.f32 %v3619, %v3635
    %v3641 = vmul.f32 %v3618, %v3630
    %v3642 = vadd.f32 %v3640, %v3641
    %v3643 = vlaneseq
    %v3644 = vshrl.u32 %v3643, 7
    %v3645 = vsub.s32 6, %v3644
    %v3646 = vrot.slane %v3642, %v3645
    %v3647 = vsel %vm38, %v3646, %v3630
    %v3648 = vlaneseq
    %v3649 = vshrl.u32 %v3648, 7
    %v3650 = vsub.s32 6, %v3649
    %v3651 = vrot.slane %v3639, %v3650
    %v3652 = vsel %vm32, %v3651, %v3647
    %v3654 = vrot.slane %v3633, 6
    %v3656 = vmul.f32 %v3618, %v3654
    %v3657 = vmul.f32 %v3619, %v3633
    %v3658 = vsub.f32 %v3656, %v3657
    %v3659 = vmul.f32 %v3619, %v3654
    %v3660 = vmul.f32 %v3618, %v3633
    %v3661 = vadd.f32 %v3659, %v3660
    %v3662 = vlaneseq
    %v3663 = vshrl.u32 %v3662, 7
    %v3664 = vsub.s32 6, %v3663
    %v3665 = vrot.slane %v3661, %v3664
    %v3666 = vsel %vm38, %v3665, %v3633
    %v3667 = vlaneseq
    %v3668 = vshrl.u32 %v3667, 7
    %v3669 = vsub.s32 6, %v3668
    %v3670 = vrot.slane %v3658, %v3669
    %v3671 = vsel %vm32, %v3670, %v3666
    %v3672 = vlaneseq
    %v3673 = vshrl.u32 %v3672, 7
    %v3674 = vsub.s32 0, %v3673
    %v3675 = vrot.slane %v3633, %v3674
    %v3676 = vsel %vm38, %v3675, %v3528
    %v3677 = vlaneseq
    %v3678 = vshrl.u32 %v3677, 7
    %v3679 = vsub.s32 0, %v3678
    %v3680 = vrot.slane %v3630, %v3679
    %v3681 = vsel %vm32, %v3680, %v3676
    %v3682 = vlaneseq
    %v3683 = vshrl.u32 %v3682, 7
    %v3684 = vsub.s32 1, %v3683
    %v3685 = vrot.slane %v3633, %v3684
    %v3686 = vsel %vm38, %v3685, %v3538
    %v3687 = vlaneseq
    %v3688 = vshrl.u32 %v3687, 7
    %v3689 = vsub.s32 1, %v3688
    %v3690 = vrot.slane %v3630, %v3689
    %v3691 = vsel %vm32, %v3690, %v3686
    %v3692 = vlaneseq
    %v3693 = vshrl.u32 %v3692, 7
    %v3694 = vsub.s32 2, %v3693
    %v3695 = vrot.slane %v3633, %v3694
    %v3696 = vsel %vm38, %v3695, %v3548
    %v3697 = vlaneseq
    %v3698 = vshrl.u32 %v3697, 7
    %v3699 = vsub.s32 2, %v3698
    %v3700 = vrot.slane %v3630, %v3699
    %v3701 = vsel %vm32, %v3700, %v3696
    %v3702 = vlaneseq
    %v3703 = vshrl.u32 %v3702, 7
    %v3704 = vsub.s32 3, %v3703
    %v3705 = vrot.slane %v3633, %v3704
    %v3706 = vsel %vm38, %v3705, %v3558
    %v3707 = vlaneseq
    %v3708 = vshrl.u32 %v3707, 7
    %v3709 = vsub.s32 3, %v3708
    %v3710 = vrot.slane %v3630, %v3709
    %v3711 = vsel %vm32, %v3710, %v3706
    %v3712 = vlaneseq
    %v3713 = vshrl.u32 %v3712, 7
    %v3714 = vsub.s32 5, %v3713
    %v3715 = vrot.slane %v3633, %v3714
    %v3716 = vsel %vm38, %v3715, %v3518
    %v3717 = vlaneseq
    %v3718 = vshrl.u32 %v3717, 7
    %v3719 = vsub.s32 5, %v3718
    %v3720 = vrot.slane %v3630, %v3719
    %v3721 = vsel %vm32, %v3720, %v3716
    %v3722 = vlaneseq
    %v3723 = vshrl.u32 %v3722, 7
    %v3724 = vsub.s32 7, %v3723
    %v3725 = vrot.slane %v3633, %v3724
    %v3726 = vsel %vm38, %v3725, %v3578
    %v3727 = vlaneseq
    %v3728 = vshrl.u32 %v3727, 7
    %v3729 = vsub.s32 7, %v3728
    %v3730 = vrot.slane %v3630, %v3729
    %v3731 = vsel %vm32, %v3730, %v3726
    %v3732 = vmul.f32 %v3623, %v3581
    %v3733 = vmul.f32 %v3627, %v3278
    %v3734 = vsub.f32 %v3732, %v3733
    %v3735 = vmul.f32 %v3627, %v3581
    %v3736 = vmul.f32 %v3623, %v3278
    %v3737 = vadd.f32 %v3735, %v3736
    %v3738 = vand.u32 2147483647, %v3652
    %v3739 = vand.u32 2147483647, %v3731
    %v3741 = vrot.slane %v3739, 3
    %v3743 = vadd.f32 %v3738, %v3741
    %v3744 = vmul.f32 %v3743, 1e-12
    %v3745 = vadd.f32 %v3744, 1e-30
    %v3747 = vrot.slane %v3745, 5
    %vm3749 = vcmp.gt.f32.partialorder %v3738, %v3747
    %v3750 = vsel %vm3749, %v3652, 1.0
    %v3752 = vrot.slane %v3652, 5
    %v3754 = vsub.f32 %v3731, %v3752
    %v3755 = vrcp.pop %v3750
    %v3756 = vmul.f32 %v3755, 0.5
    %v3757 = vmul.f32 %v3754, %v3756
    %v3758 = vmul.f32 %v3757, %v3757
    %v3759 = vadd.f32 %v3758, 1.0
    %v3760 = vrsqrt.pop %v3759
    %vm3761 = vcmp.ge.f32.partialorder %v3757, 0.0
    %v3762 = vsel %vm3761, 1.0, -1.0
    %v3763 = vand.u32 2147483647, %v3757
    %v3764 = vmul.f32 %v3759, %v3760
    %v3765 = vadd.f32 %v3763, %v3764
    %v3766 = vrcp.pop %v3765
    %v3767 = vmul.f32 %v3762, %v3766
    %v3768 = vsel %vm3749, %v3767, 0.0
    %v3769 = vmul.f32 %v3768, %v3768
    %v3770 = vadd.f32 %v3769, 1.0
    %v3771 = vrsqrt.pop %v3770
    %v3772 = vmul.f32 %v3768, %v3771
    %v3773 = vlaneseq
    %v3774 = vshrl.u32 %v3773, 7
    %v3775 = vsub.s32 7, %v3774
    %v3776 = vrot.slane %v3771, %v3775
    %v3777 = vlaneseq
    %v3778 = vshrl.u32 %v3777, 7
    %v3779 = vsub.s32 7, %v3778
    %v3780 = vrot.slane %v3772, %v3779
    %v3781 = vmul.f32 %v3776, %v3652
    %v3782 = vmul.f32 %v3780, %v3731
    %v3783 = vsub.f32 %v3781, %v3782
    %v3784 = vmul.f32 %v3780, %v3652
    %v3785 = vmul.f32 %v3776, %v3731
    %v3786 = vadd.f32 %v3784, %v3785
    %v3788 = vrot.slane %v3783, 5
    %v3790 = vmul.f32 %v3771, %v3788
    %v3791 = vmul.f32 %v3772, %v3783
    %v3792 = vsub.f32 %v3790, %v3791
    %v3793 = vmul.f32 %v3772, %v3788
    %v3794 = vmul.f32 %v3771, %v3783
    %v3795 = vadd.f32 %v3793, %v3794
    %v3796 = vlaneseq
    %v3797 = vshrl.u32 %v3796, 7
    %v3798 = vsub.s32 7, %v3797
    %v3799 = vrot.slane %v3795, %v3798
    %v3800 = vsel %vm41, %v3799, %v3783
    %v3801 = vlaneseq
    %v3802 = vshrl.u32 %v3801, 7
    %v3803 = vsub.s32 7, %v3802
    %v3804 = vrot.slane %v3792, %v3803
    %v3805 = vsel %vm32, %v3804, %v3800
    %v3807 = vrot.slane %v3786, 5
    %v3809 = vmul.f32 %v3771, %v3807
    %v3810 = vmul.f32 %v3772, %v3786
    %v3811 = vsub.f32 %v3809, %v3810
    %v3812 = vmul.f32 %v3772, %v3807
    %v3813 = vmul.f32 %v3771, %v3786
    %v3814 = vadd.f32 %v3812, %v3813
    %v3815 = vlaneseq
    %v3816 = vshrl.u32 %v3815, 7
    %v3817 = vsub.s32 7, %v3816
    %v3818 = vrot.slane %v3814, %v3817
    %v3819 = vsel %vm41, %v3818, %v3786
    %v3820 = vlaneseq
    %v3821 = vshrl.u32 %v3820, 7
    %v3822 = vsub.s32 7, %v3821
    %v3823 = vrot.slane %v3811, %v3822
    %v3824 = vsel %vm32, %v3823, %v3819
    %v3825 = vlaneseq
    %v3826 = vshrl.u32 %v3825, 7
    %v3827 = vsub.s32 0, %v3826
    %v3828 = vrot.slane %v3786, %v3827
    %v3829 = vsel %vm41, %v3828, %v3681
    %v3830 = vlaneseq
    %v3831 = vshrl.u32 %v3830, 7
    %v3832 = vsub.s32 0, %v3831
    %v3833 = vrot.slane %v3783, %v3832
    %v3834 = vsel %vm32, %v3833, %v3829
    %v3835 = vlaneseq
    %v3836 = vshrl.u32 %v3835, 7
    %v3837 = vsub.s32 1, %v3836
    %v3838 = vrot.slane %v3786, %v3837
    %v3839 = vsel %vm41, %v3838, %v3691
    %v3840 = vlaneseq
    %v3841 = vshrl.u32 %v3840, 7
    %v3842 = vsub.s32 1, %v3841
    %v3843 = vrot.slane %v3783, %v3842
    %v3844 = vsel %vm32, %v3843, %v3839
    %v3845 = vlaneseq
    %v3846 = vshrl.u32 %v3845, 7
    %v3847 = vsub.s32 2, %v3846
    %v3848 = vrot.slane %v3786, %v3847
    %v3849 = vsel %vm41, %v3848, %v3701
    %v3850 = vlaneseq
    %v3851 = vshrl.u32 %v3850, 7
    %v3852 = vsub.s32 2, %v3851
    %v3853 = vrot.slane %v3783, %v3852
    %v3854 = vsel %vm32, %v3853, %v3849
    %v3855 = vlaneseq
    %v3856 = vshrl.u32 %v3855, 7
    %v3857 = vsub.s32 3, %v3856
    %v3858 = vrot.slane %v3786, %v3857
    %v3859 = vsel %vm41, %v3858, %v3711
    %v3860 = vlaneseq
    %v3861 = vshrl.u32 %v3860, 7
    %v3862 = vsub.s32 3, %v3861
    %v3863 = vrot.slane %v3783, %v3862
    %v3864 = vsel %vm32, %v3863, %v3859
    %v3865 = vlaneseq
    %v3866 = vshrl.u32 %v3865, 7
    %v3867 = vsub.s32 5, %v3866
    %v3868 = vrot.slane %v3786, %v3867
    %v3869 = vsel %vm41, %v3868, %v3721
    %v3870 = vlaneseq
    %v3871 = vshrl.u32 %v3870, 7
    %v3872 = vsub.s32 5, %v3871
    %v3873 = vrot.slane %v3783, %v3872
    %v3874 = vsel %vm32, %v3873, %v3869
    %v3875 = vlaneseq
    %v3876 = vshrl.u32 %v3875, 7
    %v3877 = vsub.s32 6, %v3876
    %v3878 = vrot.slane %v3786, %v3877
    %v3879 = vsel %vm41, %v3878, %v3671
    %v3880 = vlaneseq
    %v3881 = vshrl.u32 %v3880, 7
    %v3882 = vsub.s32 6, %v3881
    %v3883 = vrot.slane %v3783, %v3882
    %v3884 = vsel %vm32, %v3883, %v3879
    %v3885 = vmul.f32 %v3776, %v3734
    %v3886 = vmul.f32 %v3780, %v3431
    %v3887 = vsub.f32 %v3885, %v3886
    %v3888 = vmul.f32 %v3780, %v3734
    %v3889 = vmul.f32 %v3776, %v3431
    %v3890 = vadd.f32 %v3888, %v3889
    %v3891 = vand.u32 2147483647, %v3874
    %v3892 = vand.u32 2147483647, %v3884
    %v3894 = vrot.slane %v3892, 1
    %v3896 = vadd.f32 %v3891, %v3894
    %v3897 = vmul.f32 %v3896, 1e-12
    %v3898 = vadd.f32 %v3897, 1e-30
    %v3900 = vrot.slane %v3898, 7
    %vm3902 = vcmp.gt.f32.partialorder %v3891, %v3900
    %v3903 = vsel %vm3902, %v3874, 1.0
    %v3905 = vrot.slane %v3874, 7
    %v3907 = vsub.f32 %v3884, %v3905
    %v3908 = vrcp.pop %v3903
    %v3909 = vmul.f32 %v3908, 0.5
    %v3910 = vmul.f32 %v3907, %v3909
    %v3911 = vmul.f32 %v3910, %v3910
    %v3912 = vadd.f32 %v3911, 1.0
    %v3913 = vrsqrt.pop %v3912
    %vm3914 = vcmp.ge.f32.partialorder %v3910, 0.0
    %v3915 = vsel %vm3914, 1.0, -1.0
    %v3916 = vand.u32 2147483647, %v3910
    %v3917 = vmul.f32 %v3912, %v3913
    %v3918 = vadd.f32 %v3916, %v3917
    %v3919 = vrcp.pop %v3918
    %v3920 = vmul.f32 %v3915, %v3919
    %v3921 = vsel %vm3902, %v3920, 0.0
    %v3922 = vmul.f32 %v3921, %v3921
    %v3923 = vadd.f32 %v3922, 1.0
    %v3924 = vrsqrt.pop %v3923
    %v3925 = vmul.f32 %v3921, %v3924
    %v3926 = vlaneseq
    %v3927 = vshrl.u32 %v3926, 7
    %v3928 = vsub.s32 6, %v3927
    %v3929 = vrot.slane %v3924, %v3928
    %v3930 = vlaneseq
    %v3931 = vshrl.u32 %v3930, 7
    %v3932 = vsub.s32 6, %v3931
    %v3933 = vrot.slane %v3925, %v3932
    %v3934 = vmul.f32 %v3929, %v3874
    %v3935 = vmul.f32 %v3933, %v3884
    %v3936 = vsub.f32 %v3934, %v3935
    %v3937 = vmul.f32 %v3933, %v3874
    %v3938 = vmul.f32 %v3929, %v3884
    %v3939 = vadd.f32 %v3937, %v3938
    %v3941 = vrot.slane %v3936, 7
    %v3943 = vmul.f32 %v3924, %v3941
    %v3944 = vmul.f32 %v3925, %v3936
    %v3945 = vsub.f32 %v3943, %v3944
    %v3946 = vmul.f32 %v3925, %v3941
    %v3947 = vmul.f32 %v3924, %v3936
    %v3948 = vadd.f32 %v3946, %v3947
    %v3949 = vlaneseq
    %v3950 = vshrl.u32 %v3949, 7
    %v3951 = vsub.s32 6, %v3950
    %v3952 = vrot.slane %v3948, %v3951
    %v3953 = vsel %vm38, %v3952, %v3936
    %v3954 = vlaneseq
    %v3955 = vshrl.u32 %v3954, 7
    %v3956 = vsub.s32 6, %v3955
    %v3957 = vrot.slane %v3945, %v3956
    %v3958 = vsel %vm35, %v3957, %v3953
    %v3960 = vrot.slane %v3939, 7
    %v3962 = vmul.f32 %v3924, %v3960
    %v3963 = vmul.f32 %v3925, %v3939
    %v3964 = vsub.f32 %v3962, %v3963
    %v3965 = vmul.f32 %v3925, %v3960
    %v3966 = vmul.f32 %v3924, %v3939
    %v3967 = vadd.f32 %v3965, %v3966
    %v3968 = vlaneseq
    %v3969 = vshrl.u32 %v3968, 7
    %v3970 = vsub.s32 6, %v3969
    %v3971 = vrot.slane %v3967, %v3970
    %v3972 = vsel %vm38, %v3971, %v3939
    %v3973 = vlaneseq
    %v3974 = vshrl.u32 %v3973, 7
    %v3975 = vsub.s32 6, %v3974
    %v3976 = vrot.slane %v3964, %v3975
    %v3977 = vsel %vm35, %v3976, %v3972
    %v3978 = vlaneseq
    %v3979 = vshrl.u32 %v3978, 7
    %v3980 = vsub.s32 0, %v3979
    %v3981 = vrot.slane %v3939, %v3980
    %v3982 = vsel %vm38, %v3981, %v3834
    %v3983 = vlaneseq
    %v3984 = vshrl.u32 %v3983, 7
    %v3985 = vsub.s32 0, %v3984
    %v3986 = vrot.slane %v3936, %v3985
    %v3987 = vsel %vm35, %v3986, %v3982
    %v3988 = vlaneseq
    %v3989 = vshrl.u32 %v3988, 7
    %v3990 = vsub.s32 1, %v3989
    %v3991 = vrot.slane %v3939, %v3990
    %v3992 = vsel %vm38, %v3991, %v3844
    %v3993 = vlaneseq
    %v3994 = vshrl.u32 %v3993, 7
    %v3995 = vsub.s32 1, %v3994
    %v3996 = vrot.slane %v3936, %v3995
    %v3997 = vsel %vm35, %v3996, %v3992
    %v3998 = vlaneseq
    %v3999 = vshrl.u32 %v3998, 7
    %v4000 = vsub.s32 2, %v3999
    %v4001 = vrot.slane %v3939, %v4000
    %v4002 = vsel %vm38, %v4001, %v3854
    %v4003 = vlaneseq
    %v4004 = vshrl.u32 %v4003, 7
    %v4005 = vsub.s32 2, %v4004
    %v4006 = vrot.slane %v3936, %v4005
    %v4007 = vsel %vm35, %v4006, %v4002
    %v4008 = vlaneseq
    %v4009 = vshrl.u32 %v4008, 7
    %v4010 = vsub.s32 3, %v4009
    %v4011 = vrot.slane %v3939, %v4010
    %v4012 = vsel %vm38, %v4011, %v3864
    %v4013 = vlaneseq
    %v4014 = vshrl.u32 %v4013, 7
    %v4015 = vsub.s32 3, %v4014
    %v4016 = vrot.slane %v3936, %v4015
    %v4017 = vsel %vm35, %v4016, %v4012
    %v4018 = vlaneseq
    %v4019 = vshrl.u32 %v4018, 7
    %v4020 = vsub.s32 4, %v4019
    %v4021 = vrot.slane %v3939, %v4020
    %v4022 = vsel %vm38, %v4021, %v3805
    %v4023 = vlaneseq
    %v4024 = vshrl.u32 %v4023, 7
    %v4025 = vsub.s32 4, %v4024
    %v4026 = vrot.slane %v3936, %v4025
    %v4027 = vsel %vm35, %v4026, %v4022
    %v4028 = vlaneseq
    %v4029 = vshrl.u32 %v4028, 7
    %v4030 = vsub.s32 7, %v4029
    %v4031 = vrot.slane %v3939, %v4030
    %v4032 = vsel %vm38, %v4031, %v3824
    %v4033 = vlaneseq
    %v4034 = vshrl.u32 %v4033, 7
    %v4035 = vsub.s32 7, %v4034
    %v4036 = vrot.slane %v3936, %v4035
    %v4037 = vsel %vm35, %v4036, %v4032
    %v4038 = vmul.f32 %v3929, %v3584
    %v4039 = vmul.f32 %v3933, %v3737
    %v4040 = vsub.f32 %v4038, %v4039
    %v4041 = vmul.f32 %v3933, %v3584
    %v4042 = vmul.f32 %v3929, %v3737
    %v4043 = vadd.f32 %v4041, %v4042
    %v4044 = vand.u32 2147483647, %v3958
    %v4045 = vand.u32 2147483647, %v4037
    %v4047 = vrot.slane %v4045, 2
    %v4049 = vadd.f32 %v4044, %v4047
    %v4050 = vmul.f32 %v4049, 1e-12
    %v4051 = vadd.f32 %v4050, 1e-30
    %v4053 = vrot.slane %v4051, 6
    %vm4055 = vcmp.gt.f32.partialorder %v4044, %v4053
    %v4056 = vsel %vm4055, %v3958, 1.0
    %v4058 = vrot.slane %v3958, 6
    %v4060 = vsub.f32 %v4037, %v4058
    %v4061 = vrcp.pop %v4056
    %v4062 = vmul.f32 %v4061, 0.5
    %v4063 = vmul.f32 %v4060, %v4062
    %v4064 = vmul.f32 %v4063, %v4063
    %v4065 = vadd.f32 %v4064, 1.0
    %v4066 = vrsqrt.pop %v4065
    %vm4067 = vcmp.ge.f32.partialorder %v4063, 0.0
    %v4068 = vsel %vm4067, 1.0, -1.0
    %v4069 = vand.u32 2147483647, %v4063
    %v4070 = vmul.f32 %v4065, %v4066
    %v4071 = vadd.f32 %v4069, %v4070
    %v4072 = vrcp.pop %v4071
    %v4073 = vmul.f32 %v4068, %v4072
    %v4074 = vsel %vm4055, %v4073, 0.0
    %v4075 = vmul.f32 %v4074, %v4074
    %v4076 = vadd.f32 %v4075, 1.0
    %v4077 = vrsqrt.pop %v4076
    %v4078 = vmul.f32 %v4074, %v4077
    %v4079 = vlaneseq
    %v4080 = vshrl.u32 %v4079, 7
    %v4081 = vsub.s32 7, %v4080
    %v4082 = vrot.slane %v4077, %v4081
    %v4083 = vlaneseq
    %v4084 = vshrl.u32 %v4083, 7
    %v4085 = vsub.s32 7, %v4084
    %v4086 = vrot.slane %v4078, %v4085
    %v4087 = vmul.f32 %v4082, %v3958
    %v4088 = vmul.f32 %v4086, %v4037
    %v4089 = vsub.f32 %v4087, %v4088
    %v4090 = vmul.f32 %v4086, %v3958
    %v4091 = vmul.f32 %v4082, %v4037
    %v4092 = vadd.f32 %v4090, %v4091
    %v4094 = vrot.slane %v4089, 6
    %v4096 = vmul.f32 %v4077, %v4094
    %v4097 = vmul.f32 %v4078, %v4089
    %v4098 = vsub.f32 %v4096, %v4097
    %v4099 = vmul.f32 %v4078, %v4094
    %v4100 = vmul.f32 %v4077, %v4089
    %v4101 = vadd.f32 %v4099, %v4100
    %v4102 = vlaneseq
    %v4103 = vshrl.u32 %v4102, 7
    %v4104 = vsub.s32 7, %v4103
    %v4105 = vrot.slane %v4101, %v4104
    %v4106 = vsel %vm41, %v4105, %v4089
    %v4107 = vlaneseq
    %v4108 = vshrl.u32 %v4107, 7
    %v4109 = vsub.s32 7, %v4108
    %v4110 = vrot.slane %v4098, %v4109
    %v4111 = vsel %vm35, %v4110, %v4106
    %v4113 = vrot.slane %v4092, 6
    %v4115 = vmul.f32 %v4077, %v4113
    %v4116 = vmul.f32 %v4078, %v4092
    %v4117 = vsub.f32 %v4115, %v4116
    %v4118 = vmul.f32 %v4078, %v4113
    %v4119 = vmul.f32 %v4077, %v4092
    %v4120 = vadd.f32 %v4118, %v4119
    %v4121 = vlaneseq
    %v4122 = vshrl.u32 %v4121, 7
    %v4123 = vsub.s32 7, %v4122
    %v4124 = vrot.slane %v4120, %v4123
    %v4125 = vsel %vm41, %v4124, %v4092
    %v4126 = vlaneseq
    %v4127 = vshrl.u32 %v4126, 7
    %v4128 = vsub.s32 7, %v4127
    %v4129 = vrot.slane %v4117, %v4128
    %v4130 = vsel %vm35, %v4129, %v4125
    %v4131 = vlaneseq
    %v4132 = vshrl.u32 %v4131, 7
    %v4133 = vsub.s32 0, %v4132
    %v4134 = vrot.slane %v4092, %v4133
    %v4135 = vsel %vm41, %v4134, %v3987
    %v4136 = vlaneseq
    %v4137 = vshrl.u32 %v4136, 7
    %v4138 = vsub.s32 0, %v4137
    %v4139 = vrot.slane %v4089, %v4138
    %v4140 = vsel %vm35, %v4139, %v4135
    %v4141 = vlaneseq
    %v4142 = vshrl.u32 %v4141, 7
    %v4143 = vsub.s32 1, %v4142
    %v4144 = vrot.slane %v4092, %v4143
    %v4145 = vsel %vm41, %v4144, %v3997
    %v4146 = vlaneseq
    %v4147 = vshrl.u32 %v4146, 7
    %v4148 = vsub.s32 1, %v4147
    %v4149 = vrot.slane %v4089, %v4148
    %v4150 = vsel %vm35, %v4149, %v4145
    %v4151 = vlaneseq
    %v4152 = vshrl.u32 %v4151, 7
    %v4153 = vsub.s32 2, %v4152
    %v4154 = vrot.slane %v4092, %v4153
    %v4155 = vsel %vm41, %v4154, %v4007
    %v4156 = vlaneseq
    %v4157 = vshrl.u32 %v4156, 7
    %v4158 = vsub.s32 2, %v4157
    %v4159 = vrot.slane %v4089, %v4158
    %v4160 = vsel %vm35, %v4159, %v4155
    %v4161 = vlaneseq
    %v4162 = vshrl.u32 %v4161, 7
    %v4163 = vsub.s32 3, %v4162
    %v4164 = vrot.slane %v4092, %v4163
    %v4165 = vsel %vm41, %v4164, %v4017
    %v4166 = vlaneseq
    %v4167 = vshrl.u32 %v4166, 7
    %v4168 = vsub.s32 3, %v4167
    %v4169 = vrot.slane %v4089, %v4168
    %v4170 = vsel %vm35, %v4169, %v4165
    %v4171 = vlaneseq
    %v4172 = vshrl.u32 %v4171, 7
    %v4173 = vsub.s32 4, %v4172
    %v4174 = vrot.slane %v4092, %v4173
    %v4175 = vsel %vm41, %v4174, %v4027
    %v4176 = vlaneseq
    %v4177 = vshrl.u32 %v4176, 7
    %v4178 = vsub.s32 4, %v4177
    %v4179 = vrot.slane %v4089, %v4178
    %v4180 = vsel %vm35, %v4179, %v4175
    %v4181 = vlaneseq
    %v4182 = vshrl.u32 %v4181, 7
    %v4183 = vsub.s32 6, %v4182
    %v4184 = vrot.slane %v4092, %v4183
    %v4185 = vsel %vm41, %v4184, %v3977
    %v4186 = vlaneseq
    %v4187 = vshrl.u32 %v4186, 7
    %v4188 = vsub.s32 6, %v4187
    %v4189 = vrot.slane %v4089, %v4188
    %v4190 = vsel %vm35, %v4189, %v4185
    %v4191 = vmul.f32 %v4082, %v4040
    %v4192 = vmul.f32 %v4086, %v3890
    %v4193 = vsub.f32 %v4191, %v4192
    %v4194 = vmul.f32 %v4086, %v4040
    %v4195 = vmul.f32 %v4082, %v3890
    %v4196 = vadd.f32 %v4194, %v4195
    %v4197 = vand.u32 2147483647, %v4190
    %v4198 = vand.u32 2147483647, %v4130
    %v4200 = vrot.slane %v4198, 1
    %v4202 = vadd.f32 %v4197, %v4200
    %v4203 = vmul.f32 %v4202, 1e-12
    %v4204 = vadd.f32 %v4203, 1e-30
    %v4206 = vrot.slane %v4204, 7
    %vm4208 = vcmp.gt.f32.partialorder %v4197, %v4206
    %v4209 = vsel %vm4208, %v4190, 1.0
    %v4211 = vrot.slane %v4190, 7
    %v4213 = vsub.f32 %v4130, %v4211
    %v4214 = vrcp.pop %v4209
    %v4215 = vmul.f32 %v4214, 0.5
    %v4216 = vmul.f32 %v4213, %v4215
    %v4217 = vmul.f32 %v4216, %v4216
    %v4218 = vadd.f32 %v4217, 1.0
    %v4219 = vrsqrt.pop %v4218
    %vm4220 = vcmp.ge.f32.partialorder %v4216, 0.0
    %v4221 = vsel %vm4220, 1.0, -1.0
    %v4222 = vand.u32 2147483647, %v4216
    %v4223 = vmul.f32 %v4218, %v4219
    %v4224 = vadd.f32 %v4222, %v4223
    %v4225 = vrcp.pop %v4224
    %v4226 = vmul.f32 %v4221, %v4225
    %v4227 = vsel %vm4208, %v4226, 0.0
    %v4228 = vmul.f32 %v4227, %v4227
    %v4229 = vadd.f32 %v4228, 1.0
    %v4230 = vrsqrt.pop %v4229
    %v4231 = vmul.f32 %v4227, %v4230
    %v4232 = vlaneseq
    %v4233 = vshrl.u32 %v4232, 7
    %v4234 = vsub.s32 7, %v4233
    %v4235 = vrot.slane %v4230, %v4234
    %v4236 = vlaneseq
    %v4237 = vshrl.u32 %v4236, 7
    %v4238 = vsub.s32 7, %v4237
    %v4239 = vrot.slane %v4231, %v4238
    %v4240 = vmul.f32 %v4235, %v4190
    %v4241 = vmul.f32 %v4239, %v4130
    %v4242 = vsub.f32 %v4240, %v4241
    %v4243 = vmul.f32 %v4239, %v4190
    %v4244 = vmul.f32 %v4235, %v4130
    %v4245 = vadd.f32 %v4243, %v4244
    %v4247 = vrot.slane %v4242, 7
    %v4249 = vmul.f32 %v4230, %v4247
    %v4250 = vmul.f32 %v4231, %v4242
    %v4251 = vsub.f32 %v4249, %v4250
    %v4252 = vmul.f32 %v4231, %v4247
    %v4253 = vmul.f32 %v4230, %v4242
    %v4254 = vadd.f32 %v4252, %v4253
    %v4255 = vlaneseq
    %v4256 = vshrl.u32 %v4255, 7
    %v4257 = vsub.s32 7, %v4256
    %v4258 = vrot.slane %v4254, %v4257
    %v4259 = vsel %vm41, %v4258, %v4242
    %v4260 = vlaneseq
    %v4261 = vshrl.u32 %v4260, 7
    %v4262 = vsub.s32 7, %v4261
    %v4263 = vrot.slane %v4251, %v4262
    %v4264 = vsel %vm38, %v4263, %v4259
    %v4266 = vrot.slane %v4245, 7
    %v4268 = vmul.f32 %v4230, %v4266
    %v4269 = vmul.f32 %v4231, %v4245
    %v4270 = vsub.f32 %v4268, %v4269
    %v4271 = vmul.f32 %v4231, %v4266
    %v4272 = vmul.f32 %v4230, %v4245
    %v4273 = vadd.f32 %v4271, %v4272
    %v4274 = vlaneseq
    %v4275 = vshrl.u32 %v4274, 7
    %v4276 = vsub.s32 7, %v4275
    %v4277 = vrot.slane %v4273, %v4276
    %v4278 = vsel %vm41, %v4277, %v4245
    %v4279 = vlaneseq
    %v4280 = vshrl.u32 %v4279, 7
    %v4281 = vsub.s32 7, %v4280
    %v4282 = vrot.slane %v4270, %v4281
    %v4283 = vsel %vm38, %v4282, %v4278
    %v4284 = vlaneseq
    %v4285 = vshrl.u32 %v4284, 7
    %v4286 = vsub.s32 0, %v4285
    %v4287 = vrot.slane %v4245, %v4286
    %v4288 = vsel %vm41, %v4287, %v4140
    %v4289 = vlaneseq
    %v4290 = vshrl.u32 %v4289, 7
    %v4291 = vsub.s32 0, %v4290
    %v4292 = vrot.slane %v4242, %v4291
    %v4293 = vsel %vm38, %v4292, %v4288
    %v4294 = vlaneseq
    %v4295 = vshrl.u32 %v4294, 7
    %v4296 = vsub.s32 1, %v4295
    %v4297 = vrot.slane %v4245, %v4296
    %v4298 = vsel %vm41, %v4297, %v4150
    %v4299 = vlaneseq
    %v4300 = vshrl.u32 %v4299, 7
    %v4301 = vsub.s32 1, %v4300
    %v4302 = vrot.slane %v4242, %v4301
    %v4303 = vsel %vm38, %v4302, %v4298
    %v4304 = vlaneseq
    %v4305 = vshrl.u32 %v4304, 7
    %v4306 = vsub.s32 2, %v4305
    %v4307 = vrot.slane %v4245, %v4306
    %v4308 = vsel %vm41, %v4307, %v4160
    %v4309 = vlaneseq
    %v4310 = vshrl.u32 %v4309, 7
    %v4311 = vsub.s32 2, %v4310
    %v4312 = vrot.slane %v4242, %v4311
    %v4313 = vsel %vm38, %v4312, %v4308
    %v4314 = vlaneseq
    %v4315 = vshrl.u32 %v4314, 7
    %v4316 = vsub.s32 3, %v4315
    %v4317 = vrot.slane %v4245, %v4316
    %v4318 = vsel %vm41, %v4317, %v4170
    %v4319 = vlaneseq
    %v4320 = vshrl.u32 %v4319, 7
    %v4321 = vsub.s32 3, %v4320
    %v4322 = vrot.slane %v4242, %v4321
    %v4323 = vsel %vm38, %v4322, %v4318
    %v4324 = vlaneseq
    %v4325 = vshrl.u32 %v4324, 7
    %v4326 = vsub.s32 4, %v4325
    %v4327 = vrot.slane %v4245, %v4326
    %v4328 = vsel %vm41, %v4327, %v4180
    %v4329 = vlaneseq
    %v4330 = vshrl.u32 %v4329, 7
    %v4331 = vsub.s32 4, %v4330
    %v4332 = vrot.slane %v4242, %v4331
    %v4333 = vsel %vm38, %v4332, %v4328
    %v4334 = vlaneseq
    %v4335 = vshrl.u32 %v4334, 7
    %v4336 = vsub.s32 5, %v4335
    %v4337 = vrot.slane %v4245, %v4336
    %v4338 = vsel %vm41, %v4337, %v4111
    %v4339 = vlaneseq
    %v4340 = vshrl.u32 %v4339, 7
    %v4341 = vsub.s32 5, %v4340
    %v4342 = vrot.slane %v4242, %v4341
    %v4343 = vsel %vm38, %v4342, %v4338
    %v4344 = vmul.f32 %v4235, %v4043
    %v4345 = vmul.f32 %v4239, %v4196
    %v4346 = vsub.f32 %v4344, %v4345
    %v4347 = vmul.f32 %v4239, %v4043
    %v4348 = vmul.f32 %v4235, %v4196
    %v4349 = vadd.f32 %v4347, %v4348
  $region10: #{eig_layer.1} parent=0 // loop_footer
    %s49 = sadd.s32 1, %s45
  $region11: #{eig_layer.1} parent=0 // loop_footer_branch
    %44 = sbr.rel target = $region7
  $region12: #{eig_layer.1} parent=0 // loop_exit
    _
  %vm4350 = vcmask 1040384
  %v4351 = vsel %vm4350, %v50, %v51
  %vm4352 = vcmask 1041408
  %v4353 = vsel %vm4352, %v4351, %v52
  %vm4354 = vcmask 1042432
  %v4355 = vsel %vm4354, %v4353, %v53
  %vm4356 = vcmask 1043456
  %v4357 = vsel %vm4356, %v4355, %v54
  %vm4358 = vcmask 1044480
  %v4359 = vsel %vm4358, %v4357, %v55
  %vm4360 = vcmask 1045504
  %v4361 = vsel %vm4360, %v4359, %v56
  %vm4362 = vcmask 1046528
  %v4363 = vsel %vm4362, %v4361, %v57
  %4364 = vst [vmem:[%s1] sm:$0xff] %v4363
  %4365 = vst [vmem:[%s2] sm:$0xff] %v58
  %s4366 = scalar_lea.vmem %s2, 8
  %4367 = vst [vmem:[%s4366] sm:$0xff] %v59
  %s4368 = scalar_lea.vmem %s2, 16
  %4369 = vst [vmem:[%s4368] sm:$0xff] %v60
  %s4370 = scalar_lea.vmem %s2, 24
  %4371 = vst [vmem:[%s4370] sm:$0xff] %v61
  %s4372 = scalar_lea.vmem %s2, 32
  %4373 = vst [vmem:[%s4372] sm:$0xff] %v62
  %s4374 = scalar_lea.vmem %s2, 40
  %4375 = vst [vmem:[%s4374] sm:$0xff] %v63
  %s4376 = scalar_lea.vmem %s2, 48
  %4377 = vst [vmem:[%s4376] sm:$0xff] %v64
  %s4378 = scalar_lea.vmem %s2, 56
  %4379 = vst [vmem:[%s4378] sm:$0xff] %v65
  // Predicated region
  $region13: #{eig_layer.1} parent=0 // pred_check
    _
  $region14: #{eig_layer.1} parent=0 // pred_check_branch
    %4381 = sbr.rel (0) target = $region16
  $region15: #{eig_layer.1} parent=0 // pred_region
    _
  $region16: #{eig_layer.1} parent=0 // pred_fallthru
    _
  // Predicated region
  $region17: #{eig_layer.1} parent=0 // pred_check
    _
  $region18: #{eig_layer.1} parent=0 // pred_check_branch
    %4383 = sbr.rel (0) target = $region20
  $region19: #{eig_layer.1} parent=0 // pred_region
    _
  $region20: #{eig_layer.1} parent=0 // pred_fallthru
    _
  // Predicated region
  $region21: #{eig_layer.1} parent=0 // pred_check
    _
  $region22: #{eig_layer.1} parent=0 // pred_check_branch
    %4385 = sbr.rel (0) target = $region24
  $region23: #{eig_layer.1} parent=0 // pred_region
    _
  $region24: #{eig_layer.1} parent=0 // pred_fallthru
    _
  // Predicated region
  $region25: #{eig_layer.1} parent=0 // pred_check
    _
  $region26: #{eig_layer.1} parent=0 // pred_check_branch
    %4387 = sbr.rel (0) target = $region28
  $region27: #{eig_layer.1} parent=0 // pred_region
    _
  $region28: #{eig_layer.1} parent=0 // pred_fallthru
    _

</llo_original>
